<compile_context>
chip_gen: v7x
topology: tpu7x:2x2x1
jax: 0.10.0
libtpu: 0.0.40
codegen_flags: <defaults>
</compile_context>

<pallas_src>
import jax
import jax.numpy as jnp
from jax import lax
from jax.experimental import pallas as pl
from jax.experimental.pallas import tpu as pltpu

BATCH_TILE = 8      # images per grid step (batch is zero-padded to a multiple)
CPAD = 128          # lane-dense padded output-channel / logits width


# ----------------------------------------------------------------------------
# Pallas kernels
# ----------------------------------------------------------------------------
def _conv_relu_pool_kernel(p_ref, w_ref, b_ref, o_ref):
    """Fused conv-as-matmul + bias + ReLU + 2x2 max-pool.

    p_ref : (4, M, K)  im2col patches, leading axis = pool-window corner
    w_ref : (K, CPAD)  packed conv weights (Cout zero-padded to 128)
    b_ref : (1, CPAD)  bias
    o_ref : (M, CPAD)  pooled NHWC activations (channel-padded, lane-dense)
    """
    w = w_ref[...]

    def corner(c):
        return jnp.dot(p_ref[c], w, preferred_element_type=jnp.float32)

    m = jnp.maximum(jnp.maximum(corner(0), corner(1)),
                    jnp.maximum(corner(2), corner(3)))
    # max-pool commutes with (+bias) and with the monotonic ReLU, so apply
    # them once after the 4-way max.
    o_ref[...] = jnp.maximum(m + b_ref[...], 0.0).astype(o_ref.dtype)


def _fc_kernel(x_ref, w_ref, b_ref, o_ref):
    acc = jnp.dot(x_ref[...], w_ref[...], preferred_element_type=jnp.float32)
    o_ref[...] = (acc + b_ref[...]).astype(o_ref.dtype)


def conv_relu_pool(patches, wmat, bias, m_tile):
    """patches: (4, M, K); wmat: (K, CPAD); bias: (1, CPAD) -> (M, CPAD)."""
    _, M, K = patches.shape
    C = wmat.shape[1]
    return pl.pallas_call(
        _conv_relu_pool_kernel,
        out_shape=jax.ShapeDtypeStruct((M, C), jnp.float32),
        grid_spec=pltpu.PrefetchScalarGridSpec(
            num_scalar_prefetch=0,
            grid=(M // m_tile,),
            in_specs=[
                pl.BlockSpec((4, m_tile, K), lambda i: (0, i, 0)),
                pl.BlockSpec((K, C), lambda i: (0, 0)),
                pl.BlockSpec((1, C), lambda i: (0, 0)),
            ],
            out_specs=pl.BlockSpec((m_tile, C), lambda i: (i, 0)),
        ),
        compiler_params=pltpu.CompilerParams(
            dimension_semantics=("parallel",)),
    )(patches, wmat, bias)


def fc_forward(x, wmat, bias, m_tile):
    """x: (M, K); wmat: (K, CPAD); bias: (1, CPAD) -> (M, CPAD)."""
    M, K = x.shape
    C = wmat.shape[1]
    return pl.pallas_call(
        _fc_kernel,
        out_shape=jax.ShapeDtypeStruct((M, C), jnp.float32),
        grid_spec=pltpu.PrefetchScalarGridSpec(
            num_scalar_prefetch=0,
            grid=(M // m_tile,),
            in_specs=[
                pl.BlockSpec((m_tile, K), lambda i: (i, 0)),
                pl.BlockSpec((K, C), lambda i: (0, 0)),
                pl.BlockSpec((1, C), lambda i: (0, 0)),
            ],
            out_specs=pl.BlockSpec((m_tile, C), lambda i: (i, 0)),
        ),
        compiler_params=pltpu.CompilerParams(
            dimension_semantics=("parallel",)),
    )(x, wmat, bias)


# ----------------------------------------------------------------------------
# Wrapper glue (all fused inside one jit)
# ----------------------------------------------------------------------------
def _im2col_pooled(x, kh, kw):
    """x: (N, H, W, Cin) -> (4, N*(Ho//2)*(Wo//2), kh*kw*Cin).

    Leading axis indexes the 2x2 pool-window corner (dy*2+dx); rows within a
    corner are ordered (b, y', x'), i.e. the pooled-output NHWC row order.
    Feature order is (i*kw + j)*Cin + ci, matching the packed weights.
    """
    N, H, W, Cin = x.shape
    Ho, Wo = H - kh + 1, W - kw + 1
    cols = [x[:, i:i + Ho, j:j + Wo, :] for i in range(kh) for j in range(kw)]
    p = jnp.concatenate(cols, axis=-1)                      # (N, Ho, Wo, K)
    K = kh * kw * Cin
    p = p.reshape(N, Ho // 2, 2, Wo // 2, 2, K)
    p = jnp.transpose(p, (2, 4, 0, 1, 3, 5))                # (2, 2, N, Ho/2, Wo/2, K)
    return p.reshape(4, N * (Ho // 2) * (Wo // 2), K)


@jax.jit
def net_forward(x_nchw, packed):
    """Forward pass matching the PyTorch Net.  x_nchw: (N, 1, 28, 28) f32."""
    N = x_nchw.shape[0]
    npad = ((N + BATCH_TILE - 1) // BATCH_TILE) * BATCH_TILE
    x = jnp.transpose(x_nchw, (0, 2, 3, 1)).astype(jnp.float32)   # NCHW -> NHWC
    if npad != N:
        x = jnp.pad(x, ((0, npad - N), (0, 0), (0, 0), (0, 0)))

    # Stage 1: conv1 (5x5, 1->6) + ReLU + pool2  -> (npad*12*12, 128)
    p1 = _im2col_pooled(x, 5, 5)                                  # (4, npad*144, 25)
    y1 = conv_relu_pool(p1, packed["w1"], packed["b1"], BATCH_TILE * 144)

    # Stage 2: conv2 (5x5, 6->16) + ReLU + pool2 -> (npad*4*4, 128)
    x2 = y1.reshape(npad, 12, 12, CPAD)[..., :6]
    p2 = _im2col_pooled(x2, 5, 5)                                 # (4, npad*16, 150)
    y2 = conv_relu_pool(p2, packed["w2"], packed["b2"], BATCH_TILE * 16)

    # FC: NHWC flatten; the NCHW view(-1, 256) order is baked into packed["wf"].
    feats = y2.reshape(npad, 4, 4, CPAD)[..., :16].reshape(npad, 16 * 4 * 4)
    out = fc_forward(feats, packed["wf"], packed["bf"], BATCH_TILE)
    return out[:N, :10]


# ----------------------------------------------------------------------------
# One-time weight packing (done outside the jitted forward)
# ----------------------------------------------------------------------------
def pack_params(p):
    def pad_cols(a, n=CPAD):
        return jnp.pad(a, ((0, 0), (0, n - a.shape[1])))

    # conv weights (Cout, Cin, kh, kw) -> (kh*kw*Cin, Cout), feature order
    # (i*kw + j)*Cin + ci, then zero-pad Cout -> 128 for lane-dense stores.
    w1 = jnp.transpose(p["conv1_w"], (2, 3, 1, 0)).reshape(25, 6)
    w2 = jnp.transpose(p["conv2_w"], (2, 3, 1, 0)).reshape(150, 16)
    # fc weight (10, 256) expects NCHW-flattened features; permute its rows so
    # it consumes the NHWC-flattened activations directly, then pad 10 -> 128.
    wf = jnp.transpose(p["fc_w"].reshape(10, 16, 4, 4), (0, 2, 3, 1))
    wf = wf.reshape(10, 256).T                                    # (256, 10)
    return {
        "w1": pad_cols(w1), "b1": pad_cols(p["conv1_b"].reshape(1, 6)),
        "w2": pad_cols(w2), "b2": pad_cols(p["conv2_b"].reshape(1, 16)),
        "wf": pad_cols(wf), "bf": pad_cols(p["fc_b"].reshape(1, 10)),
    }


# ----------------------------------------------------------------------------
# Deterministic parameter init (PyTorch-style uniform(-1/sqrt(fan_in), +..))
# ----------------------------------------------------------------------------
def init_params(key):
    ks = jax.random.split(key, 6)

    def u(k, shape, fan_in):
        bound = 1.0 / jnp.sqrt(fan_in)
        return jax.random.uniform(k, shape, jnp.float32, -bound, bound)

    return {
        "conv1_w": u(ks[0], (6, 1, 5, 5), 1 * 5 * 5),
        "conv1_b": u(ks[1], (6,), 1 * 5 * 5),
        "conv2_w": u(ks[2], (16, 6, 5, 5), 6 * 5 * 5),
        "conv2_b": u(ks[3], (16,), 6 * 5 * 5),
        "fc_w":    u(ks[4], (10, 256), 256),
        "fc_b":    u(ks[5], (10,), 256),
    }


# ----------------------------------------------------------------------------
# Pure-JAX reference (for correctness check)
# ----------------------------------------------------------------------------
def net_reference(x_nchw, p):
    dn = ("NCHW", "OIHW", "NCHW")

    def conv(x, w, b):
        y = lax.conv_general_dilated(x, w, (1, 1), "VALID", dimension_numbers=dn)
        return jnp.maximum(y + b.reshape(1, -1, 1, 1), 0.0)

    def pool(x):
        return lax.reduce_window(x, -jnp.inf, lax.max,
                                 (1, 1, 2, 2), (1, 1, 2, 2), "VALID")

    y = pool(conv(x_nchw, p["conv1_w"], p["conv1_b"]))
    y = pool(conv(y, p["conv2_w"], p["conv2_b"]))
    y = y.reshape(x_nchw.shape[0], 16 * 4 * 4)
    return y @ p["fc_w"].T + p["fc_b"]


if __name__ == "__main__":
    key = jax.random.PRNGKey(0)
    k_x, k_p = jax.random.split(key)
    x = jax.random.normal(k_x, (2, 1, 28, 28), jnp.float32)   # (N, C, H, W)
    params = init_params(k_p)
    packed = pack_params(params)      # packed/padded once, outside the jit

    out = jax.block_until_ready(net_forward(x, packed))
    ref = jax.block_until_ready(net_reference(x, params))

    assert out.shape == (2, 10), out.shape
    assert jnp.allclose(out, ref, rtol=1e-3, atol=1e-3), (
        "mismatch vs reference", float(jnp.max(jnp.abs(out - ref))))
    print("KERNEL_OK")
</pallas_src>

<mosaic_0001>
module attributes {stable_mosaic.version = 11 : i64} {
  func.func @_conv_relu_pool_kernel(%arg0: i32, %arg1: memref<4x1152x25xf32, #tpu.memory_space<vmem>>, %arg2: memref<25x128xf32, #tpu.memory_space<vmem>>, %arg3: memref<1x128xf32, #tpu.memory_space<vmem>>, %arg4: memref<1152x128xf32, #tpu.memory_space<vmem>>) attributes {dimension_semantics = [#tpu.dimension_semantics<parallel>], iteration_bounds = array<i64: 1>, scalar_prefetch = 0 : i64, scratch_operands = 0 : i64, tpu.core_type = #tpu.core_type<tc>, window_params = [{transform_indices = @transform_0, window_bounds = array<i64: 4, 1152, 25>}, {pipeline_mode = #tpu.pipeline_mode<synchronous>, transform_indices = @transform_1, window_bounds = array<i64: 25, 128>}, {pipeline_mode = #tpu.pipeline_mode<synchronous>, transform_indices = @transform_2, window_bounds = array<i64: 1, 128>}, {transform_indices = @transform_3, window_bounds = array<i64: 1152, 128>}]} {
    %c0 = arith.constant 0 : index
    %c0_0 = arith.constant 0 : index
    %0 = vector.load %arg2[%c0, %c0_0] : memref<25x128xf32, #tpu.memory_space<vmem>>, vector<25x128xf32>
    %c0_1 = arith.constant 0 : index
    %c0_2 = arith.constant 0 : index
    %c0_3 = arith.constant 0 : index
    %1 = vector.load %arg1[%c0_1, %c0_2, %c0_3] : memref<4x1152x25xf32, #tpu.memory_space<vmem>>, vector<1x1152x25xf32>
    %2 = vector.shape_cast %1 : vector<1x1152x25xf32> to vector<1152x25xf32>
    %cst = arith.constant dense<0.000000e+00> : vector<1152x128xf32>
    %3 = tpu.matmul %2, %0, %cst {dimension_numbers = #tpu.dot_dimension_numbers<[1], [0], [0], [1], [0, 0, 1, 1], [], []>} : vector<1152x25xf32>, vector<25x128xf32>, vector<1152x128xf32> -> vector<1152x128xf32>
    %c1 = arith.constant 1 : index
    %c0_4 = arith.constant 0 : index
    %c0_5 = arith.constant 0 : index
    %4 = vector.load %arg1[%c1, %c0_4, %c0_5] : memref<4x1152x25xf32, #tpu.memory_space<vmem>>, vector<1x1152x25xf32>
    %5 = vector.shape_cast %4 : vector<1x1152x25xf32> to vector<1152x25xf32>
    %cst_6 = arith.constant dense<0.000000e+00> : vector<1152x128xf32>
    %6 = tpu.matmul %5, %0, %cst_6 {dimension_numbers = #tpu.dot_dimension_numbers<[1], [0], [0], [1], [0, 0, 1, 1], [], []>} : vector<1152x25xf32>, vector<25x128xf32>, vector<1152x128xf32> -> vector<1152x128xf32>
    %7 = arith.maximumf %3, %6 : vector<1152x128xf32>
    %c2 = arith.constant 2 : index
    %c0_7 = arith.constant 0 : index
    %c0_8 = arith.constant 0 : index
    %8 = vector.load %arg1[%c2, %c0_7, %c0_8] : memref<4x1152x25xf32, #tpu.memory_space<vmem>>, vector<1x1152x25xf32>
    %9 = vector.shape_cast %8 : vector<1x1152x25xf32> to vector<1152x25xf32>
    %cst_9 = arith.constant dense<0.000000e+00> : vector<1152x128xf32>
    %10 = tpu.matmul %9, %0, %cst_9 {dimension_numbers = #tpu.dot_dimension_numbers<[1], [0], [0], [1], [0, 0, 1, 1], [], []>} : vector<1152x25xf32>, vector<25x128xf32>, vector<1152x128xf32> -> vector<1152x128xf32>
    %c3 = arith.constant 3 : index
    %c0_10 = arith.constant 0 : index
    %c0_11 = arith.constant 0 : index
    %11 = vector.load %arg1[%c3, %c0_10, %c0_11] : memref<4x1152x25xf32, #tpu.memory_space<vmem>>, vector<1x1152x25xf32>
    %12 = vector.shape_cast %11 : vector<1x1152x25xf32> to vector<1152x25xf32>
    %cst_12 = arith.constant dense<0.000000e+00> : vector<1152x128xf32>
    %13 = tpu.matmul %12, %0, %cst_12 {dimension_numbers = #tpu.dot_dimension_numbers<[1], [0], [0], [1], [0, 0, 1, 1], [], []>} : vector<1152x25xf32>, vector<25x128xf32>, vector<1152x128xf32> -> vector<1152x128xf32>
    %14 = arith.maximumf %10, %13 : vector<1152x128xf32>
    %15 = arith.maximumf %7, %14 : vector<1152x128xf32>
    %c0_13 = arith.constant 0 : index
    %c0_14 = arith.constant 0 : index
    %16 = vector.load %arg3[%c0_13, %c0_14] : memref<1x128xf32, #tpu.memory_space<vmem>>, vector<1x128xf32>
    %17 = vector.broadcast %16 : vector<1x128xf32> to vector<1152x128xf32>
    %18 = arith.addf %15, %17 : vector<1152x128xf32>
    %cst_15 = arith.constant 0.000000e+00 : f32
    %19 = vector.broadcast %cst_15 : f32 to vector<1152x128xf32>
    %20 = arith.maximumf %18, %19 : vector<1152x128xf32>
    %c0_16 = arith.constant 0 : index
    %c0_17 = arith.constant 0 : index
    %21 = vector.load %arg4[%c0_16, %c0_17] : memref<1152x128xf32, #tpu.memory_space<vmem>>, vector<1152x128xf32>
    tpu.vector_store %arg4[%c0_16, %c0_17], %20 {strides = array<i32>} : memref<1152x128xf32, #tpu.memory_space<vmem>>, vector<1152x128xf32>,
    return
  }
  func.func @transform_0(%arg0: i32) -> (i32, i32, i32) {
    %c0_i32 = arith.constant 0 : i32
    %c0_i32_0 = arith.constant 0 : i32
    %c0_i32_1 = arith.constant 0 : i32
    return %c0_i32, %arg0, %c0_i32_0 : i32, i32, i32
  }
  func.func @transform_1(%arg0: i32) -> (i32, i32) {
    %c0_i32 = arith.constant 0 : i32
    %c0_i32_0 = arith.constant 0 : i32
    %c0_i32_1 = arith.constant 0 : i32
    return %c0_i32, %c0_i32_0 : i32, i32
  }
  func.func @transform_2(%arg0: i32) -> (i32, i32) {
    %c0_i32 = arith.constant 0 : i32
    %c0_i32_0 = arith.constant 0 : i32
    %c0_i32_1 = arith.constant 0 : i32
    return %c0_i32, %c0_i32_0 : i32, i32
  }
  func.func @transform_3(%arg0: i32) -> (i32, i32) {
    %c0_i32 = arith.constant 0 : i32
    %c0_i32_0 = arith.constant 0 : i32
    return %arg0, %c0_i32 : i32, i32
  }
}

module attributes {stable_mosaic.version = 11 : i64} {
  func.func @_conv_relu_pool_kernel(%arg0: i32, %arg1: memref<4x128x150xf32, #tpu.memory_space<vmem>>, %arg2: memref<150x128xf32, #tpu.memory_space<vmem>>, %arg3: memref<1x128xf32, #tpu.memory_space<vmem>>, %arg4: memref<128x128xf32, #tpu.memory_space<vmem>>) attributes {dimension_semantics = [#tpu.dimension_semantics<parallel>], iteration_bounds = array<i64: 1>, scalar_prefetch = 0 : i64, scratch_operands = 0 : i64, tpu.core_type = #tpu.core_type<tc>, window_params = [{transform_indices = @transform_0, window_bounds = array<i64: 4, 128, 150>}, {pipeline_mode = #tpu.pipeline_mode<synchronous>, transform_indices = @transform_1, window_bounds = array<i64: 150, 128>}, {pipeline_mode = #tpu.pipeline_mode<synchronous>, transform_indices = @transform_2, window_bounds = array<i64: 1, 128>}, {transform_indices = @transform_3, window_bounds = array<i64: 128, 128>}]} {
    %c0 = arith.constant 0 : index
    %c0_0 = arith.constant 0 : index
    %0 = vector.load %arg2[%c0, %c0_0] : memref<150x128xf32, #tpu.memory_space<vmem>>, vector<150x128xf32>
    %c0_1 = arith.constant 0 : index
    %c0_2 = arith.constant 0 : index
    %c0_3 = arith.constant 0 : index
    %1 = vector.load %arg1[%c0_1, %c0_2, %c0_3] : memref<4x128x150xf32, #tpu.memory_space<vmem>>, vector<1x128x150xf32>
    %2 = vector.shape_cast %1 : vector<1x128x150xf32> to vector<128x150xf32>
    %cst = arith.constant dense<0.000000e+00> : vector<128x128xf32>
    %3 = tpu.matmul %2, %0, %cst {dimension_numbers = #tpu.dot_dimension_numbers<[1], [0], [0], [1], [0, 0, 1, 1], [], []>} : vector<128x150xf32>, vector<150x128xf32>, vector<128x128xf32> -> vector<128x128xf32>
    %c1 = arith.constant 1 : index
    %c0_4 = arith.constant 0 : index
    %c0_5 = arith.constant 0 : index
    %4 = vector.load %arg1[%c1, %c0_4, %c0_5] : memref<4x128x150xf32, #tpu.memory_space<vmem>>, vector<1x128x150xf32>
    %5 = vector.shape_cast %4 : vector<1x128x150xf32> to vector<128x150xf32>
    %cst_6 = arith.constant dense<0.000000e+00> : vector<128x128xf32>
    %6 = tpu.matmul %5, %0, %cst_6 {dimension_numbers = #tpu.dot_dimension_numbers<[1], [0], [0], [1], [0, 0, 1, 1], [], []>} : vector<128x150xf32>, vector<150x128xf32>, vector<128x128xf32> -> vector<128x128xf32>
    %7 = arith.maximumf %3, %6 : vector<128x128xf32>
    %c2 = arith.constant 2 : index
    %c0_7 = arith.constant 0 : index
    %c0_8 = arith.constant 0 : index
    %8 = vector.load %arg1[%c2, %c0_7, %c0_8] : memref<4x128x150xf32, #tpu.memory_space<vmem>>, vector<1x128x150xf32>
    %9 = vector.shape_cast %8 : vector<1x128x150xf32> to vector<128x150xf32>
    %cst_9 = arith.constant dense<0.000000e+00> : vector<128x128xf32>
    %10 = tpu.matmul %9, %0, %cst_9 {dimension_numbers = #tpu.dot_dimension_numbers<[1], [0], [0], [1], [0, 0, 1, 1], [], []>} : vector<128x150xf32>, vector<150x128xf32>, vector<128x128xf32> -> vector<128x128xf32>
    %c3 = arith.constant 3 : index
    %c0_10 = arith.constant 0 : index
    %c0_11 = arith.constant 0 : index
    %11 = vector.load %arg1[%c3, %c0_10, %c0_11] : memref<4x128x150xf32, #tpu.memory_space<vmem>>, vector<1x128x150xf32>
    %12 = vector.shape_cast %11 : vector<1x128x150xf32> to vector<128x150xf32>
    %cst_12 = arith.constant dense<0.000000e+00> : vector<128x128xf32>
    %13 = tpu.matmul %12, %0, %cst_12 {dimension_numbers = #tpu.dot_dimension_numbers<[1], [0], [0], [1], [0, 0, 1, 1], [], []>} : vector<128x150xf32>, vector<150x128xf32>, vector<128x128xf32> -> vector<128x128xf32>
    %14 = arith.maximumf %10, %13 : vector<128x128xf32>
    %15 = arith.maximumf %7, %14 : vector<128x128xf32>
    %c0_13 = arith.constant 0 : index
    %c0_14 = arith.constant 0 : index
    %16 = vector.load %arg3[%c0_13, %c0_14] : memref<1x128xf32, #tpu.memory_space<vmem>>, vector<1x128xf32>
    %17 = vector.broadcast %16 : vector<1x128xf32> to vector<128x128xf32>
    %18 = arith.addf %15, %17 : vector<128x128xf32>
    %cst_15 = arith.constant 0.000000e+00 : f32
    %19 = vector.broadcast %cst_15 : f32 to vector<128x128xf32>
    %20 = arith.maximumf %18, %19 : vector<128x128xf32>
    %c0_16 = arith.constant 0 : index
    %c0_17 = arith.constant 0 : index
    %21 = vector.load %arg4[%c0_16, %c0_17] : memref<128x128xf32, #tpu.memory_space<vmem>>, vector<128x128xf32>
    tpu.vector_store %arg4[%c0_16, %c0_17], %20 {strides = array<i32>} : memref<128x128xf32, #tpu.memory_space<vmem>>, vector<128x128xf32>,
    return
  }
  func.func @transform_0(%arg0: i32) -> (i32, i32, i32) {
    %c0_i32 = arith.constant 0 : i32
    %c0_i32_0 = arith.constant 0 : i32
    %c0_i32_1 = arith.constant 0 : i32
    return %c0_i32, %arg0, %c0_i32_0 : i32, i32, i32
  }
  func.func @transform_1(%arg0: i32) -> (i32, i32) {
    %c0_i32 = arith.constant 0 : i32
    %c0_i32_0 = arith.constant 0 : i32
    %c0_i32_1 = arith.constant 0 : i32
    return %c0_i32, %c0_i32_0 : i32, i32
  }
  func.func @transform_2(%arg0: i32) -> (i32, i32) {
    %c0_i32 = arith.constant 0 : i32
    %c0_i32_0 = arith.constant 0 : i32
    %c0_i32_1 = arith.constant 0 : i32
    return %c0_i32, %c0_i32_0 : i32, i32
  }
  func.func @transform_3(%arg0: i32) -> (i32, i32) {
    %c0_i32 = arith.constant 0 : i32
    %c0_i32_0 = arith.constant 0 : i32
    return %arg0, %c0_i32 : i32, i32
  }
}

module attributes {stable_mosaic.version = 11 : i64} {
  func.func @_fc_kernel(%arg0: i32, %arg1: memref<8x256xf32, #tpu.memory_space<vmem>>, %arg2: memref<256x128xf32, #tpu.memory_space<vmem>>, %arg3: memref<1x128xf32, #tpu.memory_space<vmem>>, %arg4: memref<8x128xf32, #tpu.memory_space<vmem>>) attributes {dimension_semantics = [#tpu.dimension_semantics<parallel>], iteration_bounds = array<i64: 1>, scalar_prefetch = 0 : i64, scratch_operands = 0 : i64, tpu.core_type = #tpu.core_type<tc>, window_params = [{transform_indices = @transform_0, window_bounds = array<i64: 8, 256>}, {pipeline_mode = #tpu.pipeline_mode<synchronous>, transform_indices = @transform_1, window_bounds = array<i64: 256, 128>}, {pipeline_mode = #tpu.pipeline_mode<synchronous>, transform_indices = @transform_2, window_bounds = array<i64: 1, 128>}, {transform_indices = @transform_3, window_bounds = array<i64: 8, 128>}]} {
    %c0 = arith.constant 0 : index
    %c0_0 = arith.constant 0 : index
    %0 = vector.load %arg1[%c0, %c0_0] : memref<8x256xf32, #tpu.memory_space<vmem>>, vector<8x256xf32>
    %c0_1 = arith.constant 0 : index
    %c0_2 = arith.constant 0 : index
    %1 = vector.load %arg2[%c0_1, %c0_2] : memref<256x128xf32, #tpu.memory_space<vmem>>, vector<256x128xf32>
    %cst = arith.constant dense<0.000000e+00> : vector<8x128xf32>
    %2 = tpu.matmul %0, %1, %cst {dimension_numbers = #tpu.dot_dimension_numbers<[1], [0], [0], [1], [0, 0, 1, 1], [], []>} : vector<8x256xf32>, vector<256x128xf32>, vector<8x128xf32> -> vector<8x128xf32>
    %c0_3 = arith.constant 0 : index
    %c0_4 = arith.constant 0 : index
    %3 = vector.load %arg3[%c0_3, %c0_4] : memref<1x128xf32, #tpu.memory_space<vmem>>, vector<1x128xf32>
    %4 = vector.broadcast %3 : vector<1x128xf32> to vector<8x128xf32>
    %5 = arith.addf %2, %4 : vector<8x128xf32>
    %c0_5 = arith.constant 0 : index
    %c0_6 = arith.constant 0 : index
    %6 = vector.load %arg4[%c0_5, %c0_6] : memref<8x128xf32, #tpu.memory_space<vmem>>, vector<8x128xf32>
    tpu.vector_store %arg4[%c0_5, %c0_6], %5 {strides = array<i32>} : memref<8x128xf32, #tpu.memory_space<vmem>>, vector<8x128xf32>,
    return
  }
  func.func @transform_0(%arg0: i32) -> (i32, i32) {
    %c0_i32 = arith.constant 0 : i32
    %c0_i32_0 = arith.constant 0 : i32
    return %arg0, %c0_i32 : i32, i32
  }
  func.func @transform_1(%arg0: i32) -> (i32, i32) {
    %c0_i32 = arith.constant 0 : i32
    %c0_i32_0 = arith.constant 0 : i32
    %c0_i32_1 = arith.constant 0 : i32
    return %c0_i32, %c0_i32_0 : i32, i32
  }
  func.func @transform_2(%arg0: i32) -> (i32, i32) {
    %c0_i32 = arith.constant 0 : i32
    %c0_i32_0 = arith.constant 0 : i32
    %c0_i32_1 = arith.constant 0 : i32
    return %c0_i32, %c0_i32_0 : i32, i32
  }
  func.func @transform_3(%arg0: i32) -> (i32, i32) {
    %c0_i32 = arith.constant 0 : i32
    %c0_i32_0 = arith.constant 0 : i32
    return %arg0, %c0_i32 : i32, i32
  }
}

</mosaic_0001>

<llo_original>
// kernel: net_forward.3
$region0: #{net_forward.3}
  #allocation0 [shape = 'u32[]', space=smem, size = 0x4, offset = 0x4, fixed_abs, tag = 'smem constant byte address 0x4 - core index']
  #allocation1 [shape = 'u32[144,128]{1,0:T(1,128)}', space=vmem, size = 0x12000, scoped, tag = 'internal scratch']
  %s0 = inlined_call_operand.vmem [shape: f32[4,1152,25], index: 0, kind: input, shape index: {}]
  %s1 = inlined_call_operand.vmem [shape: f32[25,128], index: 1, kind: input, shape index: {}]
  %s2 = inlined_call_operand.vmem [shape: f32[1,128], index: 2, kind: input, shape index: {}]
  %s3 = inlined_call_operand.vmem [shape: f32[1152,128], index: 3, kind: output, shape index: {}]
  %s4 = sld [smem:[#allocation0]]
  $region22: #{net_forward.3} parent=0
    _
  %s6 = ssub.s32 1, %s4
  %s7 = scalar_select 0, %s6, %s4
  // Predicated region
  $region2: #{net_forward.3} parent=0 // pred_check
    _
  $region3: #{net_forward.3} parent=0 // pred_check_branch
    %9 = sbr.rel (0) target = $region5
  $region4: #{net_forward.3} parent=0 // pred_region
    _
  $region5: #{net_forward.3} parent=0 // pred_fallthru
    _
  // Predicated region
  $region6: #{net_forward.3} parent=0 // pred_check
    _
  $region7: #{net_forward.3} parent=0 // pred_check_branch
    %11 = sbr.rel (0) target = $region9
  $region8: #{net_forward.3} parent=0 // pred_region
    _
  $region9: #{net_forward.3} parent=0 // pred_fallthru
    _
  // Predicated region
  $region10: #{net_forward.3} parent=0 // pred_check
    _
  $region11: #{net_forward.3} parent=0 // pred_check_branch
    %13 = sbr.rel (0) target = $region13
  $region12: #{net_forward.3} parent=0 // pred_region
    _
  $region13: #{net_forward.3} parent=0 // pred_fallthru
    _
  %v14 = vld [vmem:[%s1] sm:$0xff]
  %v15 = vld [vmem:[%s1 + $0x8] sm:$0xff]
  %v16 = vld [vmem:[%s1 + $0x10] sm:$0xff]
  %v17 = vld [vmem:[%s1 + $0x18] sm:$0x1]
  %v18 = vld [vmem:[%s0] sm:$0xff]
  %v19 = vld [vmem:[%s0 + $0x8] sm:$0xff]
  %v20 = vld [vmem:[%s0 + $0x10] sm:$0xff]
  %v21 = vld [vmem:[%s0 + $0x18] sm:$0xff]
  %v22 = vld [vmem:[%s0 + $0x20] sm:$0xff]
  %v23 = vld [vmem:[%s0 + $0x28] sm:$0xff]
  %v24 = vld [vmem:[%s0 + $0x30] sm:$0xff]
  %v25 = vld [vmem:[%s0 + $0x38] sm:$0xff]
  %v26 = vld [vmem:[%s0 + $0x40] sm:$0xff]
  %v27 = vld [vmem:[%s0 + $0x48] sm:$0xff]
  %v28 = vld [vmem:[%s0 + $0x50] sm:$0xff]
  %v29 = vld [vmem:[%s0 + $0x58] sm:$0xff]
  %v30 = vld [vmem:[%s0 + $0x60] sm:$0xff]
  %v31 = vld [vmem:[%s0 + $0x68] sm:$0xff]
  %v32 = vld [vmem:[%s0 + $0x70] sm:$0xff]
  %v33 = vld [vmem:[%s0 + $0x78] sm:$0xff]
  %v34 = vld [vmem:[%s0 + $0x80] sm:$0xff]
  %v35 = vld [vmem:[%s0 + $0x88] sm:$0xff]
  %v36 = vld [vmem:[%s0 + $0x90] sm:$0xff]
  %v37 = vld [vmem:[%s0 + $0x98] sm:$0xff]
  %v38 = vld [vmem:[%s0 + $0xa0] sm:$0xff]
  %v39 = vld [vmem:[%s0 + $0xa8] sm:$0xff]
  %v40 = vld [vmem:[%s0 + $0xb0] sm:$0xff]
  %v41 = vld [vmem:[%s0 + $0xb8] sm:$0xff]
  %v42 = vld [vmem:[%s0 + $0xc0] sm:$0xff]
  %v43 = vld [vmem:[%s0 + $0xc8] sm:$0xff]
  %v44 = vld [vmem:[%s0 + $0xd0] sm:$0xff]
  %v45 = vld [vmem:[%s0 + $0xd8] sm:$0xff]
  %v46 = vld [vmem:[%s0 + $0xe0] sm:$0xff]
  %v47 = vld [vmem:[%s0 + $0xe8] sm:$0xff]
  %v48 = vld [vmem:[%s0 + $0xf0] sm:$0xff]
  %v49 = vld [vmem:[%s0 + $0xf8] sm:$0xff]
  %v50 = vld [vmem:[%s0 + $0x100] sm:$0xff]
  %v51 = vld [vmem:[%s0 + $0x108] sm:$0xff]
  %v52 = vld [vmem:[%s0 + $0x110] sm:$0xff]
  %v53 = vld [vmem:[%s0 + $0x118] sm:$0xff]
  %v54 = vld [vmem:[%s0 + $0x120] sm:$0xff]
  %v55 = vld [vmem:[%s0 + $0x128] sm:$0xff]
  %v56 = vld [vmem:[%s0 + $0x130] sm:$0xff]
  %v57 = vld [vmem:[%s0 + $0x138] sm:$0xff]
  %v58 = vld [vmem:[%s0 + $0x140] sm:$0xff]
  %v59 = vld [vmem:[%s0 + $0x148] sm:$0xff]
  %v60 = vld [vmem:[%s0 + $0x150] sm:$0xff]
  %v61 = vld [vmem:[%s0 + $0x158] sm:$0xff]
  %v62 = vld [vmem:[%s0 + $0x160] sm:$0xff]
  %v63 = vld [vmem:[%s0 + $0x168] sm:$0xff]
  %v64 = vld [vmem:[%s0 + $0x170] sm:$0xff]
  %v65 = vld [vmem:[%s0 + $0x178] sm:$0xff]
  %v66 = vld [vmem:[%s0 + $0x180] sm:$0xff]
  %v67 = vld [vmem:[%s0 + $0x188] sm:$0xff]
  %v68 = vld [vmem:[%s0 + $0x190] sm:$0xff]
  %v69 = vld [vmem:[%s0 + $0x198] sm:$0xff]
  %v70 = vld [vmem:[%s0 + $0x1a0] sm:$0xff]
  %v71 = vld [vmem:[%s0 + $0x1a8] sm:$0xff]
  %v72 = vld [vmem:[%s0 + $0x1b0] sm:$0xff]
  %v73 = vld [vmem:[%s0 + $0x1b8] sm:$0xff]
  %v74 = vld [vmem:[%s0 + $0x1c0] sm:$0xff]
  %v75 = vld [vmem:[%s0 + $0x1c8] sm:$0xff]
  %v76 = vld [vmem:[%s0 + $0x1d0] sm:$0xff]
  %v77 = vld [vmem:[%s0 + $0x1d8] sm:$0xff]
  %v78 = vld [vmem:[%s0 + $0x1e0] sm:$0xff]
  %v79 = vld [vmem:[%s0 + $0x1e8] sm:$0xff]
  %v80 = vld [vmem:[%s0 + $0x1f0] sm:$0xff]
  %v81 = vld [vmem:[%s0 + $0x1f8] sm:$0xff]
  %v82 = vld [vmem:[%s0 + $0x200] sm:$0xff]
  %v83 = vld [vmem:[%s0 + $0x208] sm:$0xff]
  %v84 = vld [vmem:[%s0 + $0x210] sm:$0xff]
  %v85 = vld [vmem:[%s0 + $0x218] sm:$0xff]
  %v86 = vld [vmem:[%s0 + $0x220] sm:$0xff]
  %v87 = vld [vmem:[%s0 + $0x228] sm:$0xff]
  %v88 = vld [vmem:[%s0 + $0x230] sm:$0xff]
  %v89 = vld [vmem:[%s0 + $0x238] sm:$0xff]
  %v90 = vld [vmem:[%s0 + $0x240] sm:$0xff]
  %v91 = vld [vmem:[%s0 + $0x248] sm:$0xff]
  %v92 = vld [vmem:[%s0 + $0x250] sm:$0xff]
  %v93 = vld [vmem:[%s0 + $0x258] sm:$0xff]
  %v94 = vld [vmem:[%s0 + $0x260] sm:$0xff]
  %v95 = vld [vmem:[%s0 + $0x268] sm:$0xff]
  %v96 = vld [vmem:[%s0 + $0x270] sm:$0xff]
  %v97 = vld [vmem:[%s0 + $0x278] sm:$0xff]
  %v98 = vld [vmem:[%s0 + $0x280] sm:$0xff]
  %v99 = vld [vmem:[%s0 + $0x288] sm:$0xff]
  %v100 = vld [vmem:[%s0 + $0x290] sm:$0xff]
  %v101 = vld [vmem:[%s0 + $0x298] sm:$0xff]
  %v102 = vld [vmem:[%s0 + $0x2a0] sm:$0xff]
  %v103 = vld [vmem:[%s0 + $0x2a8] sm:$0xff]
  %v104 = vld [vmem:[%s0 + $0x2b0] sm:$0xff]
  %v105 = vld [vmem:[%s0 + $0x2b8] sm:$0xff]
  %v106 = vld [vmem:[%s0 + $0x2c0] sm:$0xff]
  %v107 = vld [vmem:[%s0 + $0x2c8] sm:$0xff]
  %v108 = vld [vmem:[%s0 + $0x2d0] sm:$0xff]
  %v109 = vld [vmem:[%s0 + $0x2d8] sm:$0xff]
  %v110 = vld [vmem:[%s0 + $0x2e0] sm:$0xff]
  %v111 = vld [vmem:[%s0 + $0x2e8] sm:$0xff]
  %v112 = vld [vmem:[%s0 + $0x2f0] sm:$0xff]
  %v113 = vld [vmem:[%s0 + $0x2f8] sm:$0xff]
  %v114 = vld [vmem:[%s0 + $0x300] sm:$0xff]
  %v115 = vld [vmem:[%s0 + $0x308] sm:$0xff]
  %v116 = vld [vmem:[%s0 + $0x310] sm:$0xff]
  %v117 = vld [vmem:[%s0 + $0x318] sm:$0xff]
  %v118 = vld [vmem:[%s0 + $0x320] sm:$0xff]
  %v119 = vld [vmem:[%s0 + $0x328] sm:$0xff]
  %v120 = vld [vmem:[%s0 + $0x330] sm:$0xff]
  %v121 = vld [vmem:[%s0 + $0x338] sm:$0xff]
  %v122 = vld [vmem:[%s0 + $0x340] sm:$0xff]
  %v123 = vld [vmem:[%s0 + $0x348] sm:$0xff]
  %v124 = vld [vmem:[%s0 + $0x350] sm:$0xff]
  %v125 = vld [vmem:[%s0 + $0x358] sm:$0xff]
  %v126 = vld [vmem:[%s0 + $0x360] sm:$0xff]
  %v127 = vld [vmem:[%s0 + $0x368] sm:$0xff]
  %v128 = vld [vmem:[%s0 + $0x370] sm:$0xff]
  %v129 = vld [vmem:[%s0 + $0x378] sm:$0xff]
  %v130 = vld [vmem:[%s0 + $0x380] sm:$0xff]
  %v131 = vld [vmem:[%s0 + $0x388] sm:$0xff]
  %v132 = vld [vmem:[%s0 + $0x390] sm:$0xff]
  %v133 = vld [vmem:[%s0 + $0x398] sm:$0xff]
  %v134 = vld [vmem:[%s0 + $0x3a0] sm:$0xff]
  %v135 = vld [vmem:[%s0 + $0x3a8] sm:$0xff]
  %v136 = vld [vmem:[%s0 + $0x3b0] sm:$0xff]
  %v137 = vld [vmem:[%s0 + $0x3b8] sm:$0xff]
  %v138 = vld [vmem:[%s0 + $0x3c0] sm:$0xff]
  %v139 = vld [vmem:[%s0 + $0x3c8] sm:$0xff]
  %v140 = vld [vmem:[%s0 + $0x3d0] sm:$0xff]
  %v141 = vld [vmem:[%s0 + $0x3d8] sm:$0xff]
  %v142 = vld [vmem:[%s0 + $0x3e0] sm:$0xff]
  %v143 = vld [vmem:[%s0 + $0x3e8] sm:$0xff]
  %v144 = vld [vmem:[%s0 + $0x3f0] sm:$0xff]
  %v145 = vld [vmem:[%s0 + $0x3f8] sm:$0xff]
  %v146 = vld [vmem:[%s0 + $0x400] sm:$0xff]
  %v147 = vld [vmem:[%s0 + $0x408] sm:$0xff]
  %v148 = vld [vmem:[%s0 + $0x410] sm:$0xff]
  %v149 = vld [vmem:[%s0 + $0x418] sm:$0xff]
  %v150 = vld [vmem:[%s0 + $0x420] sm:$0xff]
  %v151 = vld [vmem:[%s0 + $0x428] sm:$0xff]
  %v152 = vld [vmem:[%s0 + $0x430] sm:$0xff]
  %v153 = vld [vmem:[%s0 + $0x438] sm:$0xff]
  %v154 = vld [vmem:[%s0 + $0x440] sm:$0xff]
  %v155 = vld [vmem:[%s0 + $0x448] sm:$0xff]
  %v156 = vld [vmem:[%s0 + $0x450] sm:$0xff]
  %v157 = vld [vmem:[%s0 + $0x458] sm:$0xff]
  %v158 = vld [vmem:[%s0 + $0x460] sm:$0xff]
  %v159 = vld [vmem:[%s0 + $0x468] sm:$0xff]
  %v160 = vld [vmem:[%s0 + $0x470] sm:$0xff]
  %v161 = vld [vmem:[%s0 + $0x478] sm:$0xff]
  %vm162 = vcmask 203776
  %v164 = vsel %vm162, %v18, 0
  %v167 = vsel %vm162, %v19, 0
  %v170 = vsel %vm162, %v20, 0
  %v173 = vsel %vm162, %v21, 0
  %v176 = vsel %vm162, %v22, 0
  %v179 = vsel %vm162, %v23, 0
  %v182 = vsel %vm162, %v24, 0
  %v185 = vsel %vm162, %v25, 0
  %v188 = vsel %vm162, %v26, 0
  %v191 = vsel %vm162, %v27, 0
  %v194 = vsel %vm162, %v28, 0
  %v197 = vsel %vm162, %v29, 0
  %v200 = vsel %vm162, %v30, 0
  %v203 = vsel %vm162, %v31, 0
  %v206 = vsel %vm162, %v32, 0
  %v209 = vsel %vm162, %v33, 0
  %v212 = vsel %vm162, %v34, 0
  %v215 = vsel %vm162, %v35, 0
  %v218 = vsel %vm162, %v36, 0
  %v221 = vsel %vm162, %v37, 0
  %v224 = vsel %vm162, %v38, 0
  %v227 = vsel %vm162, %v39, 0
  %v230 = vsel %vm162, %v40, 0
  %v233 = vsel %vm162, %v41, 0
  %v236 = vsel %vm162, %v42, 0
  %v239 = vsel %vm162, %v43, 0
  %v242 = vsel %vm162, %v44, 0
  %v245 = vsel %vm162, %v45, 0
  %v248 = vsel %vm162, %v46, 0
  %v251 = vsel %vm162, %v47, 0
  %v254 = vsel %vm162, %v48, 0
  %v257 = vsel %vm162, %v49, 0
  %v260 = vsel %vm162, %v50, 0
  %v263 = vsel %vm162, %v51, 0
  %v266 = vsel %vm162, %v52, 0
  %v269 = vsel %vm162, %v53, 0
  %v272 = vsel %vm162, %v54, 0
  %v275 = vsel %vm162, %v55, 0
  %v278 = vsel %vm162, %v56, 0
  %v281 = vsel %vm162, %v57, 0
  %v284 = vsel %vm162, %v58, 0
  %v287 = vsel %vm162, %v59, 0
  %v290 = vsel %vm162, %v60, 0
  %v293 = vsel %vm162, %v61, 0
  %v296 = vsel %vm162, %v62, 0
  %v299 = vsel %vm162, %v63, 0
  %v302 = vsel %vm162, %v64, 0
  %v305 = vsel %vm162, %v65, 0
  %v308 = vsel %vm162, %v66, 0
  %v311 = vsel %vm162, %v67, 0
  %v314 = vsel %vm162, %v68, 0
  %v317 = vsel %vm162, %v69, 0
  %v320 = vsel %vm162, %v70, 0
  %v323 = vsel %vm162, %v71, 0
  %v326 = vsel %vm162, %v72, 0
  %v329 = vsel %vm162, %v73, 0
  %v332 = vsel %vm162, %v74, 0
  %v335 = vsel %vm162, %v75, 0
  %v338 = vsel %vm162, %v76, 0
  %v341 = vsel %vm162, %v77, 0
  %v344 = vsel %vm162, %v78, 0
  %v347 = vsel %vm162, %v79, 0
  %v350 = vsel %vm162, %v80, 0
  %v353 = vsel %vm162, %v81, 0
  %v356 = vsel %vm162, %v82, 0
  %v359 = vsel %vm162, %v83, 0
  %v362 = vsel %vm162, %v84, 0
  %v365 = vsel %vm162, %v85, 0
  %v368 = vsel %vm162, %v86, 0
  %v371 = vsel %vm162, %v87, 0
  %v374 = vsel %vm162, %v88, 0
  %v377 = vsel %vm162, %v89, 0
  %v380 = vsel %vm162, %v90, 0
  %v383 = vsel %vm162, %v91, 0
  %v386 = vsel %vm162, %v92, 0
  %v389 = vsel %vm162, %v93, 0
  %v392 = vsel %vm162, %v94, 0
  %v395 = vsel %vm162, %v95, 0
  %v398 = vsel %vm162, %v96, 0
  %v401 = vsel %vm162, %v97, 0
  %v404 = vsel %vm162, %v98, 0
  %v407 = vsel %vm162, %v99, 0
  %v410 = vsel %vm162, %v100, 0
  %v413 = vsel %vm162, %v101, 0
  %v416 = vsel %vm162, %v102, 0
  %v419 = vsel %vm162, %v103, 0
  %v422 = vsel %vm162, %v104, 0
  %v425 = vsel %vm162, %v105, 0
  %v428 = vsel %vm162, %v106, 0
  %v431 = vsel %vm162, %v107, 0
  %v434 = vsel %vm162, %v108, 0
  %v437 = vsel %vm162, %v109, 0
  %v440 = vsel %vm162, %v110, 0
  %v443 = vsel %vm162, %v111, 0
  %v446 = vsel %vm162, %v112, 0
  %v449 = vsel %vm162, %v113, 0
  %v452 = vsel %vm162, %v114, 0
  %v455 = vsel %vm162, %v115, 0
  %v458 = vsel %vm162, %v116, 0
  %v461 = vsel %vm162, %v117, 0
  %v464 = vsel %vm162, %v118, 0
  %v467 = vsel %vm162, %v119, 0
  %v470 = vsel %vm162, %v120, 0
  %v473 = vsel %vm162, %v121, 0
  %v476 = vsel %vm162, %v122, 0
  %v479 = vsel %vm162, %v123, 0
  %v482 = vsel %vm162, %v124, 0
  %v485 = vsel %vm162, %v125, 0
  %v488 = vsel %vm162, %v126, 0
  %v491 = vsel %vm162, %v127, 0
  %v494 = vsel %vm162, %v128, 0
  %v497 = vsel %vm162, %v129, 0
  %v500 = vsel %vm162, %v130, 0
  %v503 = vsel %vm162, %v131, 0
  %v506 = vsel %vm162, %v132, 0
  %v509 = vsel %vm162, %v133, 0
  %v512 = vsel %vm162, %v134, 0
  %v515 = vsel %vm162, %v135, 0
  %v518 = vsel %vm162, %v136, 0
  %v521 = vsel %vm162, %v137, 0
  %v524 = vsel %vm162, %v138, 0
  %v527 = vsel %vm162, %v139, 0
  %v530 = vsel %vm162, %v140, 0
  %v533 = vsel %vm162, %v141, 0
  %v536 = vsel %vm162, %v142, 0
  %v539 = vsel %vm162, %v143, 0
  %v542 = vsel %vm162, %v144, 0
  %v545 = vsel %vm162, %v145, 0
  %v548 = vsel %vm162, %v146, 0
  %v551 = vsel %vm162, %v147, 0
  %v554 = vsel %vm162, %v148, 0
  %v557 = vsel %vm162, %v149, 0
  %v560 = vsel %vm162, %v150, 0
  %v563 = vsel %vm162, %v151, 0
  %v566 = vsel %vm162, %v152, 0
  %v569 = vsel %vm162, %v153, 0
  %v572 = vsel %vm162, %v154, 0
  %v575 = vsel %vm162, %v155, 0
  %v578 = vsel %vm162, %v156, 0
  %v581 = vsel %vm162, %v157, 0
  %v584 = vsel %vm162, %v158, 0
  %v587 = vsel %vm162, %v159, 0
  %v590 = vsel %vm162, %v160, 0
  %v593 = vsel %vm162, %v161, 0
  %vm595 = vcmask 1040384
  %v597 = vsel %vm595, %v17, 0
  %599 = vmatprep.subr.mxu0 0.0
  %600 = vmatpush1.msra.mxu0 %v14
  %601 = vmatprep.subr.mxu0 0.0
  %602 = vmatpush1.msra.mxu0 %v15
  %603 = vmatprep.subr.mxu0 0.0
  %604 = vmatpush1.msra.mxu0 %v16
  %605 = vmatprep.subr.mxu0 0.0
  %606 = vmatpush1.msra.mxu0 %v597
  %607 = vmatprep.subr.mxu0 0.0
  %608 = vmatpush1.msra.mxu0 0.0
  %609 = vmatprep.subr.mxu0 0.0
  %610 = vmatpush1.msra.mxu0 0.0
  %611 = vmatprep.subr.mxu0 0.0
  %612 = vmatpush1.msra.mxu0 0.0
  %613 = vmatprep.subr.mxu0 0.0
  %614 = vmatpush1.msra.mxu0 0.0
  %615 = vmatprep.subr.mxu0 0.0
  %616 = vmatpush1.msra.mxu0 0.0
  %617 = vmatprep.subr.mxu0 0.0
  %618 = vmatpush1.msra.mxu0 0.0
  %619 = vmatprep.subr.mxu0 0.0
  %620 = vmatpush1.msra.mxu0 0.0
  %621 = vmatprep.subr.mxu0 0.0
  %622 = vmatpush1.msra.mxu0 0.0
  %623 = vmatprep.subr.mxu0 0.0
  %624 = vmatpush1.msra.mxu0 0.0
  %625 = vmatprep.subr.mxu0 0.0
  %626 = vmatpush1.msra.mxu0 0.0
  %627 = vmatprep.subr.mxu0 0.0
  %628 = vmatpush1.msra.mxu0 0.0
  %629 = vmatprep.subr.mxu0 0.0
  %630 = vmatpush1.msra.mxu0 0.0
  %631 = vmatprep.subr.mxu0 0.0
  %632 = vmatpush1.msra.mxu0 0.0
  %633 = vmatprep.subr.mxu0 0.0
  %634 = vmatpush1.msra.mxu0 0.0
  %635 = vmatprep.subr.mxu0 0.0
  %636 = vmatpush1.msra.mxu0 0.0
  %637 = vmatprep.subr.mxu0 0.0
  %638 = vmatpush1.msra.mxu0 0.0
  %639 = vmatprep.subr.mxu0 0.0
  %640 = vmatpush1.msra.mxu0 0.0
  %641 = vmatprep.subr.mxu0 0.0
  %642 = vmatpush1.msra.mxu0 0.0
  %643 = vmatprep.subr.mxu0 0.0
  %644 = vmatpush1.msra.mxu0 0.0
  %645 = vmatprep.subr.mxu0 0.0
  %646 = vmatpush1.msra.mxu0 0.0
  %647 = vmatprep.subr.mxu0 0.0
  %648 = vmatpush1.msra.mxu0 0.0
  %649 = vmatprep.subr.mxu0 0.0
  %650 = vmatpush1.msra.mxu0 0.0
  %651 = vmatprep.subr.mxu0 0.0
  %652 = vmatpush1.msra.mxu0 0.0
  %653 = vmatprep.subr.mxu0 0.0
  %654 = vmatpush1.msra.mxu0 0.0
  %655 = vmatprep.subr.mxu0 0.0
  %656 = vmatpush1.msra.mxu0 0.0
  %657 = vmatprep.subr.mxu0 0.0
  %658 = vmatpush1.msra.mxu0 0.0
  %659 = vmatprep.subr.mxu0 0.0
  %660 = vmatpush1.msra.mxu0 0.0
  %661 = vmatprep.subr.mxu0 0.0
  %662 = vmatpush1.msra.mxu0 0.0
  %663 = vmatprep.mubr.f32.mxu0 0.0
  %664 = vmatmul.mubr.f32.gmra.mrb[0].mxu0 %v164
  %v665 = vpop.f32.mrb[0].mxu0
  %v666 = vadd.f32 0.0, %v665
  %v667 = vpop.f32.mrb[0].mxu0
  %668 = vmatprep.mubr.f32.mxu0 0.0
  %669 = vmatmul.mubr.f32.gmra.mrb[0].mxu0 %v167
  %v670 = vpop.f32.mrb[0].mxu0
  %v671 = vadd.f32 0.0, %v670
  %v672 = vpop.f32.mrb[0].mxu0
  %673 = vmatprep.mubr.f32.mxu0 0.0
  %674 = vmatmul.mubr.f32.gmra.mrb[0].mxu0 %v170
  %v675 = vpop.f32.mrb[0].mxu0
  %v676 = vadd.f32 0.0, %v675
  %v677 = vpop.f32.mrb[0].mxu0
  %678 = vmatprep.mubr.f32.mxu0 0.0
  %679 = vmatmul.mubr.f32.gmra.mrb[0].mxu0 %v173
  %v680 = vpop.f32.mrb[0].mxu0
  %v681 = vadd.f32 0.0, %v680
  %v682 = vpop.f32.mrb[0].mxu0
  %683 = vmatprep.mubr.f32.mxu0 0.0
  %684 = vmatmul.mubr.f32.gmra.mrb[0].mxu0 %v176
  %v685 = vpop.f32.mrb[0].mxu0
  %v686 = vadd.f32 0.0, %v685
  %v687 = vpop.f32.mrb[0].mxu0
  %688 = vmatprep.mubr.f32.mxu0 0.0
  %689 = vmatmul.mubr.f32.gmra.mrb[0].mxu0 %v179
  %v690 = vpop.f32.mrb[0].mxu0
  %v691 = vadd.f32 0.0, %v690
  %v692 = vpop.f32.mrb[0].mxu0
  %693 = vmatprep.mubr.f32.mxu0 0.0
  %694 = vmatmul.mubr.f32.gmra.mrb[0].mxu0 %v182
  %v695 = vpop.f32.mrb[0].mxu0
  %v696 = vadd.f32 0.0, %v695
  %v697 = vpop.f32.mrb[0].mxu0
  %698 = vmatprep.mubr.f32.mxu0 0.0
  %699 = vmatmul.mubr.f32.gmra.mrb[0].mxu0 %v185
  %v700 = vpop.f32.mrb[0].mxu0
  %v701 = vadd.f32 0.0, %v700
  %v702 = vpop.f32.mrb[0].mxu0
  %703 = vmatprep.mubr.f32.mxu0 0.0
  %704 = vmatmul.mubr.f32.gmra.mrb[0].mxu0 %v188
  %v705 = vpop.f32.mrb[0].mxu0
  %v706 = vadd.f32 0.0, %v705
  %v707 = vpop.f32.mrb[0].mxu0
  %708 = vmatprep.mubr.f32.mxu0 0.0
  %709 = vmatmul.mubr.f32.gmra.mrb[0].mxu0 %v191
  %v710 = vpop.f32.mrb[0].mxu0
  %v711 = vadd.f32 0.0, %v710
  %v712 = vpop.f32.mrb[0].mxu0
  %713 = vmatprep.mubr.f32.mxu0 0.0
  %714 = vmatmul.mubr.f32.gmra.mrb[0].mxu0 %v194
  %v715 = vpop.f32.mrb[0].mxu0
  %v716 = vadd.f32 0.0, %v715
  %v717 = vpop.f32.mrb[0].mxu0
  %718 = vmatprep.mubr.f32.mxu0 0.0
  %719 = vmatmul.mubr.f32.gmra.mrb[0].mxu0 %v197
  %v720 = vpop.f32.mrb[0].mxu0
  %v721 = vadd.f32 0.0, %v720
  %v722 = vpop.f32.mrb[0].mxu0
  %723 = vmatprep.mubr.f32.mxu0 0.0
  %724 = vmatmul.mubr.f32.gmra.mrb[0].mxu0 %v200
  %v725 = vpop.f32.mrb[0].mxu0
  %v726 = vadd.f32 0.0, %v725
  %v727 = vpop.f32.mrb[0].mxu0
  %728 = vmatprep.mubr.f32.mxu0 0.0
  %729 = vmatmul.mubr.f32.gmra.mrb[0].mxu0 %v203
  %v730 = vpop.f32.mrb[0].mxu0
  %v731 = vadd.f32 0.0, %v730
  %v732 = vpop.f32.mrb[0].mxu0
  %733 = vmatprep.mubr.f32.mxu0 0.0
  %734 = vmatmul.mubr.f32.gmra.mrb[0].mxu0 %v206
  %v735 = vpop.f32.mrb[0].mxu0
  %v736 = vadd.f32 0.0, %v735
  %v737 = vpop.f32.mrb[0].mxu0
  %738 = vmatprep.mubr.f32.mxu0 0.0
  %739 = vmatmul.mubr.f32.gmra.mrb[0].mxu0 %v209
  %v740 = vpop.f32.mrb[0].mxu0
  %v741 = vadd.f32 0.0, %v740
  %v742 = vpop.f32.mrb[0].mxu0
  %743 = vmatprep.mubr.f32.mxu0 0.0
  %744 = vmatmul.mubr.f32.gmra.mrb[0].mxu0 %v212
  %v745 = vpop.f32.mrb[0].mxu0
  %v746 = vadd.f32 0.0, %v745
  %v747 = vpop.f32.mrb[0].mxu0
  %748 = vmatprep.mubr.f32.mxu0 0.0
  %749 = vmatmul.mubr.f32.gmra.mrb[0].mxu0 %v215
  %v750 = vpop.f32.mrb[0].mxu0
  %v751 = vadd.f32 0.0, %v750
  %v752 = vpop.f32.mrb[0].mxu0
  %753 = vmatprep.mubr.f32.mxu0 0.0
  %754 = vmatmul.mubr.f32.gmra.mrb[0].mxu0 %v218
  %v755 = vpop.f32.mrb[0].mxu0
  %v756 = vadd.f32 0.0, %v755
  %v757 = vpop.f32.mrb[0].mxu0
  %758 = vmatprep.mubr.f32.mxu0 0.0
  %759 = vmatmul.mubr.f32.gmra.mrb[0].mxu0 %v221
  %v760 = vpop.f32.mrb[0].mxu0
  %v761 = vadd.f32 0.0, %v760
  %v762 = vpop.f32.mrb[0].mxu0
  %763 = vmatprep.mubr.f32.mxu0 0.0
  %764 = vmatmul.mubr.f32.gmra.mrb[0].mxu0 %v224
  %v765 = vpop.f32.mrb[0].mxu0
  %v766 = vadd.f32 0.0, %v765
  %v767 = vpop.f32.mrb[0].mxu0
  %768 = vmatprep.mubr.f32.mxu0 0.0
  %769 = vmatmul.mubr.f32.gmra.mrb[0].mxu0 %v227
  %v770 = vpop.f32.mrb[0].mxu0
  %v771 = vadd.f32 0.0, %v770
  %v772 = vpop.f32.mrb[0].mxu0
  %773 = vmatprep.mubr.f32.mxu0 0.0
  %774 = vmatmul.mubr.f32.gmra.mrb[0].mxu0 %v230
  %v775 = vpop.f32.mrb[0].mxu0
  %v776 = vadd.f32 0.0, %v775
  %v777 = vpop.f32.mrb[0].mxu0
  %778 = vmatprep.mubr.f32.mxu0 0.0
  %779 = vmatmul.mubr.f32.gmra.mrb[0].mxu0 %v233
  %v780 = vpop.f32.mrb[0].mxu0
  %v781 = vadd.f32 0.0, %v780
  %v782 = vpop.f32.mrb[0].mxu0
  %783 = vmatprep.mubr.f32.mxu0 0.0
  %784 = vmatmul.mubr.f32.gmra.mrb[0].mxu0 %v236
  %v785 = vpop.f32.mrb[0].mxu0
  %v786 = vadd.f32 0.0, %v785
  %v787 = vpop.f32.mrb[0].mxu0
  %788 = vmatprep.mubr.f32.mxu0 0.0
  %789 = vmatmul.mubr.f32.gmra.mrb[0].mxu0 %v239
  %v790 = vpop.f32.mrb[0].mxu0
  %v791 = vadd.f32 0.0, %v790
  %v792 = vpop.f32.mrb[0].mxu0
  %793 = vmatprep.mubr.f32.mxu0 0.0
  %794 = vmatmul.mubr.f32.gmra.mrb[0].mxu0 %v242
  %v795 = vpop.f32.mrb[0].mxu0
  %v796 = vadd.f32 0.0, %v795
  %v797 = vpop.f32.mrb[0].mxu0
  %798 = vmatprep.mubr.f32.mxu0 0.0
  %799 = vmatmul.mubr.f32.gmra.mrb[0].mxu0 %v245
  %v800 = vpop.f32.mrb[0].mxu0
  %v801 = vadd.f32 0.0, %v800
  %v802 = vpop.f32.mrb[0].mxu0
  %803 = vmatprep.mubr.f32.mxu0 0.0
  %804 = vmatmul.mubr.f32.gmra.mrb[0].mxu0 %v248
  %v805 = vpop.f32.mrb[0].mxu0
  %v806 = vadd.f32 0.0, %v805
  %v807 = vpop.f32.mrb[0].mxu0
  %808 = vmatprep.mubr.f32.mxu0 0.0
  %809 = vmatmul.mubr.f32.gmra.mrb[0].mxu0 %v251
  %v810 = vpop.f32.mrb[0].mxu0
  %v811 = vadd.f32 0.0, %v810
  %v812 = vpop.f32.mrb[0].mxu0
  %813 = vmatprep.mubr.f32.mxu0 0.0
  %814 = vmatmul.mubr.f32.gmra.mrb[0].mxu0 %v254
  %v815 = vpop.f32.mrb[0].mxu0
  %v816 = vadd.f32 0.0, %v815
  %v817 = vpop.f32.mrb[0].mxu0
  %818 = vmatprep.mubr.f32.mxu0 0.0
  %819 = vmatmul.mubr.f32.gmra.mrb[0].mxu0 %v257
  %v820 = vpop.f32.mrb[0].mxu0
  %v821 = vadd.f32 0.0, %v820
  %v822 = vpop.f32.mrb[0].mxu0
  %823 = vmatprep.mubr.f32.mxu0 0.0
  %824 = vmatmul.mubr.f32.gmra.mrb[0].mxu0 %v260
  %v825 = vpop.f32.mrb[0].mxu0
  %v826 = vadd.f32 0.0, %v825
  %v827 = vpop.f32.mrb[0].mxu0
  %828 = vmatprep.mubr.f32.mxu0 0.0
  %829 = vmatmul.mubr.f32.gmra.mrb[0].mxu0 %v263
  %v830 = vpop.f32.mrb[0].mxu0
  %v831 = vadd.f32 0.0, %v830
  %v832 = vpop.f32.mrb[0].mxu0
  %833 = vmatprep.mubr.f32.mxu0 0.0
  %834 = vmatmul.mubr.f32.gmra.mrb[0].mxu0 %v266
  %v835 = vpop.f32.mrb[0].mxu0
  %v836 = vadd.f32 0.0, %v835
  %v837 = vpop.f32.mrb[0].mxu0
  %838 = vmatprep.mubr.f32.mxu0 0.0
  %839 = vmatmul.mubr.f32.gmra.mrb[0].mxu0 %v269
  %v840 = vpop.f32.mrb[0].mxu0
  %v841 = vadd.f32 0.0, %v840
  %v842 = vpop.f32.mrb[0].mxu0
  %843 = vmatprep.mubr.f32.mxu0 0.0
  %844 = vmatmul.mubr.f32.gmra.mrb[0].mxu0 %v272
  %v845 = vpop.f32.mrb[0].mxu0
  %v846 = vadd.f32 0.0, %v845
  %v847 = vpop.f32.mrb[0].mxu0
  %848 = vmatprep.mubr.f32.mxu0 0.0
  %849 = vmatmul.mubr.f32.gmra.mrb[0].mxu0 %v275
  %v850 = vpop.f32.mrb[0].mxu0
  %v851 = vadd.f32 0.0, %v850
  %v852 = vpop.f32.mrb[0].mxu0
  %853 = vmatprep.mubr.f32.mxu0 0.0
  %854 = vmatmul.mubr.f32.gmra.mrb[0].mxu0 %v278
  %v855 = vpop.f32.mrb[0].mxu0
  %v856 = vadd.f32 0.0, %v855
  %v857 = vpop.f32.mrb[0].mxu0
  %858 = vmatprep.mubr.f32.mxu0 0.0
  %859 = vmatmul.mubr.f32.gmra.mrb[0].mxu0 %v281
  %v860 = vpop.f32.mrb[0].mxu0
  %v861 = vadd.f32 0.0, %v860
  %v862 = vpop.f32.mrb[0].mxu0
  %863 = vmatprep.mubr.f32.mxu0 0.0
  %864 = vmatmul.mubr.f32.gmra.mrb[0].mxu0 %v284
  %v865 = vpop.f32.mrb[0].mxu0
  %v866 = vadd.f32 0.0, %v865
  %v867 = vpop.f32.mrb[0].mxu0
  %868 = vmatprep.mubr.f32.mxu0 0.0
  %869 = vmatmul.mubr.f32.gmra.mrb[0].mxu0 %v287
  %v870 = vpop.f32.mrb[0].mxu0
  %v871 = vadd.f32 0.0, %v870
  %v872 = vpop.f32.mrb[0].mxu0
  %873 = vmatprep.mubr.f32.mxu0 0.0
  %874 = vmatmul.mubr.f32.gmra.mrb[0].mxu0 %v290
  %v875 = vpop.f32.mrb[0].mxu0
  %v876 = vadd.f32 0.0, %v875
  %v877 = vpop.f32.mrb[0].mxu0
  %878 = vmatprep.mubr.f32.mxu0 0.0
  %879 = vmatmul.mubr.f32.gmra.mrb[0].mxu0 %v293
  %v880 = vpop.f32.mrb[0].mxu0
  %v881 = vadd.f32 0.0, %v880
  %v882 = vpop.f32.mrb[0].mxu0
  %883 = vmatprep.mubr.f32.mxu0 0.0
  %884 = vmatmul.mubr.f32.gmra.mrb[0].mxu0 %v296
  %v885 = vpop.f32.mrb[0].mxu0
  %v886 = vadd.f32 0.0, %v885
  %v887 = vpop.f32.mrb[0].mxu0
  %888 = vmatprep.mubr.f32.mxu0 0.0
  %889 = vmatmul.mubr.f32.gmra.mrb[0].mxu0 %v299
  %v890 = vpop.f32.mrb[0].mxu0
  %v891 = vadd.f32 0.0, %v890
  %v892 = vpop.f32.mrb[0].mxu0
  %893 = vmatprep.mubr.f32.mxu0 0.0
  %894 = vmatmul.mubr.f32.gmra.mrb[0].mxu0 %v302
  %v895 = vpop.f32.mrb[0].mxu0
  %v896 = vadd.f32 0.0, %v895
  %v897 = vpop.f32.mrb[0].mxu0
  %898 = vmatprep.mubr.f32.mxu0 0.0
  %899 = vmatmul.mubr.f32.gmra.mrb[0].mxu0 %v305
  %v900 = vpop.f32.mrb[0].mxu0
  %v901 = vadd.f32 0.0, %v900
  %v902 = vpop.f32.mrb[0].mxu0
  %903 = vmatprep.mubr.f32.mxu0 0.0
  %904 = vmatmul.mubr.f32.gmra.mrb[0].mxu0 %v308
  %v905 = vpop.f32.mrb[0].mxu0
  %v906 = vadd.f32 0.0, %v905
  %v907 = vpop.f32.mrb[0].mxu0
  %908 = vmatprep.mubr.f32.mxu0 0.0
  %909 = vmatmul.mubr.f32.gmra.mrb[0].mxu0 %v311
  %v910 = vpop.f32.mrb[0].mxu0
  %v911 = vadd.f32 0.0, %v910
  %v912 = vpop.f32.mrb[0].mxu0
  %913 = vmatprep.mubr.f32.mxu0 0.0
  %914 = vmatmul.mubr.f32.gmra.mrb[0].mxu0 %v314
  %v915 = vpop.f32.mrb[0].mxu0
  %v916 = vadd.f32 0.0, %v915
  %v917 = vpop.f32.mrb[0].mxu0
  %918 = vmatprep.mubr.f32.mxu0 0.0
  %919 = vmatmul.mubr.f32.gmra.mrb[0].mxu0 %v317
  %v920 = vpop.f32.mrb[0].mxu0
  %v921 = vadd.f32 0.0, %v920
  %v922 = vpop.f32.mrb[0].mxu0
  %923 = vmatprep.mubr.f32.mxu0 0.0
  %924 = vmatmul.mubr.f32.gmra.mrb[0].mxu0 %v320
  %v925 = vpop.f32.mrb[0].mxu0
  %v926 = vadd.f32 0.0, %v925
  %v927 = vpop.f32.mrb[0].mxu0
  %928 = vmatprep.mubr.f32.mxu0 0.0
  %929 = vmatmul.mubr.f32.gmra.mrb[0].mxu0 %v323
  %v930 = vpop.f32.mrb[0].mxu0
  %v931 = vadd.f32 0.0, %v930
  %v932 = vpop.f32.mrb[0].mxu0
  %933 = vmatprep.mubr.f32.mxu0 0.0
  %934 = vmatmul.mubr.f32.gmra.mrb[0].mxu0 %v326
  %v935 = vpop.f32.mrb[0].mxu0
  %v936 = vadd.f32 0.0, %v935
  %v937 = vpop.f32.mrb[0].mxu0
  %938 = vmatprep.mubr.f32.mxu0 0.0
  %939 = vmatmul.mubr.f32.gmra.mrb[0].mxu0 %v329
  %v940 = vpop.f32.mrb[0].mxu0
  %v941 = vadd.f32 0.0, %v940
  %v942 = vpop.f32.mrb[0].mxu0
  %943 = vmatprep.mubr.f32.mxu0 0.0
  %944 = vmatmul.mubr.f32.gmra.mrb[0].mxu0 %v332
  %v945 = vpop.f32.mrb[0].mxu0
  %v946 = vadd.f32 0.0, %v945
  %v947 = vpop.f32.mrb[0].mxu0
  %948 = vmatprep.mubr.f32.mxu0 0.0
  %949 = vmatmul.mubr.f32.gmra.mrb[0].mxu0 %v335
  %v950 = vpop.f32.mrb[0].mxu0
  %v951 = vadd.f32 0.0, %v950
  %v952 = vpop.f32.mrb[0].mxu0
  %953 = vmatprep.mubr.f32.mxu0 0.0
  %954 = vmatmul.mubr.f32.gmra.mrb[0].mxu0 %v338
  %v955 = vpop.f32.mrb[0].mxu0
  %v956 = vadd.f32 0.0, %v955
  %v957 = vpop.f32.mrb[0].mxu0
  %958 = vmatprep.mubr.f32.mxu0 0.0
  %959 = vmatmul.mubr.f32.gmra.mrb[0].mxu0 %v341
  %v960 = vpop.f32.mrb[0].mxu0
  %v961 = vadd.f32 0.0, %v960
  %v962 = vpop.f32.mrb[0].mxu0
  %963 = vmatprep.mubr.f32.mxu0 0.0
  %964 = vmatmul.mubr.f32.gmra.mrb[0].mxu0 %v344
  %v965 = vpop.f32.mrb[0].mxu0
  %v966 = vadd.f32 0.0, %v965
  %v967 = vpop.f32.mrb[0].mxu0
  %968 = vmatprep.mubr.f32.mxu0 0.0
  %969 = vmatmul.mubr.f32.gmra.mrb[0].mxu0 %v347
  %v970 = vpop.f32.mrb[0].mxu0
  %v971 = vadd.f32 0.0, %v970
  %v972 = vpop.f32.mrb[0].mxu0
  %973 = vmatprep.mubr.f32.mxu0 0.0
  %974 = vmatmul.mubr.f32.gmra.mrb[0].mxu0 %v350
  %v975 = vpop.f32.mrb[0].mxu0
  %v976 = vadd.f32 0.0, %v975
  %v977 = vpop.f32.mrb[0].mxu0
  %978 = vmatprep.mubr.f32.mxu0 0.0
  %979 = vmatmul.mubr.f32.gmra.mrb[0].mxu0 %v353
  %v980 = vpop.f32.mrb[0].mxu0
  %v981 = vadd.f32 0.0, %v980
  %v982 = vpop.f32.mrb[0].mxu0
  %983 = vmatprep.mubr.f32.mxu0 0.0
  %984 = vmatmul.mubr.f32.gmra.mrb[0].mxu0 %v356
  %v985 = vpop.f32.mrb[0].mxu0
  %v986 = vadd.f32 0.0, %v985
  %v987 = vpop.f32.mrb[0].mxu0
  %988 = vmatprep.mubr.f32.mxu0 0.0
  %989 = vmatmul.mubr.f32.gmra.mrb[0].mxu0 %v359
  %v990 = vpop.f32.mrb[0].mxu0
  %v991 = vadd.f32 0.0, %v990
  %v992 = vpop.f32.mrb[0].mxu0
  %993 = vmatprep.mubr.f32.mxu0 0.0
  %994 = vmatmul.mubr.f32.gmra.mrb[0].mxu0 %v362
  %v995 = vpop.f32.mrb[0].mxu0
  %v996 = vadd.f32 0.0, %v995
  %v997 = vpop.f32.mrb[0].mxu0
  %998 = vmatprep.mubr.f32.mxu0 0.0
  %999 = vmatmul.mubr.f32.gmra.mrb[0].mxu0 %v365
  %v1000 = vpop.f32.mrb[0].mxu0
  %v1001 = vadd.f32 0.0, %v1000
  %v1002 = vpop.f32.mrb[0].mxu0
  %1003 = vmatprep.mubr.f32.mxu0 0.0
  %1004 = vmatmul.mubr.f32.gmra.mrb[0].mxu0 %v368
  %v1005 = vpop.f32.mrb[0].mxu0
  %v1006 = vadd.f32 0.0, %v1005
  %v1007 = vpop.f32.mrb[0].mxu0
  %1008 = vmatprep.mubr.f32.mxu0 0.0
  %1009 = vmatmul.mubr.f32.gmra.mrb[0].mxu0 %v371
  %v1010 = vpop.f32.mrb[0].mxu0
  %v1011 = vadd.f32 0.0, %v1010
  %v1012 = vpop.f32.mrb[0].mxu0
  %1013 = vmatprep.mubr.f32.mxu0 0.0
  %1014 = vmatmul.mubr.f32.gmra.mrb[0].mxu0 %v374
  %v1015 = vpop.f32.mrb[0].mxu0
  %v1016 = vadd.f32 0.0, %v1015
  %v1017 = vpop.f32.mrb[0].mxu0
  %1018 = vmatprep.mubr.f32.mxu0 0.0
  %1019 = vmatmul.mubr.f32.gmra.mrb[0].mxu0 %v377
  %v1020 = vpop.f32.mrb[0].mxu0
  %v1021 = vadd.f32 0.0, %v1020
  %v1022 = vpop.f32.mrb[0].mxu0
  %1023 = vmatprep.mubr.f32.mxu0 0.0
  %1024 = vmatmul.mubr.f32.gmra.mrb[0].mxu0 %v380
  %v1025 = vpop.f32.mrb[0].mxu0
  %v1026 = vadd.f32 0.0, %v1025
  %v1027 = vpop.f32.mrb[0].mxu0
  %1028 = vmatprep.mubr.f32.mxu0 0.0
  %1029 = vmatmul.mubr.f32.gmra.mrb[0].mxu0 %v383
  %v1030 = vpop.f32.mrb[0].mxu0
  %v1031 = vadd.f32 0.0, %v1030
  %v1032 = vpop.f32.mrb[0].mxu0
  %1033 = vmatprep.mubr.f32.mxu0 0.0
  %1034 = vmatmul.mubr.f32.gmra.mrb[0].mxu0 %v386
  %v1035 = vpop.f32.mrb[0].mxu0
  %v1036 = vadd.f32 0.0, %v1035
  %v1037 = vpop.f32.mrb[0].mxu0
  %1038 = vmatprep.mubr.f32.mxu0 0.0
  %1039 = vmatmul.mubr.f32.gmra.mrb[0].mxu0 %v389
  %v1040 = vpop.f32.mrb[0].mxu0
  %v1041 = vadd.f32 0.0, %v1040
  %v1042 = vpop.f32.mrb[0].mxu0
  %1043 = vmatprep.mubr.f32.mxu0 0.0
  %1044 = vmatmul.mubr.f32.gmra.mrb[0].mxu0 %v392
  %v1045 = vpop.f32.mrb[0].mxu0
  %v1046 = vadd.f32 0.0, %v1045
  %v1047 = vpop.f32.mrb[0].mxu0
  %1048 = vmatprep.mubr.f32.mxu0 0.0
  %1049 = vmatmul.mubr.f32.gmra.mrb[0].mxu0 %v395
  %v1050 = vpop.f32.mrb[0].mxu0
  %v1051 = vadd.f32 0.0, %v1050
  %v1052 = vpop.f32.mrb[0].mxu0
  %1053 = vmatprep.mubr.f32.mxu0 0.0
  %1054 = vmatmul.mubr.f32.gmra.mrb[0].mxu0 %v398
  %v1055 = vpop.f32.mrb[0].mxu0
  %v1056 = vadd.f32 0.0, %v1055
  %v1057 = vpop.f32.mrb[0].mxu0
  %1058 = vmatprep.mubr.f32.mxu0 0.0
  %1059 = vmatmul.mubr.f32.gmra.mrb[0].mxu0 %v401
  %v1060 = vpop.f32.mrb[0].mxu0
  %v1061 = vadd.f32 0.0, %v1060
  %v1062 = vpop.f32.mrb[0].mxu0
  %1063 = vmatprep.mubr.f32.mxu0 0.0
  %1064 = vmatmul.mubr.f32.gmra.mrb[0].mxu0 %v404
  %v1065 = vpop.f32.mrb[0].mxu0
  %v1066 = vadd.f32 0.0, %v1065
  %v1067 = vpop.f32.mrb[0].mxu0
  %1068 = vmatprep.mubr.f32.mxu0 0.0
  %1069 = vmatmul.mubr.f32.gmra.mrb[0].mxu0 %v407
  %v1070 = vpop.f32.mrb[0].mxu0
  %v1071 = vadd.f32 0.0, %v1070
  %v1072 = vpop.f32.mrb[0].mxu0
  %1073 = vmatprep.mubr.f32.mxu0 0.0
  %1074 = vmatmul.mubr.f32.gmra.mrb[0].mxu0 %v410
  %v1075 = vpop.f32.mrb[0].mxu0
  %v1076 = vadd.f32 0.0, %v1075
  %v1077 = vpop.f32.mrb[0].mxu0
  %1078 = vmatprep.mubr.f32.mxu0 0.0
  %1079 = vmatmul.mubr.f32.gmra.mrb[0].mxu0 %v413
  %v1080 = vpop.f32.mrb[0].mxu0
  %v1081 = vadd.f32 0.0, %v1080
  %v1082 = vpop.f32.mrb[0].mxu0
  %1083 = vmatprep.mubr.f32.mxu0 0.0
  %1084 = vmatmul.mubr.f32.gmra.mrb[0].mxu0 %v416
  %v1085 = vpop.f32.mrb[0].mxu0
  %v1086 = vadd.f32 0.0, %v1085
  %v1087 = vpop.f32.mrb[0].mxu0
  %1088 = vmatprep.mubr.f32.mxu0 0.0
  %1089 = vmatmul.mubr.f32.gmra.mrb[0].mxu0 %v419
  %v1090 = vpop.f32.mrb[0].mxu0
  %v1091 = vadd.f32 0.0, %v1090
  %v1092 = vpop.f32.mrb[0].mxu0
  %1093 = vmatprep.mubr.f32.mxu0 0.0
  %1094 = vmatmul.mubr.f32.gmra.mrb[0].mxu0 %v422
  %v1095 = vpop.f32.mrb[0].mxu0
  %v1096 = vadd.f32 0.0, %v1095
  %v1097 = vpop.f32.mrb[0].mxu0
  %1098 = vmatprep.mubr.f32.mxu0 0.0
  %1099 = vmatmul.mubr.f32.gmra.mrb[0].mxu0 %v425
  %v1100 = vpop.f32.mrb[0].mxu0
  %v1101 = vadd.f32 0.0, %v1100
  %v1102 = vpop.f32.mrb[0].mxu0
  %1103 = vmatprep.mubr.f32.mxu0 0.0
  %1104 = vmatmul.mubr.f32.gmra.mrb[0].mxu0 %v428
  %v1105 = vpop.f32.mrb[0].mxu0
  %v1106 = vadd.f32 0.0, %v1105
  %v1107 = vpop.f32.mrb[0].mxu0
  %1108 = vmatprep.mubr.f32.mxu0 0.0
  %1109 = vmatmul.mubr.f32.gmra.mrb[0].mxu0 %v431
  %v1110 = vpop.f32.mrb[0].mxu0
  %v1111 = vadd.f32 0.0, %v1110
  %v1112 = vpop.f32.mrb[0].mxu0
  %1113 = vmatprep.mubr.f32.mxu0 0.0
  %1114 = vmatmul.mubr.f32.gmra.mrb[0].mxu0 %v434
  %v1115 = vpop.f32.mrb[0].mxu0
  %v1116 = vadd.f32 0.0, %v1115
  %v1117 = vpop.f32.mrb[0].mxu0
  %1118 = vmatprep.mubr.f32.mxu0 0.0
  %1119 = vmatmul.mubr.f32.gmra.mrb[0].mxu0 %v437
  %v1120 = vpop.f32.mrb[0].mxu0
  %v1121 = vadd.f32 0.0, %v1120
  %v1122 = vpop.f32.mrb[0].mxu0
  %1123 = vmatprep.mubr.f32.mxu0 0.0
  %1124 = vmatmul.mubr.f32.gmra.mrb[0].mxu0 %v440
  %v1125 = vpop.f32.mrb[0].mxu0
  %v1126 = vadd.f32 0.0, %v1125
  %v1127 = vpop.f32.mrb[0].mxu0
  %1128 = vmatprep.mubr.f32.mxu0 0.0
  %1129 = vmatmul.mubr.f32.gmra.mrb[0].mxu0 %v443
  %v1130 = vpop.f32.mrb[0].mxu0
  %v1131 = vadd.f32 0.0, %v1130
  %v1132 = vpop.f32.mrb[0].mxu0
  %1133 = vmatprep.mubr.f32.mxu0 0.0
  %1134 = vmatmul.mubr.f32.gmra.mrb[0].mxu0 %v446
  %v1135 = vpop.f32.mrb[0].mxu0
  %v1136 = vadd.f32 0.0, %v1135
  %v1137 = vpop.f32.mrb[0].mxu0
  %1138 = vmatprep.mubr.f32.mxu0 0.0
  %1139 = vmatmul.mubr.f32.gmra.mrb[0].mxu0 %v449
  %v1140 = vpop.f32.mrb[0].mxu0
  %v1141 = vadd.f32 0.0, %v1140
  %v1142 = vpop.f32.mrb[0].mxu0
  %1143 = vmatprep.mubr.f32.mxu0 0.0
  %1144 = vmatmul.mubr.f32.gmra.mrb[0].mxu0 %v452
  %v1145 = vpop.f32.mrb[0].mxu0
  %v1146 = vadd.f32 0.0, %v1145
  %v1147 = vpop.f32.mrb[0].mxu0
  %1148 = vmatprep.mubr.f32.mxu0 0.0
  %1149 = vmatmul.mubr.f32.gmra.mrb[0].mxu0 %v455
  %v1150 = vpop.f32.mrb[0].mxu0
  %v1151 = vadd.f32 0.0, %v1150
  %v1152 = vpop.f32.mrb[0].mxu0
  %1153 = vmatprep.mubr.f32.mxu0 0.0
  %1154 = vmatmul.mubr.f32.gmra.mrb[0].mxu0 %v458
  %v1155 = vpop.f32.mrb[0].mxu0
  %v1156 = vadd.f32 0.0, %v1155
  %v1157 = vpop.f32.mrb[0].mxu0
  %1158 = vmatprep.mubr.f32.mxu0 0.0
  %1159 = vmatmul.mubr.f32.gmra.mrb[0].mxu0 %v461
  %v1160 = vpop.f32.mrb[0].mxu0
  %v1161 = vadd.f32 0.0, %v1160
  %v1162 = vpop.f32.mrb[0].mxu0
  %1163 = vmatprep.mubr.f32.mxu0 0.0
  %1164 = vmatmul.mubr.f32.gmra.mrb[0].mxu0 %v464
  %v1165 = vpop.f32.mrb[0].mxu0
  %v1166 = vadd.f32 0.0, %v1165
  %v1167 = vpop.f32.mrb[0].mxu0
  %1168 = vmatprep.mubr.f32.mxu0 0.0
  %1169 = vmatmul.mubr.f32.gmra.mrb[0].mxu0 %v467
  %v1170 = vpop.f32.mrb[0].mxu0
  %v1171 = vadd.f32 0.0, %v1170
  %v1172 = vpop.f32.mrb[0].mxu0
  %1173 = vmatprep.mubr.f32.mxu0 0.0
  %1174 = vmatmul.mubr.f32.gmra.mrb[0].mxu0 %v470
  %v1175 = vpop.f32.mrb[0].mxu0
  %v1176 = vadd.f32 0.0, %v1175
  %v1177 = vpop.f32.mrb[0].mxu0
  %1178 = vmatprep.mubr.f32.mxu0 0.0
  %1179 = vmatmul.mubr.f32.gmra.mrb[0].mxu0 %v473
  %v1180 = vpop.f32.mrb[0].mxu0
  %v1181 = vadd.f32 0.0, %v1180
  %v1182 = vpop.f32.mrb[0].mxu0
  %1183 = vmatprep.mubr.f32.mxu0 0.0
  %1184 = vmatmul.mubr.f32.gmra.mrb[0].mxu0 %v476
  %v1185 = vpop.f32.mrb[0].mxu0
  %v1186 = vadd.f32 0.0, %v1185
  %v1187 = vpop.f32.mrb[0].mxu0
  %1188 = vmatprep.mubr.f32.mxu0 0.0
  %1189 = vmatmul.mubr.f32.gmra.mrb[0].mxu0 %v479
  %v1190 = vpop.f32.mrb[0].mxu0
  %v1191 = vadd.f32 0.0, %v1190
  %v1192 = vpop.f32.mrb[0].mxu0
  %1193 = vmatprep.mubr.f32.mxu0 0.0
  %1194 = vmatmul.mubr.f32.gmra.mrb[0].mxu0 %v482
  %v1195 = vpop.f32.mrb[0].mxu0
  %v1196 = vadd.f32 0.0, %v1195
  %v1197 = vpop.f32.mrb[0].mxu0
  %1198 = vmatprep.mubr.f32.mxu0 0.0
  %1199 = vmatmul.mubr.f32.gmra.mrb[0].mxu0 %v485
  %v1200 = vpop.f32.mrb[0].mxu0
  %v1201 = vadd.f32 0.0, %v1200
  %v1202 = vpop.f32.mrb[0].mxu0
  %1203 = vmatprep.mubr.f32.mxu0 0.0
  %1204 = vmatmul.mubr.f32.gmra.mrb[0].mxu0 %v488
  %v1205 = vpop.f32.mrb[0].mxu0
  %v1206 = vadd.f32 0.0, %v1205
  %v1207 = vpop.f32.mrb[0].mxu0
  %1208 = vmatprep.mubr.f32.mxu0 0.0
  %1209 = vmatmul.mubr.f32.gmra.mrb[0].mxu0 %v491
  %v1210 = vpop.f32.mrb[0].mxu0
  %v1211 = vadd.f32 0.0, %v1210
  %v1212 = vpop.f32.mrb[0].mxu0
  %1213 = vmatprep.mubr.f32.mxu0 0.0
  %1214 = vmatmul.mubr.f32.gmra.mrb[0].mxu0 %v494
  %v1215 = vpop.f32.mrb[0].mxu0
  %v1216 = vadd.f32 0.0, %v1215
  %v1217 = vpop.f32.mrb[0].mxu0
  %1218 = vmatprep.mubr.f32.mxu0 0.0
  %1219 = vmatmul.mubr.f32.gmra.mrb[0].mxu0 %v497
  %v1220 = vpop.f32.mrb[0].mxu0
  %v1221 = vadd.f32 0.0, %v1220
  %v1222 = vpop.f32.mrb[0].mxu0
  %1223 = vmatprep.mubr.f32.mxu0 0.0
  %1224 = vmatmul.mubr.f32.gmra.mrb[0].mxu0 %v500
  %v1225 = vpop.f32.mrb[0].mxu0
  %v1226 = vadd.f32 0.0, %v1225
  %v1227 = vpop.f32.mrb[0].mxu0
  %1228 = vmatprep.mubr.f32.mxu0 0.0
  %1229 = vmatmul.mubr.f32.gmra.mrb[0].mxu0 %v503
  %v1230 = vpop.f32.mrb[0].mxu0
  %v1231 = vadd.f32 0.0, %v1230
  %v1232 = vpop.f32.mrb[0].mxu0
  %1233 = vmatprep.mubr.f32.mxu0 0.0
  %1234 = vmatmul.mubr.f32.gmra.mrb[0].mxu0 %v506
  %v1235 = vpop.f32.mrb[0].mxu0
  %v1236 = vadd.f32 0.0, %v1235
  %v1237 = vpop.f32.mrb[0].mxu0
  %1238 = vmatprep.mubr.f32.mxu0 0.0
  %1239 = vmatmul.mubr.f32.gmra.mrb[0].mxu0 %v509
  %v1240 = vpop.f32.mrb[0].mxu0
  %v1241 = vadd.f32 0.0, %v1240
  %v1242 = vpop.f32.mrb[0].mxu0
  %1243 = vmatprep.mubr.f32.mxu0 0.0
  %1244 = vmatmul.mubr.f32.gmra.mrb[0].mxu0 %v512
  %v1245 = vpop.f32.mrb[0].mxu0
  %v1246 = vadd.f32 0.0, %v1245
  %v1247 = vpop.f32.mrb[0].mxu0
  %1248 = vmatprep.mubr.f32.mxu0 0.0
  %1249 = vmatmul.mubr.f32.gmra.mrb[0].mxu0 %v515
  %v1250 = vpop.f32.mrb[0].mxu0
  %v1251 = vadd.f32 0.0, %v1250
  %v1252 = vpop.f32.mrb[0].mxu0
  %1253 = vmatprep.mubr.f32.mxu0 0.0
  %1254 = vmatmul.mubr.f32.gmra.mrb[0].mxu0 %v518
  %v1255 = vpop.f32.mrb[0].mxu0
  %v1256 = vadd.f32 0.0, %v1255
  %v1257 = vpop.f32.mrb[0].mxu0
  %1258 = vmatprep.mubr.f32.mxu0 0.0
  %1259 = vmatmul.mubr.f32.gmra.mrb[0].mxu0 %v521
  %v1260 = vpop.f32.mrb[0].mxu0
  %v1261 = vadd.f32 0.0, %v1260
  %v1262 = vpop.f32.mrb[0].mxu0
  %1263 = vmatprep.mubr.f32.mxu0 0.0
  %1264 = vmatmul.mubr.f32.gmra.mrb[0].mxu0 %v524
  %v1265 = vpop.f32.mrb[0].mxu0
  %v1266 = vadd.f32 0.0, %v1265
  %v1267 = vpop.f32.mrb[0].mxu0
  %1268 = vmatprep.mubr.f32.mxu0 0.0
  %1269 = vmatmul.mubr.f32.gmra.mrb[0].mxu0 %v527
  %v1270 = vpop.f32.mrb[0].mxu0
  %v1271 = vadd.f32 0.0, %v1270
  %v1272 = vpop.f32.mrb[0].mxu0
  %1273 = vmatprep.mubr.f32.mxu0 0.0
  %1274 = vmatmul.mubr.f32.gmra.mrb[0].mxu0 %v530
  %v1275 = vpop.f32.mrb[0].mxu0
  %v1276 = vadd.f32 0.0, %v1275
  %v1277 = vpop.f32.mrb[0].mxu0
  %1278 = vmatprep.mubr.f32.mxu0 0.0
  %1279 = vmatmul.mubr.f32.gmra.mrb[0].mxu0 %v533
  %v1280 = vpop.f32.mrb[0].mxu0
  %v1281 = vadd.f32 0.0, %v1280
  %v1282 = vpop.f32.mrb[0].mxu0
  %1283 = vmatprep.mubr.f32.mxu0 0.0
  %1284 = vmatmul.mubr.f32.gmra.mrb[0].mxu0 %v536
  %v1285 = vpop.f32.mrb[0].mxu0
  %v1286 = vadd.f32 0.0, %v1285
  %v1287 = vpop.f32.mrb[0].mxu0
  %1288 = vmatprep.mubr.f32.mxu0 0.0
  %1289 = vmatmul.mubr.f32.gmra.mrb[0].mxu0 %v539
  %v1290 = vpop.f32.mrb[0].mxu0
  %v1291 = vadd.f32 0.0, %v1290
  %v1292 = vpop.f32.mrb[0].mxu0
  %1293 = vmatprep.mubr.f32.mxu0 0.0
  %1294 = vmatmul.mubr.f32.gmra.mrb[0].mxu0 %v542
  %v1295 = vpop.f32.mrb[0].mxu0
  %v1296 = vadd.f32 0.0, %v1295
  %v1297 = vpop.f32.mrb[0].mxu0
  %1298 = vmatprep.mubr.f32.mxu0 0.0
  %1299 = vmatmul.mubr.f32.gmra.mrb[0].mxu0 %v545
  %v1300 = vpop.f32.mrb[0].mxu0
  %v1301 = vadd.f32 0.0, %v1300
  %v1302 = vpop.f32.mrb[0].mxu0
  %1303 = vmatprep.mubr.f32.mxu0 0.0
  %1304 = vmatmul.mubr.f32.gmra.mrb[0].mxu0 %v548
  %v1305 = vpop.f32.mrb[0].mxu0
  %v1306 = vadd.f32 0.0, %v1305
  %v1307 = vpop.f32.mrb[0].mxu0
  %1308 = vmatprep.mubr.f32.mxu0 0.0
  %1309 = vmatmul.mubr.f32.gmra.mrb[0].mxu0 %v551
  %v1310 = vpop.f32.mrb[0].mxu0
  %v1311 = vadd.f32 0.0, %v1310
  %v1312 = vpop.f32.mrb[0].mxu0
  %1313 = vmatprep.mubr.f32.mxu0 0.0
  %1314 = vmatmul.mubr.f32.gmra.mrb[0].mxu0 %v554
  %v1315 = vpop.f32.mrb[0].mxu0
  %v1316 = vadd.f32 0.0, %v1315
  %v1317 = vpop.f32.mrb[0].mxu0
  %1318 = vmatprep.mubr.f32.mxu0 0.0
  %1319 = vmatmul.mubr.f32.gmra.mrb[0].mxu0 %v557
  %v1320 = vpop.f32.mrb[0].mxu0
  %v1321 = vadd.f32 0.0, %v1320
  %v1322 = vpop.f32.mrb[0].mxu0
  %1323 = vmatprep.mubr.f32.mxu0 0.0
  %1324 = vmatmul.mubr.f32.gmra.mrb[0].mxu0 %v560
  %v1325 = vpop.f32.mrb[0].mxu0
  %v1326 = vadd.f32 0.0, %v1325
  %v1327 = vpop.f32.mrb[0].mxu0
  %1328 = vmatprep.mubr.f32.mxu0 0.0
  %1329 = vmatmul.mubr.f32.gmra.mrb[0].mxu0 %v563
  %v1330 = vpop.f32.mrb[0].mxu0
  %v1331 = vadd.f32 0.0, %v1330
  %v1332 = vpop.f32.mrb[0].mxu0
  %1333 = vmatprep.mubr.f32.mxu0 0.0
  %1334 = vmatmul.mubr.f32.gmra.mrb[0].mxu0 %v566
  %v1335 = vpop.f32.mrb[0].mxu0
  %v1336 = vadd.f32 0.0, %v1335
  %v1337 = vpop.f32.mrb[0].mxu0
  %1338 = vmatprep.mubr.f32.mxu0 0.0
  %1339 = vmatmul.mubr.f32.gmra.mrb[0].mxu0 %v569
  %v1340 = vpop.f32.mrb[0].mxu0
  %v1341 = vadd.f32 0.0, %v1340
  %v1342 = vpop.f32.mrb[0].mxu0
  %1343 = vmatprep.mubr.f32.mxu0 0.0
  %1344 = vmatmul.mubr.f32.gmra.mrb[0].mxu0 %v572
  %v1345 = vpop.f32.mrb[0].mxu0
  %v1346 = vadd.f32 0.0, %v1345
  %v1347 = vpop.f32.mrb[0].mxu0
  %1348 = vmatprep.mubr.f32.mxu0 0.0
  %1349 = vmatmul.mubr.f32.gmra.mrb[0].mxu0 %v575
  %v1350 = vpop.f32.mrb[0].mxu0
  %v1351 = vadd.f32 0.0, %v1350
  %v1352 = vpop.f32.mrb[0].mxu0
  %1353 = vmatprep.mubr.f32.mxu0 0.0
  %1354 = vmatmul.mubr.f32.gmra.mrb[0].mxu0 %v578
  %v1355 = vpop.f32.mrb[0].mxu0
  %v1356 = vadd.f32 0.0, %v1355
  %v1357 = vpop.f32.mrb[0].mxu0
  %1358 = vmatprep.mubr.f32.mxu0 0.0
  %1359 = vmatmul.mubr.f32.gmra.mrb[0].mxu0 %v581
  %v1360 = vpop.f32.mrb[0].mxu0
  %v1361 = vadd.f32 0.0, %v1360
  %v1362 = vpop.f32.mrb[0].mxu0
  %1363 = vmatprep.mubr.f32.mxu0 0.0
  %1364 = vmatmul.mubr.f32.gmra.mrb[0].mxu0 %v584
  %v1365 = vpop.f32.mrb[0].mxu0
  %v1366 = vadd.f32 0.0, %v1365
  %v1367 = vpop.f32.mrb[0].mxu0
  %1368 = vmatprep.mubr.f32.mxu0 0.0
  %1369 = vmatmul.mubr.f32.gmra.mrb[0].mxu0 %v587
  %v1370 = vpop.f32.mrb[0].mxu0
  %v1371 = vadd.f32 0.0, %v1370
  %v1372 = vpop.f32.mrb[0].mxu0
  %1373 = vmatprep.mubr.f32.mxu0 0.0
  %1374 = vmatmul.mubr.f32.gmra.mrb[0].mxu0 %v590
  %v1375 = vpop.f32.mrb[0].mxu0
  %v1376 = vadd.f32 0.0, %v1375
  %v1377 = vpop.f32.mrb[0].mxu0
  %1378 = vmatprep.mubr.f32.mxu0 0.0
  %1379 = vmatmul.mubr.f32.gmra.mrb[0].mxu0 %v593
  %v1380 = vpop.f32.mrb[0].mxu0
  %v1381 = vadd.f32 0.0, %v1380
  %v1382 = vpop.f32.mrb[0].mxu0
  %1383 = vdwg.mxu0
  %s1384 = scalar_lea.vmem %s0, 1152
  %v1385 = vld [vmem:[%s1384] sm:$0xff]
  %v1386 = vld [vmem:[%s1384 + $0x8] sm:$0xff]
  %v1387 = vld [vmem:[%s1384 + $0x10] sm:$0xff]
  %v1388 = vld [vmem:[%s1384 + $0x18] sm:$0xff]
  %v1389 = vld [vmem:[%s1384 + $0x20] sm:$0xff]
  %v1390 = vld [vmem:[%s1384 + $0x28] sm:$0xff]
  %v1391 = vld [vmem:[%s1384 + $0x30] sm:$0xff]
  %v1392 = vld [vmem:[%s1384 + $0x38] sm:$0xff]
  %v1393 = vld [vmem:[%s1384 + $0x40] sm:$0xff]
  %v1394 = vld [vmem:[%s1384 + $0x48] sm:$0xff]
  %v1395 = vld [vmem:[%s1384 + $0x50] sm:$0xff]
  %v1396 = vld [vmem:[%s1384 + $0x58] sm:$0xff]
  %v1397 = vld [vmem:[%s1384 + $0x60] sm:$0xff]
  %v1398 = vld [vmem:[%s1384 + $0x68] sm:$0xff]
  %v1399 = vld [vmem:[%s1384 + $0x70] sm:$0xff]
  %v1400 = vld [vmem:[%s1384 + $0x78] sm:$0xff]
  %v1401 = vld [vmem:[%s1384 + $0x80] sm:$0xff]
  %v1402 = vld [vmem:[%s1384 + $0x88] sm:$0xff]
  %v1403 = vld [vmem:[%s1384 + $0x90] sm:$0xff]
  %v1404 = vld [vmem:[%s1384 + $0x98] sm:$0xff]
  %v1405 = vld [vmem:[%s1384 + $0xa0] sm:$0xff]
  %v1406 = vld [vmem:[%s1384 + $0xa8] sm:$0xff]
  %v1407 = vld [vmem:[%s1384 + $0xb0] sm:$0xff]
  %v1408 = vld [vmem:[%s1384 + $0xb8] sm:$0xff]
  %v1409 = vld [vmem:[%s1384 + $0xc0] sm:$0xff]
  %v1410 = vld [vmem:[%s1384 + $0xc8] sm:$0xff]
  %v1411 = vld [vmem:[%s1384 + $0xd0] sm:$0xff]
  %v1412 = vld [vmem:[%s1384 + $0xd8] sm:$0xff]
  %v1413 = vld [vmem:[%s1384 + $0xe0] sm:$0xff]
  %v1414 = vld [vmem:[%s1384 + $0xe8] sm:$0xff]
  %v1415 = vld [vmem:[%s1384 + $0xf0] sm:$0xff]
  %v1416 = vld [vmem:[%s1384 + $0xf8] sm:$0xff]
  %v1417 = vld [vmem:[%s1384 + $0x100] sm:$0xff]
  %v1418 = vld [vmem:[%s1384 + $0x108] sm:$0xff]
  %v1419 = vld [vmem:[%s1384 + $0x110] sm:$0xff]
  %v1420 = vld [vmem:[%s1384 + $0x118] sm:$0xff]
  %v1421 = vld [vmem:[%s1384 + $0x120] sm:$0xff]
  %v1422 = vld [vmem:[%s1384 + $0x128] sm:$0xff]
  %v1423 = vld [vmem:[%s1384 + $0x130] sm:$0xff]
  %v1424 = vld [vmem:[%s1384 + $0x138] sm:$0xff]
  %v1425 = vld [vmem:[%s1384 + $0x140] sm:$0xff]
  %v1426 = vld [vmem:[%s1384 + $0x148] sm:$0xff]
  %v1427 = vld [vmem:[%s1384 + $0x150] sm:$0xff]
  %v1428 = vld [vmem:[%s1384 + $0x158] sm:$0xff]
  %v1429 = vld [vmem:[%s1384 + $0x160] sm:$0xff]
  %v1430 = vld [vmem:[%s1384 + $0x168] sm:$0xff]
  %v1431 = vld [vmem:[%s1384 + $0x170] sm:$0xff]
  %v1432 = vld [vmem:[%s1384 + $0x178] sm:$0xff]
  %v1433 = vld [vmem:[%s1384 + $0x180] sm:$0xff]
  %v1434 = vld [vmem:[%s1384 + $0x188] sm:$0xff]
  %v1435 = vld [vmem:[%s1384 + $0x190] sm:$0xff]
  %v1436 = vld [vmem:[%s1384 + $0x198] sm:$0xff]
  %v1437 = vld [vmem:[%s1384 + $0x1a0] sm:$0xff]
  %v1438 = vld [vmem:[%s1384 + $0x1a8] sm:$0xff]
  %v1439 = vld [vmem:[%s1384 + $0x1b0] sm:$0xff]
  %v1440 = vld [vmem:[%s1384 + $0x1b8] sm:$0xff]
  %v1441 = vld [vmem:[%s1384 + $0x1c0] sm:$0xff]
  %v1442 = vld [vmem:[%s1384 + $0x1c8] sm:$0xff]
  %v1443 = vld [vmem:[%s1384 + $0x1d0] sm:$0xff]
  %v1444 = vld [vmem:[%s1384 + $0x1d8] sm:$0xff]
  %v1445 = vld [vmem:[%s1384 + $0x1e0] sm:$0xff]
  %v1446 = vld [vmem:[%s1384 + $0x1e8] sm:$0xff]
  %v1447 = vld [vmem:[%s1384 + $0x1f0] sm:$0xff]
  %v1448 = vld [vmem:[%s1384 + $0x1f8] sm:$0xff]
  %v1449 = vld [vmem:[%s1384 + $0x200] sm:$0xff]
  %v1450 = vld [vmem:[%s1384 + $0x208] sm:$0xff]
  %v1451 = vld [vmem:[%s1384 + $0x210] sm:$0xff]
  %v1452 = vld [vmem:[%s1384 + $0x218] sm:$0xff]
  %v1453 = vld [vmem:[%s1384 + $0x220] sm:$0xff]
  %v1454 = vld [vmem:[%s1384 + $0x228] sm:$0xff]
  %v1455 = vld [vmem:[%s1384 + $0x230] sm:$0xff]
  %v1456 = vld [vmem:[%s1384 + $0x238] sm:$0xff]
  %v1457 = vld [vmem:[%s1384 + $0x240] sm:$0xff]
  %v1458 = vld [vmem:[%s1384 + $0x248] sm:$0xff]
  %v1459 = vld [vmem:[%s1384 + $0x250] sm:$0xff]
  %v1460 = vld [vmem:[%s1384 + $0x258] sm:$0xff]
  %v1461 = vld [vmem:[%s1384 + $0x260] sm:$0xff]
  %v1462 = vld [vmem:[%s1384 + $0x268] sm:$0xff]
  %v1463 = vld [vmem:[%s1384 + $0x270] sm:$0xff]
  %v1464 = vld [vmem:[%s1384 + $0x278] sm:$0xff]
  %v1465 = vld [vmem:[%s1384 + $0x280] sm:$0xff]
  %v1466 = vld [vmem:[%s1384 + $0x288] sm:$0xff]
  %v1467 = vld [vmem:[%s1384 + $0x290] sm:$0xff]
  %v1468 = vld [vmem:[%s1384 + $0x298] sm:$0xff]
  %v1469 = vld [vmem:[%s1384 + $0x2a0] sm:$0xff]
  %v1470 = vld [vmem:[%s1384 + $0x2a8] sm:$0xff]
  %v1471 = vld [vmem:[%s1384 + $0x2b0] sm:$0xff]
  %v1472 = vld [vmem:[%s1384 + $0x2b8] sm:$0xff]
  %v1473 = vld [vmem:[%s1384 + $0x2c0] sm:$0xff]
  %v1474 = vld [vmem:[%s1384 + $0x2c8] sm:$0xff]
  %v1475 = vld [vmem:[%s1384 + $0x2d0] sm:$0xff]
  %v1476 = vld [vmem:[%s1384 + $0x2d8] sm:$0xff]
  %v1477 = vld [vmem:[%s1384 + $0x2e0] sm:$0xff]
  %v1478 = vld [vmem:[%s1384 + $0x2e8] sm:$0xff]
  %v1479 = vld [vmem:[%s1384 + $0x2f0] sm:$0xff]
  %v1480 = vld [vmem:[%s1384 + $0x2f8] sm:$0xff]
  %v1481 = vld [vmem:[%s1384 + $0x300] sm:$0xff]
  %v1482 = vld [vmem:[%s1384 + $0x308] sm:$0xff]
  %v1483 = vld [vmem:[%s1384 + $0x310] sm:$0xff]
  %v1484 = vld [vmem:[%s1384 + $0x318] sm:$0xff]
  %v1485 = vld [vmem:[%s1384 + $0x320] sm:$0xff]
  %v1486 = vld [vmem:[%s1384 + $0x328] sm:$0xff]
  %v1487 = vld [vmem:[%s1384 + $0x330] sm:$0xff]
  %v1488 = vld [vmem:[%s1384 + $0x338] sm:$0xff]
  %v1489 = vld [vmem:[%s1384 + $0x340] sm:$0xff]
  %v1490 = vld [vmem:[%s1384 + $0x348] sm:$0xff]
  %v1491 = vld [vmem:[%s1384 + $0x350] sm:$0xff]
  %v1492 = vld [vmem:[%s1384 + $0x358] sm:$0xff]
  %v1493 = vld [vmem:[%s1384 + $0x360] sm:$0xff]
  %v1494 = vld [vmem:[%s1384 + $0x368] sm:$0xff]
  %v1495 = vld [vmem:[%s1384 + $0x370] sm:$0xff]
  %v1496 = vld [vmem:[%s1384 + $0x378] sm:$0xff]
  %v1497 = vld [vmem:[%s1384 + $0x380] sm:$0xff]
  %v1498 = vld [vmem:[%s1384 + $0x388] sm:$0xff]
  %v1499 = vld [vmem:[%s1384 + $0x390] sm:$0xff]
  %v1500 = vld [vmem:[%s1384 + $0x398] sm:$0xff]
  %v1501 = vld [vmem:[%s1384 + $0x3a0] sm:$0xff]
  %v1502 = vld [vmem:[%s1384 + $0x3a8] sm:$0xff]
  %v1503 = vld [vmem:[%s1384 + $0x3b0] sm:$0xff]
  %v1504 = vld [vmem:[%s1384 + $0x3b8] sm:$0xff]
  %v1505 = vld [vmem:[%s1384 + $0x3c0] sm:$0xff]
  %v1506 = vld [vmem:[%s1384 + $0x3c8] sm:$0xff]
  %v1507 = vld [vmem:[%s1384 + $0x3d0] sm:$0xff]
  %v1508 = vld [vmem:[%s1384 + $0x3d8] sm:$0xff]
  %v1509 = vld [vmem:[%s1384 + $0x3e0] sm:$0xff]
  %v1510 = vld [vmem:[%s1384 + $0x3e8] sm:$0xff]
  %v1511 = vld [vmem:[%s1384 + $0x3f0] sm:$0xff]
  %v1512 = vld [vmem:[%s1384 + $0x3f8] sm:$0xff]
  %v1513 = vld [vmem:[%s1384 + $0x400] sm:$0xff]
  %v1514 = vld [vmem:[%s1384 + $0x408] sm:$0xff]
  %v1515 = vld [vmem:[%s1384 + $0x410] sm:$0xff]
  %v1516 = vld [vmem:[%s1384 + $0x418] sm:$0xff]
  %v1517 = vld [vmem:[%s1384 + $0x420] sm:$0xff]
  %v1518 = vld [vmem:[%s1384 + $0x428] sm:$0xff]
  %v1519 = vld [vmem:[%s1384 + $0x430] sm:$0xff]
  %v1520 = vld [vmem:[%s1384 + $0x438] sm:$0xff]
  %v1521 = vld [vmem:[%s1384 + $0x440] sm:$0xff]
  %v1522 = vld [vmem:[%s1384 + $0x448] sm:$0xff]
  %v1523 = vld [vmem:[%s1384 + $0x450] sm:$0xff]
  %v1524 = vld [vmem:[%s1384 + $0x458] sm:$0xff]
  %v1525 = vld [vmem:[%s1384 + $0x460] sm:$0xff]
  %v1526 = vld [vmem:[%s1384 + $0x468] sm:$0xff]
  %v1527 = vld [vmem:[%s1384 + $0x470] sm:$0xff]
  %v1528 = vld [vmem:[%s1384 + $0x478] sm:$0xff]
  %v1530 = vsel %vm162, %v1385, 0
  %v1533 = vsel %vm162, %v1386, 0
  %v1536 = vsel %vm162, %v1387, 0
  %v1539 = vsel %vm162, %v1388, 0
  %v1542 = vsel %vm162, %v1389, 0
  %v1545 = vsel %vm162, %v1390, 0
  %v1548 = vsel %vm162, %v1391, 0
  %v1551 = vsel %vm162, %v1392, 0
  %v1554 = vsel %vm162, %v1393, 0
  %v1557 = vsel %vm162, %v1394, 0
  %v1560 = vsel %vm162, %v1395, 0
  %v1563 = vsel %vm162, %v1396, 0
  %v1566 = vsel %vm162, %v1397, 0
  %v1569 = vsel %vm162, %v1398, 0
  %v1572 = vsel %vm162, %v1399, 0
  %v1575 = vsel %vm162, %v1400, 0
  %v1578 = vsel %vm162, %v1401, 0
  %v1581 = vsel %vm162, %v1402, 0
  %v1584 = vsel %vm162, %v1403, 0
  %v1587 = vsel %vm162, %v1404, 0
  %v1590 = vsel %vm162, %v1405, 0
  %v1593 = vsel %vm162, %v1406, 0
  %v1596 = vsel %vm162, %v1407, 0
  %v1599 = vsel %vm162, %v1408, 0
  %v1602 = vsel %vm162, %v1409, 0
  %v1605 = vsel %vm162, %v1410, 0
  %v1608 = vsel %vm162, %v1411, 0
  %v1611 = vsel %vm162, %v1412, 0
  %v1614 = vsel %vm162, %v1413, 0
  %v1617 = vsel %vm162, %v1414, 0
  %v1620 = vsel %vm162, %v1415, 0
  %v1623 = vsel %vm162, %v1416, 0
  %v1626 = vsel %vm162, %v1417, 0
  %v1629 = vsel %vm162, %v1418, 0
  %v1632 = vsel %vm162, %v1419, 0
  %v1635 = vsel %vm162, %v1420, 0
  %v1638 = vsel %vm162, %v1421, 0
  %v1641 = vsel %vm162, %v1422, 0
  %v1644 = vsel %vm162, %v1423, 0
  %v1647 = vsel %vm162, %v1424, 0
  %v1650 = vsel %vm162, %v1425, 0
  %v1653 = vsel %vm162, %v1426, 0
  %v1656 = vsel %vm162, %v1427, 0
  %v1659 = vsel %vm162, %v1428, 0
  %v1662 = vsel %vm162, %v1429, 0
  %v1665 = vsel %vm162, %v1430, 0
  %v1668 = vsel %vm162, %v1431, 0
  %v1671 = vsel %vm162, %v1432, 0
  %v1674 = vsel %vm162, %v1433, 0
  %v1677 = vsel %vm162, %v1434, 0
  %v1680 = vsel %vm162, %v1435, 0
  %v1683 = vsel %vm162, %v1436, 0
  %v1686 = vsel %vm162, %v1437, 0
  %v1689 = vsel %vm162, %v1438, 0
  %v1692 = vsel %vm162, %v1439, 0
  %v1695 = vsel %vm162, %v1440, 0
  %v1698 = vsel %vm162, %v1441, 0
  %v1701 = vsel %vm162, %v1442, 0
  %v1704 = vsel %vm162, %v1443, 0
  %v1707 = vsel %vm162, %v1444, 0
  %v1710 = vsel %vm162, %v1445, 0
  %v1713 = vsel %vm162, %v1446, 0
  %v1716 = vsel %vm162, %v1447, 0
  %v1719 = vsel %vm162, %v1448, 0
  %v1722 = vsel %vm162, %v1449, 0
  %v1725 = vsel %vm162, %v1450, 0
  %v1728 = vsel %vm162, %v1451, 0
  %v1731 = vsel %vm162, %v1452, 0
  %v1734 = vsel %vm162, %v1453, 0
  %v1737 = vsel %vm162, %v1454, 0
  %v1740 = vsel %vm162, %v1455, 0
  %v1743 = vsel %vm162, %v1456, 0
  %v1746 = vsel %vm162, %v1457, 0
  %v1749 = vsel %vm162, %v1458, 0
  %v1752 = vsel %vm162, %v1459, 0
  %v1755 = vsel %vm162, %v1460, 0
  %v1758 = vsel %vm162, %v1461, 0
  %v1761 = vsel %vm162, %v1462, 0
  %v1764 = vsel %vm162, %v1463, 0
  %v1767 = vsel %vm162, %v1464, 0
  %v1770 = vsel %vm162, %v1465, 0
  %v1773 = vsel %vm162, %v1466, 0
  %v1776 = vsel %vm162, %v1467, 0
  %v1779 = vsel %vm162, %v1468, 0
  %v1782 = vsel %vm162, %v1469, 0
  %v1785 = vsel %vm162, %v1470, 0
  %v1788 = vsel %vm162, %v1471, 0
  %v1791 = vsel %vm162, %v1472, 0
  %v1794 = vsel %vm162, %v1473, 0
  %v1797 = vsel %vm162, %v1474, 0
  %v1800 = vsel %vm162, %v1475, 0
  %v1803 = vsel %vm162, %v1476, 0
  %v1806 = vsel %vm162, %v1477, 0
  %v1809 = vsel %vm162, %v1478, 0
  %v1812 = vsel %vm162, %v1479, 0
  %v1815 = vsel %vm162, %v1480, 0
  %v1818 = vsel %vm162, %v1481, 0
  %v1821 = vsel %vm162, %v1482, 0
  %v1824 = vsel %vm162, %v1483, 0
  %v1827 = vsel %vm162, %v1484, 0
  %v1830 = vsel %vm162, %v1485, 0
  %v1833 = vsel %vm162, %v1486, 0
  %v1836 = vsel %vm162, %v1487, 0
  %v1839 = vsel %vm162, %v1488, 0
  %v1842 = vsel %vm162, %v1489, 0
  %v1845 = vsel %vm162, %v1490, 0
  %v1848 = vsel %vm162, %v1491, 0
  %v1851 = vsel %vm162, %v1492, 0
  %v1854 = vsel %vm162, %v1493, 0
  %v1857 = vsel %vm162, %v1494, 0
  %v1860 = vsel %vm162, %v1495, 0
  %v1863 = vsel %vm162, %v1496, 0
  %v1866 = vsel %vm162, %v1497, 0
  %v1869 = vsel %vm162, %v1498, 0
  %v1872 = vsel %vm162, %v1499, 0
  %v1875 = vsel %vm162, %v1500, 0
  %v1878 = vsel %vm162, %v1501, 0
  %v1881 = vsel %vm162, %v1502, 0
  %v1884 = vsel %vm162, %v1503, 0
  %v1887 = vsel %vm162, %v1504, 0
  %v1890 = vsel %vm162, %v1505, 0
  %v1893 = vsel %vm162, %v1506, 0
  %v1896 = vsel %vm162, %v1507, 0
  %v1899 = vsel %vm162, %v1508, 0
  %v1902 = vsel %vm162, %v1509, 0
  %v1905 = vsel %vm162, %v1510, 0
  %v1908 = vsel %vm162, %v1511, 0
  %v1911 = vsel %vm162, %v1512, 0
  %v1914 = vsel %vm162, %v1513, 0
  %v1917 = vsel %vm162, %v1514, 0
  %v1920 = vsel %vm162, %v1515, 0
  %v1923 = vsel %vm162, %v1516, 0
  %v1926 = vsel %vm162, %v1517, 0
  %v1929 = vsel %vm162, %v1518, 0
  %v1932 = vsel %vm162, %v1519, 0
  %v1935 = vsel %vm162, %v1520, 0
  %v1938 = vsel %vm162, %v1521, 0
  %v1941 = vsel %vm162, %v1522, 0
  %v1944 = vsel %vm162, %v1523, 0
  %v1947 = vsel %vm162, %v1524, 0
  %v1950 = vsel %vm162, %v1525, 0
  %v1953 = vsel %vm162, %v1526, 0
  %v1956 = vsel %vm162, %v1527, 0
  %v1959 = vsel %vm162, %v1528, 0
  %1961 = vmatprep.subr.mxu0 0.0
  %1962 = vmatpush1.msra.mxu0 %v14
  %1963 = vmatprep.subr.mxu0 0.0
  %1964 = vmatpush1.msra.mxu0 %v15
  %1965 = vmatprep.subr.mxu0 0.0
  %1966 = vmatpush1.msra.mxu0 %v16
  %1967 = vmatprep.subr.mxu0 0.0
  %1968 = vmatpush1.msra.mxu0 %v597
  %1969 = vmatprep.subr.mxu0 0.0
  %1970 = vmatpush1.msra.mxu0 0.0
  %1971 = vmatprep.subr.mxu0 0.0
  %1972 = vmatpush1.msra.mxu0 0.0
  %1973 = vmatprep.subr.mxu0 0.0
  %1974 = vmatpush1.msra.mxu0 0.0
  %1975 = vmatprep.subr.mxu0 0.0
  %1976 = vmatpush1.msra.mxu0 0.0
  %1977 = vmatprep.subr.mxu0 0.0
  %1978 = vmatpush1.msra.mxu0 0.0
  %1979 = vmatprep.subr.mxu0 0.0
  %1980 = vmatpush1.msra.mxu0 0.0
  %1981 = vmatprep.subr.mxu0 0.0
  %1982 = vmatpush1.msra.mxu0 0.0
  %1983 = vmatprep.subr.mxu0 0.0
  %1984 = vmatpush1.msra.mxu0 0.0
  %1985 = vmatprep.subr.mxu0 0.0
  %1986 = vmatpush1.msra.mxu0 0.0
  %1987 = vmatprep.subr.mxu0 0.0
  %1988 = vmatpush1.msra.mxu0 0.0
  %1989 = vmatprep.subr.mxu0 0.0
  %1990 = vmatpush1.msra.mxu0 0.0
  %1991 = vmatprep.subr.mxu0 0.0
  %1992 = vmatpush1.msra.mxu0 0.0
  %1993 = vmatprep.subr.mxu0 0.0
  %1994 = vmatpush1.msra.mxu0 0.0
  %1995 = vmatprep.subr.mxu0 0.0
  %1996 = vmatpush1.msra.mxu0 0.0
  %1997 = vmatprep.subr.mxu0 0.0
  %1998 = vmatpush1.msra.mxu0 0.0
  %1999 = vmatprep.subr.mxu0 0.0
  %2000 = vmatpush1.msra.mxu0 0.0
  %2001 = vmatprep.subr.mxu0 0.0
  %2002 = vmatpush1.msra.mxu0 0.0
  %2003 = vmatprep.subr.mxu0 0.0
  %2004 = vmatpush1.msra.mxu0 0.0
  %2005 = vmatprep.subr.mxu0 0.0
  %2006 = vmatpush1.msra.mxu0 0.0
  %2007 = vmatprep.subr.mxu0 0.0
  %2008 = vmatpush1.msra.mxu0 0.0
  %2009 = vmatprep.subr.mxu0 0.0
  %2010 = vmatpush1.msra.mxu0 0.0
  %2011 = vmatprep.subr.mxu0 0.0
  %2012 = vmatpush1.msra.mxu0 0.0
  %2013 = vmatprep.subr.mxu0 0.0
  %2014 = vmatpush1.msra.mxu0 0.0
  %2015 = vmatprep.subr.mxu0 0.0
  %2016 = vmatpush1.msra.mxu0 0.0
  %2017 = vmatprep.subr.mxu0 0.0
  %2018 = vmatpush1.msra.mxu0 0.0
  %2019 = vmatprep.subr.mxu0 0.0
  %2020 = vmatpush1.msra.mxu0 0.0
  %2021 = vmatprep.subr.mxu0 0.0
  %2022 = vmatpush1.msra.mxu0 0.0
  %2023 = vmatprep.subr.mxu0 0.0
  %2024 = vmatpush1.msra.mxu0 0.0
  %2025 = vmatprep.mubr.f32.mxu0 0.0
  %2026 = vmatmul.mubr.f32.gmra.mrb[0].mxu0 %v1530
  %v2027 = vpop.f32.mrb[0].mxu0
  %v2028 = vadd.f32 0.0, %v2027
  %v2029 = vpop.f32.mrb[0].mxu0
  %2030 = vmatprep.mubr.f32.mxu0 0.0
  %2031 = vmatmul.mubr.f32.gmra.mrb[0].mxu0 %v1533
  %v2032 = vpop.f32.mrb[0].mxu0
  %v2033 = vadd.f32 0.0, %v2032
  %v2034 = vpop.f32.mrb[0].mxu0
  %2035 = vmatprep.mubr.f32.mxu0 0.0
  %2036 = vmatmul.mubr.f32.gmra.mrb[0].mxu0 %v1536
  %v2037 = vpop.f32.mrb[0].mxu0
  %v2038 = vadd.f32 0.0, %v2037
  %v2039 = vpop.f32.mrb[0].mxu0
  %2040 = vmatprep.mubr.f32.mxu0 0.0
  %2041 = vmatmul.mubr.f32.gmra.mrb[0].mxu0 %v1539
  %v2042 = vpop.f32.mrb[0].mxu0
  %v2043 = vadd.f32 0.0, %v2042
  %v2044 = vpop.f32.mrb[0].mxu0
  %2045 = vmatprep.mubr.f32.mxu0 0.0
  %2046 = vmatmul.mubr.f32.gmra.mrb[0].mxu0 %v1542
  %v2047 = vpop.f32.mrb[0].mxu0
  %v2048 = vadd.f32 0.0, %v2047
  %v2049 = vpop.f32.mrb[0].mxu0
  %2050 = vmatprep.mubr.f32.mxu0 0.0
  %2051 = vmatmul.mubr.f32.gmra.mrb[0].mxu0 %v1545
  %v2052 = vpop.f32.mrb[0].mxu0
  %v2053 = vadd.f32 0.0, %v2052
  %v2054 = vpop.f32.mrb[0].mxu0
  %2055 = vmatprep.mubr.f32.mxu0 0.0
  %2056 = vmatmul.mubr.f32.gmra.mrb[0].mxu0 %v1548
  %v2057 = vpop.f32.mrb[0].mxu0
  %v2058 = vadd.f32 0.0, %v2057
  %v2059 = vpop.f32.mrb[0].mxu0
  %2060 = vmatprep.mubr.f32.mxu0 0.0
  %2061 = vmatmul.mubr.f32.gmra.mrb[0].mxu0 %v1551
  %v2062 = vpop.f32.mrb[0].mxu0
  %v2063 = vadd.f32 0.0, %v2062
  %v2064 = vpop.f32.mrb[0].mxu0
  %2065 = vmatprep.mubr.f32.mxu0 0.0
  %2066 = vmatmul.mubr.f32.gmra.mrb[0].mxu0 %v1554
  %v2067 = vpop.f32.mrb[0].mxu0
  %v2068 = vadd.f32 0.0, %v2067
  %v2069 = vpop.f32.mrb[0].mxu0
  %2070 = vmatprep.mubr.f32.mxu0 0.0
  %2071 = vmatmul.mubr.f32.gmra.mrb[0].mxu0 %v1557
  %v2072 = vpop.f32.mrb[0].mxu0
  %v2073 = vadd.f32 0.0, %v2072
  %v2074 = vpop.f32.mrb[0].mxu0
  %2075 = vmatprep.mubr.f32.mxu0 0.0
  %2076 = vmatmul.mubr.f32.gmra.mrb[0].mxu0 %v1560
  %v2077 = vpop.f32.mrb[0].mxu0
  %v2078 = vadd.f32 0.0, %v2077
  %v2079 = vpop.f32.mrb[0].mxu0
  %2080 = vmatprep.mubr.f32.mxu0 0.0
  %2081 = vmatmul.mubr.f32.gmra.mrb[0].mxu0 %v1563
  %v2082 = vpop.f32.mrb[0].mxu0
  %v2083 = vadd.f32 0.0, %v2082
  %v2084 = vpop.f32.mrb[0].mxu0
  %2085 = vmatprep.mubr.f32.mxu0 0.0
  %2086 = vmatmul.mubr.f32.gmra.mrb[0].mxu0 %v1566
  %v2087 = vpop.f32.mrb[0].mxu0
  %v2088 = vadd.f32 0.0, %v2087
  %v2089 = vpop.f32.mrb[0].mxu0
  %2090 = vmatprep.mubr.f32.mxu0 0.0
  %2091 = vmatmul.mubr.f32.gmra.mrb[0].mxu0 %v1569
  %v2092 = vpop.f32.mrb[0].mxu0
  %v2093 = vadd.f32 0.0, %v2092
  %v2094 = vpop.f32.mrb[0].mxu0
  %2095 = vmatprep.mubr.f32.mxu0 0.0
  %2096 = vmatmul.mubr.f32.gmra.mrb[0].mxu0 %v1572
  %v2097 = vpop.f32.mrb[0].mxu0
  %v2098 = vadd.f32 0.0, %v2097
  %v2099 = vpop.f32.mrb[0].mxu0
  %2100 = vmatprep.mubr.f32.mxu0 0.0
  %2101 = vmatmul.mubr.f32.gmra.mrb[0].mxu0 %v1575
  %v2102 = vpop.f32.mrb[0].mxu0
  %v2103 = vadd.f32 0.0, %v2102
  %v2104 = vpop.f32.mrb[0].mxu0
  %2105 = vmatprep.mubr.f32.mxu0 0.0
  %2106 = vmatmul.mubr.f32.gmra.mrb[0].mxu0 %v1578
  %v2107 = vpop.f32.mrb[0].mxu0
  %v2108 = vadd.f32 0.0, %v2107
  %v2109 = vpop.f32.mrb[0].mxu0
  %2110 = vmatprep.mubr.f32.mxu0 0.0
  %2111 = vmatmul.mubr.f32.gmra.mrb[0].mxu0 %v1581
  %v2112 = vpop.f32.mrb[0].mxu0
  %v2113 = vadd.f32 0.0, %v2112
  %v2114 = vpop.f32.mrb[0].mxu0
  %2115 = vmatprep.mubr.f32.mxu0 0.0
  %2116 = vmatmul.mubr.f32.gmra.mrb[0].mxu0 %v1584
  %v2117 = vpop.f32.mrb[0].mxu0
  %v2118 = vadd.f32 0.0, %v2117
  %v2119 = vpop.f32.mrb[0].mxu0
  %2120 = vmatprep.mubr.f32.mxu0 0.0
  %2121 = vmatmul.mubr.f32.gmra.mrb[0].mxu0 %v1587
  %v2122 = vpop.f32.mrb[0].mxu0
  %v2123 = vadd.f32 0.0, %v2122
  %v2124 = vpop.f32.mrb[0].mxu0
  %2125 = vmatprep.mubr.f32.mxu0 0.0
  %2126 = vmatmul.mubr.f32.gmra.mrb[0].mxu0 %v1590
  %v2127 = vpop.f32.mrb[0].mxu0
  %v2128 = vadd.f32 0.0, %v2127
  %v2129 = vpop.f32.mrb[0].mxu0
  %2130 = vmatprep.mubr.f32.mxu0 0.0
  %2131 = vmatmul.mubr.f32.gmra.mrb[0].mxu0 %v1593
  %v2132 = vpop.f32.mrb[0].mxu0
  %v2133 = vadd.f32 0.0, %v2132
  %v2134 = vpop.f32.mrb[0].mxu0
  %2135 = vmatprep.mubr.f32.mxu0 0.0
  %2136 = vmatmul.mubr.f32.gmra.mrb[0].mxu0 %v1596
  %v2137 = vpop.f32.mrb[0].mxu0
  %v2138 = vadd.f32 0.0, %v2137
  %v2139 = vpop.f32.mrb[0].mxu0
  %2140 = vmatprep.mubr.f32.mxu0 0.0
  %2141 = vmatmul.mubr.f32.gmra.mrb[0].mxu0 %v1599
  %v2142 = vpop.f32.mrb[0].mxu0
  %v2143 = vadd.f32 0.0, %v2142
  %v2144 = vpop.f32.mrb[0].mxu0
  %2145 = vmatprep.mubr.f32.mxu0 0.0
  %2146 = vmatmul.mubr.f32.gmra.mrb[0].mxu0 %v1602
  %v2147 = vpop.f32.mrb[0].mxu0
  %v2148 = vadd.f32 0.0, %v2147
  %v2149 = vpop.f32.mrb[0].mxu0
  %2150 = vmatprep.mubr.f32.mxu0 0.0
  %2151 = vmatmul.mubr.f32.gmra.mrb[0].mxu0 %v1605
  %v2152 = vpop.f32.mrb[0].mxu0
  %v2153 = vadd.f32 0.0, %v2152
  %v2154 = vpop.f32.mrb[0].mxu0
  %2155 = vmatprep.mubr.f32.mxu0 0.0
  %2156 = vmatmul.mubr.f32.gmra.mrb[0].mxu0 %v1608
  %v2157 = vpop.f32.mrb[0].mxu0
  %v2158 = vadd.f32 0.0, %v2157
  %v2159 = vpop.f32.mrb[0].mxu0
  %2160 = vmatprep.mubr.f32.mxu0 0.0
  %2161 = vmatmul.mubr.f32.gmra.mrb[0].mxu0 %v1611
  %v2162 = vpop.f32.mrb[0].mxu0
  %v2163 = vadd.f32 0.0, %v2162
  %v2164 = vpop.f32.mrb[0].mxu0
  %2165 = vmatprep.mubr.f32.mxu0 0.0
  %2166 = vmatmul.mubr.f32.gmra.mrb[0].mxu0 %v1614
  %v2167 = vpop.f32.mrb[0].mxu0
  %v2168 = vadd.f32 0.0, %v2167
  %v2169 = vpop.f32.mrb[0].mxu0
  %2170 = vmatprep.mubr.f32.mxu0 0.0
  %2171 = vmatmul.mubr.f32.gmra.mrb[0].mxu0 %v1617
  %v2172 = vpop.f32.mrb[0].mxu0
  %v2173 = vadd.f32 0.0, %v2172
  %v2174 = vpop.f32.mrb[0].mxu0
  %2175 = vmatprep.mubr.f32.mxu0 0.0
  %2176 = vmatmul.mubr.f32.gmra.mrb[0].mxu0 %v1620
  %v2177 = vpop.f32.mrb[0].mxu0
  %v2178 = vadd.f32 0.0, %v2177
  %v2179 = vpop.f32.mrb[0].mxu0
  %2180 = vmatprep.mubr.f32.mxu0 0.0
  %2181 = vmatmul.mubr.f32.gmra.mrb[0].mxu0 %v1623
  %v2182 = vpop.f32.mrb[0].mxu0
  %v2183 = vadd.f32 0.0, %v2182
  %v2184 = vpop.f32.mrb[0].mxu0
  %2185 = vmatprep.mubr.f32.mxu0 0.0
  %2186 = vmatmul.mubr.f32.gmra.mrb[0].mxu0 %v1626
  %v2187 = vpop.f32.mrb[0].mxu0
  %v2188 = vadd.f32 0.0, %v2187
  %v2189 = vpop.f32.mrb[0].mxu0
  %2190 = vmatprep.mubr.f32.mxu0 0.0
  %2191 = vmatmul.mubr.f32.gmra.mrb[0].mxu0 %v1629
  %v2192 = vpop.f32.mrb[0].mxu0
  %v2193 = vadd.f32 0.0, %v2192
  %v2194 = vpop.f32.mrb[0].mxu0
  %2195 = vmatprep.mubr.f32.mxu0 0.0
  %2196 = vmatmul.mubr.f32.gmra.mrb[0].mxu0 %v1632
  %v2197 = vpop.f32.mrb[0].mxu0
  %v2198 = vadd.f32 0.0, %v2197
  %v2199 = vpop.f32.mrb[0].mxu0
  %2200 = vmatprep.mubr.f32.mxu0 0.0
  %2201 = vmatmul.mubr.f32.gmra.mrb[0].mxu0 %v1635
  %v2202 = vpop.f32.mrb[0].mxu0
  %v2203 = vadd.f32 0.0, %v2202
  %v2204 = vpop.f32.mrb[0].mxu0
  %2205 = vmatprep.mubr.f32.mxu0 0.0
  %2206 = vmatmul.mubr.f32.gmra.mrb[0].mxu0 %v1638
  %v2207 = vpop.f32.mrb[0].mxu0
  %v2208 = vadd.f32 0.0, %v2207
  %v2209 = vpop.f32.mrb[0].mxu0
  %2210 = vmatprep.mubr.f32.mxu0 0.0
  %2211 = vmatmul.mubr.f32.gmra.mrb[0].mxu0 %v1641
  %v2212 = vpop.f32.mrb[0].mxu0
  %v2213 = vadd.f32 0.0, %v2212
  %v2214 = vpop.f32.mrb[0].mxu0
  %2215 = vmatprep.mubr.f32.mxu0 0.0
  %2216 = vmatmul.mubr.f32.gmra.mrb[0].mxu0 %v1644
  %v2217 = vpop.f32.mrb[0].mxu0
  %v2218 = vadd.f32 0.0, %v2217
  %v2219 = vpop.f32.mrb[0].mxu0
  %2220 = vmatprep.mubr.f32.mxu0 0.0
  %2221 = vmatmul.mubr.f32.gmra.mrb[0].mxu0 %v1647
  %v2222 = vpop.f32.mrb[0].mxu0
  %v2223 = vadd.f32 0.0, %v2222
  %v2224 = vpop.f32.mrb[0].mxu0
  %2225 = vmatprep.mubr.f32.mxu0 0.0
  %2226 = vmatmul.mubr.f32.gmra.mrb[0].mxu0 %v1650
  %v2227 = vpop.f32.mrb[0].mxu0
  %v2228 = vadd.f32 0.0, %v2227
  %v2229 = vpop.f32.mrb[0].mxu0
  %2230 = vmatprep.mubr.f32.mxu0 0.0
  %2231 = vmatmul.mubr.f32.gmra.mrb[0].mxu0 %v1653
  %v2232 = vpop.f32.mrb[0].mxu0
  %v2233 = vadd.f32 0.0, %v2232
  %v2234 = vpop.f32.mrb[0].mxu0
  %2235 = vmatprep.mubr.f32.mxu0 0.0
  %2236 = vmatmul.mubr.f32.gmra.mrb[0].mxu0 %v1656
  %v2237 = vpop.f32.mrb[0].mxu0
  %v2238 = vadd.f32 0.0, %v2237
  %v2239 = vpop.f32.mrb[0].mxu0
  %2240 = vmatprep.mubr.f32.mxu0 0.0
  %2241 = vmatmul.mubr.f32.gmra.mrb[0].mxu0 %v1659
  %v2242 = vpop.f32.mrb[0].mxu0
  %v2243 = vadd.f32 0.0, %v2242
  %v2244 = vpop.f32.mrb[0].mxu0
  %2245 = vmatprep.mubr.f32.mxu0 0.0
  %2246 = vmatmul.mubr.f32.gmra.mrb[0].mxu0 %v1662
  %v2247 = vpop.f32.mrb[0].mxu0
  %v2248 = vadd.f32 0.0, %v2247
  %v2249 = vpop.f32.mrb[0].mxu0
  %2250 = vmatprep.mubr.f32.mxu0 0.0
  %2251 = vmatmul.mubr.f32.gmra.mrb[0].mxu0 %v1665
  %v2252 = vpop.f32.mrb[0].mxu0
  %v2253 = vadd.f32 0.0, %v2252
  %v2254 = vpop.f32.mrb[0].mxu0
  %2255 = vmatprep.mubr.f32.mxu0 0.0
  %2256 = vmatmul.mubr.f32.gmra.mrb[0].mxu0 %v1668
  %v2257 = vpop.f32.mrb[0].mxu0
  %v2258 = vadd.f32 0.0, %v2257
  %v2259 = vpop.f32.mrb[0].mxu0
  %2260 = vmatprep.mubr.f32.mxu0 0.0
  %2261 = vmatmul.mubr.f32.gmra.mrb[0].mxu0 %v1671
  %v2262 = vpop.f32.mrb[0].mxu0
  %v2263 = vadd.f32 0.0, %v2262
  %v2264 = vpop.f32.mrb[0].mxu0
  %2265 = vmatprep.mubr.f32.mxu0 0.0
  %2266 = vmatmul.mubr.f32.gmra.mrb[0].mxu0 %v1674
  %v2267 = vpop.f32.mrb[0].mxu0
  %v2268 = vadd.f32 0.0, %v2267
  %v2269 = vpop.f32.mrb[0].mxu0
  %2270 = vmatprep.mubr.f32.mxu0 0.0
  %2271 = vmatmul.mubr.f32.gmra.mrb[0].mxu0 %v1677
  %v2272 = vpop.f32.mrb[0].mxu0
  %v2273 = vadd.f32 0.0, %v2272
  %v2274 = vpop.f32.mrb[0].mxu0
  %2275 = vmatprep.mubr.f32.mxu0 0.0
  %2276 = vmatmul.mubr.f32.gmra.mrb[0].mxu0 %v1680
  %v2277 = vpop.f32.mrb[0].mxu0
  %v2278 = vadd.f32 0.0, %v2277
  %v2279 = vpop.f32.mrb[0].mxu0
  %2280 = vmatprep.mubr.f32.mxu0 0.0
  %2281 = vmatmul.mubr.f32.gmra.mrb[0].mxu0 %v1683
  %v2282 = vpop.f32.mrb[0].mxu0
  %v2283 = vadd.f32 0.0, %v2282
  %v2284 = vpop.f32.mrb[0].mxu0
  %2285 = vmatprep.mubr.f32.mxu0 0.0
  %2286 = vmatmul.mubr.f32.gmra.mrb[0].mxu0 %v1686
  %v2287 = vpop.f32.mrb[0].mxu0
  %v2288 = vadd.f32 0.0, %v2287
  %v2289 = vpop.f32.mrb[0].mxu0
  %2290 = vmatprep.mubr.f32.mxu0 0.0
  %2291 = vmatmul.mubr.f32.gmra.mrb[0].mxu0 %v1689
  %v2292 = vpop.f32.mrb[0].mxu0
  %v2293 = vadd.f32 0.0, %v2292
  %v2294 = vpop.f32.mrb[0].mxu0
  %2295 = vmatprep.mubr.f32.mxu0 0.0
  %2296 = vmatmul.mubr.f32.gmra.mrb[0].mxu0 %v1692
  %v2297 = vpop.f32.mrb[0].mxu0
  %v2298 = vadd.f32 0.0, %v2297
  %v2299 = vpop.f32.mrb[0].mxu0
  %2300 = vmatprep.mubr.f32.mxu0 0.0
  %2301 = vmatmul.mubr.f32.gmra.mrb[0].mxu0 %v1695
  %v2302 = vpop.f32.mrb[0].mxu0
  %v2303 = vadd.f32 0.0, %v2302
  %v2304 = vpop.f32.mrb[0].mxu0
  %2305 = vmatprep.mubr.f32.mxu0 0.0
  %2306 = vmatmul.mubr.f32.gmra.mrb[0].mxu0 %v1698
  %v2307 = vpop.f32.mrb[0].mxu0
  %v2308 = vadd.f32 0.0, %v2307
  %v2309 = vpop.f32.mrb[0].mxu0
  %2310 = vmatprep.mubr.f32.mxu0 0.0
  %2311 = vmatmul.mubr.f32.gmra.mrb[0].mxu0 %v1701
  %v2312 = vpop.f32.mrb[0].mxu0
  %v2313 = vadd.f32 0.0, %v2312
  %v2314 = vpop.f32.mrb[0].mxu0
  %2315 = vmatprep.mubr.f32.mxu0 0.0
  %2316 = vmatmul.mubr.f32.gmra.mrb[0].mxu0 %v1704
  %v2317 = vpop.f32.mrb[0].mxu0
  %v2318 = vadd.f32 0.0, %v2317
  %v2319 = vpop.f32.mrb[0].mxu0
  %2320 = vmatprep.mubr.f32.mxu0 0.0
  %2321 = vmatmul.mubr.f32.gmra.mrb[0].mxu0 %v1707
  %v2322 = vpop.f32.mrb[0].mxu0
  %v2323 = vadd.f32 0.0, %v2322
  %v2324 = vpop.f32.mrb[0].mxu0
  %2325 = vmatprep.mubr.f32.mxu0 0.0
  %2326 = vmatmul.mubr.f32.gmra.mrb[0].mxu0 %v1710
  %v2327 = vpop.f32.mrb[0].mxu0
  %v2328 = vadd.f32 0.0, %v2327
  %v2329 = vpop.f32.mrb[0].mxu0
  %2330 = vmatprep.mubr.f32.mxu0 0.0
  %2331 = vmatmul.mubr.f32.gmra.mrb[0].mxu0 %v1713
  %v2332 = vpop.f32.mrb[0].mxu0
  %v2333 = vadd.f32 0.0, %v2332
  %v2334 = vpop.f32.mrb[0].mxu0
  %2335 = vmatprep.mubr.f32.mxu0 0.0
  %2336 = vmatmul.mubr.f32.gmra.mrb[0].mxu0 %v1716
  %v2337 = vpop.f32.mrb[0].mxu0
  %v2338 = vadd.f32 0.0, %v2337
  %v2339 = vpop.f32.mrb[0].mxu0
  %2340 = vmatprep.mubr.f32.mxu0 0.0
  %2341 = vmatmul.mubr.f32.gmra.mrb[0].mxu0 %v1719
  %v2342 = vpop.f32.mrb[0].mxu0
  %v2343 = vadd.f32 0.0, %v2342
  %v2344 = vpop.f32.mrb[0].mxu0
  %2345 = vmatprep.mubr.f32.mxu0 0.0
  %2346 = vmatmul.mubr.f32.gmra.mrb[0].mxu0 %v1722
  %v2347 = vpop.f32.mrb[0].mxu0
  %v2348 = vadd.f32 0.0, %v2347
  %v2349 = vpop.f32.mrb[0].mxu0
  %2350 = vmatprep.mubr.f32.mxu0 0.0
  %2351 = vmatmul.mubr.f32.gmra.mrb[0].mxu0 %v1725
  %v2352 = vpop.f32.mrb[0].mxu0
  %v2353 = vadd.f32 0.0, %v2352
  %v2354 = vpop.f32.mrb[0].mxu0
  %2355 = vmatprep.mubr.f32.mxu0 0.0
  %2356 = vmatmul.mubr.f32.gmra.mrb[0].mxu0 %v1728
  %v2357 = vpop.f32.mrb[0].mxu0
  %v2358 = vadd.f32 0.0, %v2357
  %v2359 = vpop.f32.mrb[0].mxu0
  %2360 = vmatprep.mubr.f32.mxu0 0.0
  %2361 = vmatmul.mubr.f32.gmra.mrb[0].mxu0 %v1731
  %v2362 = vpop.f32.mrb[0].mxu0
  %v2363 = vadd.f32 0.0, %v2362
  %v2364 = vpop.f32.mrb[0].mxu0
  %2365 = vmatprep.mubr.f32.mxu0 0.0
  %2366 = vmatmul.mubr.f32.gmra.mrb[0].mxu0 %v1734
  %v2367 = vpop.f32.mrb[0].mxu0
  %v2368 = vadd.f32 0.0, %v2367
  %v2369 = vpop.f32.mrb[0].mxu0
  %2370 = vmatprep.mubr.f32.mxu0 0.0
  %2371 = vmatmul.mubr.f32.gmra.mrb[0].mxu0 %v1737
  %v2372 = vpop.f32.mrb[0].mxu0
  %v2373 = vadd.f32 0.0, %v2372
  %v2374 = vpop.f32.mrb[0].mxu0
  %2375 = vmatprep.mubr.f32.mxu0 0.0
  %2376 = vmatmul.mubr.f32.gmra.mrb[0].mxu0 %v1740
  %v2377 = vpop.f32.mrb[0].mxu0
  %v2378 = vadd.f32 0.0, %v2377
  %v2379 = vpop.f32.mrb[0].mxu0
  %2380 = vmatprep.mubr.f32.mxu0 0.0
  %2381 = vmatmul.mubr.f32.gmra.mrb[0].mxu0 %v1743
  %v2382 = vpop.f32.mrb[0].mxu0
  %v2383 = vadd.f32 0.0, %v2382
  %v2384 = vpop.f32.mrb[0].mxu0
  %2385 = vmatprep.mubr.f32.mxu0 0.0
  %2386 = vmatmul.mubr.f32.gmra.mrb[0].mxu0 %v1746
  %v2387 = vpop.f32.mrb[0].mxu0
  %v2388 = vadd.f32 0.0, %v2387
  %v2389 = vpop.f32.mrb[0].mxu0
  %2390 = vmatprep.mubr.f32.mxu0 0.0
  %2391 = vmatmul.mubr.f32.gmra.mrb[0].mxu0 %v1749
  %v2392 = vpop.f32.mrb[0].mxu0
  %v2393 = vadd.f32 0.0, %v2392
  %v2394 = vpop.f32.mrb[0].mxu0
  %2395 = vmatprep.mubr.f32.mxu0 0.0
  %2396 = vmatmul.mubr.f32.gmra.mrb[0].mxu0 %v1752
  %v2397 = vpop.f32.mrb[0].mxu0
  %v2398 = vadd.f32 0.0, %v2397
  %v2399 = vpop.f32.mrb[0].mxu0
  %2400 = vmatprep.mubr.f32.mxu0 0.0
  %2401 = vmatmul.mubr.f32.gmra.mrb[0].mxu0 %v1755
  %v2402 = vpop.f32.mrb[0].mxu0
  %v2403 = vadd.f32 0.0, %v2402
  %v2404 = vpop.f32.mrb[0].mxu0
  %2405 = vmatprep.mubr.f32.mxu0 0.0
  %2406 = vmatmul.mubr.f32.gmra.mrb[0].mxu0 %v1758
  %v2407 = vpop.f32.mrb[0].mxu0
  %v2408 = vadd.f32 0.0, %v2407
  %v2409 = vpop.f32.mrb[0].mxu0
  %2410 = vmatprep.mubr.f32.mxu0 0.0
  %2411 = vmatmul.mubr.f32.gmra.mrb[0].mxu0 %v1761
  %v2412 = vpop.f32.mrb[0].mxu0
  %v2413 = vadd.f32 0.0, %v2412
  %v2414 = vpop.f32.mrb[0].mxu0
  %2415 = vmatprep.mubr.f32.mxu0 0.0
  %2416 = vmatmul.mubr.f32.gmra.mrb[0].mxu0 %v1764
  %v2417 = vpop.f32.mrb[0].mxu0
  %v2418 = vadd.f32 0.0, %v2417
  %v2419 = vpop.f32.mrb[0].mxu0
  %2420 = vmatprep.mubr.f32.mxu0 0.0
  %2421 = vmatmul.mubr.f32.gmra.mrb[0].mxu0 %v1767
  %v2422 = vpop.f32.mrb[0].mxu0
  %v2423 = vadd.f32 0.0, %v2422
  %v2424 = vpop.f32.mrb[0].mxu0
  %2425 = vmatprep.mubr.f32.mxu0 0.0
  %2426 = vmatmul.mubr.f32.gmra.mrb[0].mxu0 %v1770
  %v2427 = vpop.f32.mrb[0].mxu0
  %v2428 = vadd.f32 0.0, %v2427
  %v2429 = vpop.f32.mrb[0].mxu0
  %2430 = vmatprep.mubr.f32.mxu0 0.0
  %2431 = vmatmul.mubr.f32.gmra.mrb[0].mxu0 %v1773
  %v2432 = vpop.f32.mrb[0].mxu0
  %v2433 = vadd.f32 0.0, %v2432
  %v2434 = vpop.f32.mrb[0].mxu0
  %2435 = vmatprep.mubr.f32.mxu0 0.0
  %2436 = vmatmul.mubr.f32.gmra.mrb[0].mxu0 %v1776
  %v2437 = vpop.f32.mrb[0].mxu0
  %v2438 = vadd.f32 0.0, %v2437
  %v2439 = vpop.f32.mrb[0].mxu0
  %2440 = vmatprep.mubr.f32.mxu0 0.0
  %2441 = vmatmul.mubr.f32.gmra.mrb[0].mxu0 %v1779
  %v2442 = vpop.f32.mrb[0].mxu0
  %v2443 = vadd.f32 0.0, %v2442
  %v2444 = vpop.f32.mrb[0].mxu0
  %2445 = vmatprep.mubr.f32.mxu0 0.0
  %2446 = vmatmul.mubr.f32.gmra.mrb[0].mxu0 %v1782
  %v2447 = vpop.f32.mrb[0].mxu0
  %v2448 = vadd.f32 0.0, %v2447
  %v2449 = vpop.f32.mrb[0].mxu0
  %2450 = vmatprep.mubr.f32.mxu0 0.0
  %2451 = vmatmul.mubr.f32.gmra.mrb[0].mxu0 %v1785
  %v2452 = vpop.f32.mrb[0].mxu0
  %v2453 = vadd.f32 0.0, %v2452
  %v2454 = vpop.f32.mrb[0].mxu0
  %2455 = vmatprep.mubr.f32.mxu0 0.0
  %2456 = vmatmul.mubr.f32.gmra.mrb[0].mxu0 %v1788
  %v2457 = vpop.f32.mrb[0].mxu0
  %v2458 = vadd.f32 0.0, %v2457
  %v2459 = vpop.f32.mrb[0].mxu0
  %2460 = vmatprep.mubr.f32.mxu0 0.0
  %2461 = vmatmul.mubr.f32.gmra.mrb[0].mxu0 %v1791
  %v2462 = vpop.f32.mrb[0].mxu0
  %v2463 = vadd.f32 0.0, %v2462
  %v2464 = vpop.f32.mrb[0].mxu0
  %2465 = vmatprep.mubr.f32.mxu0 0.0
  %2466 = vmatmul.mubr.f32.gmra.mrb[0].mxu0 %v1794
  %v2467 = vpop.f32.mrb[0].mxu0
  %v2468 = vadd.f32 0.0, %v2467
  %v2469 = vpop.f32.mrb[0].mxu0
  %2470 = vmatprep.mubr.f32.mxu0 0.0
  %2471 = vmatmul.mubr.f32.gmra.mrb[0].mxu0 %v1797
  %v2472 = vpop.f32.mrb[0].mxu0
  %v2473 = vadd.f32 0.0, %v2472
  %v2474 = vpop.f32.mrb[0].mxu0
  %2475 = vmatprep.mubr.f32.mxu0 0.0
  %2476 = vmatmul.mubr.f32.gmra.mrb[0].mxu0 %v1800
  %v2477 = vpop.f32.mrb[0].mxu0
  %v2478 = vadd.f32 0.0, %v2477
  %v2479 = vpop.f32.mrb[0].mxu0
  %2480 = vmatprep.mubr.f32.mxu0 0.0
  %2481 = vmatmul.mubr.f32.gmra.mrb[0].mxu0 %v1803
  %v2482 = vpop.f32.mrb[0].mxu0
  %v2483 = vadd.f32 0.0, %v2482
  %v2484 = vpop.f32.mrb[0].mxu0
  %2485 = vmatprep.mubr.f32.mxu0 0.0
  %2486 = vmatmul.mubr.f32.gmra.mrb[0].mxu0 %v1806
  %v2487 = vpop.f32.mrb[0].mxu0
  %v2488 = vadd.f32 0.0, %v2487
  %v2489 = vpop.f32.mrb[0].mxu0
  %2490 = vmatprep.mubr.f32.mxu0 0.0
  %2491 = vmatmul.mubr.f32.gmra.mrb[0].mxu0 %v1809
  %v2492 = vpop.f32.mrb[0].mxu0
  %v2493 = vadd.f32 0.0, %v2492
  %v2494 = vpop.f32.mrb[0].mxu0
  %2495 = vmatprep.mubr.f32.mxu0 0.0
  %2496 = vmatmul.mubr.f32.gmra.mrb[0].mxu0 %v1812
  %v2497 = vpop.f32.mrb[0].mxu0
  %v2498 = vadd.f32 0.0, %v2497
  %v2499 = vpop.f32.mrb[0].mxu0
  %2500 = vmatprep.mubr.f32.mxu0 0.0
  %2501 = vmatmul.mubr.f32.gmra.mrb[0].mxu0 %v1815
  %v2502 = vpop.f32.mrb[0].mxu0
  %v2503 = vadd.f32 0.0, %v2502
  %v2504 = vpop.f32.mrb[0].mxu0
  %2505 = vmatprep.mubr.f32.mxu0 0.0
  %2506 = vmatmul.mubr.f32.gmra.mrb[0].mxu0 %v1818
  %v2507 = vpop.f32.mrb[0].mxu0
  %v2508 = vadd.f32 0.0, %v2507
  %v2509 = vpop.f32.mrb[0].mxu0
  %2510 = vmatprep.mubr.f32.mxu0 0.0
  %2511 = vmatmul.mubr.f32.gmra.mrb[0].mxu0 %v1821
  %v2512 = vpop.f32.mrb[0].mxu0
  %v2513 = vadd.f32 0.0, %v2512
  %v2514 = vpop.f32.mrb[0].mxu0
  %2515 = vmatprep.mubr.f32.mxu0 0.0
  %2516 = vmatmul.mubr.f32.gmra.mrb[0].mxu0 %v1824
  %v2517 = vpop.f32.mrb[0].mxu0
  %v2518 = vadd.f32 0.0, %v2517
  %v2519 = vpop.f32.mrb[0].mxu0
  %2520 = vmatprep.mubr.f32.mxu0 0.0
  %2521 = vmatmul.mubr.f32.gmra.mrb[0].mxu0 %v1827
  %v2522 = vpop.f32.mrb[0].mxu0
  %v2523 = vadd.f32 0.0, %v2522
  %v2524 = vpop.f32.mrb[0].mxu0
  %2525 = vmatprep.mubr.f32.mxu0 0.0
  %2526 = vmatmul.mubr.f32.gmra.mrb[0].mxu0 %v1830
  %v2527 = vpop.f32.mrb[0].mxu0
  %v2528 = vadd.f32 0.0, %v2527
  %v2529 = vpop.f32.mrb[0].mxu0
  %2530 = vmatprep.mubr.f32.mxu0 0.0
  %2531 = vmatmul.mubr.f32.gmra.mrb[0].mxu0 %v1833
  %v2532 = vpop.f32.mrb[0].mxu0
  %v2533 = vadd.f32 0.0, %v2532
  %v2534 = vpop.f32.mrb[0].mxu0
  %2535 = vmatprep.mubr.f32.mxu0 0.0
  %2536 = vmatmul.mubr.f32.gmra.mrb[0].mxu0 %v1836
  %v2537 = vpop.f32.mrb[0].mxu0
  %v2538 = vadd.f32 0.0, %v2537
  %v2539 = vpop.f32.mrb[0].mxu0
  %2540 = vmatprep.mubr.f32.mxu0 0.0
  %2541 = vmatmul.mubr.f32.gmra.mrb[0].mxu0 %v1839
  %v2542 = vpop.f32.mrb[0].mxu0
  %v2543 = vadd.f32 0.0, %v2542
  %v2544 = vpop.f32.mrb[0].mxu0
  %2545 = vmatprep.mubr.f32.mxu0 0.0
  %2546 = vmatmul.mubr.f32.gmra.mrb[0].mxu0 %v1842
  %v2547 = vpop.f32.mrb[0].mxu0
  %v2548 = vadd.f32 0.0, %v2547
  %v2549 = vpop.f32.mrb[0].mxu0
  %2550 = vmatprep.mubr.f32.mxu0 0.0
  %2551 = vmatmul.mubr.f32.gmra.mrb[0].mxu0 %v1845
  %v2552 = vpop.f32.mrb[0].mxu0
  %v2553 = vadd.f32 0.0, %v2552
  %v2554 = vpop.f32.mrb[0].mxu0
  %2555 = vmatprep.mubr.f32.mxu0 0.0
  %2556 = vmatmul.mubr.f32.gmra.mrb[0].mxu0 %v1848
  %v2557 = vpop.f32.mrb[0].mxu0
  %v2558 = vadd.f32 0.0, %v2557
  %v2559 = vpop.f32.mrb[0].mxu0
  %2560 = vmatprep.mubr.f32.mxu0 0.0
  %2561 = vmatmul.mubr.f32.gmra.mrb[0].mxu0 %v1851
  %v2562 = vpop.f32.mrb[0].mxu0
  %v2563 = vadd.f32 0.0, %v2562
  %v2564 = vpop.f32.mrb[0].mxu0
  %2565 = vmatprep.mubr.f32.mxu0 0.0
  %2566 = vmatmul.mubr.f32.gmra.mrb[0].mxu0 %v1854
  %v2567 = vpop.f32.mrb[0].mxu0
  %v2568 = vadd.f32 0.0, %v2567
  %v2569 = vpop.f32.mrb[0].mxu0
  %2570 = vmatprep.mubr.f32.mxu0 0.0
  %2571 = vmatmul.mubr.f32.gmra.mrb[0].mxu0 %v1857
  %v2572 = vpop.f32.mrb[0].mxu0
  %v2573 = vadd.f32 0.0, %v2572
  %v2574 = vpop.f32.mrb[0].mxu0
  %2575 = vmatprep.mubr.f32.mxu0 0.0
  %2576 = vmatmul.mubr.f32.gmra.mrb[0].mxu0 %v1860
  %v2577 = vpop.f32.mrb[0].mxu0
  %v2578 = vadd.f32 0.0, %v2577
  %v2579 = vpop.f32.mrb[0].mxu0
  %2580 = vmatprep.mubr.f32.mxu0 0.0
  %2581 = vmatmul.mubr.f32.gmra.mrb[0].mxu0 %v1863
  %v2582 = vpop.f32.mrb[0].mxu0
  %v2583 = vadd.f32 0.0, %v2582
  %v2584 = vpop.f32.mrb[0].mxu0
  %2585 = vmatprep.mubr.f32.mxu0 0.0
  %2586 = vmatmul.mubr.f32.gmra.mrb[0].mxu0 %v1866
  %v2587 = vpop.f32.mrb[0].mxu0
  %v2588 = vadd.f32 0.0, %v2587
  %v2589 = vpop.f32.mrb[0].mxu0
  %2590 = vmatprep.mubr.f32.mxu0 0.0
  %2591 = vmatmul.mubr.f32.gmra.mrb[0].mxu0 %v1869
  %v2592 = vpop.f32.mrb[0].mxu0
  %v2593 = vadd.f32 0.0, %v2592
  %v2594 = vpop.f32.mrb[0].mxu0
  %2595 = vmatprep.mubr.f32.mxu0 0.0
  %2596 = vmatmul.mubr.f32.gmra.mrb[0].mxu0 %v1872
  %v2597 = vpop.f32.mrb[0].mxu0
  %v2598 = vadd.f32 0.0, %v2597
  %v2599 = vpop.f32.mrb[0].mxu0
  %2600 = vmatprep.mubr.f32.mxu0 0.0
  %2601 = vmatmul.mubr.f32.gmra.mrb[0].mxu0 %v1875
  %v2602 = vpop.f32.mrb[0].mxu0
  %v2603 = vadd.f32 0.0, %v2602
  %v2604 = vpop.f32.mrb[0].mxu0
  %2605 = vmatprep.mubr.f32.mxu0 0.0
  %2606 = vmatmul.mubr.f32.gmra.mrb[0].mxu0 %v1878
  %v2607 = vpop.f32.mrb[0].mxu0
  %v2608 = vadd.f32 0.0, %v2607
  %v2609 = vpop.f32.mrb[0].mxu0
  %2610 = vmatprep.mubr.f32.mxu0 0.0
  %2611 = vmatmul.mubr.f32.gmra.mrb[0].mxu0 %v1881
  %v2612 = vpop.f32.mrb[0].mxu0
  %v2613 = vadd.f32 0.0, %v2612
  %v2614 = vpop.f32.mrb[0].mxu0
  %2615 = vmatprep.mubr.f32.mxu0 0.0
  %2616 = vmatmul.mubr.f32.gmra.mrb[0].mxu0 %v1884
  %v2617 = vpop.f32.mrb[0].mxu0
  %v2618 = vadd.f32 0.0, %v2617
  %v2619 = vpop.f32.mrb[0].mxu0
  %2620 = vmatprep.mubr.f32.mxu0 0.0
  %2621 = vmatmul.mubr.f32.gmra.mrb[0].mxu0 %v1887
  %v2622 = vpop.f32.mrb[0].mxu0
  %v2623 = vadd.f32 0.0, %v2622
  %v2624 = vpop.f32.mrb[0].mxu0
  %2625 = vmatprep.mubr.f32.mxu0 0.0
  %2626 = vmatmul.mubr.f32.gmra.mrb[0].mxu0 %v1890
  %v2627 = vpop.f32.mrb[0].mxu0
  %v2628 = vadd.f32 0.0, %v2627
  %v2629 = vpop.f32.mrb[0].mxu0
  %2630 = vmatprep.mubr.f32.mxu0 0.0
  %2631 = vmatmul.mubr.f32.gmra.mrb[0].mxu0 %v1893
  %v2632 = vpop.f32.mrb[0].mxu0
  %v2633 = vadd.f32 0.0, %v2632
  %v2634 = vpop.f32.mrb[0].mxu0
  %2635 = vmatprep.mubr.f32.mxu0 0.0
  %2636 = vmatmul.mubr.f32.gmra.mrb[0].mxu0 %v1896
  %v2637 = vpop.f32.mrb[0].mxu0
  %v2638 = vadd.f32 0.0, %v2637
  %v2639 = vpop.f32.mrb[0].mxu0
  %2640 = vmatprep.mubr.f32.mxu0 0.0
  %2641 = vmatmul.mubr.f32.gmra.mrb[0].mxu0 %v1899
  %v2642 = vpop.f32.mrb[0].mxu0
  %v2643 = vadd.f32 0.0, %v2642
  %v2644 = vpop.f32.mrb[0].mxu0
  %2645 = vmatprep.mubr.f32.mxu0 0.0
  %2646 = vmatmul.mubr.f32.gmra.mrb[0].mxu0 %v1902
  %v2647 = vpop.f32.mrb[0].mxu0
  %v2648 = vadd.f32 0.0, %v2647
  %v2649 = vpop.f32.mrb[0].mxu0
  %2650 = vmatprep.mubr.f32.mxu0 0.0
  %2651 = vmatmul.mubr.f32.gmra.mrb[0].mxu0 %v1905
  %v2652 = vpop.f32.mrb[0].mxu0
  %v2653 = vadd.f32 0.0, %v2652
  %v2654 = vpop.f32.mrb[0].mxu0
  %2655 = vmatprep.mubr.f32.mxu0 0.0
  %2656 = vmatmul.mubr.f32.gmra.mrb[0].mxu0 %v1908
  %v2657 = vpop.f32.mrb[0].mxu0
  %v2658 = vadd.f32 0.0, %v2657
  %v2659 = vpop.f32.mrb[0].mxu0
  %2660 = vmatprep.mubr.f32.mxu0 0.0
  %2661 = vmatmul.mubr.f32.gmra.mrb[0].mxu0 %v1911
  %v2662 = vpop.f32.mrb[0].mxu0
  %v2663 = vadd.f32 0.0, %v2662
  %v2664 = vpop.f32.mrb[0].mxu0
  %2665 = vmatprep.mubr.f32.mxu0 0.0
  %2666 = vmatmul.mubr.f32.gmra.mrb[0].mxu0 %v1914
  %v2667 = vpop.f32.mrb[0].mxu0
  %v2668 = vadd.f32 0.0, %v2667
  %v2669 = vpop.f32.mrb[0].mxu0
  %2670 = vmatprep.mubr.f32.mxu0 0.0
  %2671 = vmatmul.mubr.f32.gmra.mrb[0].mxu0 %v1917
  %v2672 = vpop.f32.mrb[0].mxu0
  %v2673 = vadd.f32 0.0, %v2672
  %v2674 = vpop.f32.mrb[0].mxu0
  %2675 = vmatprep.mubr.f32.mxu0 0.0
  %2676 = vmatmul.mubr.f32.gmra.mrb[0].mxu0 %v1920
  %v2677 = vpop.f32.mrb[0].mxu0
  %v2678 = vadd.f32 0.0, %v2677
  %v2679 = vpop.f32.mrb[0].mxu0
  %2680 = vmatprep.mubr.f32.mxu0 0.0
  %2681 = vmatmul.mubr.f32.gmra.mrb[0].mxu0 %v1923
  %v2682 = vpop.f32.mrb[0].mxu0
  %v2683 = vadd.f32 0.0, %v2682
  %v2684 = vpop.f32.mrb[0].mxu0
  %2685 = vmatprep.mubr.f32.mxu0 0.0
  %2686 = vmatmul.mubr.f32.gmra.mrb[0].mxu0 %v1926
  %v2687 = vpop.f32.mrb[0].mxu0
  %v2688 = vadd.f32 0.0, %v2687
  %v2689 = vpop.f32.mrb[0].mxu0
  %2690 = vmatprep.mubr.f32.mxu0 0.0
  %2691 = vmatmul.mubr.f32.gmra.mrb[0].mxu0 %v1929
  %v2692 = vpop.f32.mrb[0].mxu0
  %v2693 = vadd.f32 0.0, %v2692
  %v2694 = vpop.f32.mrb[0].mxu0
  %2695 = vmatprep.mubr.f32.mxu0 0.0
  %2696 = vmatmul.mubr.f32.gmra.mrb[0].mxu0 %v1932
  %v2697 = vpop.f32.mrb[0].mxu0
  %v2698 = vadd.f32 0.0, %v2697
  %v2699 = vpop.f32.mrb[0].mxu0
  %2700 = vmatprep.mubr.f32.mxu0 0.0
  %2701 = vmatmul.mubr.f32.gmra.mrb[0].mxu0 %v1935
  %v2702 = vpop.f32.mrb[0].mxu0
  %v2703 = vadd.f32 0.0, %v2702
  %v2704 = vpop.f32.mrb[0].mxu0
  %2705 = vmatprep.mubr.f32.mxu0 0.0
  %2706 = vmatmul.mubr.f32.gmra.mrb[0].mxu0 %v1938
  %v2707 = vpop.f32.mrb[0].mxu0
  %v2708 = vadd.f32 0.0, %v2707
  %v2709 = vpop.f32.mrb[0].mxu0
  %2710 = vmatprep.mubr.f32.mxu0 0.0
  %2711 = vmatmul.mubr.f32.gmra.mrb[0].mxu0 %v1941
  %v2712 = vpop.f32.mrb[0].mxu0
  %v2713 = vadd.f32 0.0, %v2712
  %v2714 = vpop.f32.mrb[0].mxu0
  %2715 = vmatprep.mubr.f32.mxu0 0.0
  %2716 = vmatmul.mubr.f32.gmra.mrb[0].mxu0 %v1944
  %v2717 = vpop.f32.mrb[0].mxu0
  %v2718 = vadd.f32 0.0, %v2717
  %v2719 = vpop.f32.mrb[0].mxu0
  %2720 = vmatprep.mubr.f32.mxu0 0.0
  %2721 = vmatmul.mubr.f32.gmra.mrb[0].mxu0 %v1947
  %v2722 = vpop.f32.mrb[0].mxu0
  %v2723 = vadd.f32 0.0, %v2722
  %v2724 = vpop.f32.mrb[0].mxu0
  %2725 = vmatprep.mubr.f32.mxu0 0.0
  %2726 = vmatmul.mubr.f32.gmra.mrb[0].mxu0 %v1950
  %v2727 = vpop.f32.mrb[0].mxu0
  %v2728 = vadd.f32 0.0, %v2727
  %v2729 = vpop.f32.mrb[0].mxu0
  %2730 = vmatprep.mubr.f32.mxu0 0.0
  %2731 = vmatmul.mubr.f32.gmra.mrb[0].mxu0 %v1953
  %v2732 = vpop.f32.mrb[0].mxu0
  %v2733 = vadd.f32 0.0, %v2732
  %v2734 = vpop.f32.mrb[0].mxu0
  %2735 = vmatprep.mubr.f32.mxu0 0.0
  %2736 = vmatmul.mubr.f32.gmra.mrb[0].mxu0 %v1956
  %v2737 = vpop.f32.mrb[0].mxu0
  %v2738 = vadd.f32 0.0, %v2737
  %v2739 = vpop.f32.mrb[0].mxu0
  %2740 = vmatprep.mubr.f32.mxu0 0.0
  %2741 = vmatmul.mubr.f32.gmra.mrb[0].mxu0 %v1959
  %v2742 = vpop.f32.mrb[0].mxu0
  %v2743 = vadd.f32 0.0, %v2742
  %v2744 = vpop.f32.mrb[0].mxu0
  %2745 = vdwg.mxu0
  %v2746 = vmax.f32 %v666, %v2028
  %v2747 = vmax.f32 %v671, %v2033
  %v2748 = vmax.f32 %v676, %v2038
  %v2749 = vmax.f32 %v681, %v2043
  %v2750 = vmax.f32 %v686, %v2048
  %v2751 = vmax.f32 %v691, %v2053
  %v2752 = vmax.f32 %v696, %v2058
  %v2753 = vmax.f32 %v701, %v2063
  %v2754 = vmax.f32 %v706, %v2068
  %v2755 = vmax.f32 %v711, %v2073
  %v2756 = vmax.f32 %v716, %v2078
  %v2757 = vmax.f32 %v721, %v2083
  %v2758 = vmax.f32 %v726, %v2088
  %v2759 = vmax.f32 %v731, %v2093
  %v2760 = vmax.f32 %v736, %v2098
  %v2761 = vmax.f32 %v741, %v2103
  %v2762 = vmax.f32 %v746, %v2108
  %v2763 = vmax.f32 %v751, %v2113
  %v2764 = vmax.f32 %v756, %v2118
  %v2765 = vmax.f32 %v761, %v2123
  %v2766 = vmax.f32 %v766, %v2128
  %v2767 = vmax.f32 %v771, %v2133
  %v2768 = vmax.f32 %v776, %v2138
  %v2769 = vmax.f32 %v781, %v2143
  %v2770 = vmax.f32 %v786, %v2148
  %v2771 = vmax.f32 %v791, %v2153
  %v2772 = vmax.f32 %v796, %v2158
  %v2773 = vmax.f32 %v801, %v2163
  %v2774 = vmax.f32 %v806, %v2168
  %v2775 = vmax.f32 %v811, %v2173
  %v2776 = vmax.f32 %v816, %v2178
  %v2777 = vmax.f32 %v821, %v2183
  %v2778 = vmax.f32 %v826, %v2188
  %v2779 = vmax.f32 %v831, %v2193
  %v2780 = vmax.f32 %v836, %v2198
  %v2781 = vmax.f32 %v841, %v2203
  %v2782 = vmax.f32 %v846, %v2208
  %v2783 = vmax.f32 %v851, %v2213
  %v2784 = vmax.f32 %v856, %v2218
  %v2785 = vmax.f32 %v861, %v2223
  %v2786 = vmax.f32 %v866, %v2228
  %v2787 = vmax.f32 %v871, %v2233
  %v2788 = vmax.f32 %v876, %v2238
  %v2789 = vmax.f32 %v881, %v2243
  %v2790 = vmax.f32 %v886, %v2248
  %v2791 = vmax.f32 %v891, %v2253
  %v2792 = vmax.f32 %v896, %v2258
  %v2793 = vmax.f32 %v901, %v2263
  %v2794 = vmax.f32 %v906, %v2268
  %v2795 = vmax.f32 %v911, %v2273
  %v2796 = vmax.f32 %v916, %v2278
  %v2797 = vmax.f32 %v921, %v2283
  %v2798 = vmax.f32 %v926, %v2288
  %v2799 = vmax.f32 %v931, %v2293
  %v2800 = vmax.f32 %v936, %v2298
  %v2801 = vmax.f32 %v941, %v2303
  %v2802 = vmax.f32 %v946, %v2308
  %v2803 = vmax.f32 %v951, %v2313
  %v2804 = vmax.f32 %v956, %v2318
  %v2805 = vmax.f32 %v961, %v2323
  %v2806 = vmax.f32 %v966, %v2328
  %v2807 = vmax.f32 %v971, %v2333
  %v2808 = vmax.f32 %v976, %v2338
  %v2809 = vmax.f32 %v981, %v2343
  %v2810 = vmax.f32 %v986, %v2348
  %v2811 = vmax.f32 %v991, %v2353
  %v2812 = vmax.f32 %v996, %v2358
  %v2813 = vmax.f32 %v1001, %v2363
  %v2814 = vmax.f32 %v1006, %v2368
  %v2815 = vmax.f32 %v1011, %v2373
  %v2816 = vmax.f32 %v1016, %v2378
  %v2817 = vmax.f32 %v1021, %v2383
  %v2818 = vmax.f32 %v1026, %v2388
  %v2819 = vmax.f32 %v1031, %v2393
  %v2820 = vmax.f32 %v1036, %v2398
  %v2821 = vmax.f32 %v1041, %v2403
  %v2822 = vmax.f32 %v1046, %v2408
  %v2823 = vmax.f32 %v1051, %v2413
  %v2824 = vmax.f32 %v1056, %v2418
  %v2825 = vmax.f32 %v1061, %v2423
  %v2826 = vmax.f32 %v1066, %v2428
  %v2827 = vmax.f32 %v1071, %v2433
  %v2828 = vmax.f32 %v1076, %v2438
  %v2829 = vmax.f32 %v1081, %v2443
  %v2830 = vmax.f32 %v1086, %v2448
  %v2831 = vmax.f32 %v1091, %v2453
  %v2832 = vmax.f32 %v1096, %v2458
  %v2833 = vmax.f32 %v1101, %v2463
  %v2834 = vmax.f32 %v1106, %v2468
  %v2835 = vmax.f32 %v1111, %v2473
  %v2836 = vmax.f32 %v1116, %v2478
  %v2837 = vmax.f32 %v1121, %v2483
  %v2838 = vmax.f32 %v1126, %v2488
  %v2839 = vmax.f32 %v1131, %v2493
  %v2840 = vmax.f32 %v1136, %v2498
  %v2841 = vmax.f32 %v1141, %v2503
  %v2842 = vmax.f32 %v1146, %v2508
  %v2843 = vmax.f32 %v1151, %v2513
  %v2844 = vmax.f32 %v1156, %v2518
  %v2845 = vmax.f32 %v1161, %v2523
  %v2846 = vmax.f32 %v1166, %v2528
  %v2847 = vmax.f32 %v1171, %v2533
  %v2848 = vmax.f32 %v1176, %v2538
  %v2849 = vmax.f32 %v1181, %v2543
  %v2850 = vmax.f32 %v1186, %v2548
  %v2851 = vmax.f32 %v1191, %v2553
  %v2852 = vmax.f32 %v1196, %v2558
  %v2853 = vmax.f32 %v1201, %v2563
  %v2854 = vmax.f32 %v1206, %v2568
  %v2855 = vmax.f32 %v1211, %v2573
  %v2856 = vmax.f32 %v1216, %v2578
  %v2857 = vmax.f32 %v1221, %v2583
  %v2858 = vmax.f32 %v1226, %v2588
  %v2859 = vmax.f32 %v1231, %v2593
  %v2860 = vmax.f32 %v1236, %v2598
  %v2861 = vmax.f32 %v1241, %v2603
  %v2862 = vmax.f32 %v1246, %v2608
  %v2863 = vmax.f32 %v1251, %v2613
  %v2864 = vmax.f32 %v1256, %v2618
  %v2865 = vmax.f32 %v1261, %v2623
  %v2866 = vmax.f32 %v1266, %v2628
  %v2867 = vmax.f32 %v1271, %v2633
  %v2868 = vmax.f32 %v1276, %v2638
  %v2869 = vmax.f32 %v1281, %v2643
  %v2870 = vmax.f32 %v1286, %v2648
  %v2871 = vmax.f32 %v1291, %v2653
  %v2872 = vmax.f32 %v1296, %v2658
  %v2873 = vmax.f32 %v1301, %v2663
  %v2874 = vmax.f32 %v1306, %v2668
  %v2875 = vmax.f32 %v1311, %v2673
  %v2876 = vmax.f32 %v1316, %v2678
  %v2877 = vmax.f32 %v1321, %v2683
  %v2878 = vmax.f32 %v1326, %v2688
  %v2879 = vmax.f32 %v1331, %v2693
  %v2880 = vmax.f32 %v1336, %v2698
  %v2881 = vmax.f32 %v1341, %v2703
  %v2882 = vmax.f32 %v1346, %v2708
  %v2883 = vmax.f32 %v1351, %v2713
  %v2884 = vmax.f32 %v1356, %v2718
  %v2885 = vmax.f32 %v1361, %v2723
  %v2886 = vmax.f32 %v1366, %v2728
  %v2887 = vmax.f32 %v1371, %v2733
  %v2888 = vmax.f32 %v1376, %v2738
  %v2889 = vmax.f32 %v1381, %v2743
  %s2890 = scalar_lea.vmem %s0, 2304
  %v2891 = vld [vmem:[%s2890] sm:$0xff]
  %v2892 = vld [vmem:[%s2890 + $0x8] sm:$0xff]
  %v2893 = vld [vmem:[%s2890 + $0x10] sm:$0xff]
  %v2894 = vld [vmem:[%s2890 + $0x18] sm:$0xff]
  %v2895 = vld [vmem:[%s2890 + $0x20] sm:$0xff]
  %v2896 = vld [vmem:[%s2890 + $0x28] sm:$0xff]
  %v2897 = vld [vmem:[%s2890 + $0x30] sm:$0xff]
  %v2898 = vld [vmem:[%s2890 + $0x38] sm:$0xff]
  %v2899 = vld [vmem:[%s2890 + $0x40] sm:$0xff]
  %v2900 = vld [vmem:[%s2890 + $0x48] sm:$0xff]
  %v2901 = vld [vmem:[%s2890 + $0x50] sm:$0xff]
  %v2902 = vld [vmem:[%s2890 + $0x58] sm:$0xff]
  %v2903 = vld [vmem:[%s2890 + $0x60] sm:$0xff]
  %v2904 = vld [vmem:[%s2890 + $0x68] sm:$0xff]
  %v2905 = vld [vmem:[%s2890 + $0x70] sm:$0xff]
  %v2906 = vld [vmem:[%s2890 + $0x78] sm:$0xff]
  %v2907 = vld [vmem:[%s2890 + $0x80] sm:$0xff]
  %v2908 = vld [vmem:[%s2890 + $0x88] sm:$0xff]
  %v2909 = vld [vmem:[%s2890 + $0x90] sm:$0xff]
  %v2910 = vld [vmem:[%s2890 + $0x98] sm:$0xff]
  %v2911 = vld [vmem:[%s2890 + $0xa0] sm:$0xff]
  %v2912 = vld [vmem:[%s2890 + $0xa8] sm:$0xff]
  %v2913 = vld [vmem:[%s2890 + $0xb0] sm:$0xff]
  %v2914 = vld [vmem:[%s2890 + $0xb8] sm:$0xff]
  %v2915 = vld [vmem:[%s2890 + $0xc0] sm:$0xff]
  %v2916 = vld [vmem:[%s2890 + $0xc8] sm:$0xff]
  %v2917 = vld [vmem:[%s2890 + $0xd0] sm:$0xff]
  %v2918 = vld [vmem:[%s2890 + $0xd8] sm:$0xff]
  %v2919 = vld [vmem:[%s2890 + $0xe0] sm:$0xff]
  %v2920 = vld [vmem:[%s2890 + $0xe8] sm:$0xff]
  %v2921 = vld [vmem:[%s2890 + $0xf0] sm:$0xff]
  %v2922 = vld [vmem:[%s2890 + $0xf8] sm:$0xff]
  %v2923 = vld [vmem:[%s2890 + $0x100] sm:$0xff]
  %v2924 = vld [vmem:[%s2890 + $0x108] sm:$0xff]
  %v2925 = vld [vmem:[%s2890 + $0x110] sm:$0xff]
  %v2926 = vld [vmem:[%s2890 + $0x118] sm:$0xff]
  %v2927 = vld [vmem:[%s2890 + $0x120] sm:$0xff]
  %v2928 = vld [vmem:[%s2890 + $0x128] sm:$0xff]
  %v2929 = vld [vmem:[%s2890 + $0x130] sm:$0xff]
  %v2930 = vld [vmem:[%s2890 + $0x138] sm:$0xff]
  %v2931 = vld [vmem:[%s2890 + $0x140] sm:$0xff]
  %v2932 = vld [vmem:[%s2890 + $0x148] sm:$0xff]
  %v2933 = vld [vmem:[%s2890 + $0x150] sm:$0xff]
  %v2934 = vld [vmem:[%s2890 + $0x158] sm:$0xff]
  %v2935 = vld [vmem:[%s2890 + $0x160] sm:$0xff]
  %v2936 = vld [vmem:[%s2890 + $0x168] sm:$0xff]
  %v2937 = vld [vmem:[%s2890 + $0x170] sm:$0xff]
  %v2938 = vld [vmem:[%s2890 + $0x178] sm:$0xff]
  %v2939 = vld [vmem:[%s2890 + $0x180] sm:$0xff]
  %v2940 = vld [vmem:[%s2890 + $0x188] sm:$0xff]
  %v2941 = vld [vmem:[%s2890 + $0x190] sm:$0xff]
  %v2942 = vld [vmem:[%s2890 + $0x198] sm:$0xff]
  %v2943 = vld [vmem:[%s2890 + $0x1a0] sm:$0xff]
  %v2944 = vld [vmem:[%s2890 + $0x1a8] sm:$0xff]
  %v2945 = vld [vmem:[%s2890 + $0x1b0] sm:$0xff]
  %v2946 = vld [vmem:[%s2890 + $0x1b8] sm:$0xff]
  %v2947 = vld [vmem:[%s2890 + $0x1c0] sm:$0xff]
  %v2948 = vld [vmem:[%s2890 + $0x1c8] sm:$0xff]
  %v2949 = vld [vmem:[%s2890 + $0x1d0] sm:$0xff]
  %v2950 = vld [vmem:[%s2890 + $0x1d8] sm:$0xff]
  %v2951 = vld [vmem:[%s2890 + $0x1e0] sm:$0xff]
  %v2952 = vld [vmem:[%s2890 + $0x1e8] sm:$0xff]
  %v2953 = vld [vmem:[%s2890 + $0x1f0] sm:$0xff]
  %v2954 = vld [vmem:[%s2890 + $0x1f8] sm:$0xff]
  %v2955 = vld [vmem:[%s2890 + $0x200] sm:$0xff]
  %v2956 = vld [vmem:[%s2890 + $0x208] sm:$0xff]
  %v2957 = vld [vmem:[%s2890 + $0x210] sm:$0xff]
  %v2958 = vld [vmem:[%s2890 + $0x218] sm:$0xff]
  %v2959 = vld [vmem:[%s2890 + $0x220] sm:$0xff]
  %v2960 = vld [vmem:[%s2890 + $0x228] sm:$0xff]
  %v2961 = vld [vmem:[%s2890 + $0x230] sm:$0xff]
  %v2962 = vld [vmem:[%s2890 + $0x238] sm:$0xff]
  %v2963 = vld [vmem:[%s2890 + $0x240] sm:$0xff]
  %v2964 = vld [vmem:[%s2890 + $0x248] sm:$0xff]
  %v2965 = vld [vmem:[%s2890 + $0x250] sm:$0xff]
  %v2966 = vld [vmem:[%s2890 + $0x258] sm:$0xff]
  %v2967 = vld [vmem:[%s2890 + $0x260] sm:$0xff]
  %v2968 = vld [vmem:[%s2890 + $0x268] sm:$0xff]
  %v2969 = vld [vmem:[%s2890 + $0x270] sm:$0xff]
  %v2970 = vld [vmem:[%s2890 + $0x278] sm:$0xff]
  %v2971 = vld [vmem:[%s2890 + $0x280] sm:$0xff]
  %v2972 = vld [vmem:[%s2890 + $0x288] sm:$0xff]
  %v2973 = vld [vmem:[%s2890 + $0x290] sm:$0xff]
  %v2974 = vld [vmem:[%s2890 + $0x298] sm:$0xff]
  %v2975 = vld [vmem:[%s2890 + $0x2a0] sm:$0xff]
  %v2976 = vld [vmem:[%s2890 + $0x2a8] sm:$0xff]
  %v2977 = vld [vmem:[%s2890 + $0x2b0] sm:$0xff]
  %v2978 = vld [vmem:[%s2890 + $0x2b8] sm:$0xff]
  %v2979 = vld [vmem:[%s2890 + $0x2c0] sm:$0xff]
  %v2980 = vld [vmem:[%s2890 + $0x2c8] sm:$0xff]
  %v2981 = vld [vmem:[%s2890 + $0x2d0] sm:$0xff]
  %v2982 = vld [vmem:[%s2890 + $0x2d8] sm:$0xff]
  %v2983 = vld [vmem:[%s2890 + $0x2e0] sm:$0xff]
  %v2984 = vld [vmem:[%s2890 + $0x2e8] sm:$0xff]
  %v2985 = vld [vmem:[%s2890 + $0x2f0] sm:$0xff]
  %v2986 = vld [vmem:[%s2890 + $0x2f8] sm:$0xff]
  %v2987 = vld [vmem:[%s2890 + $0x300] sm:$0xff]
  %v2988 = vld [vmem:[%s2890 + $0x308] sm:$0xff]
  %v2989 = vld [vmem:[%s2890 + $0x310] sm:$0xff]
  %v2990 = vld [vmem:[%s2890 + $0x318] sm:$0xff]
  %v2991 = vld [vmem:[%s2890 + $0x320] sm:$0xff]
  %v2992 = vld [vmem:[%s2890 + $0x328] sm:$0xff]
  %v2993 = vld [vmem:[%s2890 + $0x330] sm:$0xff]
  %v2994 = vld [vmem:[%s2890 + $0x338] sm:$0xff]
  %v2995 = vld [vmem:[%s2890 + $0x340] sm:$0xff]
  %v2996 = vld [vmem:[%s2890 + $0x348] sm:$0xff]
  %v2997 = vld [vmem:[%s2890 + $0x350] sm:$0xff]
  %v2998 = vld [vmem:[%s2890 + $0x358] sm:$0xff]
  %v2999 = vld [vmem:[%s2890 + $0x360] sm:$0xff]
  %v3000 = vld [vmem:[%s2890 + $0x368] sm:$0xff]
  %v3001 = vld [vmem:[%s2890 + $0x370] sm:$0xff]
  %v3002 = vld [vmem:[%s2890 + $0x378] sm:$0xff]
  %v3003 = vld [vmem:[%s2890 + $0x380] sm:$0xff]
  %v3004 = vld [vmem:[%s2890 + $0x388] sm:$0xff]
  %v3005 = vld [vmem:[%s2890 + $0x390] sm:$0xff]
  %v3006 = vld [vmem:[%s2890 + $0x398] sm:$0xff]
  %v3007 = vld [vmem:[%s2890 + $0x3a0] sm:$0xff]
  %v3008 = vld [vmem:[%s2890 + $0x3a8] sm:$0xff]
  %v3009 = vld [vmem:[%s2890 + $0x3b0] sm:$0xff]
  %v3010 = vld [vmem:[%s2890 + $0x3b8] sm:$0xff]
  %v3011 = vld [vmem:[%s2890 + $0x3c0] sm:$0xff]
  %v3012 = vld [vmem:[%s2890 + $0x3c8] sm:$0xff]
  %v3013 = vld [vmem:[%s2890 + $0x3d0] sm:$0xff]
  %v3014 = vld [vmem:[%s2890 + $0x3d8] sm:$0xff]
  %v3015 = vld [vmem:[%s2890 + $0x3e0] sm:$0xff]
  %v3016 = vld [vmem:[%s2890 + $0x3e8] sm:$0xff]
  %v3017 = vld [vmem:[%s2890 + $0x3f0] sm:$0xff]
  %v3018 = vld [vmem:[%s2890 + $0x3f8] sm:$0xff]
  %v3019 = vld [vmem:[%s2890 + $0x400] sm:$0xff]
  %v3020 = vld [vmem:[%s2890 + $0x408] sm:$0xff]
  %v3021 = vld [vmem:[%s2890 + $0x410] sm:$0xff]
  %v3022 = vld [vmem:[%s2890 + $0x418] sm:$0xff]
  %v3023 = vld [vmem:[%s2890 + $0x420] sm:$0xff]
  %v3024 = vld [vmem:[%s2890 + $0x428] sm:$0xff]
  %v3025 = vld [vmem:[%s2890 + $0x430] sm:$0xff]
  %v3026 = vld [vmem:[%s2890 + $0x438] sm:$0xff]
  %v3027 = vld [vmem:[%s2890 + $0x440] sm:$0xff]
  %v3028 = vld [vmem:[%s2890 + $0x448] sm:$0xff]
  %v3029 = vld [vmem:[%s2890 + $0x450] sm:$0xff]
  %v3030 = vld [vmem:[%s2890 + $0x458] sm:$0xff]
  %v3031 = vld [vmem:[%s2890 + $0x460] sm:$0xff]
  %v3032 = vld [vmem:[%s2890 + $0x468] sm:$0xff]
  %v3033 = vld [vmem:[%s2890 + $0x470] sm:$0xff]
  %v3034 = vld [vmem:[%s2890 + $0x478] sm:$0xff]
  %v3036 = vsel %vm162, %v2891, 0
  %v3039 = vsel %vm162, %v2892, 0
  %v3042 = vsel %vm162, %v2893, 0
  %v3045 = vsel %vm162, %v2894, 0
  %v3048 = vsel %vm162, %v2895, 0
  %v3051 = vsel %vm162, %v2896, 0
  %v3054 = vsel %vm162, %v2897, 0
  %v3057 = vsel %vm162, %v2898, 0
  %v3060 = vsel %vm162, %v2899, 0
  %v3063 = vsel %vm162, %v2900, 0
  %v3066 = vsel %vm162, %v2901, 0
  %v3069 = vsel %vm162, %v2902, 0
  %v3072 = vsel %vm162, %v2903, 0
  %v3075 = vsel %vm162, %v2904, 0
  %v3078 = vsel %vm162, %v2905, 0
  %v3081 = vsel %vm162, %v2906, 0
  %v3084 = vsel %vm162, %v2907, 0
  %v3087 = vsel %vm162, %v2908, 0
  %v3090 = vsel %vm162, %v2909, 0
  %v3093 = vsel %vm162, %v2910, 0
  %v3096 = vsel %vm162, %v2911, 0
  %v3099 = vsel %vm162, %v2912, 0
  %v3102 = vsel %vm162, %v2913, 0
  %v3105 = vsel %vm162, %v2914, 0
  %v3108 = vsel %vm162, %v2915, 0
  %v3111 = vsel %vm162, %v2916, 0
  %v3114 = vsel %vm162, %v2917, 0
  %v3117 = vsel %vm162, %v2918, 0
  %v3120 = vsel %vm162, %v2919, 0
  %v3123 = vsel %vm162, %v2920, 0
  %v3126 = vsel %vm162, %v2921, 0
  %v3129 = vsel %vm162, %v2922, 0
  %v3132 = vsel %vm162, %v2923, 0
  %v3135 = vsel %vm162, %v2924, 0
  %v3138 = vsel %vm162, %v2925, 0
  %v3141 = vsel %vm162, %v2926, 0
  %v3144 = vsel %vm162, %v2927, 0
  %v3147 = vsel %vm162, %v2928, 0
  %v3150 = vsel %vm162, %v2929, 0
  %v3153 = vsel %vm162, %v2930, 0
  %v3156 = vsel %vm162, %v2931, 0
  %v3159 = vsel %vm162, %v2932, 0
  %v3162 = vsel %vm162, %v2933, 0
  %v3165 = vsel %vm162, %v2934, 0
  %v3168 = vsel %vm162, %v2935, 0
  %v3171 = vsel %vm162, %v2936, 0
  %v3174 = vsel %vm162, %v2937, 0
  %v3177 = vsel %vm162, %v2938, 0
  %v3180 = vsel %vm162, %v2939, 0
  %v3183 = vsel %vm162, %v2940, 0
  %v3186 = vsel %vm162, %v2941, 0
  %v3189 = vsel %vm162, %v2942, 0
  %v3192 = vsel %vm162, %v2943, 0
  %v3195 = vsel %vm162, %v2944, 0
  %v3198 = vsel %vm162, %v2945, 0
  %v3201 = vsel %vm162, %v2946, 0
  %v3204 = vsel %vm162, %v2947, 0
  %v3207 = vsel %vm162, %v2948, 0
  %v3210 = vsel %vm162, %v2949, 0
  %v3213 = vsel %vm162, %v2950, 0
  %v3216 = vsel %vm162, %v2951, 0
  %v3219 = vsel %vm162, %v2952, 0
  %v3222 = vsel %vm162, %v2953, 0
  %v3225 = vsel %vm162, %v2954, 0
  %v3228 = vsel %vm162, %v2955, 0
  %v3231 = vsel %vm162, %v2956, 0
  %v3234 = vsel %vm162, %v2957, 0
  %v3237 = vsel %vm162, %v2958, 0
  %v3240 = vsel %vm162, %v2959, 0
  %v3243 = vsel %vm162, %v2960, 0
  %v3246 = vsel %vm162, %v2961, 0
  %v3249 = vsel %vm162, %v2962, 0
  %v3252 = vsel %vm162, %v2963, 0
  %v3255 = vsel %vm162, %v2964, 0
  %v3258 = vsel %vm162, %v2965, 0
  %v3261 = vsel %vm162, %v2966, 0
  %v3264 = vsel %vm162, %v2967, 0
  %v3267 = vsel %vm162, %v2968, 0
  %v3270 = vsel %vm162, %v2969, 0
  %v3273 = vsel %vm162, %v2970, 0
  %v3276 = vsel %vm162, %v2971, 0
  %v3279 = vsel %vm162, %v2972, 0
  %v3282 = vsel %vm162, %v2973, 0
  %v3285 = vsel %vm162, %v2974, 0
  %v3288 = vsel %vm162, %v2975, 0
  %v3291 = vsel %vm162, %v2976, 0
  %v3294 = vsel %vm162, %v2977, 0
  %v3297 = vsel %vm162, %v2978, 0
  %v3300 = vsel %vm162, %v2979, 0
  %v3303 = vsel %vm162, %v2980, 0
  %v3306 = vsel %vm162, %v2981, 0
  %v3309 = vsel %vm162, %v2982, 0
  %v3312 = vsel %vm162, %v2983, 0
  %v3315 = vsel %vm162, %v2984, 0
  %v3318 = vsel %vm162, %v2985, 0
  %v3321 = vsel %vm162, %v2986, 0
  %v3324 = vsel %vm162, %v2987, 0
  %v3327 = vsel %vm162, %v2988, 0
  %v3330 = vsel %vm162, %v2989, 0
  %v3333 = vsel %vm162, %v2990, 0
  %v3336 = vsel %vm162, %v2991, 0
  %v3339 = vsel %vm162, %v2992, 0
  %v3342 = vsel %vm162, %v2993, 0
  %v3345 = vsel %vm162, %v2994, 0
  %v3348 = vsel %vm162, %v2995, 0
  %v3351 = vsel %vm162, %v2996, 0
  %v3354 = vsel %vm162, %v2997, 0
  %v3357 = vsel %vm162, %v2998, 0
  %v3360 = vsel %vm162, %v2999, 0
  %v3363 = vsel %vm162, %v3000, 0
  %v3366 = vsel %vm162, %v3001, 0
  %v3369 = vsel %vm162, %v3002, 0
  %v3372 = vsel %vm162, %v3003, 0
  %v3375 = vsel %vm162, %v3004, 0
  %v3378 = vsel %vm162, %v3005, 0
  %v3381 = vsel %vm162, %v3006, 0
  %v3384 = vsel %vm162, %v3007, 0
  %v3387 = vsel %vm162, %v3008, 0
  %v3390 = vsel %vm162, %v3009, 0
  %v3393 = vsel %vm162, %v3010, 0
  %v3396 = vsel %vm162, %v3011, 0
  %v3399 = vsel %vm162, %v3012, 0
  %v3402 = vsel %vm162, %v3013, 0
  %v3405 = vsel %vm162, %v3014, 0
  %v3408 = vsel %vm162, %v3015, 0
  %v3411 = vsel %vm162, %v3016, 0
  %v3414 = vsel %vm162, %v3017, 0
  %v3417 = vsel %vm162, %v3018, 0
  %v3420 = vsel %vm162, %v3019, 0
  %v3423 = vsel %vm162, %v3020, 0
  %v3426 = vsel %vm162, %v3021, 0
  %v3429 = vsel %vm162, %v3022, 0
  %v3432 = vsel %vm162, %v3023, 0
  %v3435 = vsel %vm162, %v3024, 0
  %v3438 = vsel %vm162, %v3025, 0
  %v3441 = vsel %vm162, %v3026, 0
  %v3444 = vsel %vm162, %v3027, 0
  %v3447 = vsel %vm162, %v3028, 0
  %v3450 = vsel %vm162, %v3029, 0
  %v3453 = vsel %vm162, %v3030, 0
  %v3456 = vsel %vm162, %v3031, 0
  %v3459 = vsel %vm162, %v3032, 0
  %v3462 = vsel %vm162, %v3033, 0
  %v3465 = vsel %vm162, %v3034, 0
  %3467 = vmatprep.subr.mxu0 0.0
  %3468 = vmatpush1.msra.mxu0 %v14
  %3469 = vmatprep.subr.mxu0 0.0
  %3470 = vmatpush1.msra.mxu0 %v15
  %3471 = vmatprep.subr.mxu0 0.0
  %3472 = vmatpush1.msra.mxu0 %v16
  %3473 = vmatprep.subr.mxu0 0.0
  %3474 = vmatpush1.msra.mxu0 %v597
  %3475 = vmatprep.subr.mxu0 0.0
  %3476 = vmatpush1.msra.mxu0 0.0
  %3477 = vmatprep.subr.mxu0 0.0
  %3478 = vmatpush1.msra.mxu0 0.0
  %3479 = vmatprep.subr.mxu0 0.0
  %3480 = vmatpush1.msra.mxu0 0.0
  %3481 = vmatprep.subr.mxu0 0.0
  %3482 = vmatpush1.msra.mxu0 0.0
  %3483 = vmatprep.subr.mxu0 0.0
  %3484 = vmatpush1.msra.mxu0 0.0
  %3485 = vmatprep.subr.mxu0 0.0
  %3486 = vmatpush1.msra.mxu0 0.0
  %3487 = vmatprep.subr.mxu0 0.0
  %3488 = vmatpush1.msra.mxu0 0.0
  %3489 = vmatprep.subr.mxu0 0.0
  %3490 = vmatpush1.msra.mxu0 0.0
  %3491 = vmatprep.subr.mxu0 0.0
  %3492 = vmatpush1.msra.mxu0 0.0
  %3493 = vmatprep.subr.mxu0 0.0
  %3494 = vmatpush1.msra.mxu0 0.0
  %3495 = vmatprep.subr.mxu0 0.0
  %3496 = vmatpush1.msra.mxu0 0.0
  %3497 = vmatprep.subr.mxu0 0.0
  %3498 = vmatpush1.msra.mxu0 0.0
  %3499 = vmatprep.subr.mxu0 0.0
  %3500 = vmatpush1.msra.mxu0 0.0
  %3501 = vmatprep.subr.mxu0 0.0
  %3502 = vmatpush1.msra.mxu0 0.0
  %3503 = vmatprep.subr.mxu0 0.0
  %3504 = vmatpush1.msra.mxu0 0.0
  %3505 = vmatprep.subr.mxu0 0.0
  %3506 = vmatpush1.msra.mxu0 0.0
  %3507 = vmatprep.subr.mxu0 0.0
  %3508 = vmatpush1.msra.mxu0 0.0
  %3509 = vmatprep.subr.mxu0 0.0
  %3510 = vmatpush1.msra.mxu0 0.0
  %3511 = vmatprep.subr.mxu0 0.0
  %3512 = vmatpush1.msra.mxu0 0.0
  %3513 = vmatprep.subr.mxu0 0.0
  %3514 = vmatpush1.msra.mxu0 0.0
  %3515 = vmatprep.subr.mxu0 0.0
  %3516 = vmatpush1.msra.mxu0 0.0
  %3517 = vmatprep.subr.mxu0 0.0
  %3518 = vmatpush1.msra.mxu0 0.0
  %3519 = vmatprep.subr.mxu0 0.0
  %3520 = vmatpush1.msra.mxu0 0.0
  %3521 = vmatprep.subr.mxu0 0.0
  %3522 = vmatpush1.msra.mxu0 0.0
  %3523 = vmatprep.subr.mxu0 0.0
  %3524 = vmatpush1.msra.mxu0 0.0
  %3525 = vmatprep.subr.mxu0 0.0
  %3526 = vmatpush1.msra.mxu0 0.0
  %3527 = vmatprep.subr.mxu0 0.0
  %3528 = vmatpush1.msra.mxu0 0.0
  %3529 = vmatprep.subr.mxu0 0.0
  %3530 = vmatpush1.msra.mxu0 0.0
  %3531 = vmatprep.mubr.f32.mxu0 0.0
  %3532 = vmatmul.mubr.f32.gmra.mrb[0].mxu0 %v3036
  %v3533 = vpop.f32.mrb[0].mxu0
  %v3534 = vadd.f32 0.0, %v3533
  %v3535 = vpop.f32.mrb[0].mxu0
  %3536 = vmatprep.mubr.f32.mxu0 0.0
  %3537 = vmatmul.mubr.f32.gmra.mrb[0].mxu0 %v3039
  %v3538 = vpop.f32.mrb[0].mxu0
  %v3539 = vadd.f32 0.0, %v3538
  %v3540 = vpop.f32.mrb[0].mxu0
  %3541 = vmatprep.mubr.f32.mxu0 0.0
  %3542 = vmatmul.mubr.f32.gmra.mrb[0].mxu0 %v3042
  %v3543 = vpop.f32.mrb[0].mxu0
  %v3544 = vadd.f32 0.0, %v3543
  %v3545 = vpop.f32.mrb[0].mxu0
  %3546 = vmatprep.mubr.f32.mxu0 0.0
  %3547 = vmatmul.mubr.f32.gmra.mrb[0].mxu0 %v3045
  %v3548 = vpop.f32.mrb[0].mxu0
  %v3549 = vadd.f32 0.0, %v3548
  %v3550 = vpop.f32.mrb[0].mxu0
  %3551 = vmatprep.mubr.f32.mxu0 0.0
  %3552 = vmatmul.mubr.f32.gmra.mrb[0].mxu0 %v3048
  %v3553 = vpop.f32.mrb[0].mxu0
  %v3554 = vadd.f32 0.0, %v3553
  %v3555 = vpop.f32.mrb[0].mxu0
  %3556 = vmatprep.mubr.f32.mxu0 0.0
  %3557 = vmatmul.mubr.f32.gmra.mrb[0].mxu0 %v3051
  %v3558 = vpop.f32.mrb[0].mxu0
  %v3559 = vadd.f32 0.0, %v3558
  %v3560 = vpop.f32.mrb[0].mxu0
  %3561 = vmatprep.mubr.f32.mxu0 0.0
  %3562 = vmatmul.mubr.f32.gmra.mrb[0].mxu0 %v3054
  %v3563 = vpop.f32.mrb[0].mxu0
  %v3564 = vadd.f32 0.0, %v3563
  %v3565 = vpop.f32.mrb[0].mxu0
  %3566 = vmatprep.mubr.f32.mxu0 0.0
  %3567 = vmatmul.mubr.f32.gmra.mrb[0].mxu0 %v3057
  %v3568 = vpop.f32.mrb[0].mxu0
  %v3569 = vadd.f32 0.0, %v3568
  %v3570 = vpop.f32.mrb[0].mxu0
  %3571 = vmatprep.mubr.f32.mxu0 0.0
  %3572 = vmatmul.mubr.f32.gmra.mrb[0].mxu0 %v3060
  %v3573 = vpop.f32.mrb[0].mxu0
  %v3574 = vadd.f32 0.0, %v3573
  %v3575 = vpop.f32.mrb[0].mxu0
  %3576 = vmatprep.mubr.f32.mxu0 0.0
  %3577 = vmatmul.mubr.f32.gmra.mrb[0].mxu0 %v3063
  %v3578 = vpop.f32.mrb[0].mxu0
  %v3579 = vadd.f32 0.0, %v3578
  %v3580 = vpop.f32.mrb[0].mxu0
  %3581 = vmatprep.mubr.f32.mxu0 0.0
  %3582 = vmatmul.mubr.f32.gmra.mrb[0].mxu0 %v3066
  %v3583 = vpop.f32.mrb[0].mxu0
  %v3584 = vadd.f32 0.0, %v3583
  %v3585 = vpop.f32.mrb[0].mxu0
  %3586 = vmatprep.mubr.f32.mxu0 0.0
  %3587 = vmatmul.mubr.f32.gmra.mrb[0].mxu0 %v3069
  %v3588 = vpop.f32.mrb[0].mxu0
  %v3589 = vadd.f32 0.0, %v3588
  %v3590 = vpop.f32.mrb[0].mxu0
  %3591 = vmatprep.mubr.f32.mxu0 0.0
  %3592 = vmatmul.mubr.f32.gmra.mrb[0].mxu0 %v3072
  %v3593 = vpop.f32.mrb[0].mxu0
  %v3594 = vadd.f32 0.0, %v3593
  %v3595 = vpop.f32.mrb[0].mxu0
  %3596 = vmatprep.mubr.f32.mxu0 0.0
  %3597 = vmatmul.mubr.f32.gmra.mrb[0].mxu0 %v3075
  %v3598 = vpop.f32.mrb[0].mxu0
  %v3599 = vadd.f32 0.0, %v3598
  %v3600 = vpop.f32.mrb[0].mxu0
  %3601 = vmatprep.mubr.f32.mxu0 0.0
  %3602 = vmatmul.mubr.f32.gmra.mrb[0].mxu0 %v3078
  %v3603 = vpop.f32.mrb[0].mxu0
  %v3604 = vadd.f32 0.0, %v3603
  %v3605 = vpop.f32.mrb[0].mxu0
  %3606 = vmatprep.mubr.f32.mxu0 0.0
  %3607 = vmatmul.mubr.f32.gmra.mrb[0].mxu0 %v3081
  %v3608 = vpop.f32.mrb[0].mxu0
  %v3609 = vadd.f32 0.0, %v3608
  %v3610 = vpop.f32.mrb[0].mxu0
  %3611 = vmatprep.mubr.f32.mxu0 0.0
  %3612 = vmatmul.mubr.f32.gmra.mrb[0].mxu0 %v3084
  %v3613 = vpop.f32.mrb[0].mxu0
  %v3614 = vadd.f32 0.0, %v3613
  %v3615 = vpop.f32.mrb[0].mxu0
  %3616 = vmatprep.mubr.f32.mxu0 0.0
  %3617 = vmatmul.mubr.f32.gmra.mrb[0].mxu0 %v3087
  %v3618 = vpop.f32.mrb[0].mxu0
  %v3619 = vadd.f32 0.0, %v3618
  %v3620 = vpop.f32.mrb[0].mxu0
  %3621 = vmatprep.mubr.f32.mxu0 0.0
  %3622 = vmatmul.mubr.f32.gmra.mrb[0].mxu0 %v3090
  %v3623 = vpop.f32.mrb[0].mxu0
  %v3624 = vadd.f32 0.0, %v3623
  %v3625 = vpop.f32.mrb[0].mxu0
  %3626 = vmatprep.mubr.f32.mxu0 0.0
  %3627 = vmatmul.mubr.f32.gmra.mrb[0].mxu0 %v3093
  %v3628 = vpop.f32.mrb[0].mxu0
  %v3629 = vadd.f32 0.0, %v3628
  %v3630 = vpop.f32.mrb[0].mxu0
  %3631 = vmatprep.mubr.f32.mxu0 0.0
  %3632 = vmatmul.mubr.f32.gmra.mrb[0].mxu0 %v3096
  %v3633 = vpop.f32.mrb[0].mxu0
  %v3634 = vadd.f32 0.0, %v3633
  %v3635 = vpop.f32.mrb[0].mxu0
  %3636 = vmatprep.mubr.f32.mxu0 0.0
  %3637 = vmatmul.mubr.f32.gmra.mrb[0].mxu0 %v3099
  %v3638 = vpop.f32.mrb[0].mxu0
  %v3639 = vadd.f32 0.0, %v3638
  %v3640 = vpop.f32.mrb[0].mxu0
  %3641 = vmatprep.mubr.f32.mxu0 0.0
  %3642 = vmatmul.mubr.f32.gmra.mrb[0].mxu0 %v3102
  %v3643 = vpop.f32.mrb[0].mxu0
  %v3644 = vadd.f32 0.0, %v3643
  %v3645 = vpop.f32.mrb[0].mxu0
  %3646 = vmatprep.mubr.f32.mxu0 0.0
  %3647 = vmatmul.mubr.f32.gmra.mrb[0].mxu0 %v3105
  %v3648 = vpop.f32.mrb[0].mxu0
  %v3649 = vadd.f32 0.0, %v3648
  %v3650 = vpop.f32.mrb[0].mxu0
  %3651 = vmatprep.mubr.f32.mxu0 0.0
  %3652 = vmatmul.mubr.f32.gmra.mrb[0].mxu0 %v3108
  %v3653 = vpop.f32.mrb[0].mxu0
  %v3654 = vadd.f32 0.0, %v3653
  %v3655 = vpop.f32.mrb[0].mxu0
  %3656 = vmatprep.mubr.f32.mxu0 0.0
  %3657 = vmatmul.mubr.f32.gmra.mrb[0].mxu0 %v3111
  %v3658 = vpop.f32.mrb[0].mxu0
  %v3659 = vadd.f32 0.0, %v3658
  %v3660 = vpop.f32.mrb[0].mxu0
  %3661 = vmatprep.mubr.f32.mxu0 0.0
  %3662 = vmatmul.mubr.f32.gmra.mrb[0].mxu0 %v3114
  %v3663 = vpop.f32.mrb[0].mxu0
  %v3664 = vadd.f32 0.0, %v3663
  %v3665 = vpop.f32.mrb[0].mxu0
  %3666 = vmatprep.mubr.f32.mxu0 0.0
  %3667 = vmatmul.mubr.f32.gmra.mrb[0].mxu0 %v3117
  %v3668 = vpop.f32.mrb[0].mxu0
  %v3669 = vadd.f32 0.0, %v3668
  %v3670 = vpop.f32.mrb[0].mxu0
  %3671 = vmatprep.mubr.f32.mxu0 0.0
  %3672 = vmatmul.mubr.f32.gmra.mrb[0].mxu0 %v3120
  %v3673 = vpop.f32.mrb[0].mxu0
  %v3674 = vadd.f32 0.0, %v3673
  %v3675 = vpop.f32.mrb[0].mxu0
  %3676 = vmatprep.mubr.f32.mxu0 0.0
  %3677 = vmatmul.mubr.f32.gmra.mrb[0].mxu0 %v3123
  %v3678 = vpop.f32.mrb[0].mxu0
  %v3679 = vadd.f32 0.0, %v3678
  %v3680 = vpop.f32.mrb[0].mxu0
  %3681 = vmatprep.mubr.f32.mxu0 0.0
  %3682 = vmatmul.mubr.f32.gmra.mrb[0].mxu0 %v3126
  %v3683 = vpop.f32.mrb[0].mxu0
  %v3684 = vadd.f32 0.0, %v3683
  %v3685 = vpop.f32.mrb[0].mxu0
  %3686 = vmatprep.mubr.f32.mxu0 0.0
  %3687 = vmatmul.mubr.f32.gmra.mrb[0].mxu0 %v3129
  %v3688 = vpop.f32.mrb[0].mxu0
  %v3689 = vadd.f32 0.0, %v3688
  %v3690 = vpop.f32.mrb[0].mxu0
  %3691 = vmatprep.mubr.f32.mxu0 0.0
  %3692 = vmatmul.mubr.f32.gmra.mrb[0].mxu0 %v3132
  %v3693 = vpop.f32.mrb[0].mxu0
  %v3694 = vadd.f32 0.0, %v3693
  %v3695 = vpop.f32.mrb[0].mxu0
  %3696 = vmatprep.mubr.f32.mxu0 0.0
  %3697 = vmatmul.mubr.f32.gmra.mrb[0].mxu0 %v3135
  %v3698 = vpop.f32.mrb[0].mxu0
  %v3699 = vadd.f32 0.0, %v3698
  %v3700 = vpop.f32.mrb[0].mxu0
  %3701 = vmatprep.mubr.f32.mxu0 0.0
  %3702 = vmatmul.mubr.f32.gmra.mrb[0].mxu0 %v3138
  %v3703 = vpop.f32.mrb[0].mxu0
  %v3704 = vadd.f32 0.0, %v3703
  %v3705 = vpop.f32.mrb[0].mxu0
  %3706 = vmatprep.mubr.f32.mxu0 0.0
  %3707 = vmatmul.mubr.f32.gmra.mrb[0].mxu0 %v3141
  %v3708 = vpop.f32.mrb[0].mxu0
  %v3709 = vadd.f32 0.0, %v3708
  %v3710 = vpop.f32.mrb[0].mxu0
  %3711 = vmatprep.mubr.f32.mxu0 0.0
  %3712 = vmatmul.mubr.f32.gmra.mrb[0].mxu0 %v3144
  %v3713 = vpop.f32.mrb[0].mxu0
  %v3714 = vadd.f32 0.0, %v3713
  %v3715 = vpop.f32.mrb[0].mxu0
  %3716 = vmatprep.mubr.f32.mxu0 0.0
  %3717 = vmatmul.mubr.f32.gmra.mrb[0].mxu0 %v3147
  %v3718 = vpop.f32.mrb[0].mxu0
  %v3719 = vadd.f32 0.0, %v3718
  %v3720 = vpop.f32.mrb[0].mxu0
  %3721 = vmatprep.mubr.f32.mxu0 0.0
  %3722 = vmatmul.mubr.f32.gmra.mrb[0].mxu0 %v3150
  %v3723 = vpop.f32.mrb[0].mxu0
  %v3724 = vadd.f32 0.0, %v3723
  %v3725 = vpop.f32.mrb[0].mxu0
  %3726 = vmatprep.mubr.f32.mxu0 0.0
  %3727 = vmatmul.mubr.f32.gmra.mrb[0].mxu0 %v3153
  %v3728 = vpop.f32.mrb[0].mxu0
  %v3729 = vadd.f32 0.0, %v3728
  %v3730 = vpop.f32.mrb[0].mxu0
  %3731 = vmatprep.mubr.f32.mxu0 0.0
  %3732 = vmatmul.mubr.f32.gmra.mrb[0].mxu0 %v3156
  %v3733 = vpop.f32.mrb[0].mxu0
  %v3734 = vadd.f32 0.0, %v3733
  %v3735 = vpop.f32.mrb[0].mxu0
  %3736 = vmatprep.mubr.f32.mxu0 0.0
  %3737 = vmatmul.mubr.f32.gmra.mrb[0].mxu0 %v3159
  %v3738 = vpop.f32.mrb[0].mxu0
  %v3739 = vadd.f32 0.0, %v3738
  %v3740 = vpop.f32.mrb[0].mxu0
  %3741 = vmatprep.mubr.f32.mxu0 0.0
  %3742 = vmatmul.mubr.f32.gmra.mrb[0].mxu0 %v3162
  %v3743 = vpop.f32.mrb[0].mxu0
  %v3744 = vadd.f32 0.0, %v3743
  %v3745 = vpop.f32.mrb[0].mxu0
  %3746 = vmatprep.mubr.f32.mxu0 0.0
  %3747 = vmatmul.mubr.f32.gmra.mrb[0].mxu0 %v3165
  %v3748 = vpop.f32.mrb[0].mxu0
  %v3749 = vadd.f32 0.0, %v3748
  %v3750 = vpop.f32.mrb[0].mxu0
  %3751 = vmatprep.mubr.f32.mxu0 0.0
  %3752 = vmatmul.mubr.f32.gmra.mrb[0].mxu0 %v3168
  %v3753 = vpop.f32.mrb[0].mxu0
  %v3754 = vadd.f32 0.0, %v3753
  %v3755 = vpop.f32.mrb[0].mxu0
  %3756 = vmatprep.mubr.f32.mxu0 0.0
  %3757 = vmatmul.mubr.f32.gmra.mrb[0].mxu0 %v3171
  %v3758 = vpop.f32.mrb[0].mxu0
  %v3759 = vadd.f32 0.0, %v3758
  %v3760 = vpop.f32.mrb[0].mxu0
  %3761 = vmatprep.mubr.f32.mxu0 0.0
  %3762 = vmatmul.mubr.f32.gmra.mrb[0].mxu0 %v3174
  %v3763 = vpop.f32.mrb[0].mxu0
  %v3764 = vadd.f32 0.0, %v3763
  %v3765 = vpop.f32.mrb[0].mxu0
  %3766 = vmatprep.mubr.f32.mxu0 0.0
  %3767 = vmatmul.mubr.f32.gmra.mrb[0].mxu0 %v3177
  %v3768 = vpop.f32.mrb[0].mxu0
  %v3769 = vadd.f32 0.0, %v3768
  %v3770 = vpop.f32.mrb[0].mxu0
  %3771 = vmatprep.mubr.f32.mxu0 0.0
  %3772 = vmatmul.mubr.f32.gmra.mrb[0].mxu0 %v3180
  %v3773 = vpop.f32.mrb[0].mxu0
  %v3774 = vadd.f32 0.0, %v3773
  %v3775 = vpop.f32.mrb[0].mxu0
  %3776 = vmatprep.mubr.f32.mxu0 0.0
  %3777 = vmatmul.mubr.f32.gmra.mrb[0].mxu0 %v3183
  %v3778 = vpop.f32.mrb[0].mxu0
  %v3779 = vadd.f32 0.0, %v3778
  %v3780 = vpop.f32.mrb[0].mxu0
  %3781 = vmatprep.mubr.f32.mxu0 0.0
  %3782 = vmatmul.mubr.f32.gmra.mrb[0].mxu0 %v3186
  %v3783 = vpop.f32.mrb[0].mxu0
  %v3784 = vadd.f32 0.0, %v3783
  %v3785 = vpop.f32.mrb[0].mxu0
  %3786 = vmatprep.mubr.f32.mxu0 0.0
  %3787 = vmatmul.mubr.f32.gmra.mrb[0].mxu0 %v3189
  %v3788 = vpop.f32.mrb[0].mxu0
  %v3789 = vadd.f32 0.0, %v3788
  %v3790 = vpop.f32.mrb[0].mxu0
  %3791 = vmatprep.mubr.f32.mxu0 0.0
  %3792 = vmatmul.mubr.f32.gmra.mrb[0].mxu0 %v3192
  %v3793 = vpop.f32.mrb[0].mxu0
  %v3794 = vadd.f32 0.0, %v3793
  %v3795 = vpop.f32.mrb[0].mxu0
  %3796 = vmatprep.mubr.f32.mxu0 0.0
  %3797 = vmatmul.mubr.f32.gmra.mrb[0].mxu0 %v3195
  %v3798 = vpop.f32.mrb[0].mxu0
  %v3799 = vadd.f32 0.0, %v3798
  %v3800 = vpop.f32.mrb[0].mxu0
  %3801 = vmatprep.mubr.f32.mxu0 0.0
  %3802 = vmatmul.mubr.f32.gmra.mrb[0].mxu0 %v3198
  %v3803 = vpop.f32.mrb[0].mxu0
  %v3804 = vadd.f32 0.0, %v3803
  %v3805 = vpop.f32.mrb[0].mxu0
  %3806 = vmatprep.mubr.f32.mxu0 0.0
  %3807 = vmatmul.mubr.f32.gmra.mrb[0].mxu0 %v3201
  %v3808 = vpop.f32.mrb[0].mxu0
  %v3809 = vadd.f32 0.0, %v3808
  %v3810 = vpop.f32.mrb[0].mxu0
  %3811 = vmatprep.mubr.f32.mxu0 0.0
  %3812 = vmatmul.mubr.f32.gmra.mrb[0].mxu0 %v3204
  %v3813 = vpop.f32.mrb[0].mxu0
  %v3814 = vadd.f32 0.0, %v3813
  %v3815 = vpop.f32.mrb[0].mxu0
  %3816 = vmatprep.mubr.f32.mxu0 0.0
  %3817 = vmatmul.mubr.f32.gmra.mrb[0].mxu0 %v3207
  %v3818 = vpop.f32.mrb[0].mxu0
  %v3819 = vadd.f32 0.0, %v3818
  %v3820 = vpop.f32.mrb[0].mxu0
  %3821 = vmatprep.mubr.f32.mxu0 0.0
  %3822 = vmatmul.mubr.f32.gmra.mrb[0].mxu0 %v3210
  %v3823 = vpop.f32.mrb[0].mxu0
  %v3824 = vadd.f32 0.0, %v3823
  %v3825 = vpop.f32.mrb[0].mxu0
  %3826 = vmatprep.mubr.f32.mxu0 0.0
  %3827 = vmatmul.mubr.f32.gmra.mrb[0].mxu0 %v3213
  %v3828 = vpop.f32.mrb[0].mxu0
  %v3829 = vadd.f32 0.0, %v3828
  %v3830 = vpop.f32.mrb[0].mxu0
  %3831 = vmatprep.mubr.f32.mxu0 0.0
  %3832 = vmatmul.mubr.f32.gmra.mrb[0].mxu0 %v3216
  %v3833 = vpop.f32.mrb[0].mxu0
  %v3834 = vadd.f32 0.0, %v3833
  %v3835 = vpop.f32.mrb[0].mxu0
  %3836 = vmatprep.mubr.f32.mxu0 0.0
  %3837 = vmatmul.mubr.f32.gmra.mrb[0].mxu0 %v3219
  %v3838 = vpop.f32.mrb[0].mxu0
  %v3839 = vadd.f32 0.0, %v3838
  %v3840 = vpop.f32.mrb[0].mxu0
  %3841 = vmatprep.mubr.f32.mxu0 0.0
  %3842 = vmatmul.mubr.f32.gmra.mrb[0].mxu0 %v3222
  %v3843 = vpop.f32.mrb[0].mxu0
  %v3844 = vadd.f32 0.0, %v3843
  %v3845 = vpop.f32.mrb[0].mxu0
  %3846 = vmatprep.mubr.f32.mxu0 0.0
  %3847 = vmatmul.mubr.f32.gmra.mrb[0].mxu0 %v3225
  %v3848 = vpop.f32.mrb[0].mxu0
  %v3849 = vadd.f32 0.0, %v3848
  %v3850 = vpop.f32.mrb[0].mxu0
  %3851 = vmatprep.mubr.f32.mxu0 0.0
  %3852 = vmatmul.mubr.f32.gmra.mrb[0].mxu0 %v3228
  %v3853 = vpop.f32.mrb[0].mxu0
  %v3854 = vadd.f32 0.0, %v3853
  %v3855 = vpop.f32.mrb[0].mxu0
  %3856 = vmatprep.mubr.f32.mxu0 0.0
  %3857 = vmatmul.mubr.f32.gmra.mrb[0].mxu0 %v3231
  %v3858 = vpop.f32.mrb[0].mxu0
  %v3859 = vadd.f32 0.0, %v3858
  %v3860 = vpop.f32.mrb[0].mxu0
  %3861 = vmatprep.mubr.f32.mxu0 0.0
  %3862 = vmatmul.mubr.f32.gmra.mrb[0].mxu0 %v3234
  %v3863 = vpop.f32.mrb[0].mxu0
  %v3864 = vadd.f32 0.0, %v3863
  %v3865 = vpop.f32.mrb[0].mxu0
  %3866 = vmatprep.mubr.f32.mxu0 0.0
  %3867 = vmatmul.mubr.f32.gmra.mrb[0].mxu0 %v3237
  %v3868 = vpop.f32.mrb[0].mxu0
  %v3869 = vadd.f32 0.0, %v3868
  %v3870 = vpop.f32.mrb[0].mxu0
  %3871 = vmatprep.mubr.f32.mxu0 0.0
  %3872 = vmatmul.mubr.f32.gmra.mrb[0].mxu0 %v3240
  %v3873 = vpop.f32.mrb[0].mxu0
  %v3874 = vadd.f32 0.0, %v3873
  %v3875 = vpop.f32.mrb[0].mxu0
  %3876 = vmatprep.mubr.f32.mxu0 0.0
  %3877 = vmatmul.mubr.f32.gmra.mrb[0].mxu0 %v3243
  %v3878 = vpop.f32.mrb[0].mxu0
  %v3879 = vadd.f32 0.0, %v3878
  %v3880 = vpop.f32.mrb[0].mxu0
  %3881 = vmatprep.mubr.f32.mxu0 0.0
  %3882 = vmatmul.mubr.f32.gmra.mrb[0].mxu0 %v3246
  %v3883 = vpop.f32.mrb[0].mxu0
  %v3884 = vadd.f32 0.0, %v3883
  %v3885 = vpop.f32.mrb[0].mxu0
  %3886 = vmatprep.mubr.f32.mxu0 0.0
  %3887 = vmatmul.mubr.f32.gmra.mrb[0].mxu0 %v3249
  %v3888 = vpop.f32.mrb[0].mxu0
  %v3889 = vadd.f32 0.0, %v3888
  %v3890 = vpop.f32.mrb[0].mxu0
  %3891 = vmatprep.mubr.f32.mxu0 0.0
  %3892 = vmatmul.mubr.f32.gmra.mrb[0].mxu0 %v3252
  %v3893 = vpop.f32.mrb[0].mxu0
  %v3894 = vadd.f32 0.0, %v3893
  %v3895 = vpop.f32.mrb[0].mxu0
  %3896 = vmatprep.mubr.f32.mxu0 0.0
  %3897 = vmatmul.mubr.f32.gmra.mrb[0].mxu0 %v3255
  %v3898 = vpop.f32.mrb[0].mxu0
  %v3899 = vadd.f32 0.0, %v3898
  %v3900 = vpop.f32.mrb[0].mxu0
  %3901 = vmatprep.mubr.f32.mxu0 0.0
  %3902 = vmatmul.mubr.f32.gmra.mrb[0].mxu0 %v3258
  %v3903 = vpop.f32.mrb[0].mxu0
  %v3904 = vadd.f32 0.0, %v3903
  %v3905 = vpop.f32.mrb[0].mxu0
  %3906 = vmatprep.mubr.f32.mxu0 0.0
  %3907 = vmatmul.mubr.f32.gmra.mrb[0].mxu0 %v3261
  %v3908 = vpop.f32.mrb[0].mxu0
  %v3909 = vadd.f32 0.0, %v3908
  %v3910 = vpop.f32.mrb[0].mxu0
  %3911 = vmatprep.mubr.f32.mxu0 0.0
  %3912 = vmatmul.mubr.f32.gmra.mrb[0].mxu0 %v3264
  %v3913 = vpop.f32.mrb[0].mxu0
  %v3914 = vadd.f32 0.0, %v3913
  %v3915 = vpop.f32.mrb[0].mxu0
  %3916 = vmatprep.mubr.f32.mxu0 0.0
  %3917 = vmatmul.mubr.f32.gmra.mrb[0].mxu0 %v3267
  %v3918 = vpop.f32.mrb[0].mxu0
  %v3919 = vadd.f32 0.0, %v3918
  %v3920 = vpop.f32.mrb[0].mxu0
  %3921 = vmatprep.mubr.f32.mxu0 0.0
  %3922 = vmatmul.mubr.f32.gmra.mrb[0].mxu0 %v3270
  %v3923 = vpop.f32.mrb[0].mxu0
  %v3924 = vadd.f32 0.0, %v3923
  %v3925 = vpop.f32.mrb[0].mxu0
  %3926 = vmatprep.mubr.f32.mxu0 0.0
  %3927 = vmatmul.mubr.f32.gmra.mrb[0].mxu0 %v3273
  %v3928 = vpop.f32.mrb[0].mxu0
  %v3929 = vadd.f32 0.0, %v3928
  %v3930 = vpop.f32.mrb[0].mxu0
  %3931 = vmatprep.mubr.f32.mxu0 0.0
  %3932 = vmatmul.mubr.f32.gmra.mrb[0].mxu0 %v3276
  %v3933 = vpop.f32.mrb[0].mxu0
  %v3934 = vadd.f32 0.0, %v3933
  %v3935 = vpop.f32.mrb[0].mxu0
  %3936 = vmatprep.mubr.f32.mxu0 0.0
  %3937 = vmatmul.mubr.f32.gmra.mrb[0].mxu0 %v3279
  %v3938 = vpop.f32.mrb[0].mxu0
  %v3939 = vadd.f32 0.0, %v3938
  %v3940 = vpop.f32.mrb[0].mxu0
  %3941 = vmatprep.mubr.f32.mxu0 0.0
  %3942 = vmatmul.mubr.f32.gmra.mrb[0].mxu0 %v3282
  %v3943 = vpop.f32.mrb[0].mxu0
  %v3944 = vadd.f32 0.0, %v3943
  %v3945 = vpop.f32.mrb[0].mxu0
  %3946 = vmatprep.mubr.f32.mxu0 0.0
  %3947 = vmatmul.mubr.f32.gmra.mrb[0].mxu0 %v3285
  %v3948 = vpop.f32.mrb[0].mxu0
  %v3949 = vadd.f32 0.0, %v3948
  %v3950 = vpop.f32.mrb[0].mxu0
  %3951 = vmatprep.mubr.f32.mxu0 0.0
  %3952 = vmatmul.mubr.f32.gmra.mrb[0].mxu0 %v3288
  %v3953 = vpop.f32.mrb[0].mxu0
  %v3954 = vadd.f32 0.0, %v3953
  %v3955 = vpop.f32.mrb[0].mxu0
  %3956 = vmatprep.mubr.f32.mxu0 0.0
  %3957 = vmatmul.mubr.f32.gmra.mrb[0].mxu0 %v3291
  %v3958 = vpop.f32.mrb[0].mxu0
  %v3959 = vadd.f32 0.0, %v3958
  %v3960 = vpop.f32.mrb[0].mxu0
  %3961 = vmatprep.mubr.f32.mxu0 0.0
  %3962 = vmatmul.mubr.f32.gmra.mrb[0].mxu0 %v3294
  %v3963 = vpop.f32.mrb[0].mxu0
  %v3964 = vadd.f32 0.0, %v3963
  %v3965 = vpop.f32.mrb[0].mxu0
  %3966 = vmatprep.mubr.f32.mxu0 0.0
  %3967 = vmatmul.mubr.f32.gmra.mrb[0].mxu0 %v3297
  %v3968 = vpop.f32.mrb[0].mxu0
  %v3969 = vadd.f32 0.0, %v3968
  %v3970 = vpop.f32.mrb[0].mxu0
  %3971 = vmatprep.mubr.f32.mxu0 0.0
  %3972 = vmatmul.mubr.f32.gmra.mrb[0].mxu0 %v3300
  %v3973 = vpop.f32.mrb[0].mxu0
  %v3974 = vadd.f32 0.0, %v3973
  %v3975 = vpop.f32.mrb[0].mxu0
  %3976 = vmatprep.mubr.f32.mxu0 0.0
  %3977 = vmatmul.mubr.f32.gmra.mrb[0].mxu0 %v3303
  %v3978 = vpop.f32.mrb[0].mxu0
  %v3979 = vadd.f32 0.0, %v3978
  %v3980 = vpop.f32.mrb[0].mxu0
  %3981 = vmatprep.mubr.f32.mxu0 0.0
  %3982 = vmatmul.mubr.f32.gmra.mrb[0].mxu0 %v3306
  %v3983 = vpop.f32.mrb[0].mxu0
  %v3984 = vadd.f32 0.0, %v3983
  %v3985 = vpop.f32.mrb[0].mxu0
  %3986 = vmatprep.mubr.f32.mxu0 0.0
  %3987 = vmatmul.mubr.f32.gmra.mrb[0].mxu0 %v3309
  %v3988 = vpop.f32.mrb[0].mxu0
  %v3989 = vadd.f32 0.0, %v3988
  %v3990 = vpop.f32.mrb[0].mxu0
  %3991 = vmatprep.mubr.f32.mxu0 0.0
  %3992 = vmatmul.mubr.f32.gmra.mrb[0].mxu0 %v3312
  %v3993 = vpop.f32.mrb[0].mxu0
  %v3994 = vadd.f32 0.0, %v3993
  %v3995 = vpop.f32.mrb[0].mxu0
  %3996 = vmatprep.mubr.f32.mxu0 0.0
  %3997 = vmatmul.mubr.f32.gmra.mrb[0].mxu0 %v3315
  %v3998 = vpop.f32.mrb[0].mxu0
  %v3999 = vadd.f32 0.0, %v3998
  %v4000 = vpop.f32.mrb[0].mxu0
  %4001 = vmatprep.mubr.f32.mxu0 0.0
  %4002 = vmatmul.mubr.f32.gmra.mrb[0].mxu0 %v3318
  %v4003 = vpop.f32.mrb[0].mxu0
  %v4004 = vadd.f32 0.0, %v4003
  %v4005 = vpop.f32.mrb[0].mxu0
  %4006 = vmatprep.mubr.f32.mxu0 0.0
  %4007 = vmatmul.mubr.f32.gmra.mrb[0].mxu0 %v3321
  %v4008 = vpop.f32.mrb[0].mxu0
  %v4009 = vadd.f32 0.0, %v4008
  %v4010 = vpop.f32.mrb[0].mxu0
  %4011 = vmatprep.mubr.f32.mxu0 0.0
  %4012 = vmatmul.mubr.f32.gmra.mrb[0].mxu0 %v3324
  %v4013 = vpop.f32.mrb[0].mxu0
  %v4014 = vadd.f32 0.0, %v4013
  %v4015 = vpop.f32.mrb[0].mxu0
  %4016 = vmatprep.mubr.f32.mxu0 0.0
  %4017 = vmatmul.mubr.f32.gmra.mrb[0].mxu0 %v3327
  %v4018 = vpop.f32.mrb[0].mxu0
  %v4019 = vadd.f32 0.0, %v4018
  %v4020 = vpop.f32.mrb[0].mxu0
  %4021 = vmatprep.mubr.f32.mxu0 0.0
  %4022 = vmatmul.mubr.f32.gmra.mrb[0].mxu0 %v3330
  %v4023 = vpop.f32.mrb[0].mxu0
  %v4024 = vadd.f32 0.0, %v4023
  %v4025 = vpop.f32.mrb[0].mxu0
  %4026 = vmatprep.mubr.f32.mxu0 0.0
  %4027 = vmatmul.mubr.f32.gmra.mrb[0].mxu0 %v3333
  %v4028 = vpop.f32.mrb[0].mxu0
  %v4029 = vadd.f32 0.0, %v4028
  %v4030 = vpop.f32.mrb[0].mxu0
  %4031 = vmatprep.mubr.f32.mxu0 0.0
  %4032 = vmatmul.mubr.f32.gmra.mrb[0].mxu0 %v3336
  %v4033 = vpop.f32.mrb[0].mxu0
  %v4034 = vadd.f32 0.0, %v4033
  %v4035 = vpop.f32.mrb[0].mxu0
  %4036 = vmatprep.mubr.f32.mxu0 0.0
  %4037 = vmatmul.mubr.f32.gmra.mrb[0].mxu0 %v3339
  %v4038 = vpop.f32.mrb[0].mxu0
  %v4039 = vadd.f32 0.0, %v4038
  %v4040 = vpop.f32.mrb[0].mxu0
  %4041 = vmatprep.mubr.f32.mxu0 0.0
  %4042 = vmatmul.mubr.f32.gmra.mrb[0].mxu0 %v3342
  %v4043 = vpop.f32.mrb[0].mxu0
  %v4044 = vadd.f32 0.0, %v4043
  %v4045 = vpop.f32.mrb[0].mxu0
  %4046 = vmatprep.mubr.f32.mxu0 0.0
  %4047 = vmatmul.mubr.f32.gmra.mrb[0].mxu0 %v3345
  %v4048 = vpop.f32.mrb[0].mxu0
  %v4049 = vadd.f32 0.0, %v4048
  %v4050 = vpop.f32.mrb[0].mxu0
  %4051 = vmatprep.mubr.f32.mxu0 0.0
  %4052 = vmatmul.mubr.f32.gmra.mrb[0].mxu0 %v3348
  %v4053 = vpop.f32.mrb[0].mxu0
  %v4054 = vadd.f32 0.0, %v4053
  %v4055 = vpop.f32.mrb[0].mxu0
  %4056 = vmatprep.mubr.f32.mxu0 0.0
  %4057 = vmatmul.mubr.f32.gmra.mrb[0].mxu0 %v3351
  %v4058 = vpop.f32.mrb[0].mxu0
  %v4059 = vadd.f32 0.0, %v4058
  %v4060 = vpop.f32.mrb[0].mxu0
  %4061 = vmatprep.mubr.f32.mxu0 0.0
  %4062 = vmatmul.mubr.f32.gmra.mrb[0].mxu0 %v3354
  %v4063 = vpop.f32.mrb[0].mxu0
  %v4064 = vadd.f32 0.0, %v4063
  %v4065 = vpop.f32.mrb[0].mxu0
  %4066 = vmatprep.mubr.f32.mxu0 0.0
  %4067 = vmatmul.mubr.f32.gmra.mrb[0].mxu0 %v3357
  %v4068 = vpop.f32.mrb[0].mxu0
  %v4069 = vadd.f32 0.0, %v4068
  %v4070 = vpop.f32.mrb[0].mxu0
  %4071 = vmatprep.mubr.f32.mxu0 0.0
  %4072 = vmatmul.mubr.f32.gmra.mrb[0].mxu0 %v3360
  %v4073 = vpop.f32.mrb[0].mxu0
  %v4074 = vadd.f32 0.0, %v4073
  %v4075 = vpop.f32.mrb[0].mxu0
  %4076 = vmatprep.mubr.f32.mxu0 0.0
  %4077 = vmatmul.mubr.f32.gmra.mrb[0].mxu0 %v3363
  %v4078 = vpop.f32.mrb[0].mxu0
  %v4079 = vadd.f32 0.0, %v4078
  %v4080 = vpop.f32.mrb[0].mxu0
  %4081 = vmatprep.mubr.f32.mxu0 0.0
  %4082 = vmatmul.mubr.f32.gmra.mrb[0].mxu0 %v3366
  %v4083 = vpop.f32.mrb[0].mxu0
  %v4084 = vadd.f32 0.0, %v4083
  %v4085 = vpop.f32.mrb[0].mxu0
  %4086 = vmatprep.mubr.f32.mxu0 0.0
  %4087 = vmatmul.mubr.f32.gmra.mrb[0].mxu0 %v3369
  %v4088 = vpop.f32.mrb[0].mxu0
  %v4089 = vadd.f32 0.0, %v4088
  %v4090 = vpop.f32.mrb[0].mxu0
  %4091 = vmatprep.mubr.f32.mxu0 0.0
  %4092 = vmatmul.mubr.f32.gmra.mrb[0].mxu0 %v3372
  %v4093 = vpop.f32.mrb[0].mxu0
  %v4094 = vadd.f32 0.0, %v4093
  %v4095 = vpop.f32.mrb[0].mxu0
  %4096 = vmatprep.mubr.f32.mxu0 0.0
  %4097 = vmatmul.mubr.f32.gmra.mrb[0].mxu0 %v3375
  %v4098 = vpop.f32.mrb[0].mxu0
  %v4099 = vadd.f32 0.0, %v4098
  %v4100 = vpop.f32.mrb[0].mxu0
  %4101 = vmatprep.mubr.f32.mxu0 0.0
  %4102 = vmatmul.mubr.f32.gmra.mrb[0].mxu0 %v3378
  %v4103 = vpop.f32.mrb[0].mxu0
  %v4104 = vadd.f32 0.0, %v4103
  %v4105 = vpop.f32.mrb[0].mxu0
  %4106 = vmatprep.mubr.f32.mxu0 0.0
  %4107 = vmatmul.mubr.f32.gmra.mrb[0].mxu0 %v3381
  %v4108 = vpop.f32.mrb[0].mxu0
  %v4109 = vadd.f32 0.0, %v4108
  %v4110 = vpop.f32.mrb[0].mxu0
  %4111 = vmatprep.mubr.f32.mxu0 0.0
  %4112 = vmatmul.mubr.f32.gmra.mrb[0].mxu0 %v3384
  %v4113 = vpop.f32.mrb[0].mxu0
  %v4114 = vadd.f32 0.0, %v4113
  %v4115 = vpop.f32.mrb[0].mxu0
  %4116 = vmatprep.mubr.f32.mxu0 0.0
  %4117 = vmatmul.mubr.f32.gmra.mrb[0].mxu0 %v3387
  %v4118 = vpop.f32.mrb[0].mxu0
  %v4119 = vadd.f32 0.0, %v4118
  %v4120 = vpop.f32.mrb[0].mxu0
  %4121 = vmatprep.mubr.f32.mxu0 0.0
  %4122 = vmatmul.mubr.f32.gmra.mrb[0].mxu0 %v3390
  %v4123 = vpop.f32.mrb[0].mxu0
  %v4124 = vadd.f32 0.0, %v4123
  %v4125 = vpop.f32.mrb[0].mxu0
  %4126 = vmatprep.mubr.f32.mxu0 0.0
  %4127 = vmatmul.mubr.f32.gmra.mrb[0].mxu0 %v3393
  %v4128 = vpop.f32.mrb[0].mxu0
  %v4129 = vadd.f32 0.0, %v4128
  %v4130 = vpop.f32.mrb[0].mxu0
  %4131 = vmatprep.mubr.f32.mxu0 0.0
  %4132 = vmatmul.mubr.f32.gmra.mrb[0].mxu0 %v3396
  %v4133 = vpop.f32.mrb[0].mxu0
  %v4134 = vadd.f32 0.0, %v4133
  %v4135 = vpop.f32.mrb[0].mxu0
  %4136 = vmatprep.mubr.f32.mxu0 0.0
  %4137 = vmatmul.mubr.f32.gmra.mrb[0].mxu0 %v3399
  %v4138 = vpop.f32.mrb[0].mxu0
  %v4139 = vadd.f32 0.0, %v4138
  %v4140 = vpop.f32.mrb[0].mxu0
  %4141 = vmatprep.mubr.f32.mxu0 0.0
  %4142 = vmatmul.mubr.f32.gmra.mrb[0].mxu0 %v3402
  %v4143 = vpop.f32.mrb[0].mxu0
  %v4144 = vadd.f32 0.0, %v4143
  %v4145 = vpop.f32.mrb[0].mxu0
  %4146 = vmatprep.mubr.f32.mxu0 0.0
  %4147 = vmatmul.mubr.f32.gmra.mrb[0].mxu0 %v3405
  %v4148 = vpop.f32.mrb[0].mxu0
  %v4149 = vadd.f32 0.0, %v4148
  %v4150 = vpop.f32.mrb[0].mxu0
  %4151 = vmatprep.mubr.f32.mxu0 0.0
  %4152 = vmatmul.mubr.f32.gmra.mrb[0].mxu0 %v3408
  %v4153 = vpop.f32.mrb[0].mxu0
  %v4154 = vadd.f32 0.0, %v4153
  %v4155 = vpop.f32.mrb[0].mxu0
  %4156 = vmatprep.mubr.f32.mxu0 0.0
  %4157 = vmatmul.mubr.f32.gmra.mrb[0].mxu0 %v3411
  %v4158 = vpop.f32.mrb[0].mxu0
  %v4159 = vadd.f32 0.0, %v4158
  %v4160 = vpop.f32.mrb[0].mxu0
  %4161 = vmatprep.mubr.f32.mxu0 0.0
  %4162 = vmatmul.mubr.f32.gmra.mrb[0].mxu0 %v3414
  %v4163 = vpop.f32.mrb[0].mxu0
  %v4164 = vadd.f32 0.0, %v4163
  %v4165 = vpop.f32.mrb[0].mxu0
  %4166 = vmatprep.mubr.f32.mxu0 0.0
  %4167 = vmatmul.mubr.f32.gmra.mrb[0].mxu0 %v3417
  %v4168 = vpop.f32.mrb[0].mxu0
  %v4169 = vadd.f32 0.0, %v4168
  %v4170 = vpop.f32.mrb[0].mxu0
  %4171 = vmatprep.mubr.f32.mxu0 0.0
  %4172 = vmatmul.mubr.f32.gmra.mrb[0].mxu0 %v3420
  %v4173 = vpop.f32.mrb[0].mxu0
  %v4174 = vadd.f32 0.0, %v4173
  %v4175 = vpop.f32.mrb[0].mxu0
  %4176 = vmatprep.mubr.f32.mxu0 0.0
  %4177 = vmatmul.mubr.f32.gmra.mrb[0].mxu0 %v3423
  %v4178 = vpop.f32.mrb[0].mxu0
  %v4179 = vadd.f32 0.0, %v4178
  %v4180 = vpop.f32.mrb[0].mxu0
  %4181 = vmatprep.mubr.f32.mxu0 0.0
  %4182 = vmatmul.mubr.f32.gmra.mrb[0].mxu0 %v3426
  %v4183 = vpop.f32.mrb[0].mxu0
  %v4184 = vadd.f32 0.0, %v4183
  %v4185 = vpop.f32.mrb[0].mxu0
  %4186 = vmatprep.mubr.f32.mxu0 0.0
  %4187 = vmatmul.mubr.f32.gmra.mrb[0].mxu0 %v3429
  %v4188 = vpop.f32.mrb[0].mxu0
  %v4189 = vadd.f32 0.0, %v4188
  %v4190 = vpop.f32.mrb[0].mxu0
  %4191 = vmatprep.mubr.f32.mxu0 0.0
  %4192 = vmatmul.mubr.f32.gmra.mrb[0].mxu0 %v3432
  %v4193 = vpop.f32.mrb[0].mxu0
  %v4194 = vadd.f32 0.0, %v4193
  %v4195 = vpop.f32.mrb[0].mxu0
  %4196 = vmatprep.mubr.f32.mxu0 0.0
  %4197 = vmatmul.mubr.f32.gmra.mrb[0].mxu0 %v3435
  %v4198 = vpop.f32.mrb[0].mxu0
  %v4199 = vadd.f32 0.0, %v4198
  %v4200 = vpop.f32.mrb[0].mxu0
  %4201 = vmatprep.mubr.f32.mxu0 0.0
  %4202 = vmatmul.mubr.f32.gmra.mrb[0].mxu0 %v3438
  %v4203 = vpop.f32.mrb[0].mxu0
  %v4204 = vadd.f32 0.0, %v4203
  %v4205 = vpop.f32.mrb[0].mxu0
  %4206 = vmatprep.mubr.f32.mxu0 0.0
  %4207 = vmatmul.mubr.f32.gmra.mrb[0].mxu0 %v3441
  %v4208 = vpop.f32.mrb[0].mxu0
  %v4209 = vadd.f32 0.0, %v4208
  %v4210 = vpop.f32.mrb[0].mxu0
  %4211 = vmatprep.mubr.f32.mxu0 0.0
  %4212 = vmatmul.mubr.f32.gmra.mrb[0].mxu0 %v3444
  %v4213 = vpop.f32.mrb[0].mxu0
  %v4214 = vadd.f32 0.0, %v4213
  %v4215 = vpop.f32.mrb[0].mxu0
  %4216 = vmatprep.mubr.f32.mxu0 0.0
  %4217 = vmatmul.mubr.f32.gmra.mrb[0].mxu0 %v3447
  %v4218 = vpop.f32.mrb[0].mxu0
  %v4219 = vadd.f32 0.0, %v4218
  %v4220 = vpop.f32.mrb[0].mxu0
  %4221 = vmatprep.mubr.f32.mxu0 0.0
  %4222 = vmatmul.mubr.f32.gmra.mrb[0].mxu0 %v3450
  %v4223 = vpop.f32.mrb[0].mxu0
  %v4224 = vadd.f32 0.0, %v4223
  %v4225 = vpop.f32.mrb[0].mxu0
  %4226 = vmatprep.mubr.f32.mxu0 0.0
  %4227 = vmatmul.mubr.f32.gmra.mrb[0].mxu0 %v3453
  %v4228 = vpop.f32.mrb[0].mxu0
  %v4229 = vadd.f32 0.0, %v4228
  %v4230 = vpop.f32.mrb[0].mxu0
  %4231 = vmatprep.mubr.f32.mxu0 0.0
  %4232 = vmatmul.mubr.f32.gmra.mrb[0].mxu0 %v3456
  %v4233 = vpop.f32.mrb[0].mxu0
  %v4234 = vadd.f32 0.0, %v4233
  %v4235 = vpop.f32.mrb[0].mxu0
  %4236 = vmatprep.mubr.f32.mxu0 0.0
  %4237 = vmatmul.mubr.f32.gmra.mrb[0].mxu0 %v3459
  %v4238 = vpop.f32.mrb[0].mxu0
  %v4239 = vadd.f32 0.0, %v4238
  %v4240 = vpop.f32.mrb[0].mxu0
  %4241 = vmatprep.mubr.f32.mxu0 0.0
  %4242 = vmatmul.mubr.f32.gmra.mrb[0].mxu0 %v3462
  %v4243 = vpop.f32.mrb[0].mxu0
  %v4244 = vadd.f32 0.0, %v4243
  %v4245 = vpop.f32.mrb[0].mxu0
  %4246 = vmatprep.mubr.f32.mxu0 0.0
  %4247 = vmatmul.mubr.f32.gmra.mrb[0].mxu0 %v3465
  %v4248 = vpop.f32.mrb[0].mxu0
  %v4249 = vadd.f32 0.0, %v4248
  %v4250 = vpop.f32.mrb[0].mxu0
  %4251 = vdwg.mxu0
  %s4252 = scalar_lea.vmem %s0, 3456
  %v4253 = vld [vmem:[%s4252] sm:$0xff]
  %v4254 = vld [vmem:[%s4252 + $0x8] sm:$0xff]
  %v4255 = vld [vmem:[%s4252 + $0x10] sm:$0xff]
  %v4256 = vld [vmem:[%s4252 + $0x18] sm:$0xff]
  %v4257 = vld [vmem:[%s4252 + $0x20] sm:$0xff]
  %v4258 = vld [vmem:[%s4252 + $0x28] sm:$0xff]
  %v4259 = vld [vmem:[%s4252 + $0x30] sm:$0xff]
  %v4260 = vld [vmem:[%s4252 + $0x38] sm:$0xff]
  %v4261 = vld [vmem:[%s4252 + $0x40] sm:$0xff]
  %v4262 = vld [vmem:[%s4252 + $0x48] sm:$0xff]
  %v4263 = vld [vmem:[%s4252 + $0x50] sm:$0xff]
  %v4264 = vld [vmem:[%s4252 + $0x58] sm:$0xff]
  %v4265 = vld [vmem:[%s4252 + $0x60] sm:$0xff]
  %v4266 = vld [vmem:[%s4252 + $0x68] sm:$0xff]
  %v4267 = vld [vmem:[%s4252 + $0x70] sm:$0xff]
  %v4268 = vld [vmem:[%s4252 + $0x78] sm:$0xff]
  %v4269 = vld [vmem:[%s4252 + $0x80] sm:$0xff]
  %v4270 = vld [vmem:[%s4252 + $0x88] sm:$0xff]
  %v4271 = vld [vmem:[%s4252 + $0x90] sm:$0xff]
  %v4272 = vld [vmem:[%s4252 + $0x98] sm:$0xff]
  %v4273 = vld [vmem:[%s4252 + $0xa0] sm:$0xff]
  %v4274 = vld [vmem:[%s4252 + $0xa8] sm:$0xff]
  %v4275 = vld [vmem:[%s4252 + $0xb0] sm:$0xff]
  %v4276 = vld [vmem:[%s4252 + $0xb8] sm:$0xff]
  %v4277 = vld [vmem:[%s4252 + $0xc0] sm:$0xff]
  %v4278 = vld [vmem:[%s4252 + $0xc8] sm:$0xff]
  %v4279 = vld [vmem:[%s4252 + $0xd0] sm:$0xff]
  %v4280 = vld [vmem:[%s4252 + $0xd8] sm:$0xff]
  %v4281 = vld [vmem:[%s4252 + $0xe0] sm:$0xff]
  %v4282 = vld [vmem:[%s4252 + $0xe8] sm:$0xff]
  %v4283 = vld [vmem:[%s4252 + $0xf0] sm:$0xff]
  %v4284 = vld [vmem:[%s4252 + $0xf8] sm:$0xff]
  %v4285 = vld [vmem:[%s4252 + $0x100] sm:$0xff]
  %v4286 = vld [vmem:[%s4252 + $0x108] sm:$0xff]
  %v4287 = vld [vmem:[%s4252 + $0x110] sm:$0xff]
  %v4288 = vld [vmem:[%s4252 + $0x118] sm:$0xff]
  %v4289 = vld [vmem:[%s4252 + $0x120] sm:$0xff]
  %v4290 = vld [vmem:[%s4252 + $0x128] sm:$0xff]
  %v4291 = vld [vmem:[%s4252 + $0x130] sm:$0xff]
  %v4292 = vld [vmem:[%s4252 + $0x138] sm:$0xff]
  %v4293 = vld [vmem:[%s4252 + $0x140] sm:$0xff]
  %v4294 = vld [vmem:[%s4252 + $0x148] sm:$0xff]
  %v4295 = vld [vmem:[%s4252 + $0x150] sm:$0xff]
  %v4296 = vld [vmem:[%s4252 + $0x158] sm:$0xff]
  %v4297 = vld [vmem:[%s4252 + $0x160] sm:$0xff]
  %v4298 = vld [vmem:[%s4252 + $0x168] sm:$0xff]
  %v4299 = vld [vmem:[%s4252 + $0x170] sm:$0xff]
  %v4300 = vld [vmem:[%s4252 + $0x178] sm:$0xff]
  %v4301 = vld [vmem:[%s4252 + $0x180] sm:$0xff]
  %v4302 = vld [vmem:[%s4252 + $0x188] sm:$0xff]
  %v4303 = vld [vmem:[%s4252 + $0x190] sm:$0xff]
  %v4304 = vld [vmem:[%s4252 + $0x198] sm:$0xff]
  %v4305 = vld [vmem:[%s4252 + $0x1a0] sm:$0xff]
  %v4306 = vld [vmem:[%s4252 + $0x1a8] sm:$0xff]
  %v4307 = vld [vmem:[%s4252 + $0x1b0] sm:$0xff]
  %v4308 = vld [vmem:[%s4252 + $0x1b8] sm:$0xff]
  %v4309 = vld [vmem:[%s4252 + $0x1c0] sm:$0xff]
  %v4310 = vld [vmem:[%s4252 + $0x1c8] sm:$0xff]
  %v4311 = vld [vmem:[%s4252 + $0x1d0] sm:$0xff]
  %v4312 = vld [vmem:[%s4252 + $0x1d8] sm:$0xff]
  %v4313 = vld [vmem:[%s4252 + $0x1e0] sm:$0xff]
  %v4314 = vld [vmem:[%s4252 + $0x1e8] sm:$0xff]
  %v4315 = vld [vmem:[%s4252 + $0x1f0] sm:$0xff]
  %v4316 = vld [vmem:[%s4252 + $0x1f8] sm:$0xff]
  %v4317 = vld [vmem:[%s4252 + $0x200] sm:$0xff]
  %v4318 = vld [vmem:[%s4252 + $0x208] sm:$0xff]
  %v4319 = vld [vmem:[%s4252 + $0x210] sm:$0xff]
  %v4320 = vld [vmem:[%s4252 + $0x218] sm:$0xff]
  %v4321 = vld [vmem:[%s4252 + $0x220] sm:$0xff]
  %v4322 = vld [vmem:[%s4252 + $0x228] sm:$0xff]
  %v4323 = vld [vmem:[%s4252 + $0x230] sm:$0xff]
  %v4324 = vld [vmem:[%s4252 + $0x238] sm:$0xff]
  %v4325 = vld [vmem:[%s4252 + $0x240] sm:$0xff]
  %v4326 = vld [vmem:[%s4252 + $0x248] sm:$0xff]
  %v4327 = vld [vmem:[%s4252 + $0x250] sm:$0xff]
  %v4328 = vld [vmem:[%s4252 + $0x258] sm:$0xff]
  %v4329 = vld [vmem:[%s4252 + $0x260] sm:$0xff]
  %v4330 = vld [vmem:[%s4252 + $0x268] sm:$0xff]
  %v4331 = vld [vmem:[%s4252 + $0x270] sm:$0xff]
  %v4332 = vld [vmem:[%s4252 + $0x278] sm:$0xff]
  %v4333 = vld [vmem:[%s4252 + $0x280] sm:$0xff]
  %v4334 = vld [vmem:[%s4252 + $0x288] sm:$0xff]
  %v4335 = vld [vmem:[%s4252 + $0x290] sm:$0xff]
  %v4336 = vld [vmem:[%s4252 + $0x298] sm:$0xff]
  %v4337 = vld [vmem:[%s4252 + $0x2a0] sm:$0xff]
  %v4338 = vld [vmem:[%s4252 + $0x2a8] sm:$0xff]
  %v4339 = vld [vmem:[%s4252 + $0x2b0] sm:$0xff]
  %v4340 = vld [vmem:[%s4252 + $0x2b8] sm:$0xff]
  %v4341 = vld [vmem:[%s4252 + $0x2c0] sm:$0xff]
  %v4342 = vld [vmem:[%s4252 + $0x2c8] sm:$0xff]
  %v4343 = vld [vmem:[%s4252 + $0x2d0] sm:$0xff]
  %v4344 = vld [vmem:[%s4252 + $0x2d8] sm:$0xff]
  %v4345 = vld [vmem:[%s4252 + $0x2e0] sm:$0xff]
  %v4346 = vld [vmem:[%s4252 + $0x2e8] sm:$0xff]
  %v4347 = vld [vmem:[%s4252 + $0x2f0] sm:$0xff]
  %v4348 = vld [vmem:[%s4252 + $0x2f8] sm:$0xff]
  %v4349 = vld [vmem:[%s4252 + $0x300] sm:$0xff]
  %v4350 = vld [vmem:[%s4252 + $0x308] sm:$0xff]
  %v4351 = vld [vmem:[%s4252 + $0x310] sm:$0xff]
  %v4352 = vld [vmem:[%s4252 + $0x318] sm:$0xff]
  %v4353 = vld [vmem:[%s4252 + $0x320] sm:$0xff]
  %v4354 = vld [vmem:[%s4252 + $0x328] sm:$0xff]
  %v4355 = vld [vmem:[%s4252 + $0x330] sm:$0xff]
  %v4356 = vld [vmem:[%s4252 + $0x338] sm:$0xff]
  %v4357 = vld [vmem:[%s4252 + $0x340] sm:$0xff]
  %v4358 = vld [vmem:[%s4252 + $0x348] sm:$0xff]
  %v4359 = vld [vmem:[%s4252 + $0x350] sm:$0xff]
  %v4360 = vld [vmem:[%s4252 + $0x358] sm:$0xff]
  %v4361 = vld [vmem:[%s4252 + $0x360] sm:$0xff]
  %v4362 = vld [vmem:[%s4252 + $0x368] sm:$0xff]
  %v4363 = vld [vmem:[%s4252 + $0x370] sm:$0xff]
  %v4364 = vld [vmem:[%s4252 + $0x378] sm:$0xff]
  %v4365 = vld [vmem:[%s4252 + $0x380] sm:$0xff]
  %v4366 = vld [vmem:[%s4252 + $0x388] sm:$0xff]
  %v4367 = vld [vmem:[%s4252 + $0x390] sm:$0xff]
  %v4368 = vld [vmem:[%s4252 + $0x398] sm:$0xff]
  %v4369 = vld [vmem:[%s4252 + $0x3a0] sm:$0xff]
  %v4370 = vld [vmem:[%s4252 + $0x3a8] sm:$0xff]
  %v4371 = vld [vmem:[%s4252 + $0x3b0] sm:$0xff]
  %v4372 = vld [vmem:[%s4252 + $0x3b8] sm:$0xff]
  %v4373 = vld [vmem:[%s4252 + $0x3c0] sm:$0xff]
  %v4374 = vld [vmem:[%s4252 + $0x3c8] sm:$0xff]
  %v4375 = vld [vmem:[%s4252 + $0x3d0] sm:$0xff]
  %v4376 = vld [vmem:[%s4252 + $0x3d8] sm:$0xff]
  %v4377 = vld [vmem:[%s4252 + $0x3e0] sm:$0xff]
  %v4378 = vld [vmem:[%s4252 + $0x3e8] sm:$0xff]
  %v4379 = vld [vmem:[%s4252 + $0x3f0] sm:$0xff]
  %v4380 = vld [vmem:[%s4252 + $0x3f8] sm:$0xff]
  %v4381 = vld [vmem:[%s4252 + $0x400] sm:$0xff]
  %v4382 = vld [vmem:[%s4252 + $0x408] sm:$0xff]
  %v4383 = vld [vmem:[%s4252 + $0x410] sm:$0xff]
  %v4384 = vld [vmem:[%s4252 + $0x418] sm:$0xff]
  %v4385 = vld [vmem:[%s4252 + $0x420] sm:$0xff]
  %v4386 = vld [vmem:[%s4252 + $0x428] sm:$0xff]
  %v4387 = vld [vmem:[%s4252 + $0x430] sm:$0xff]
  %v4388 = vld [vmem:[%s4252 + $0x438] sm:$0xff]
  %v4389 = vld [vmem:[%s4252 + $0x440] sm:$0xff]
  %v4390 = vld [vmem:[%s4252 + $0x448] sm:$0xff]
  %v4391 = vld [vmem:[%s4252 + $0x450] sm:$0xff]
  %v4392 = vld [vmem:[%s4252 + $0x458] sm:$0xff]
  %v4393 = vld [vmem:[%s4252 + $0x460] sm:$0xff]
  %v4394 = vld [vmem:[%s4252 + $0x468] sm:$0xff]
  %v4395 = vld [vmem:[%s4252 + $0x470] sm:$0xff]
  %v4396 = vld [vmem:[%s4252 + $0x478] sm:$0xff]
  %v4398 = vsel %vm162, %v4253, 0
  %v4401 = vsel %vm162, %v4254, 0
  %v4404 = vsel %vm162, %v4255, 0
  %v4407 = vsel %vm162, %v4256, 0
  %v4410 = vsel %vm162, %v4257, 0
  %v4413 = vsel %vm162, %v4258, 0
  %v4416 = vsel %vm162, %v4259, 0
  %v4419 = vsel %vm162, %v4260, 0
  %v4422 = vsel %vm162, %v4261, 0
  %v4425 = vsel %vm162, %v4262, 0
  %v4428 = vsel %vm162, %v4263, 0
  %v4431 = vsel %vm162, %v4264, 0
  %v4434 = vsel %vm162, %v4265, 0
  %v4437 = vsel %vm162, %v4266, 0
  %v4440 = vsel %vm162, %v4267, 0
  %v4443 = vsel %vm162, %v4268, 0
  %v4446 = vsel %vm162, %v4269, 0
  %v4449 = vsel %vm162, %v4270, 0
  %v4452 = vsel %vm162, %v4271, 0
  %v4455 = vsel %vm162, %v4272, 0
  %v4458 = vsel %vm162, %v4273, 0
  %v4461 = vsel %vm162, %v4274, 0
  %v4464 = vsel %vm162, %v4275, 0
  %v4467 = vsel %vm162, %v4276, 0
  %v4470 = vsel %vm162, %v4277, 0
  %v4473 = vsel %vm162, %v4278, 0
  %v4476 = vsel %vm162, %v4279, 0
  %v4479 = vsel %vm162, %v4280, 0
  %v4482 = vsel %vm162, %v4281, 0
  %v4485 = vsel %vm162, %v4282, 0
  %v4488 = vsel %vm162, %v4283, 0
  %v4491 = vsel %vm162, %v4284, 0
  %v4494 = vsel %vm162, %v4285, 0
  %v4497 = vsel %vm162, %v4286, 0
  %v4500 = vsel %vm162, %v4287, 0
  %v4503 = vsel %vm162, %v4288, 0
  %v4506 = vsel %vm162, %v4289, 0
  %v4509 = vsel %vm162, %v4290, 0
  %v4512 = vsel %vm162, %v4291, 0
  %v4515 = vsel %vm162, %v4292, 0
  %v4518 = vsel %vm162, %v4293, 0
  %v4521 = vsel %vm162, %v4294, 0
  %v4524 = vsel %vm162, %v4295, 0
  %v4527 = vsel %vm162, %v4296, 0
  %v4530 = vsel %vm162, %v4297, 0
  %v4533 = vsel %vm162, %v4298, 0
  %v4536 = vsel %vm162, %v4299, 0
  %v4539 = vsel %vm162, %v4300, 0
  %v4542 = vsel %vm162, %v4301, 0
  %v4545 = vsel %vm162, %v4302, 0
  %v4548 = vsel %vm162, %v4303, 0
  %v4551 = vsel %vm162, %v4304, 0
  %v4554 = vsel %vm162, %v4305, 0
  %v4557 = vsel %vm162, %v4306, 0
  %v4560 = vsel %vm162, %v4307, 0
  %v4563 = vsel %vm162, %v4308, 0
  %v4566 = vsel %vm162, %v4309, 0
  %v4569 = vsel %vm162, %v4310, 0
  %v4572 = vsel %vm162, %v4311, 0
  %v4575 = vsel %vm162, %v4312, 0
  %v4578 = vsel %vm162, %v4313, 0
  %v4581 = vsel %vm162, %v4314, 0
  %v4584 = vsel %vm162, %v4315, 0
  %v4587 = vsel %vm162, %v4316, 0
  %v4590 = vsel %vm162, %v4317, 0
  %v4593 = vsel %vm162, %v4318, 0
  %v4596 = vsel %vm162, %v4319, 0
  %v4599 = vsel %vm162, %v4320, 0
  %v4602 = vsel %vm162, %v4321, 0
  %v4605 = vsel %vm162, %v4322, 0
  %v4608 = vsel %vm162, %v4323, 0
  %v4611 = vsel %vm162, %v4324, 0
  %v4614 = vsel %vm162, %v4325, 0
  %v4617 = vsel %vm162, %v4326, 0
  %v4620 = vsel %vm162, %v4327, 0
  %v4623 = vsel %vm162, %v4328, 0
  %v4626 = vsel %vm162, %v4329, 0
  %v4629 = vsel %vm162, %v4330, 0
  %v4632 = vsel %vm162, %v4331, 0
  %v4635 = vsel %vm162, %v4332, 0
  %v4638 = vsel %vm162, %v4333, 0
  %v4641 = vsel %vm162, %v4334, 0
  %v4644 = vsel %vm162, %v4335, 0
  %v4647 = vsel %vm162, %v4336, 0
  %v4650 = vsel %vm162, %v4337, 0
  %v4653 = vsel %vm162, %v4338, 0
  %v4656 = vsel %vm162, %v4339, 0
  %v4659 = vsel %vm162, %v4340, 0
  %v4662 = vsel %vm162, %v4341, 0
  %v4665 = vsel %vm162, %v4342, 0
  %v4668 = vsel %vm162, %v4343, 0
  %v4671 = vsel %vm162, %v4344, 0
  %v4674 = vsel %vm162, %v4345, 0
  %v4677 = vsel %vm162, %v4346, 0
  %v4680 = vsel %vm162, %v4347, 0
  %v4683 = vsel %vm162, %v4348, 0
  %v4686 = vsel %vm162, %v4349, 0
  %v4689 = vsel %vm162, %v4350, 0
  %v4692 = vsel %vm162, %v4351, 0
  %v4695 = vsel %vm162, %v4352, 0
  %v4698 = vsel %vm162, %v4353, 0
  %v4701 = vsel %vm162, %v4354, 0
  %v4704 = vsel %vm162, %v4355, 0
  %v4707 = vsel %vm162, %v4356, 0
  %v4710 = vsel %vm162, %v4357, 0
  %v4713 = vsel %vm162, %v4358, 0
  %v4716 = vsel %vm162, %v4359, 0
  %v4719 = vsel %vm162, %v4360, 0
  %v4722 = vsel %vm162, %v4361, 0
  %v4725 = vsel %vm162, %v4362, 0
  %v4728 = vsel %vm162, %v4363, 0
  %v4731 = vsel %vm162, %v4364, 0
  %v4734 = vsel %vm162, %v4365, 0
  %v4737 = vsel %vm162, %v4366, 0
  %v4740 = vsel %vm162, %v4367, 0
  %v4743 = vsel %vm162, %v4368, 0
  %v4746 = vsel %vm162, %v4369, 0
  %v4749 = vsel %vm162, %v4370, 0
  %v4752 = vsel %vm162, %v4371, 0
  %v4755 = vsel %vm162, %v4372, 0
  %v4758 = vsel %vm162, %v4373, 0
  %v4761 = vsel %vm162, %v4374, 0
  %v4764 = vsel %vm162, %v4375, 0
  %v4767 = vsel %vm162, %v4376, 0
  %v4770 = vsel %vm162, %v4377, 0
  %v4773 = vsel %vm162, %v4378, 0
  %v4776 = vsel %vm162, %v4379, 0
  %v4779 = vsel %vm162, %v4380, 0
  %v4782 = vsel %vm162, %v4381, 0
  %v4785 = vsel %vm162, %v4382, 0
  %v4788 = vsel %vm162, %v4383, 0
  %v4791 = vsel %vm162, %v4384, 0
  %v4794 = vsel %vm162, %v4385, 0
  %v4797 = vsel %vm162, %v4386, 0
  %v4800 = vsel %vm162, %v4387, 0
  %v4803 = vsel %vm162, %v4388, 0
  %v4806 = vsel %vm162, %v4389, 0
  %v4809 = vsel %vm162, %v4390, 0
  %v4812 = vsel %vm162, %v4391, 0
  %v4815 = vsel %vm162, %v4392, 0
  %v4818 = vsel %vm162, %v4393, 0
  %v4821 = vsel %vm162, %v4394, 0
  %v4824 = vsel %vm162, %v4395, 0
  %v4827 = vsel %vm162, %v4396, 0
  %4829 = vmatprep.subr.mxu0 0.0
  %4830 = vmatpush1.msra.mxu0 %v14
  %4831 = vmatprep.subr.mxu0 0.0
  %4832 = vmatpush1.msra.mxu0 %v15
  %4833 = vmatprep.subr.mxu0 0.0
  %4834 = vmatpush1.msra.mxu0 %v16
  %4835 = vmatprep.subr.mxu0 0.0
  %4836 = vmatpush1.msra.mxu0 %v597
  %4837 = vmatprep.subr.mxu0 0.0
  %4838 = vmatpush1.msra.mxu0 0.0
  %4839 = vmatprep.subr.mxu0 0.0
  %4840 = vmatpush1.msra.mxu0 0.0
  %4841 = vmatprep.subr.mxu0 0.0
  %4842 = vmatpush1.msra.mxu0 0.0
  %4843 = vmatprep.subr.mxu0 0.0
  %4844 = vmatpush1.msra.mxu0 0.0
  %4845 = vmatprep.subr.mxu0 0.0
  %4846 = vmatpush1.msra.mxu0 0.0
  %4847 = vmatprep.subr.mxu0 0.0
  %4848 = vmatpush1.msra.mxu0 0.0
  %4849 = vmatprep.subr.mxu0 0.0
  %4850 = vmatpush1.msra.mxu0 0.0
  %4851 = vmatprep.subr.mxu0 0.0
  %4852 = vmatpush1.msra.mxu0 0.0
  %4853 = vmatprep.subr.mxu0 0.0
  %4854 = vmatpush1.msra.mxu0 0.0
  %4855 = vmatprep.subr.mxu0 0.0
  %4856 = vmatpush1.msra.mxu0 0.0
  %4857 = vmatprep.subr.mxu0 0.0
  %4858 = vmatpush1.msra.mxu0 0.0
  %4859 = vmatprep.subr.mxu0 0.0
  %4860 = vmatpush1.msra.mxu0 0.0
  %4861 = vmatprep.subr.mxu0 0.0
  %4862 = vmatpush1.msra.mxu0 0.0
  %4863 = vmatprep.subr.mxu0 0.0
  %4864 = vmatpush1.msra.mxu0 0.0
  %4865 = vmatprep.subr.mxu0 0.0
  %4866 = vmatpush1.msra.mxu0 0.0
  %4867 = vmatprep.subr.mxu0 0.0
  %4868 = vmatpush1.msra.mxu0 0.0
  %4869 = vmatprep.subr.mxu0 0.0
  %4870 = vmatpush1.msra.mxu0 0.0
  %4871 = vmatprep.subr.mxu0 0.0
  %4872 = vmatpush1.msra.mxu0 0.0
  %4873 = vmatprep.subr.mxu0 0.0
  %4874 = vmatpush1.msra.mxu0 0.0
  %4875 = vmatprep.subr.mxu0 0.0
  %4876 = vmatpush1.msra.mxu0 0.0
  %4877 = vmatprep.subr.mxu0 0.0
  %4878 = vmatpush1.msra.mxu0 0.0
  %4879 = vmatprep.subr.mxu0 0.0
  %4880 = vmatpush1.msra.mxu0 0.0
  %4881 = vmatprep.subr.mxu0 0.0
  %4882 = vmatpush1.msra.mxu0 0.0
  %4883 = vmatprep.subr.mxu0 0.0
  %4884 = vmatpush1.msra.mxu0 0.0
  %4885 = vmatprep.subr.mxu0 0.0
  %4886 = vmatpush1.msra.mxu0 0.0
  %4887 = vmatprep.subr.mxu0 0.0
  %4888 = vmatpush1.msra.mxu0 0.0
  %4889 = vmatprep.subr.mxu0 0.0
  %4890 = vmatpush1.msra.mxu0 0.0
  %4891 = vmatprep.subr.mxu0 0.0
  %4892 = vmatpush1.msra.mxu0 0.0
  %4893 = vmatprep.mubr.f32.mxu0 0.0
  %4894 = vmatmul.mubr.f32.gmra.mrb[0].mxu0 %v4398
  %v4895 = vpop.f32.mrb[0].mxu0
  %v4896 = vadd.f32 0.0, %v4895
  %v4897 = vpop.f32.mrb[0].mxu0
  %4898 = vmatprep.mubr.f32.mxu0 0.0
  %4899 = vmatmul.mubr.f32.gmra.mrb[0].mxu0 %v4401
  %v4900 = vpop.f32.mrb[0].mxu0
  %v4901 = vadd.f32 0.0, %v4900
  %v4902 = vpop.f32.mrb[0].mxu0
  %4903 = vmatprep.mubr.f32.mxu0 0.0
  %4904 = vmatmul.mubr.f32.gmra.mrb[0].mxu0 %v4404
  %v4905 = vpop.f32.mrb[0].mxu0
  %v4906 = vadd.f32 0.0, %v4905
  %v4907 = vpop.f32.mrb[0].mxu0
  %4908 = vmatprep.mubr.f32.mxu0 0.0
  %4909 = vmatmul.mubr.f32.gmra.mrb[0].mxu0 %v4407
  %v4910 = vpop.f32.mrb[0].mxu0
  %v4911 = vadd.f32 0.0, %v4910
  %v4912 = vpop.f32.mrb[0].mxu0
  %4913 = vmatprep.mubr.f32.mxu0 0.0
  %4914 = vmatmul.mubr.f32.gmra.mrb[0].mxu0 %v4410
  %v4915 = vpop.f32.mrb[0].mxu0
  %v4916 = vadd.f32 0.0, %v4915
  %v4917 = vpop.f32.mrb[0].mxu0
  %4918 = vmatprep.mubr.f32.mxu0 0.0
  %4919 = vmatmul.mubr.f32.gmra.mrb[0].mxu0 %v4413
  %v4920 = vpop.f32.mrb[0].mxu0
  %v4921 = vadd.f32 0.0, %v4920
  %v4922 = vpop.f32.mrb[0].mxu0
  %4923 = vmatprep.mubr.f32.mxu0 0.0
  %4924 = vmatmul.mubr.f32.gmra.mrb[0].mxu0 %v4416
  %v4925 = vpop.f32.mrb[0].mxu0
  %v4926 = vadd.f32 0.0, %v4925
  %v4927 = vpop.f32.mrb[0].mxu0
  %4928 = vmatprep.mubr.f32.mxu0 0.0
  %4929 = vmatmul.mubr.f32.gmra.mrb[0].mxu0 %v4419
  %v4930 = vpop.f32.mrb[0].mxu0
  %v4931 = vadd.f32 0.0, %v4930
  %v4932 = vpop.f32.mrb[0].mxu0
  %4933 = vmatprep.mubr.f32.mxu0 0.0
  %4934 = vmatmul.mubr.f32.gmra.mrb[0].mxu0 %v4422
  %v4935 = vpop.f32.mrb[0].mxu0
  %v4936 = vadd.f32 0.0, %v4935
  %v4937 = vpop.f32.mrb[0].mxu0
  %4938 = vmatprep.mubr.f32.mxu0 0.0
  %4939 = vmatmul.mubr.f32.gmra.mrb[0].mxu0 %v4425
  %v4940 = vpop.f32.mrb[0].mxu0
  %v4941 = vadd.f32 0.0, %v4940
  %v4942 = vpop.f32.mrb[0].mxu0
  %4943 = vmatprep.mubr.f32.mxu0 0.0
  %4944 = vmatmul.mubr.f32.gmra.mrb[0].mxu0 %v4428
  %v4945 = vpop.f32.mrb[0].mxu0
  %v4946 = vadd.f32 0.0, %v4945
  %v4947 = vpop.f32.mrb[0].mxu0
  %4948 = vmatprep.mubr.f32.mxu0 0.0
  %4949 = vmatmul.mubr.f32.gmra.mrb[0].mxu0 %v4431
  %v4950 = vpop.f32.mrb[0].mxu0
  %v4951 = vadd.f32 0.0, %v4950
  %v4952 = vpop.f32.mrb[0].mxu0
  %4953 = vmatprep.mubr.f32.mxu0 0.0
  %4954 = vmatmul.mubr.f32.gmra.mrb[0].mxu0 %v4434
  %v4955 = vpop.f32.mrb[0].mxu0
  %v4956 = vadd.f32 0.0, %v4955
  %v4957 = vpop.f32.mrb[0].mxu0
  %4958 = vmatprep.mubr.f32.mxu0 0.0
  %4959 = vmatmul.mubr.f32.gmra.mrb[0].mxu0 %v4437
  %v4960 = vpop.f32.mrb[0].mxu0
  %v4961 = vadd.f32 0.0, %v4960
  %v4962 = vpop.f32.mrb[0].mxu0
  %4963 = vmatprep.mubr.f32.mxu0 0.0
  %4964 = vmatmul.mubr.f32.gmra.mrb[0].mxu0 %v4440
  %v4965 = vpop.f32.mrb[0].mxu0
  %v4966 = vadd.f32 0.0, %v4965
  %v4967 = vpop.f32.mrb[0].mxu0
  %4968 = vmatprep.mubr.f32.mxu0 0.0
  %4969 = vmatmul.mubr.f32.gmra.mrb[0].mxu0 %v4443
  %v4970 = vpop.f32.mrb[0].mxu0
  %v4971 = vadd.f32 0.0, %v4970
  %v4972 = vpop.f32.mrb[0].mxu0
  %4973 = vmatprep.mubr.f32.mxu0 0.0
  %4974 = vmatmul.mubr.f32.gmra.mrb[0].mxu0 %v4446
  %v4975 = vpop.f32.mrb[0].mxu0
  %v4976 = vadd.f32 0.0, %v4975
  %v4977 = vpop.f32.mrb[0].mxu0
  %4978 = vmatprep.mubr.f32.mxu0 0.0
  %4979 = vmatmul.mubr.f32.gmra.mrb[0].mxu0 %v4449
  %v4980 = vpop.f32.mrb[0].mxu0
  %v4981 = vadd.f32 0.0, %v4980
  %v4982 = vpop.f32.mrb[0].mxu0
  %4983 = vmatprep.mubr.f32.mxu0 0.0
  %4984 = vmatmul.mubr.f32.gmra.mrb[0].mxu0 %v4452
  %v4985 = vpop.f32.mrb[0].mxu0
  %v4986 = vadd.f32 0.0, %v4985
  %v4987 = vpop.f32.mrb[0].mxu0
  %4988 = vmatprep.mubr.f32.mxu0 0.0
  %4989 = vmatmul.mubr.f32.gmra.mrb[0].mxu0 %v4455
  %v4990 = vpop.f32.mrb[0].mxu0
  %v4991 = vadd.f32 0.0, %v4990
  %v4992 = vpop.f32.mrb[0].mxu0
  %4993 = vmatprep.mubr.f32.mxu0 0.0
  %4994 = vmatmul.mubr.f32.gmra.mrb[0].mxu0 %v4458
  %v4995 = vpop.f32.mrb[0].mxu0
  %v4996 = vadd.f32 0.0, %v4995
  %v4997 = vpop.f32.mrb[0].mxu0
  %4998 = vmatprep.mubr.f32.mxu0 0.0
  %4999 = vmatmul.mubr.f32.gmra.mrb[0].mxu0 %v4461
  %v5000 = vpop.f32.mrb[0].mxu0
  %v5001 = vadd.f32 0.0, %v5000
  %v5002 = vpop.f32.mrb[0].mxu0
  %5003 = vmatprep.mubr.f32.mxu0 0.0
  %5004 = vmatmul.mubr.f32.gmra.mrb[0].mxu0 %v4464
  %v5005 = vpop.f32.mrb[0].mxu0
  %v5006 = vadd.f32 0.0, %v5005
  %v5007 = vpop.f32.mrb[0].mxu0
  %5008 = vmatprep.mubr.f32.mxu0 0.0
  %5009 = vmatmul.mubr.f32.gmra.mrb[0].mxu0 %v4467
  %v5010 = vpop.f32.mrb[0].mxu0
  %v5011 = vadd.f32 0.0, %v5010
  %v5012 = vpop.f32.mrb[0].mxu0
  %5013 = vmatprep.mubr.f32.mxu0 0.0
  %5014 = vmatmul.mubr.f32.gmra.mrb[0].mxu0 %v4470
  %v5015 = vpop.f32.mrb[0].mxu0
  %v5016 = vadd.f32 0.0, %v5015
  %v5017 = vpop.f32.mrb[0].mxu0
  %5018 = vmatprep.mubr.f32.mxu0 0.0
  %5019 = vmatmul.mubr.f32.gmra.mrb[0].mxu0 %v4473
  %v5020 = vpop.f32.mrb[0].mxu0
  %v5021 = vadd.f32 0.0, %v5020
  %v5022 = vpop.f32.mrb[0].mxu0
  %5023 = vmatprep.mubr.f32.mxu0 0.0
  %5024 = vmatmul.mubr.f32.gmra.mrb[0].mxu0 %v4476
  %v5025 = vpop.f32.mrb[0].mxu0
  %v5026 = vadd.f32 0.0, %v5025
  %v5027 = vpop.f32.mrb[0].mxu0
  %5028 = vmatprep.mubr.f32.mxu0 0.0
  %5029 = vmatmul.mubr.f32.gmra.mrb[0].mxu0 %v4479
  %v5030 = vpop.f32.mrb[0].mxu0
  %v5031 = vadd.f32 0.0, %v5030
  %v5032 = vpop.f32.mrb[0].mxu0
  %5033 = vmatprep.mubr.f32.mxu0 0.0
  %5034 = vmatmul.mubr.f32.gmra.mrb[0].mxu0 %v4482
  %v5035 = vpop.f32.mrb[0].mxu0
  %v5036 = vadd.f32 0.0, %v5035
  %v5037 = vpop.f32.mrb[0].mxu0
  %5038 = vmatprep.mubr.f32.mxu0 0.0
  %5039 = vmatmul.mubr.f32.gmra.mrb[0].mxu0 %v4485
  %v5040 = vpop.f32.mrb[0].mxu0
  %v5041 = vadd.f32 0.0, %v5040
  %v5042 = vpop.f32.mrb[0].mxu0
  %5043 = vmatprep.mubr.f32.mxu0 0.0
  %5044 = vmatmul.mubr.f32.gmra.mrb[0].mxu0 %v4488
  %v5045 = vpop.f32.mrb[0].mxu0
  %v5046 = vadd.f32 0.0, %v5045
  %v5047 = vpop.f32.mrb[0].mxu0
  %5048 = vmatprep.mubr.f32.mxu0 0.0
  %5049 = vmatmul.mubr.f32.gmra.mrb[0].mxu0 %v4491
  %v5050 = vpop.f32.mrb[0].mxu0
  %v5051 = vadd.f32 0.0, %v5050
  %v5052 = vpop.f32.mrb[0].mxu0
  %5053 = vmatprep.mubr.f32.mxu0 0.0
  %5054 = vmatmul.mubr.f32.gmra.mrb[0].mxu0 %v4494
  %v5055 = vpop.f32.mrb[0].mxu0
  %v5056 = vadd.f32 0.0, %v5055
  %v5057 = vpop.f32.mrb[0].mxu0
  %5058 = vmatprep.mubr.f32.mxu0 0.0
  %5059 = vmatmul.mubr.f32.gmra.mrb[0].mxu0 %v4497
  %v5060 = vpop.f32.mrb[0].mxu0
  %v5061 = vadd.f32 0.0, %v5060
  %v5062 = vpop.f32.mrb[0].mxu0
  %5063 = vmatprep.mubr.f32.mxu0 0.0
  %5064 = vmatmul.mubr.f32.gmra.mrb[0].mxu0 %v4500
  %v5065 = vpop.f32.mrb[0].mxu0
  %v5066 = vadd.f32 0.0, %v5065
  %v5067 = vpop.f32.mrb[0].mxu0
  %5068 = vmatprep.mubr.f32.mxu0 0.0
  %5069 = vmatmul.mubr.f32.gmra.mrb[0].mxu0 %v4503
  %v5070 = vpop.f32.mrb[0].mxu0
  %v5071 = vadd.f32 0.0, %v5070
  %v5072 = vpop.f32.mrb[0].mxu0
  %5073 = vmatprep.mubr.f32.mxu0 0.0
  %5074 = vmatmul.mubr.f32.gmra.mrb[0].mxu0 %v4506
  %v5075 = vpop.f32.mrb[0].mxu0
  %v5076 = vadd.f32 0.0, %v5075
  %v5077 = vpop.f32.mrb[0].mxu0
  %5078 = vmatprep.mubr.f32.mxu0 0.0
  %5079 = vmatmul.mubr.f32.gmra.mrb[0].mxu0 %v4509
  %v5080 = vpop.f32.mrb[0].mxu0
  %v5081 = vadd.f32 0.0, %v5080
  %v5082 = vpop.f32.mrb[0].mxu0
  %5083 = vmatprep.mubr.f32.mxu0 0.0
  %5084 = vmatmul.mubr.f32.gmra.mrb[0].mxu0 %v4512
  %v5085 = vpop.f32.mrb[0].mxu0
  %v5086 = vadd.f32 0.0, %v5085
  %v5087 = vpop.f32.mrb[0].mxu0
  %5088 = vmatprep.mubr.f32.mxu0 0.0
  %5089 = vmatmul.mubr.f32.gmra.mrb[0].mxu0 %v4515
  %v5090 = vpop.f32.mrb[0].mxu0
  %v5091 = vadd.f32 0.0, %v5090
  %v5092 = vpop.f32.mrb[0].mxu0
  %5093 = vmatprep.mubr.f32.mxu0 0.0
  %5094 = vmatmul.mubr.f32.gmra.mrb[0].mxu0 %v4518
  %v5095 = vpop.f32.mrb[0].mxu0
  %v5096 = vadd.f32 0.0, %v5095
  %v5097 = vpop.f32.mrb[0].mxu0
  %5098 = vmatprep.mubr.f32.mxu0 0.0
  %5099 = vmatmul.mubr.f32.gmra.mrb[0].mxu0 %v4521
  %v5100 = vpop.f32.mrb[0].mxu0
  %v5101 = vadd.f32 0.0, %v5100
  %v5102 = vpop.f32.mrb[0].mxu0
  %5103 = vmatprep.mubr.f32.mxu0 0.0
  %5104 = vmatmul.mubr.f32.gmra.mrb[0].mxu0 %v4524
  %v5105 = vpop.f32.mrb[0].mxu0
  %v5106 = vadd.f32 0.0, %v5105
  %v5107 = vpop.f32.mrb[0].mxu0
  %5108 = vmatprep.mubr.f32.mxu0 0.0
  %5109 = vmatmul.mubr.f32.gmra.mrb[0].mxu0 %v4527
  %v5110 = vpop.f32.mrb[0].mxu0
  %v5111 = vadd.f32 0.0, %v5110
  %v5112 = vpop.f32.mrb[0].mxu0
  %5113 = vmatprep.mubr.f32.mxu0 0.0
  %5114 = vmatmul.mubr.f32.gmra.mrb[0].mxu0 %v4530
  %v5115 = vpop.f32.mrb[0].mxu0
  %v5116 = vadd.f32 0.0, %v5115
  %v5117 = vpop.f32.mrb[0].mxu0
  %5118 = vmatprep.mubr.f32.mxu0 0.0
  %5119 = vmatmul.mubr.f32.gmra.mrb[0].mxu0 %v4533
  %v5120 = vpop.f32.mrb[0].mxu0
  %v5121 = vadd.f32 0.0, %v5120
  %v5122 = vpop.f32.mrb[0].mxu0
  %5123 = vmatprep.mubr.f32.mxu0 0.0
  %5124 = vmatmul.mubr.f32.gmra.mrb[0].mxu0 %v4536
  %v5125 = vpop.f32.mrb[0].mxu0
  %v5126 = vadd.f32 0.0, %v5125
  %v5127 = vpop.f32.mrb[0].mxu0
  %5128 = vmatprep.mubr.f32.mxu0 0.0
  %5129 = vmatmul.mubr.f32.gmra.mrb[0].mxu0 %v4539
  %v5130 = vpop.f32.mrb[0].mxu0
  %v5131 = vadd.f32 0.0, %v5130
  %v5132 = vpop.f32.mrb[0].mxu0
  %5133 = vmatprep.mubr.f32.mxu0 0.0
  %5134 = vmatmul.mubr.f32.gmra.mrb[0].mxu0 %v4542
  %v5135 = vpop.f32.mrb[0].mxu0
  %v5136 = vadd.f32 0.0, %v5135
  %v5137 = vpop.f32.mrb[0].mxu0
  %5138 = vmatprep.mubr.f32.mxu0 0.0
  %5139 = vmatmul.mubr.f32.gmra.mrb[0].mxu0 %v4545
  %v5140 = vpop.f32.mrb[0].mxu0
  %v5141 = vadd.f32 0.0, %v5140
  %v5142 = vpop.f32.mrb[0].mxu0
  %5143 = vmatprep.mubr.f32.mxu0 0.0
  %5144 = vmatmul.mubr.f32.gmra.mrb[0].mxu0 %v4548
  %v5145 = vpop.f32.mrb[0].mxu0
  %v5146 = vadd.f32 0.0, %v5145
  %v5147 = vpop.f32.mrb[0].mxu0
  %5148 = vmatprep.mubr.f32.mxu0 0.0
  %5149 = vmatmul.mubr.f32.gmra.mrb[0].mxu0 %v4551
  %v5150 = vpop.f32.mrb[0].mxu0
  %v5151 = vadd.f32 0.0, %v5150
  %v5152 = vpop.f32.mrb[0].mxu0
  %5153 = vmatprep.mubr.f32.mxu0 0.0
  %5154 = vmatmul.mubr.f32.gmra.mrb[0].mxu0 %v4554
  %v5155 = vpop.f32.mrb[0].mxu0
  %v5156 = vadd.f32 0.0, %v5155
  %v5157 = vpop.f32.mrb[0].mxu0
  %5158 = vmatprep.mubr.f32.mxu0 0.0
  %5159 = vmatmul.mubr.f32.gmra.mrb[0].mxu0 %v4557
  %v5160 = vpop.f32.mrb[0].mxu0
  %v5161 = vadd.f32 0.0, %v5160
  %v5162 = vpop.f32.mrb[0].mxu0
  %5163 = vmatprep.mubr.f32.mxu0 0.0
  %5164 = vmatmul.mubr.f32.gmra.mrb[0].mxu0 %v4560
  %v5165 = vpop.f32.mrb[0].mxu0
  %v5166 = vadd.f32 0.0, %v5165
  %v5167 = vpop.f32.mrb[0].mxu0
  %5168 = vmatprep.mubr.f32.mxu0 0.0
  %5169 = vmatmul.mubr.f32.gmra.mrb[0].mxu0 %v4563
  %v5170 = vpop.f32.mrb[0].mxu0
  %v5171 = vadd.f32 0.0, %v5170
  %v5172 = vpop.f32.mrb[0].mxu0
  %5173 = vmatprep.mubr.f32.mxu0 0.0
  %5174 = vmatmul.mubr.f32.gmra.mrb[0].mxu0 %v4566
  %v5175 = vpop.f32.mrb[0].mxu0
  %v5176 = vadd.f32 0.0, %v5175
  %v5177 = vpop.f32.mrb[0].mxu0
  %5178 = vmatprep.mubr.f32.mxu0 0.0
  %5179 = vmatmul.mubr.f32.gmra.mrb[0].mxu0 %v4569
  %v5180 = vpop.f32.mrb[0].mxu0
  %v5181 = vadd.f32 0.0, %v5180
  %v5182 = vpop.f32.mrb[0].mxu0
  %5183 = vmatprep.mubr.f32.mxu0 0.0
  %5184 = vmatmul.mubr.f32.gmra.mrb[0].mxu0 %v4572
  %v5185 = vpop.f32.mrb[0].mxu0
  %v5186 = vadd.f32 0.0, %v5185
  %v5187 = vpop.f32.mrb[0].mxu0
  %5188 = vmatprep.mubr.f32.mxu0 0.0
  %5189 = vmatmul.mubr.f32.gmra.mrb[0].mxu0 %v4575
  %v5190 = vpop.f32.mrb[0].mxu0
  %v5191 = vadd.f32 0.0, %v5190
  %v5192 = vpop.f32.mrb[0].mxu0
  %5193 = vmatprep.mubr.f32.mxu0 0.0
  %5194 = vmatmul.mubr.f32.gmra.mrb[0].mxu0 %v4578
  %v5195 = vpop.f32.mrb[0].mxu0
  %v5196 = vadd.f32 0.0, %v5195
  %v5197 = vpop.f32.mrb[0].mxu0
  %5198 = vmatprep.mubr.f32.mxu0 0.0
  %5199 = vmatmul.mubr.f32.gmra.mrb[0].mxu0 %v4581
  %v5200 = vpop.f32.mrb[0].mxu0
  %v5201 = vadd.f32 0.0, %v5200
  %v5202 = vpop.f32.mrb[0].mxu0
  %5203 = vmatprep.mubr.f32.mxu0 0.0
  %5204 = vmatmul.mubr.f32.gmra.mrb[0].mxu0 %v4584
  %v5205 = vpop.f32.mrb[0].mxu0
  %v5206 = vadd.f32 0.0, %v5205
  %v5207 = vpop.f32.mrb[0].mxu0
  %5208 = vmatprep.mubr.f32.mxu0 0.0
  %5209 = vmatmul.mubr.f32.gmra.mrb[0].mxu0 %v4587
  %v5210 = vpop.f32.mrb[0].mxu0
  %v5211 = vadd.f32 0.0, %v5210
  %v5212 = vpop.f32.mrb[0].mxu0
  %5213 = vmatprep.mubr.f32.mxu0 0.0
  %5214 = vmatmul.mubr.f32.gmra.mrb[0].mxu0 %v4590
  %v5215 = vpop.f32.mrb[0].mxu0
  %v5216 = vadd.f32 0.0, %v5215
  %v5217 = vpop.f32.mrb[0].mxu0
  %5218 = vmatprep.mubr.f32.mxu0 0.0
  %5219 = vmatmul.mubr.f32.gmra.mrb[0].mxu0 %v4593
  %v5220 = vpop.f32.mrb[0].mxu0
  %v5221 = vadd.f32 0.0, %v5220
  %v5222 = vpop.f32.mrb[0].mxu0
  %5223 = vmatprep.mubr.f32.mxu0 0.0
  %5224 = vmatmul.mubr.f32.gmra.mrb[0].mxu0 %v4596
  %v5225 = vpop.f32.mrb[0].mxu0
  %v5226 = vadd.f32 0.0, %v5225
  %v5227 = vpop.f32.mrb[0].mxu0
  %5228 = vmatprep.mubr.f32.mxu0 0.0
  %5229 = vmatmul.mubr.f32.gmra.mrb[0].mxu0 %v4599
  %v5230 = vpop.f32.mrb[0].mxu0
  %v5231 = vadd.f32 0.0, %v5230
  %v5232 = vpop.f32.mrb[0].mxu0
  %5233 = vmatprep.mubr.f32.mxu0 0.0
  %5234 = vmatmul.mubr.f32.gmra.mrb[0].mxu0 %v4602
  %v5235 = vpop.f32.mrb[0].mxu0
  %v5236 = vadd.f32 0.0, %v5235
  %v5237 = vpop.f32.mrb[0].mxu0
  %5238 = vmatprep.mubr.f32.mxu0 0.0
  %5239 = vmatmul.mubr.f32.gmra.mrb[0].mxu0 %v4605
  %v5240 = vpop.f32.mrb[0].mxu0
  %v5241 = vadd.f32 0.0, %v5240
  %v5242 = vpop.f32.mrb[0].mxu0
  %5243 = vmatprep.mubr.f32.mxu0 0.0
  %5244 = vmatmul.mubr.f32.gmra.mrb[0].mxu0 %v4608
  %v5245 = vpop.f32.mrb[0].mxu0
  %v5246 = vadd.f32 0.0, %v5245
  %v5247 = vpop.f32.mrb[0].mxu0
  %5248 = vmatprep.mubr.f32.mxu0 0.0
  %5249 = vmatmul.mubr.f32.gmra.mrb[0].mxu0 %v4611
  %v5250 = vpop.f32.mrb[0].mxu0
  %v5251 = vadd.f32 0.0, %v5250
  %v5252 = vpop.f32.mrb[0].mxu0
  %5253 = vmatprep.mubr.f32.mxu0 0.0
  %5254 = vmatmul.mubr.f32.gmra.mrb[0].mxu0 %v4614
  %v5255 = vpop.f32.mrb[0].mxu0
  %v5256 = vadd.f32 0.0, %v5255
  %v5257 = vpop.f32.mrb[0].mxu0
  %5258 = vmatprep.mubr.f32.mxu0 0.0
  %5259 = vmatmul.mubr.f32.gmra.mrb[0].mxu0 %v4617
  %v5260 = vpop.f32.mrb[0].mxu0
  %v5261 = vadd.f32 0.0, %v5260
  %v5262 = vpop.f32.mrb[0].mxu0
  %5263 = vmatprep.mubr.f32.mxu0 0.0
  %5264 = vmatmul.mubr.f32.gmra.mrb[0].mxu0 %v4620
  %v5265 = vpop.f32.mrb[0].mxu0
  %v5266 = vadd.f32 0.0, %v5265
  %v5267 = vpop.f32.mrb[0].mxu0
  %5268 = vmatprep.mubr.f32.mxu0 0.0
  %5269 = vmatmul.mubr.f32.gmra.mrb[0].mxu0 %v4623
  %v5270 = vpop.f32.mrb[0].mxu0
  %v5271 = vadd.f32 0.0, %v5270
  %v5272 = vpop.f32.mrb[0].mxu0
  %5273 = vmatprep.mubr.f32.mxu0 0.0
  %5274 = vmatmul.mubr.f32.gmra.mrb[0].mxu0 %v4626
  %v5275 = vpop.f32.mrb[0].mxu0
  %v5276 = vadd.f32 0.0, %v5275
  %v5277 = vpop.f32.mrb[0].mxu0
  %5278 = vmatprep.mubr.f32.mxu0 0.0
  %5279 = vmatmul.mubr.f32.gmra.mrb[0].mxu0 %v4629
  %v5280 = vpop.f32.mrb[0].mxu0
  %v5281 = vadd.f32 0.0, %v5280
  %v5282 = vpop.f32.mrb[0].mxu0
  %5283 = vmatprep.mubr.f32.mxu0 0.0
  %5284 = vmatmul.mubr.f32.gmra.mrb[0].mxu0 %v4632
  %v5285 = vpop.f32.mrb[0].mxu0
  %v5286 = vadd.f32 0.0, %v5285
  %v5287 = vpop.f32.mrb[0].mxu0
  %5288 = vmatprep.mubr.f32.mxu0 0.0
  %5289 = vmatmul.mubr.f32.gmra.mrb[0].mxu0 %v4635
  %v5290 = vpop.f32.mrb[0].mxu0
  %v5291 = vadd.f32 0.0, %v5290
  %v5292 = vpop.f32.mrb[0].mxu0
  %5293 = vmatprep.mubr.f32.mxu0 0.0
  %5294 = vmatmul.mubr.f32.gmra.mrb[0].mxu0 %v4638
  %v5295 = vpop.f32.mrb[0].mxu0
  %v5296 = vadd.f32 0.0, %v5295
  %v5297 = vpop.f32.mrb[0].mxu0
  %5298 = vmatprep.mubr.f32.mxu0 0.0
  %5299 = vmatmul.mubr.f32.gmra.mrb[0].mxu0 %v4641
  %v5300 = vpop.f32.mrb[0].mxu0
  %v5301 = vadd.f32 0.0, %v5300
  %v5302 = vpop.f32.mrb[0].mxu0
  %5303 = vmatprep.mubr.f32.mxu0 0.0
  %5304 = vmatmul.mubr.f32.gmra.mrb[0].mxu0 %v4644
  %v5305 = vpop.f32.mrb[0].mxu0
  %v5306 = vadd.f32 0.0, %v5305
  %v5307 = vpop.f32.mrb[0].mxu0
  %5308 = vmatprep.mubr.f32.mxu0 0.0
  %5309 = vmatmul.mubr.f32.gmra.mrb[0].mxu0 %v4647
  %v5310 = vpop.f32.mrb[0].mxu0
  %v5311 = vadd.f32 0.0, %v5310
  %v5312 = vpop.f32.mrb[0].mxu0
  %5313 = vmatprep.mubr.f32.mxu0 0.0
  %5314 = vmatmul.mubr.f32.gmra.mrb[0].mxu0 %v4650
  %v5315 = vpop.f32.mrb[0].mxu0
  %v5316 = vadd.f32 0.0, %v5315
  %v5317 = vpop.f32.mrb[0].mxu0
  %5318 = vmatprep.mubr.f32.mxu0 0.0
  %5319 = vmatmul.mubr.f32.gmra.mrb[0].mxu0 %v4653
  %v5320 = vpop.f32.mrb[0].mxu0
  %v5321 = vadd.f32 0.0, %v5320
  %v5322 = vpop.f32.mrb[0].mxu0
  %5323 = vmatprep.mubr.f32.mxu0 0.0
  %5324 = vmatmul.mubr.f32.gmra.mrb[0].mxu0 %v4656
  %v5325 = vpop.f32.mrb[0].mxu0
  %v5326 = vadd.f32 0.0, %v5325
  %v5327 = vpop.f32.mrb[0].mxu0
  %5328 = vmatprep.mubr.f32.mxu0 0.0
  %5329 = vmatmul.mubr.f32.gmra.mrb[0].mxu0 %v4659
  %v5330 = vpop.f32.mrb[0].mxu0
  %v5331 = vadd.f32 0.0, %v5330
  %v5332 = vpop.f32.mrb[0].mxu0
  %5333 = vmatprep.mubr.f32.mxu0 0.0
  %5334 = vmatmul.mubr.f32.gmra.mrb[0].mxu0 %v4662
  %v5335 = vpop.f32.mrb[0].mxu0
  %v5336 = vadd.f32 0.0, %v5335
  %v5337 = vpop.f32.mrb[0].mxu0
  %5338 = vmatprep.mubr.f32.mxu0 0.0
  %5339 = vmatmul.mubr.f32.gmra.mrb[0].mxu0 %v4665
  %v5340 = vpop.f32.mrb[0].mxu0
  %v5341 = vadd.f32 0.0, %v5340
  %v5342 = vpop.f32.mrb[0].mxu0
  %5343 = vmatprep.mubr.f32.mxu0 0.0
  %5344 = vmatmul.mubr.f32.gmra.mrb[0].mxu0 %v4668
  %v5345 = vpop.f32.mrb[0].mxu0
  %v5346 = vadd.f32 0.0, %v5345
  %v5347 = vpop.f32.mrb[0].mxu0
  %5348 = vmatprep.mubr.f32.mxu0 0.0
  %5349 = vmatmul.mubr.f32.gmra.mrb[0].mxu0 %v4671
  %v5350 = vpop.f32.mrb[0].mxu0
  %v5351 = vadd.f32 0.0, %v5350
  %v5352 = vpop.f32.mrb[0].mxu0
  %5353 = vmatprep.mubr.f32.mxu0 0.0
  %5354 = vmatmul.mubr.f32.gmra.mrb[0].mxu0 %v4674
  %v5355 = vpop.f32.mrb[0].mxu0
  %v5356 = vadd.f32 0.0, %v5355
  %v5357 = vpop.f32.mrb[0].mxu0
  %5358 = vmatprep.mubr.f32.mxu0 0.0
  %5359 = vmatmul.mubr.f32.gmra.mrb[0].mxu0 %v4677
  %v5360 = vpop.f32.mrb[0].mxu0
  %v5361 = vadd.f32 0.0, %v5360
  %v5362 = vpop.f32.mrb[0].mxu0
  %5363 = vmatprep.mubr.f32.mxu0 0.0
  %5364 = vmatmul.mubr.f32.gmra.mrb[0].mxu0 %v4680
  %v5365 = vpop.f32.mrb[0].mxu0
  %v5366 = vadd.f32 0.0, %v5365
  %v5367 = vpop.f32.mrb[0].mxu0
  %5368 = vmatprep.mubr.f32.mxu0 0.0
  %5369 = vmatmul.mubr.f32.gmra.mrb[0].mxu0 %v4683
  %v5370 = vpop.f32.mrb[0].mxu0
  %v5371 = vadd.f32 0.0, %v5370
  %v5372 = vpop.f32.mrb[0].mxu0
  %5373 = vmatprep.mubr.f32.mxu0 0.0
  %5374 = vmatmul.mubr.f32.gmra.mrb[0].mxu0 %v4686
  %v5375 = vpop.f32.mrb[0].mxu0
  %v5376 = vadd.f32 0.0, %v5375
  %v5377 = vpop.f32.mrb[0].mxu0
  %5378 = vmatprep.mubr.f32.mxu0 0.0
  %5379 = vmatmul.mubr.f32.gmra.mrb[0].mxu0 %v4689
  %v5380 = vpop.f32.mrb[0].mxu0
  %v5381 = vadd.f32 0.0, %v5380
  %v5382 = vpop.f32.mrb[0].mxu0
  %5383 = vmatprep.mubr.f32.mxu0 0.0
  %5384 = vmatmul.mubr.f32.gmra.mrb[0].mxu0 %v4692
  %v5385 = vpop.f32.mrb[0].mxu0
  %v5386 = vadd.f32 0.0, %v5385
  %v5387 = vpop.f32.mrb[0].mxu0
  %5388 = vmatprep.mubr.f32.mxu0 0.0
  %5389 = vmatmul.mubr.f32.gmra.mrb[0].mxu0 %v4695
  %v5390 = vpop.f32.mrb[0].mxu0
  %v5391 = vadd.f32 0.0, %v5390
  %v5392 = vpop.f32.mrb[0].mxu0
  %5393 = vmatprep.mubr.f32.mxu0 0.0
  %5394 = vmatmul.mubr.f32.gmra.mrb[0].mxu0 %v4698
  %v5395 = vpop.f32.mrb[0].mxu0
  %v5396 = vadd.f32 0.0, %v5395
  %v5397 = vpop.f32.mrb[0].mxu0
  %5398 = vmatprep.mubr.f32.mxu0 0.0
  %5399 = vmatmul.mubr.f32.gmra.mrb[0].mxu0 %v4701
  %v5400 = vpop.f32.mrb[0].mxu0
  %v5401 = vadd.f32 0.0, %v5400
  %v5402 = vpop.f32.mrb[0].mxu0
  %5403 = vmatprep.mubr.f32.mxu0 0.0
  %5404 = vmatmul.mubr.f32.gmra.mrb[0].mxu0 %v4704
  %v5405 = vpop.f32.mrb[0].mxu0
  %v5406 = vadd.f32 0.0, %v5405
  %v5407 = vpop.f32.mrb[0].mxu0
  %5408 = vmatprep.mubr.f32.mxu0 0.0
  %5409 = vmatmul.mubr.f32.gmra.mrb[0].mxu0 %v4707
  %v5410 = vpop.f32.mrb[0].mxu0
  %v5411 = vadd.f32 0.0, %v5410
  %v5412 = vpop.f32.mrb[0].mxu0
  %5413 = vmatprep.mubr.f32.mxu0 0.0
  %5414 = vmatmul.mubr.f32.gmra.mrb[0].mxu0 %v4710
  %v5415 = vpop.f32.mrb[0].mxu0
  %v5416 = vadd.f32 0.0, %v5415
  %v5417 = vpop.f32.mrb[0].mxu0
  %5418 = vmatprep.mubr.f32.mxu0 0.0
  %5419 = vmatmul.mubr.f32.gmra.mrb[0].mxu0 %v4713
  %v5420 = vpop.f32.mrb[0].mxu0
  %v5421 = vadd.f32 0.0, %v5420
  %v5422 = vpop.f32.mrb[0].mxu0
  %5423 = vmatprep.mubr.f32.mxu0 0.0
  %5424 = vmatmul.mubr.f32.gmra.mrb[0].mxu0 %v4716
  %v5425 = vpop.f32.mrb[0].mxu0
  %v5426 = vadd.f32 0.0, %v5425
  %v5427 = vpop.f32.mrb[0].mxu0
  %5428 = vmatprep.mubr.f32.mxu0 0.0
  %5429 = vmatmul.mubr.f32.gmra.mrb[0].mxu0 %v4719
  %v5430 = vpop.f32.mrb[0].mxu0
  %v5431 = vadd.f32 0.0, %v5430
  %v5432 = vpop.f32.mrb[0].mxu0
  %5433 = vmatprep.mubr.f32.mxu0 0.0
  %5434 = vmatmul.mubr.f32.gmra.mrb[0].mxu0 %v4722
  %v5435 = vpop.f32.mrb[0].mxu0
  %v5436 = vadd.f32 0.0, %v5435
  %v5437 = vpop.f32.mrb[0].mxu0
  %5438 = vmatprep.mubr.f32.mxu0 0.0
  %5439 = vmatmul.mubr.f32.gmra.mrb[0].mxu0 %v4725
  %v5440 = vpop.f32.mrb[0].mxu0
  %v5441 = vadd.f32 0.0, %v5440
  %v5442 = vpop.f32.mrb[0].mxu0
  %5443 = vmatprep.mubr.f32.mxu0 0.0
  %5444 = vmatmul.mubr.f32.gmra.mrb[0].mxu0 %v4728
  %v5445 = vpop.f32.mrb[0].mxu0
  %v5446 = vadd.f32 0.0, %v5445
  %v5447 = vpop.f32.mrb[0].mxu0
  %5448 = vmatprep.mubr.f32.mxu0 0.0
  %5449 = vmatmul.mubr.f32.gmra.mrb[0].mxu0 %v4731
  %v5450 = vpop.f32.mrb[0].mxu0
  %v5451 = vadd.f32 0.0, %v5450
  %v5452 = vpop.f32.mrb[0].mxu0
  %5453 = vmatprep.mubr.f32.mxu0 0.0
  %5454 = vmatmul.mubr.f32.gmra.mrb[0].mxu0 %v4734
  %v5455 = vpop.f32.mrb[0].mxu0
  %v5456 = vadd.f32 0.0, %v5455
  %v5457 = vpop.f32.mrb[0].mxu0
  %5458 = vmatprep.mubr.f32.mxu0 0.0
  %5459 = vmatmul.mubr.f32.gmra.mrb[0].mxu0 %v4737
  %v5460 = vpop.f32.mrb[0].mxu0
  %v5461 = vadd.f32 0.0, %v5460
  %v5462 = vpop.f32.mrb[0].mxu0
  %5463 = vmatprep.mubr.f32.mxu0 0.0
  %5464 = vmatmul.mubr.f32.gmra.mrb[0].mxu0 %v4740
  %v5465 = vpop.f32.mrb[0].mxu0
  %v5466 = vadd.f32 0.0, %v5465
  %v5467 = vpop.f32.mrb[0].mxu0
  %5468 = vmatprep.mubr.f32.mxu0 0.0
  %5469 = vmatmul.mubr.f32.gmra.mrb[0].mxu0 %v4743
  %v5470 = vpop.f32.mrb[0].mxu0
  %v5471 = vadd.f32 0.0, %v5470
  %v5472 = vpop.f32.mrb[0].mxu0
  %5473 = vmatprep.mubr.f32.mxu0 0.0
  %5474 = vmatmul.mubr.f32.gmra.mrb[0].mxu0 %v4746
  %v5475 = vpop.f32.mrb[0].mxu0
  %v5476 = vadd.f32 0.0, %v5475
  %v5477 = vpop.f32.mrb[0].mxu0
  %5478 = vmatprep.mubr.f32.mxu0 0.0
  %5479 = vmatmul.mubr.f32.gmra.mrb[0].mxu0 %v4749
  %v5480 = vpop.f32.mrb[0].mxu0
  %v5481 = vadd.f32 0.0, %v5480
  %v5482 = vpop.f32.mrb[0].mxu0
  %5483 = vmatprep.mubr.f32.mxu0 0.0
  %5484 = vmatmul.mubr.f32.gmra.mrb[0].mxu0 %v4752
  %v5485 = vpop.f32.mrb[0].mxu0
  %v5486 = vadd.f32 0.0, %v5485
  %v5487 = vpop.f32.mrb[0].mxu0
  %5488 = vmatprep.mubr.f32.mxu0 0.0
  %5489 = vmatmul.mubr.f32.gmra.mrb[0].mxu0 %v4755
  %v5490 = vpop.f32.mrb[0].mxu0
  %v5491 = vadd.f32 0.0, %v5490
  %v5492 = vpop.f32.mrb[0].mxu0
  %5493 = vmatprep.mubr.f32.mxu0 0.0
  %5494 = vmatmul.mubr.f32.gmra.mrb[0].mxu0 %v4758
  %v5495 = vpop.f32.mrb[0].mxu0
  %v5496 = vadd.f32 0.0, %v5495
  %v5497 = vpop.f32.mrb[0].mxu0
  %5498 = vmatprep.mubr.f32.mxu0 0.0
  %5499 = vmatmul.mubr.f32.gmra.mrb[0].mxu0 %v4761
  %v5500 = vpop.f32.mrb[0].mxu0
  %v5501 = vadd.f32 0.0, %v5500
  %v5502 = vpop.f32.mrb[0].mxu0
  %5503 = vmatprep.mubr.f32.mxu0 0.0
  %5504 = vmatmul.mubr.f32.gmra.mrb[0].mxu0 %v4764
  %v5505 = vpop.f32.mrb[0].mxu0
  %v5506 = vadd.f32 0.0, %v5505
  %v5507 = vpop.f32.mrb[0].mxu0
  %5508 = vmatprep.mubr.f32.mxu0 0.0
  %5509 = vmatmul.mubr.f32.gmra.mrb[0].mxu0 %v4767
  %v5510 = vpop.f32.mrb[0].mxu0
  %v5511 = vadd.f32 0.0, %v5510
  %v5512 = vpop.f32.mrb[0].mxu0
  %5513 = vmatprep.mubr.f32.mxu0 0.0
  %5514 = vmatmul.mubr.f32.gmra.mrb[0].mxu0 %v4770
  %v5515 = vpop.f32.mrb[0].mxu0
  %v5516 = vadd.f32 0.0, %v5515
  %v5517 = vpop.f32.mrb[0].mxu0
  %5518 = vmatprep.mubr.f32.mxu0 0.0
  %5519 = vmatmul.mubr.f32.gmra.mrb[0].mxu0 %v4773
  %v5520 = vpop.f32.mrb[0].mxu0
  %v5521 = vadd.f32 0.0, %v5520
  %v5522 = vpop.f32.mrb[0].mxu0
  %5523 = vmatprep.mubr.f32.mxu0 0.0
  %5524 = vmatmul.mubr.f32.gmra.mrb[0].mxu0 %v4776
  %v5525 = vpop.f32.mrb[0].mxu0
  %v5526 = vadd.f32 0.0, %v5525
  %v5527 = vpop.f32.mrb[0].mxu0
  %5528 = vmatprep.mubr.f32.mxu0 0.0
  %5529 = vmatmul.mubr.f32.gmra.mrb[0].mxu0 %v4779
  %v5530 = vpop.f32.mrb[0].mxu0
  %v5531 = vadd.f32 0.0, %v5530
  %v5532 = vpop.f32.mrb[0].mxu0
  %5533 = vmatprep.mubr.f32.mxu0 0.0
  %5534 = vmatmul.mubr.f32.gmra.mrb[0].mxu0 %v4782
  %v5535 = vpop.f32.mrb[0].mxu0
  %v5536 = vadd.f32 0.0, %v5535
  %v5537 = vpop.f32.mrb[0].mxu0
  %5538 = vmatprep.mubr.f32.mxu0 0.0
  %5539 = vmatmul.mubr.f32.gmra.mrb[0].mxu0 %v4785
  %v5540 = vpop.f32.mrb[0].mxu0
  %v5541 = vadd.f32 0.0, %v5540
  %v5542 = vpop.f32.mrb[0].mxu0
  %5543 = vmatprep.mubr.f32.mxu0 0.0
  %5544 = vmatmul.mubr.f32.gmra.mrb[0].mxu0 %v4788
  %v5545 = vpop.f32.mrb[0].mxu0
  %v5546 = vadd.f32 0.0, %v5545
  %v5547 = vpop.f32.mrb[0].mxu0
  %5548 = vmatprep.mubr.f32.mxu0 0.0
  %5549 = vmatmul.mubr.f32.gmra.mrb[0].mxu0 %v4791
  %v5550 = vpop.f32.mrb[0].mxu0
  %v5551 = vadd.f32 0.0, %v5550
  %v5552 = vpop.f32.mrb[0].mxu0
  %5553 = vmatprep.mubr.f32.mxu0 0.0
  %5554 = vmatmul.mubr.f32.gmra.mrb[0].mxu0 %v4794
  %v5555 = vpop.f32.mrb[0].mxu0
  %v5556 = vadd.f32 0.0, %v5555
  %v5557 = vpop.f32.mrb[0].mxu0
  %5558 = vmatprep.mubr.f32.mxu0 0.0
  %5559 = vmatmul.mubr.f32.gmra.mrb[0].mxu0 %v4797
  %v5560 = vpop.f32.mrb[0].mxu0
  %v5561 = vadd.f32 0.0, %v5560
  %v5562 = vpop.f32.mrb[0].mxu0
  %5563 = vmatprep.mubr.f32.mxu0 0.0
  %5564 = vmatmul.mubr.f32.gmra.mrb[0].mxu0 %v4800
  %v5565 = vpop.f32.mrb[0].mxu0
  %v5566 = vadd.f32 0.0, %v5565
  %v5567 = vpop.f32.mrb[0].mxu0
  %5568 = vmatprep.mubr.f32.mxu0 0.0
  %5569 = vmatmul.mubr.f32.gmra.mrb[0].mxu0 %v4803
  %v5570 = vpop.f32.mrb[0].mxu0
  %v5571 = vadd.f32 0.0, %v5570
  %v5572 = vpop.f32.mrb[0].mxu0
  %5573 = vmatprep.mubr.f32.mxu0 0.0
  %5574 = vmatmul.mubr.f32.gmra.mrb[0].mxu0 %v4806
  %v5575 = vpop.f32.mrb[0].mxu0
  %v5576 = vadd.f32 0.0, %v5575
  %v5577 = vpop.f32.mrb[0].mxu0
  %5578 = vmatprep.mubr.f32.mxu0 0.0
  %5579 = vmatmul.mubr.f32.gmra.mrb[0].mxu0 %v4809
  %v5580 = vpop.f32.mrb[0].mxu0
  %v5581 = vadd.f32 0.0, %v5580
  %v5582 = vpop.f32.mrb[0].mxu0
  %5583 = vmatprep.mubr.f32.mxu0 0.0
  %5584 = vmatmul.mubr.f32.gmra.mrb[0].mxu0 %v4812
  %v5585 = vpop.f32.mrb[0].mxu0
  %v5586 = vadd.f32 0.0, %v5585
  %v5587 = vpop.f32.mrb[0].mxu0
  %5588 = vmatprep.mubr.f32.mxu0 0.0
  %5589 = vmatmul.mubr.f32.gmra.mrb[0].mxu0 %v4815
  %v5590 = vpop.f32.mrb[0].mxu0
  %v5591 = vadd.f32 0.0, %v5590
  %v5592 = vpop.f32.mrb[0].mxu0
  %5593 = vmatprep.mubr.f32.mxu0 0.0
  %5594 = vmatmul.mubr.f32.gmra.mrb[0].mxu0 %v4818
  %v5595 = vpop.f32.mrb[0].mxu0
  %v5596 = vadd.f32 0.0, %v5595
  %v5597 = vpop.f32.mrb[0].mxu0
  %5598 = vmatprep.mubr.f32.mxu0 0.0
  %5599 = vmatmul.mubr.f32.gmra.mrb[0].mxu0 %v4821
  %v5600 = vpop.f32.mrb[0].mxu0
  %v5601 = vadd.f32 0.0, %v5600
  %v5602 = vpop.f32.mrb[0].mxu0
  %5603 = vmatprep.mubr.f32.mxu0 0.0
  %5604 = vmatmul.mubr.f32.gmra.mrb[0].mxu0 %v4824
  %v5605 = vpop.f32.mrb[0].mxu0
  %v5606 = vadd.f32 0.0, %v5605
  %v5607 = vpop.f32.mrb[0].mxu0
  %5608 = vmatprep.mubr.f32.mxu0 0.0
  %5609 = vmatmul.mubr.f32.gmra.mrb[0].mxu0 %v4827
  %v5610 = vpop.f32.mrb[0].mxu0
  %v5611 = vadd.f32 0.0, %v5610
  %v5612 = vpop.f32.mrb[0].mxu0
  %5613 = vdwg.mxu0
  %v5614 = vmax.f32 %v3534, %v4896
  %v5615 = vmax.f32 %v3539, %v4901
  %v5616 = vmax.f32 %v3544, %v4906
  %v5617 = vmax.f32 %v3549, %v4911
  %v5618 = vmax.f32 %v3554, %v4916
  %v5619 = vmax.f32 %v3559, %v4921
  %v5620 = vmax.f32 %v3564, %v4926
  %v5621 = vmax.f32 %v3569, %v4931
  %v5622 = vmax.f32 %v3574, %v4936
  %v5623 = vmax.f32 %v3579, %v4941
  %v5624 = vmax.f32 %v3584, %v4946
  %v5625 = vmax.f32 %v3589, %v4951
  %v5626 = vmax.f32 %v3594, %v4956
  %v5627 = vmax.f32 %v3599, %v4961
  %v5628 = vmax.f32 %v3604, %v4966
  %v5629 = vmax.f32 %v3609, %v4971
  %v5630 = vmax.f32 %v3614, %v4976
  %v5631 = vmax.f32 %v3619, %v4981
  %v5632 = vmax.f32 %v3624, %v4986
  %v5633 = vmax.f32 %v3629, %v4991
  %v5634 = vmax.f32 %v3634, %v4996
  %v5635 = vmax.f32 %v3639, %v5001
  %v5636 = vmax.f32 %v3644, %v5006
  %v5637 = vmax.f32 %v3649, %v5011
  %v5638 = vmax.f32 %v3654, %v5016
  %v5639 = vmax.f32 %v3659, %v5021
  %v5640 = vmax.f32 %v3664, %v5026
  %v5641 = vmax.f32 %v3669, %v5031
  %v5642 = vmax.f32 %v3674, %v5036
  %v5643 = vmax.f32 %v3679, %v5041
  %v5644 = vmax.f32 %v3684, %v5046
  %v5645 = vmax.f32 %v3689, %v5051
  %v5646 = vmax.f32 %v3694, %v5056
  %v5647 = vmax.f32 %v3699, %v5061
  %v5648 = vmax.f32 %v3704, %v5066
  %v5649 = vmax.f32 %v3709, %v5071
  %v5650 = vmax.f32 %v3714, %v5076
  %v5651 = vmax.f32 %v3719, %v5081
  %v5652 = vmax.f32 %v3724, %v5086
  %v5653 = vmax.f32 %v3729, %v5091
  %v5654 = vmax.f32 %v3734, %v5096
  %v5655 = vmax.f32 %v3739, %v5101
  %v5656 = vmax.f32 %v3744, %v5106
  %v5657 = vmax.f32 %v3749, %v5111
  %v5658 = vmax.f32 %v3754, %v5116
  %v5659 = vmax.f32 %v3759, %v5121
  %v5660 = vmax.f32 %v3764, %v5126
  %v5661 = vmax.f32 %v3769, %v5131
  %v5662 = vmax.f32 %v3774, %v5136
  %v5663 = vmax.f32 %v3779, %v5141
  %v5664 = vmax.f32 %v3784, %v5146
  %v5665 = vmax.f32 %v3789, %v5151
  %v5666 = vmax.f32 %v3794, %v5156
  %v5667 = vmax.f32 %v3799, %v5161
  %v5668 = vmax.f32 %v3804, %v5166
  %v5669 = vmax.f32 %v3809, %v5171
  %v5670 = vmax.f32 %v3814, %v5176
  %v5671 = vmax.f32 %v3819, %v5181
  %v5672 = vmax.f32 %v3824, %v5186
  %v5673 = vmax.f32 %v3829, %v5191
  %v5674 = vmax.f32 %v3834, %v5196
  %v5675 = vmax.f32 %v3839, %v5201
  %v5676 = vmax.f32 %v3844, %v5206
  %v5677 = vmax.f32 %v3849, %v5211
  %v5678 = vmax.f32 %v3854, %v5216
  %v5679 = vmax.f32 %v3859, %v5221
  %v5680 = vmax.f32 %v3864, %v5226
  %v5681 = vmax.f32 %v3869, %v5231
  %v5682 = vmax.f32 %v3874, %v5236
  %v5683 = vmax.f32 %v3879, %v5241
  %v5684 = vmax.f32 %v3884, %v5246
  %v5685 = vmax.f32 %v3889, %v5251
  %v5686 = vmax.f32 %v3894, %v5256
  %v5687 = vmax.f32 %v3899, %v5261
  %v5688 = vmax.f32 %v3904, %v5266
  %v5689 = vmax.f32 %v3909, %v5271
  %v5690 = vmax.f32 %v3914, %v5276
  %v5691 = vmax.f32 %v3919, %v5281
  %v5692 = vmax.f32 %v3924, %v5286
  %v5693 = vmax.f32 %v3929, %v5291
  %v5694 = vmax.f32 %v3934, %v5296
  %v5695 = vmax.f32 %v3939, %v5301
  %v5696 = vmax.f32 %v3944, %v5306
  %v5697 = vmax.f32 %v3949, %v5311
  %v5698 = vmax.f32 %v3954, %v5316
  %v5699 = vmax.f32 %v3959, %v5321
  %v5700 = vmax.f32 %v3964, %v5326
  %v5701 = vmax.f32 %v3969, %v5331
  %v5702 = vmax.f32 %v3974, %v5336
  %v5703 = vmax.f32 %v3979, %v5341
  %v5704 = vmax.f32 %v3984, %v5346
  %v5705 = vmax.f32 %v3989, %v5351
  %v5706 = vmax.f32 %v3994, %v5356
  %v5707 = vmax.f32 %v3999, %v5361
  %v5708 = vmax.f32 %v4004, %v5366
  %v5709 = vmax.f32 %v4009, %v5371
  %v5710 = vmax.f32 %v4014, %v5376
  %v5711 = vmax.f32 %v4019, %v5381
  %v5712 = vmax.f32 %v4024, %v5386
  %v5713 = vmax.f32 %v4029, %v5391
  %v5714 = vmax.f32 %v4034, %v5396
  %v5715 = vmax.f32 %v4039, %v5401
  %v5716 = vmax.f32 %v4044, %v5406
  %v5717 = vmax.f32 %v4049, %v5411
  %v5718 = vmax.f32 %v4054, %v5416
  %v5719 = vmax.f32 %v4059, %v5421
  %v5720 = vmax.f32 %v4064, %v5426
  %v5721 = vmax.f32 %v4069, %v5431
  %v5722 = vmax.f32 %v4074, %v5436
  %v5723 = vmax.f32 %v4079, %v5441
  %v5724 = vmax.f32 %v4084, %v5446
  %v5725 = vmax.f32 %v4089, %v5451
  %v5726 = vmax.f32 %v4094, %v5456
  %v5727 = vmax.f32 %v4099, %v5461
  %v5728 = vmax.f32 %v4104, %v5466
  %v5729 = vmax.f32 %v4109, %v5471
  %v5730 = vmax.f32 %v4114, %v5476
  %v5731 = vmax.f32 %v4119, %v5481
  %v5732 = vmax.f32 %v4124, %v5486
  %v5733 = vmax.f32 %v4129, %v5491
  %v5734 = vmax.f32 %v4134, %v5496
  %v5735 = vmax.f32 %v4139, %v5501
  %v5736 = vmax.f32 %v4144, %v5506
  %v5737 = vmax.f32 %v4149, %v5511
  %v5738 = vmax.f32 %v4154, %v5516
  %v5739 = vmax.f32 %v4159, %v5521
  %v5740 = vmax.f32 %v4164, %v5526
  %v5741 = vmax.f32 %v4169, %v5531
  %v5742 = vmax.f32 %v4174, %v5536
  %v5743 = vmax.f32 %v4179, %v5541
  %v5744 = vmax.f32 %v4184, %v5546
  %v5745 = vmax.f32 %v4189, %v5551
  %v5746 = vmax.f32 %v4194, %v5556
  %v5747 = vmax.f32 %v4199, %v5561
  %v5748 = vmax.f32 %v4204, %v5566
  %v5749 = vmax.f32 %v4209, %v5571
  %v5750 = vmax.f32 %v4214, %v5576
  %v5751 = vmax.f32 %v4219, %v5581
  %v5752 = vmax.f32 %v4224, %v5586
  %v5753 = vmax.f32 %v4229, %v5591
  %v5754 = vmax.f32 %v4234, %v5596
  %v5755 = vmax.f32 %v4239, %v5601
  %v5756 = vmax.f32 %v4244, %v5606
  %v5757 = vmax.f32 %v4249, %v5611
  %v5758 = vmax.f32 %v2746, %v5614
  %v5759 = vmax.f32 %v2747, %v5615
  %v5760 = vmax.f32 %v2748, %v5616
  %v5761 = vmax.f32 %v2749, %v5617
  %v5762 = vmax.f32 %v2750, %v5618
  %v5763 = vmax.f32 %v2751, %v5619
  %v5764 = vmax.f32 %v2752, %v5620
  %v5765 = vmax.f32 %v2753, %v5621
  %v5766 = vmax.f32 %v2754, %v5622
  %v5767 = vmax.f32 %v2755, %v5623
  %v5768 = vmax.f32 %v2756, %v5624
  %v5769 = vmax.f32 %v2757, %v5625
  %v5770 = vmax.f32 %v2758, %v5626
  %v5771 = vmax.f32 %v2759, %v5627
  %v5772 = vmax.f32 %v2760, %v5628
  %v5773 = vmax.f32 %v2761, %v5629
  %v5774 = vmax.f32 %v2762, %v5630
  %v5775 = vmax.f32 %v2763, %v5631
  %v5776 = vmax.f32 %v2764, %v5632
  %v5777 = vmax.f32 %v2765, %v5633
  %v5778 = vmax.f32 %v2766, %v5634
  %v5779 = vmax.f32 %v2767, %v5635
  %v5780 = vmax.f32 %v2768, %v5636
  %v5781 = vmax.f32 %v2769, %v5637
  %v5782 = vmax.f32 %v2770, %v5638
  %v5783 = vmax.f32 %v2771, %v5639
  %v5784 = vmax.f32 %v2772, %v5640
  %v5785 = vmax.f32 %v2773, %v5641
  %v5786 = vmax.f32 %v2774, %v5642
  %v5787 = vmax.f32 %v2775, %v5643
  %v5788 = vmax.f32 %v2776, %v5644
  %v5789 = vmax.f32 %v2777, %v5645
  %v5790 = vmax.f32 %v2778, %v5646
  %v5791 = vmax.f32 %v2779, %v5647
  %v5792 = vmax.f32 %v2780, %v5648
  %v5793 = vmax.f32 %v2781, %v5649
  %v5794 = vmax.f32 %v2782, %v5650
  %v5795 = vmax.f32 %v2783, %v5651
  %v5796 = vmax.f32 %v2784, %v5652
  %v5797 = vmax.f32 %v2785, %v5653
  %v5798 = vmax.f32 %v2786, %v5654
  %v5799 = vmax.f32 %v2787, %v5655
  %v5800 = vmax.f32 %v2788, %v5656
  %v5801 = vmax.f32 %v2789, %v5657
  %v5802 = vmax.f32 %v2790, %v5658
  %v5803 = vmax.f32 %v2791, %v5659
  %v5804 = vmax.f32 %v2792, %v5660
  %v5805 = vmax.f32 %v2793, %v5661
  %v5806 = vmax.f32 %v2794, %v5662
  %v5807 = vmax.f32 %v2795, %v5663
  %v5808 = vmax.f32 %v2796, %v5664
  %v5809 = vmax.f32 %v2797, %v5665
  %v5810 = vmax.f32 %v2798, %v5666
  %v5811 = vmax.f32 %v2799, %v5667
  %v5812 = vmax.f32 %v2800, %v5668
  %v5813 = vmax.f32 %v2801, %v5669
  %v5814 = vmax.f32 %v2802, %v5670
  %v5815 = vmax.f32 %v2803, %v5671
  %v5816 = vmax.f32 %v2804, %v5672
  %v5817 = vmax.f32 %v2805, %v5673
  %v5818 = vmax.f32 %v2806, %v5674
  %v5819 = vmax.f32 %v2807, %v5675
  %v5820 = vmax.f32 %v2808, %v5676
  %v5821 = vmax.f32 %v2809, %v5677
  %v5822 = vmax.f32 %v2810, %v5678
  %v5823 = vmax.f32 %v2811, %v5679
  %v5824 = vmax.f32 %v2812, %v5680
  %v5825 = vmax.f32 %v2813, %v5681
  %v5826 = vmax.f32 %v2814, %v5682
  %v5827 = vmax.f32 %v2815, %v5683
  %v5828 = vmax.f32 %v2816, %v5684
  %v5829 = vmax.f32 %v2817, %v5685
  %v5830 = vmax.f32 %v2818, %v5686
  %v5831 = vmax.f32 %v2819, %v5687
  %v5832 = vmax.f32 %v2820, %v5688
  %v5833 = vmax.f32 %v2821, %v5689
  %v5834 = vmax.f32 %v2822, %v5690
  %v5835 = vmax.f32 %v2823, %v5691
  %v5836 = vmax.f32 %v2824, %v5692
  %v5837 = vmax.f32 %v2825, %v5693
  %v5838 = vmax.f32 %v2826, %v5694
  %v5839 = vmax.f32 %v2827, %v5695
  %v5840 = vmax.f32 %v2828, %v5696
  %v5841 = vmax.f32 %v2829, %v5697
  %v5842 = vmax.f32 %v2830, %v5698
  %v5843 = vmax.f32 %v2831, %v5699
  %v5844 = vmax.f32 %v2832, %v5700
  %v5845 = vmax.f32 %v2833, %v5701
  %v5846 = vmax.f32 %v2834, %v5702
  %v5847 = vmax.f32 %v2835, %v5703
  %v5848 = vmax.f32 %v2836, %v5704
  %v5849 = vmax.f32 %v2837, %v5705
  %v5850 = vmax.f32 %v2838, %v5706
  %v5851 = vmax.f32 %v2839, %v5707
  %v5852 = vmax.f32 %v2840, %v5708
  %v5853 = vmax.f32 %v2841, %v5709
  %v5854 = vmax.f32 %v2842, %v5710
  %v5855 = vmax.f32 %v2843, %v5711
  %v5856 = vmax.f32 %v2844, %v5712
  %v5857 = vmax.f32 %v2845, %v5713
  %v5858 = vmax.f32 %v2846, %v5714
  %v5859 = vmax.f32 %v2847, %v5715
  %v5860 = vmax.f32 %v2848, %v5716
  %v5861 = vmax.f32 %v2849, %v5717
  %v5862 = vmax.f32 %v2850, %v5718
  %v5863 = vmax.f32 %v2851, %v5719
  %v5864 = vmax.f32 %v2852, %v5720
  %v5865 = vmax.f32 %v2853, %v5721
  %v5866 = vmax.f32 %v2854, %v5722
  %v5867 = vmax.f32 %v2855, %v5723
  %v5868 = vmax.f32 %v2856, %v5724
  %v5869 = vmax.f32 %v2857, %v5725
  %v5870 = vmax.f32 %v2858, %v5726
  %v5871 = vmax.f32 %v2859, %v5727
  %v5872 = vmax.f32 %v2860, %v5728
  %v5873 = vmax.f32 %v2861, %v5729
  %v5874 = vmax.f32 %v2862, %v5730
  %v5875 = vmax.f32 %v2863, %v5731
  %v5876 = vmax.f32 %v2864, %v5732
  %v5877 = vmax.f32 %v2865, %v5733
  %v5878 = vmax.f32 %v2866, %v5734
  %v5879 = vmax.f32 %v2867, %v5735
  %v5880 = vmax.f32 %v2868, %v5736
  %v5881 = vmax.f32 %v2869, %v5737
  %v5882 = vmax.f32 %v2870, %v5738
  %v5883 = vmax.f32 %v2871, %v5739
  %v5884 = vmax.f32 %v2872, %v5740
  %v5885 = vmax.f32 %v2873, %v5741
  %v5886 = vmax.f32 %v2874, %v5742
  %v5887 = vmax.f32 %v2875, %v5743
  %v5888 = vmax.f32 %v2876, %v5744
  %v5889 = vmax.f32 %v2877, %v5745
  %v5890 = vmax.f32 %v2878, %v5746
  %v5891 = vmax.f32 %v2879, %v5747
  %v5892 = vmax.f32 %v2880, %v5748
  %v5893 = vmax.f32 %v2881, %v5749
  %v5894 = vmax.f32 %v2882, %v5750
  %v5895 = vmax.f32 %v2883, %v5751
  %v5896 = vmax.f32 %v2884, %v5752
  %v5897 = vmax.f32 %v2885, %v5753
  %v5898 = vmax.f32 %v2886, %v5754
  %v5899 = vmax.f32 %v2887, %v5755
  %v5900 = vmax.f32 %v2888, %v5756
  %v5901 = vmax.f32 %v2889, %v5757
  %v5902 = vld [vmem:[%s2] sm:$0x1]
  %v5904 = vlaneseq
  %v5905 = vshrl.u32 %v5904, 7
  %v5906 = vsub.s32 0, %v5905
  %v5907 = vrot.slane %v5902, %v5906
  %v5909 = vadd.f32 %v5758, %v5907
  %v5910 = vadd.f32 %v5759, %v5907
  %v5911 = vadd.f32 %v5760, %v5907
  %v5912 = vadd.f32 %v5761, %v5907
  %v5913 = vadd.f32 %v5762, %v5907
  %v5914 = vadd.f32 %v5763, %v5907
  %v5915 = vadd.f32 %v5764, %v5907
  %v5916 = vadd.f32 %v5765, %v5907
  %v5917 = vadd.f32 %v5766, %v5907
  %v5918 = vadd.f32 %v5767, %v5907
  %v5919 = vadd.f32 %v5768, %v5907
  %v5920 = vadd.f32 %v5769, %v5907
  %v5921 = vadd.f32 %v5770, %v5907
  %v5922 = vadd.f32 %v5771, %v5907
  %v5923 = vadd.f32 %v5772, %v5907
  %v5924 = vadd.f32 %v5773, %v5907
  %v5925 = vadd.f32 %v5774, %v5907
  %v5926 = vadd.f32 %v5775, %v5907
  %v5927 = vadd.f32 %v5776, %v5907
  %v5928 = vadd.f32 %v5777, %v5907
  %v5929 = vadd.f32 %v5778, %v5907
  %v5930 = vadd.f32 %v5779, %v5907
  %v5931 = vadd.f32 %v5780, %v5907
  %v5932 = vadd.f32 %v5781, %v5907
  %v5933 = vadd.f32 %v5782, %v5907
  %v5934 = vadd.f32 %v5783, %v5907
  %v5935 = vadd.f32 %v5784, %v5907
  %v5936 = vadd.f32 %v5785, %v5907
  %v5937 = vadd.f32 %v5786, %v5907
  %v5938 = vadd.f32 %v5787, %v5907
  %v5939 = vadd.f32 %v5788, %v5907
  %v5940 = vadd.f32 %v5789, %v5907
  %v5941 = vadd.f32 %v5790, %v5907
  %v5942 = vadd.f32 %v5791, %v5907
  %v5943 = vadd.f32 %v5792, %v5907
  %v5944 = vadd.f32 %v5793, %v5907
  %v5945 = vadd.f32 %v5794, %v5907
  %v5946 = vadd.f32 %v5795, %v5907
  %v5947 = vadd.f32 %v5796, %v5907
  %v5948 = vadd.f32 %v5797, %v5907
  %v5949 = vadd.f32 %v5798, %v5907
  %v5950 = vadd.f32 %v5799, %v5907
  %v5951 = vadd.f32 %v5800, %v5907
  %v5952 = vadd.f32 %v5801, %v5907
  %v5953 = vadd.f32 %v5802, %v5907
  %v5954 = vadd.f32 %v5803, %v5907
  %v5955 = vadd.f32 %v5804, %v5907
  %v5956 = vadd.f32 %v5805, %v5907
  %v5957 = vadd.f32 %v5806, %v5907
  %v5958 = vadd.f32 %v5807, %v5907
  %v5959 = vadd.f32 %v5808, %v5907
  %v5960 = vadd.f32 %v5809, %v5907
  %v5961 = vadd.f32 %v5810, %v5907
  %v5962 = vadd.f32 %v5811, %v5907
  %v5963 = vadd.f32 %v5812, %v5907
  %v5964 = vadd.f32 %v5813, %v5907
  %v5965 = vadd.f32 %v5814, %v5907
  %v5966 = vadd.f32 %v5815, %v5907
  %v5967 = vadd.f32 %v5816, %v5907
  %v5968 = vadd.f32 %v5817, %v5907
  %v5969 = vadd.f32 %v5818, %v5907
  %v5970 = vadd.f32 %v5819, %v5907
  %v5971 = vadd.f32 %v5820, %v5907
  %v5972 = vadd.f32 %v5821, %v5907
  %v5973 = vadd.f32 %v5822, %v5907
  %v5974 = vadd.f32 %v5823, %v5907
  %v5975 = vadd.f32 %v5824, %v5907
  %v5976 = vadd.f32 %v5825, %v5907
  %v5977 = vadd.f32 %v5826, %v5907
  %v5978 = vadd.f32 %v5827, %v5907
  %v5979 = vadd.f32 %v5828, %v5907
  %v5980 = vadd.f32 %v5829, %v5907
  %v5981 = vadd.f32 %v5830, %v5907
  %v5982 = vadd.f32 %v5831, %v5907
  %v5983 = vadd.f32 %v5832, %v5907
  %v5984 = vadd.f32 %v5833, %v5907
  %v5985 = vadd.f32 %v5834, %v5907
  %v5986 = vadd.f32 %v5835, %v5907
  %v5987 = vadd.f32 %v5836, %v5907
  %v5988 = vadd.f32 %v5837, %v5907
  %v5989 = vadd.f32 %v5838, %v5907
  %v5990 = vadd.f32 %v5839, %v5907
  %v5991 = vadd.f32 %v5840, %v5907
  %v5992 = vadd.f32 %v5841, %v5907
  %v5993 = vadd.f32 %v5842, %v5907
  %v5994 = vadd.f32 %v5843, %v5907
  %v5995 = vadd.f32 %v5844, %v5907
  %v5996 = vadd.f32 %v5845, %v5907
  %v5997 = vadd.f32 %v5846, %v5907
  %v5998 = vadd.f32 %v5847, %v5907
  %v5999 = vadd.f32 %v5848, %v5907
  %v6000 = vadd.f32 %v5849, %v5907
  %v6001 = vadd.f32 %v5850, %v5907
  %v6002 = vadd.f32 %v5851, %v5907
  %v6003 = vadd.f32 %v5852, %v5907
  %v6004 = vadd.f32 %v5853, %v5907
  %v6005 = vadd.f32 %v5854, %v5907
  %v6006 = vadd.f32 %v5855, %v5907
  %v6007 = vadd.f32 %v5856, %v5907
  %v6008 = vadd.f32 %v5857, %v5907
  %v6009 = vadd.f32 %v5858, %v5907
  %v6010 = vadd.f32 %v5859, %v5907
  %v6011 = vadd.f32 %v5860, %v5907
  %v6012 = vadd.f32 %v5861, %v5907
  %v6013 = vadd.f32 %v5862, %v5907
  %v6014 = vadd.f32 %v5863, %v5907
  %v6015 = vadd.f32 %v5864, %v5907
  %v6016 = vadd.f32 %v5865, %v5907
  %v6017 = vadd.f32 %v5866, %v5907
  %v6018 = vadd.f32 %v5867, %v5907
  %v6019 = vadd.f32 %v5868, %v5907
  %v6020 = vadd.f32 %v5869, %v5907
  %v6021 = vadd.f32 %v5870, %v5907
  %v6022 = vadd.f32 %v5871, %v5907
  %v6023 = vadd.f32 %v5872, %v5907
  %v6024 = vadd.f32 %v5873, %v5907
  %v6025 = vadd.f32 %v5874, %v5907
  %v6026 = vadd.f32 %v5875, %v5907
  %v6027 = vadd.f32 %v5876, %v5907
  %v6028 = vadd.f32 %v5877, %v5907
  %v6029 = vadd.f32 %v5878, %v5907
  %v6030 = vadd.f32 %v5879, %v5907
  %v6031 = vadd.f32 %v5880, %v5907
  %v6032 = vadd.f32 %v5881, %v5907
  %v6033 = vadd.f32 %v5882, %v5907
  %v6034 = vadd.f32 %v5883, %v5907
  %v6035 = vadd.f32 %v5884, %v5907
  %v6036 = vadd.f32 %v5885, %v5907
  %v6037 = vadd.f32 %v5886, %v5907
  %v6038 = vadd.f32 %v5887, %v5907
  %v6039 = vadd.f32 %v5888, %v5907
  %v6040 = vadd.f32 %v5889, %v5907
  %v6041 = vadd.f32 %v5890, %v5907
  %v6042 = vadd.f32 %v5891, %v5907
  %v6043 = vadd.f32 %v5892, %v5907
  %v6044 = vadd.f32 %v5893, %v5907
  %v6045 = vadd.f32 %v5894, %v5907
  %v6046 = vadd.f32 %v5895, %v5907
  %v6047 = vadd.f32 %v5896, %v5907
  %v6048 = vadd.f32 %v5897, %v5907
  %v6049 = vadd.f32 %v5898, %v5907
  %v6050 = vadd.f32 %v5899, %v5907
  %v6051 = vadd.f32 %v5900, %v5907
  %v6052 = vadd.f32 %v5901, %v5907
  %v6053 = vmax.f32 %v5909, 0.0
  %v6054 = vmax.f32 %v5910, 0.0
  %v6055 = vmax.f32 %v5911, 0.0
  %v6056 = vmax.f32 %v5912, 0.0
  %v6057 = vmax.f32 %v5913, 0.0
  %v6058 = vmax.f32 %v5914, 0.0
  %v6059 = vmax.f32 %v5915, 0.0
  %v6060 = vmax.f32 %v5916, 0.0
  %v6061 = vmax.f32 %v5917, 0.0
  %v6062 = vmax.f32 %v5918, 0.0
  %v6063 = vmax.f32 %v5919, 0.0
  %v6064 = vmax.f32 %v5920, 0.0
  %v6065 = vmax.f32 %v5921, 0.0
  %v6066 = vmax.f32 %v5922, 0.0
  %v6067 = vmax.f32 %v5923, 0.0
  %v6068 = vmax.f32 %v5924, 0.0
  %v6069 = vmax.f32 %v5925, 0.0
  %v6070 = vmax.f32 %v5926, 0.0
  %v6071 = vmax.f32 %v5927, 0.0
  %v6072 = vmax.f32 %v5928, 0.0
  %v6073 = vmax.f32 %v5929, 0.0
  %v6074 = vmax.f32 %v5930, 0.0
  %v6075 = vmax.f32 %v5931, 0.0
  %v6076 = vmax.f32 %v5932, 0.0
  %v6077 = vmax.f32 %v5933, 0.0
  %v6078 = vmax.f32 %v5934, 0.0
  %v6079 = vmax.f32 %v5935, 0.0
  %v6080 = vmax.f32 %v5936, 0.0
  %v6081 = vmax.f32 %v5937, 0.0
  %v6082 = vmax.f32 %v5938, 0.0
  %v6083 = vmax.f32 %v5939, 0.0
  %v6084 = vmax.f32 %v5940, 0.0
  %v6085 = vmax.f32 %v5941, 0.0
  %v6086 = vmax.f32 %v5942, 0.0
  %v6087 = vmax.f32 %v5943, 0.0
  %v6088 = vmax.f32 %v5944, 0.0
  %v6089 = vmax.f32 %v5945, 0.0
  %v6090 = vmax.f32 %v5946, 0.0
  %v6091 = vmax.f32 %v5947, 0.0
  %v6092 = vmax.f32 %v5948, 0.0
  %v6093 = vmax.f32 %v5949, 0.0
  %v6094 = vmax.f32 %v5950, 0.0
  %v6095 = vmax.f32 %v5951, 0.0
  %v6096 = vmax.f32 %v5952, 0.0
  %v6097 = vmax.f32 %v5953, 0.0
  %v6098 = vmax.f32 %v5954, 0.0
  %v6099 = vmax.f32 %v5955, 0.0
  %v6100 = vmax.f32 %v5956, 0.0
  %v6101 = vmax.f32 %v5957, 0.0
  %v6102 = vmax.f32 %v5958, 0.0
  %v6103 = vmax.f32 %v5959, 0.0
  %v6104 = vmax.f32 %v5960, 0.0
  %v6105 = vmax.f32 %v5961, 0.0
  %v6106 = vmax.f32 %v5962, 0.0
  %v6107 = vmax.f32 %v5963, 0.0
  %v6108 = vmax.f32 %v5964, 0.0
  %v6109 = vmax.f32 %v5965, 0.0
  %v6110 = vmax.f32 %v5966, 0.0
  %v6111 = vmax.f32 %v5967, 0.0
  %v6112 = vmax.f32 %v5968, 0.0
  %v6113 = vmax.f32 %v5969, 0.0
  %v6114 = vmax.f32 %v5970, 0.0
  %v6115 = vmax.f32 %v5971, 0.0
  %v6116 = vmax.f32 %v5972, 0.0
  %v6117 = vmax.f32 %v5973, 0.0
  %v6118 = vmax.f32 %v5974, 0.0
  %v6119 = vmax.f32 %v5975, 0.0
  %v6120 = vmax.f32 %v5976, 0.0
  %v6121 = vmax.f32 %v5977, 0.0
  %v6122 = vmax.f32 %v5978, 0.0
  %v6123 = vmax.f32 %v5979, 0.0
  %v6124 = vmax.f32 %v5980, 0.0
  %v6125 = vmax.f32 %v5981, 0.0
  %v6126 = vmax.f32 %v5982, 0.0
  %v6127 = vmax.f32 %v5983, 0.0
  %v6128 = vmax.f32 %v5984, 0.0
  %v6129 = vmax.f32 %v5985, 0.0
  %v6130 = vmax.f32 %v5986, 0.0
  %v6131 = vmax.f32 %v5987, 0.0
  %v6132 = vmax.f32 %v5988, 0.0
  %v6133 = vmax.f32 %v5989, 0.0
  %v6134 = vmax.f32 %v5990, 0.0
  %v6135 = vmax.f32 %v5991, 0.0
  %v6136 = vmax.f32 %v5992, 0.0
  %v6137 = vmax.f32 %v5993, 0.0
  %v6138 = vmax.f32 %v5994, 0.0
  %v6139 = vmax.f32 %v5995, 0.0
  %v6140 = vmax.f32 %v5996, 0.0
  %v6141 = vmax.f32 %v5997, 0.0
  %v6142 = vmax.f32 %v5998, 0.0
  %v6143 = vmax.f32 %v5999, 0.0
  %v6144 = vmax.f32 %v6000, 0.0
  %v6145 = vmax.f32 %v6001, 0.0
  %v6146 = vmax.f32 %v6002, 0.0
  %v6147 = vmax.f32 %v6003, 0.0
  %v6148 = vmax.f32 %v6004, 0.0
  %v6149 = vmax.f32 %v6005, 0.0
  %v6150 = vmax.f32 %v6006, 0.0
  %v6151 = vmax.f32 %v6007, 0.0
  %v6152 = vmax.f32 %v6008, 0.0
  %v6153 = vmax.f32 %v6009, 0.0
  %v6154 = vmax.f32 %v6010, 0.0
  %v6155 = vmax.f32 %v6011, 0.0
  %v6156 = vmax.f32 %v6012, 0.0
  %v6157 = vmax.f32 %v6013, 0.0
  %v6158 = vmax.f32 %v6014, 0.0
  %v6159 = vmax.f32 %v6015, 0.0
  %v6160 = vmax.f32 %v6016, 0.0
  %v6161 = vmax.f32 %v6017, 0.0
  %v6162 = vmax.f32 %v6018, 0.0
  %v6163 = vmax.f32 %v6019, 0.0
  %v6164 = vmax.f32 %v6020, 0.0
  %v6165 = vmax.f32 %v6021, 0.0
  %v6166 = vmax.f32 %v6022, 0.0
  %v6167 = vmax.f32 %v6023, 0.0
  %v6168 = vmax.f32 %v6024, 0.0
  %v6169 = vmax.f32 %v6025, 0.0
  %v6170 = vmax.f32 %v6026, 0.0
  %v6171 = vmax.f32 %v6027, 0.0
  %v6172 = vmax.f32 %v6028, 0.0
  %v6173 = vmax.f32 %v6029, 0.0
  %v6174 = vmax.f32 %v6030, 0.0
  %v6175 = vmax.f32 %v6031, 0.0
  %v6176 = vmax.f32 %v6032, 0.0
  %v6177 = vmax.f32 %v6033, 0.0
  %v6178 = vmax.f32 %v6034, 0.0
  %v6179 = vmax.f32 %v6035, 0.0
  %v6180 = vmax.f32 %v6036, 0.0
  %v6181 = vmax.f32 %v6037, 0.0
  %v6182 = vmax.f32 %v6038, 0.0
  %v6183 = vmax.f32 %v6039, 0.0
  %v6184 = vmax.f32 %v6040, 0.0
  %v6185 = vmax.f32 %v6041, 0.0
  %v6186 = vmax.f32 %v6042, 0.0
  %v6187 = vmax.f32 %v6043, 0.0
  %v6188 = vmax.f32 %v6044, 0.0
  %v6189 = vmax.f32 %v6045, 0.0
  %v6190 = vmax.f32 %v6046, 0.0
  %v6191 = vmax.f32 %v6047, 0.0
  %v6192 = vmax.f32 %v6048, 0.0
  %v6193 = vmax.f32 %v6049, 0.0
  %v6194 = vmax.f32 %v6050, 0.0
  %v6195 = vmax.f32 %v6051, 0.0
  %v6196 = vmax.f32 %v6052, 0.0
  %6197 = vst [vmem:[%s3] sm:$0xff] %v6053
  %6198 = vst [vmem:[%s3 + $0x8] sm:$0xff] %v6054
  %6199 = vst [vmem:[%s3 + $0x10] sm:$0xff] %v6055
  %6200 = vst [vmem:[%s3 + $0x18] sm:$0xff] %v6056
  %6201 = vst [vmem:[%s3 + $0x20] sm:$0xff] %v6057
  %6202 = vst [vmem:[%s3 + $0x28] sm:$0xff] %v6058
  %6203 = vst [vmem:[%s3 + $0x30] sm:$0xff] %v6059
  %6204 = vst [vmem:[%s3 + $0x38] sm:$0xff] %v6060
  %6205 = vst [vmem:[%s3 + $0x40] sm:$0xff] %v6061
  %6206 = vst [vmem:[%s3 + $0x48] sm:$0xff] %v6062
  %6207 = vst [vmem:[%s3 + $0x50] sm:$0xff] %v6063
  %6208 = vst [vmem:[%s3 + $0x58] sm:$0xff] %v6064
  %6209 = vst [vmem:[%s3 + $0x60] sm:$0xff] %v6065
  %6210 = vst [vmem:[%s3 + $0x68] sm:$0xff] %v6066
  %6211 = vst [vmem:[%s3 + $0x70] sm:$0xff] %v6067
  %6212 = vst [vmem:[%s3 + $0x78] sm:$0xff] %v6068
  %6213 = vst [vmem:[%s3 + $0x80] sm:$0xff] %v6069
  %6214 = vst [vmem:[%s3 + $0x88] sm:$0xff] %v6070
  %6215 = vst [vmem:[%s3 + $0x90] sm:$0xff] %v6071
  %6216 = vst [vmem:[%s3 + $0x98] sm:$0xff] %v6072
  %6217 = vst [vmem:[%s3 + $0xa0] sm:$0xff] %v6073
  %6218 = vst [vmem:[%s3 + $0xa8] sm:$0xff] %v6074
  %6219 = vst [vmem:[%s3 + $0xb0] sm:$0xff] %v6075
  %6220 = vst [vmem:[%s3 + $0xb8] sm:$0xff] %v6076
  %6221 = vst [vmem:[%s3 + $0xc0] sm:$0xff] %v6077
  %6222 = vst [vmem:[%s3 + $0xc8] sm:$0xff] %v6078
  %6223 = vst [vmem:[%s3 + $0xd0] sm:$0xff] %v6079
  %6224 = vst [vmem:[%s3 + $0xd8] sm:$0xff] %v6080
  %6225 = vst [vmem:[%s3 + $0xe0] sm:$0xff] %v6081
  %6226 = vst [vmem:[%s3 + $0xe8] sm:$0xff] %v6082
  %6227 = vst [vmem:[%s3 + $0xf0] sm:$0xff] %v6083
  %6228 = vst [vmem:[%s3 + $0xf8] sm:$0xff] %v6084
  %6229 = vst [vmem:[%s3 + $0x100] sm:$0xff] %v6085
  %6230 = vst [vmem:[%s3 + $0x108] sm:$0xff] %v6086
  %6231 = vst [vmem:[%s3 + $0x110] sm:$0xff] %v6087
  %6232 = vst [vmem:[%s3 + $0x118] sm:$0xff] %v6088
  %6233 = vst [vmem:[%s3 + $0x120] sm:$0xff] %v6089
  %6234 = vst [vmem:[%s3 + $0x128] sm:$0xff] %v6090
  %6235 = vst [vmem:[%s3 + $0x130] sm:$0xff] %v6091
  %6236 = vst [vmem:[%s3 + $0x138] sm:$0xff] %v6092
  %6237 = vst [vmem:[%s3 + $0x140] sm:$0xff] %v6093
  %6238 = vst [vmem:[%s3 + $0x148] sm:$0xff] %v6094
  %6239 = vst [vmem:[%s3 + $0x150] sm:$0xff] %v6095
  %6240 = vst [vmem:[%s3 + $0x158] sm:$0xff] %v6096
  %6241 = vst [vmem:[%s3 + $0x160] sm:$0xff] %v6097
  %6242 = vst [vmem:[%s3 + $0x168] sm:$0xff] %v6098
  %6243 = vst [vmem:[%s3 + $0x170] sm:$0xff] %v6099
  %6244 = vst [vmem:[%s3 + $0x178] sm:$0xff] %v6100
  %6245 = vst [vmem:[%s3 + $0x180] sm:$0xff] %v6101
  %6246 = vst [vmem:[%s3 + $0x188] sm:$0xff] %v6102
  %6247 = vst [vmem:[%s3 + $0x190] sm:$0xff] %v6103
  %6248 = vst [vmem:[%s3 + $0x198] sm:$0xff] %v6104
  %6249 = vst [vmem:[%s3 + $0x1a0] sm:$0xff] %v6105
  %6250 = vst [vmem:[%s3 + $0x1a8] sm:$0xff] %v6106
  %6251 = vst [vmem:[%s3 + $0x1b0] sm:$0xff] %v6107
  %6252 = vst [vmem:[%s3 + $0x1b8] sm:$0xff] %v6108
  %6253 = vst [vmem:[%s3 + $0x1c0] sm:$0xff] %v6109
  %6254 = vst [vmem:[%s3 + $0x1c8] sm:$0xff] %v6110
  %6255 = vst [vmem:[%s3 + $0x1d0] sm:$0xff] %v6111
  %6256 = vst [vmem:[%s3 + $0x1d8] sm:$0xff] %v6112
  %6257 = vst [vmem:[%s3 + $0x1e0] sm:$0xff] %v6113
  %6258 = vst [vmem:[%s3 + $0x1e8] sm:$0xff] %v6114
  %6259 = vst [vmem:[%s3 + $0x1f0] sm:$0xff] %v6115
  %6260 = vst [vmem:[%s3 + $0x1f8] sm:$0xff] %v6116
  %6261 = vst [vmem:[%s3 + $0x200] sm:$0xff] %v6117
  %6262 = vst [vmem:[%s3 + $0x208] sm:$0xff] %v6118
  %6263 = vst [vmem:[%s3 + $0x210] sm:$0xff] %v6119
  %6264 = vst [vmem:[%s3 + $0x218] sm:$0xff] %v6120
  %6265 = vst [vmem:[%s3 + $0x220] sm:$0xff] %v6121
  %6266 = vst [vmem:[%s3 + $0x228] sm:$0xff] %v6122
  %6267 = vst [vmem:[%s3 + $0x230] sm:$0xff] %v6123
  %6268 = vst [vmem:[%s3 + $0x238] sm:$0xff] %v6124
  %6269 = vst [vmem:[%s3 + $0x240] sm:$0xff] %v6125
  %6270 = vst [vmem:[%s3 + $0x248] sm:$0xff] %v6126
  %6271 = vst [vmem:[%s3 + $0x250] sm:$0xff] %v6127
  %6272 = vst [vmem:[%s3 + $0x258] sm:$0xff] %v6128
  %6273 = vst [vmem:[%s3 + $0x260] sm:$0xff] %v6129
  %6274 = vst [vmem:[%s3 + $0x268] sm:$0xff] %v6130
  %6275 = vst [vmem:[%s3 + $0x270] sm:$0xff] %v6131
  %6276 = vst [vmem:[%s3 + $0x278] sm:$0xff] %v6132
  %6277 = vst [vmem:[%s3 + $0x280] sm:$0xff] %v6133
  %6278 = vst [vmem:[%s3 + $0x288] sm:$0xff] %v6134
  %6279 = vst [vmem:[%s3 + $0x290] sm:$0xff] %v6135
  %6280 = vst [vmem:[%s3 + $0x298] sm:$0xff] %v6136
  %6281 = vst [vmem:[%s3 + $0x2a0] sm:$0xff] %v6137
  %6282 = vst [vmem:[%s3 + $0x2a8] sm:$0xff] %v6138
  %6283 = vst [vmem:[%s3 + $0x2b0] sm:$0xff] %v6139
  %6284 = vst [vmem:[%s3 + $0x2b8] sm:$0xff] %v6140
  %6285 = vst [vmem:[%s3 + $0x2c0] sm:$0xff] %v6141
  %6286 = vst [vmem:[%s3 + $0x2c8] sm:$0xff] %v6142
  %6287 = vst [vmem:[%s3 + $0x2d0] sm:$0xff] %v6143
  %6288 = vst [vmem:[%s3 + $0x2d8] sm:$0xff] %v6144
  %6289 = vst [vmem:[%s3 + $0x2e0] sm:$0xff] %v6145
  %6290 = vst [vmem:[%s3 + $0x2e8] sm:$0xff] %v6146
  %6291 = vst [vmem:[%s3 + $0x2f0] sm:$0xff] %v6147
  %6292 = vst [vmem:[%s3 + $0x2f8] sm:$0xff] %v6148
  %6293 = vst [vmem:[%s3 + $0x300] sm:$0xff] %v6149
  %6294 = vst [vmem:[%s3 + $0x308] sm:$0xff] %v6150
  %6295 = vst [vmem:[%s3 + $0x310] sm:$0xff] %v6151
  %6296 = vst [vmem:[%s3 + $0x318] sm:$0xff] %v6152
  %6297 = vst [vmem:[%s3 + $0x320] sm:$0xff] %v6153
  %6298 = vst [vmem:[%s3 + $0x328] sm:$0xff] %v6154
  %6299 = vst [vmem:[%s3 + $0x330] sm:$0xff] %v6155
  %6300 = vst [vmem:[%s3 + $0x338] sm:$0xff] %v6156
  %6301 = vst [vmem:[%s3 + $0x340] sm:$0xff] %v6157
  %6302 = vst [vmem:[%s3 + $0x348] sm:$0xff] %v6158
  %6303 = vst [vmem:[%s3 + $0x350] sm:$0xff] %v6159
  %6304 = vst [vmem:[%s3 + $0x358] sm:$0xff] %v6160
  %6305 = vst [vmem:[%s3 + $0x360] sm:$0xff] %v6161
  %6306 = vst [vmem:[%s3 + $0x368] sm:$0xff] %v6162
  %6307 = vst [vmem:[%s3 + $0x370] sm:$0xff] %v6163
  %6308 = vst [vmem:[%s3 + $0x378] sm:$0xff] %v6164
  %6309 = vst [vmem:[%s3 + $0x380] sm:$0xff] %v6165
  %6310 = vst [vmem:[%s3 + $0x388] sm:$0xff] %v6166
  %6311 = vst [vmem:[%s3 + $0x390] sm:$0xff] %v6167
  %6312 = vst [vmem:[%s3 + $0x398] sm:$0xff] %v6168
  %6313 = vst [vmem:[%s3 + $0x3a0] sm:$0xff] %v6169
  %6314 = vst [vmem:[%s3 + $0x3a8] sm:$0xff] %v6170
  %6315 = vst [vmem:[%s3 + $0x3b0] sm:$0xff] %v6171
  %6316 = vst [vmem:[%s3 + $0x3b8] sm:$0xff] %v6172
  %6317 = vst [vmem:[%s3 + $0x3c0] sm:$0xff] %v6173
  %6318 = vst [vmem:[%s3 + $0x3c8] sm:$0xff] %v6174
  %6319 = vst [vmem:[%s3 + $0x3d0] sm:$0xff] %v6175
  %6320 = vst [vmem:[%s3 + $0x3d8] sm:$0xff] %v6176
  %6321 = vst [vmem:[%s3 + $0x3e0] sm:$0xff] %v6177
  %6322 = vst [vmem:[%s3 + $0x3e8] sm:$0xff] %v6178
  %6323 = vst [vmem:[%s3 + $0x3f0] sm:$0xff] %v6179
  %6324 = vst [vmem:[%s3 + $0x3f8] sm:$0xff] %v6180
  %6325 = vst [vmem:[%s3 + $0x400] sm:$0xff] %v6181
  %6326 = vst [vmem:[%s3 + $0x408] sm:$0xff] %v6182
  %6327 = vst [vmem:[%s3 + $0x410] sm:$0xff] %v6183
  %6328 = vst [vmem:[%s3 + $0x418] sm:$0xff] %v6184
  %6329 = vst [vmem:[%s3 + $0x420] sm:$0xff] %v6185
  %6330 = vst [vmem:[%s3 + $0x428] sm:$0xff] %v6186
  %6331 = vst [vmem:[%s3 + $0x430] sm:$0xff] %v6187
  %6332 = vst [vmem:[%s3 + $0x438] sm:$0xff] %v6188
  %6333 = vst [vmem:[%s3 + $0x440] sm:$0xff] %v6189
  %6334 = vst [vmem:[%s3 + $0x448] sm:$0xff] %v6190
  %6335 = vst [vmem:[%s3 + $0x450] sm:$0xff] %v6191
  %6336 = vst [vmem:[%s3 + $0x458] sm:$0xff] %v6192
  %6337 = vst [vmem:[%s3 + $0x460] sm:$0xff] %v6193
  %6338 = vst [vmem:[%s3 + $0x468] sm:$0xff] %v6194
  %6339 = vst [vmem:[%s3 + $0x470] sm:$0xff] %v6195
  %6340 = vst [vmem:[%s3 + $0x478] sm:$0xff] %v6196
  // Predicated region
  $region14: #{net_forward.3} parent=0 // pred_check
    _
  $region15: #{net_forward.3} parent=0 // pred_check_branch
    %6342 = sbr.rel (0) target = $region17
  $region16: #{net_forward.3} parent=0 // pred_region
    _
  $region17: #{net_forward.3} parent=0 // pred_fallthru
    _
  // Predicated region
  $region18: #{net_forward.3} parent=0 // pred_check
    _
  $region19: #{net_forward.3} parent=0 // pred_check_branch
    %6344 = sbr.rel (0) target = $region21
  $region20: #{net_forward.3} parent=0 // pred_region
    _
  $region21: #{net_forward.3} parent=0 // pred_fallthru
    _

// kernel: net_forward.4
$region0: #{net_forward.4}
  #allocation0 [shape = 'u32[]', space=smem, size = 0x4, offset = 0x4, fixed_abs, tag = 'smem constant byte address 0x4 - core index']
  #allocation1 [shape = 'u32[144,128]{1,0:T(1,128)}', space=vmem, size = 0x12000, scoped, tag = 'internal scratch']
  %s0 = inlined_call_operand.vmem [shape: f32[4,128,150], index: 0, kind: input, shape index: {}]
  %s1 = inlined_call_operand.vmem [shape: f32[150,128], index: 1, kind: input, shape index: {}]
  %s2 = inlined_call_operand.vmem [shape: f32[1,128], index: 2, kind: input, shape index: {}]
  %s3 = inlined_call_operand.vmem [shape: f32[128,128], index: 3, kind: output, shape index: {}]
  %s4 = sld [smem:[#allocation0]]
  $region22: #{net_forward.4} parent=0
    _
  %s6 = ssub.s32 1, %s4
  %s7 = scalar_select 0, %s6, %s4
  // Predicated region
  $region2: #{net_forward.4} parent=0 // pred_check
    _
  $region3: #{net_forward.4} parent=0 // pred_check_branch
    %9 = sbr.rel (0) target = $region5
  $region4: #{net_forward.4} parent=0 // pred_region
    _
  $region5: #{net_forward.4} parent=0 // pred_fallthru
    _
  // Predicated region
  $region6: #{net_forward.4} parent=0 // pred_check
    _
  $region7: #{net_forward.4} parent=0 // pred_check_branch
    %11 = sbr.rel (0) target = $region9
  $region8: #{net_forward.4} parent=0 // pred_region
    _
  $region9: #{net_forward.4} parent=0 // pred_fallthru
    _
  // Predicated region
  $region10: #{net_forward.4} parent=0 // pred_check
    _
  $region11: #{net_forward.4} parent=0 // pred_check_branch
    %13 = sbr.rel (0) target = $region13
  $region12: #{net_forward.4} parent=0 // pred_region
    _
  $region13: #{net_forward.4} parent=0 // pred_fallthru
    _
  %v14 = vld [vmem:[%s1] sm:$0xff]
  %v15 = vld [vmem:[%s1 + $0x8] sm:$0xff]
  %v16 = vld [vmem:[%s1 + $0x10] sm:$0xff]
  %v17 = vld [vmem:[%s1 + $0x18] sm:$0xff]
  %v18 = vld [vmem:[%s1 + $0x20] sm:$0xff]
  %v19 = vld [vmem:[%s1 + $0x28] sm:$0xff]
  %v20 = vld [vmem:[%s1 + $0x30] sm:$0xff]
  %v21 = vld [vmem:[%s1 + $0x38] sm:$0xff]
  %v22 = vld [vmem:[%s1 + $0x40] sm:$0xff]
  %v23 = vld [vmem:[%s1 + $0x48] sm:$0xff]
  %v24 = vld [vmem:[%s1 + $0x50] sm:$0xff]
  %v25 = vld [vmem:[%s1 + $0x58] sm:$0xff]
  %v26 = vld [vmem:[%s1 + $0x60] sm:$0xff]
  %v27 = vld [vmem:[%s1 + $0x68] sm:$0xff]
  %v28 = vld [vmem:[%s1 + $0x70] sm:$0xff]
  %v29 = vld [vmem:[%s1 + $0x78] sm:$0xff]
  %v30 = vld [vmem:[%s1 + $0x80] sm:$0xff]
  %v31 = vld [vmem:[%s1 + $0x88] sm:$0xff]
  %v32 = vld [vmem:[%s1 + $0x90] sm:$0x3f]
  %v33 = vld [vmem:[%s0] sm:$0xff]
  %v34 = vld [vmem:[%s0 + $0x8] sm:$0xff]
  %v35 = vld [vmem:[%s0 + $0x10] sm:$0xff]
  %v36 = vld [vmem:[%s0 + $0x18] sm:$0xff]
  %v37 = vld [vmem:[%s0 + $0x20] sm:$0xff]
  %v38 = vld [vmem:[%s0 + $0x28] sm:$0xff]
  %v39 = vld [vmem:[%s0 + $0x30] sm:$0xff]
  %v40 = vld [vmem:[%s0 + $0x38] sm:$0xff]
  %v41 = vld [vmem:[%s0 + $0x40] sm:$0xff]
  %v42 = vld [vmem:[%s0 + $0x48] sm:$0xff]
  %v43 = vld [vmem:[%s0 + $0x50] sm:$0xff]
  %v44 = vld [vmem:[%s0 + $0x58] sm:$0xff]
  %v45 = vld [vmem:[%s0 + $0x60] sm:$0xff]
  %v46 = vld [vmem:[%s0 + $0x68] sm:$0xff]
  %v47 = vld [vmem:[%s0 + $0x70] sm:$0xff]
  %v48 = vld [vmem:[%s0 + $0x78] sm:$0xff]
  %v49 = vld [vmem:[%s0 + $0x80] sm:$0xff]
  %v50 = vld [vmem:[%s0 + $0x88] sm:$0xff]
  %v51 = vld [vmem:[%s0 + $0x90] sm:$0xff]
  %v52 = vld [vmem:[%s0 + $0x98] sm:$0xff]
  %v53 = vld [vmem:[%s0 + $0xa0] sm:$0xff]
  %v54 = vld [vmem:[%s0 + $0xa8] sm:$0xff]
  %v55 = vld [vmem:[%s0 + $0xb0] sm:$0xff]
  %v56 = vld [vmem:[%s0 + $0xb8] sm:$0xff]
  %v57 = vld [vmem:[%s0 + $0xc0] sm:$0xff]
  %v58 = vld [vmem:[%s0 + $0xc8] sm:$0xff]
  %v59 = vld [vmem:[%s0 + $0xd0] sm:$0xff]
  %v60 = vld [vmem:[%s0 + $0xd8] sm:$0xff]
  %v61 = vld [vmem:[%s0 + $0xe0] sm:$0xff]
  %v62 = vld [vmem:[%s0 + $0xe8] sm:$0xff]
  %v63 = vld [vmem:[%s0 + $0xf0] sm:$0xff]
  %v64 = vld [vmem:[%s0 + $0xf8] sm:$0xff]
  %vm65 = vcmask 179200
  %v67 = vsel %vm65, %v34, 0
  %v70 = vsel %vm65, %v36, 0
  %v73 = vsel %vm65, %v38, 0
  %v76 = vsel %vm65, %v40, 0
  %v79 = vsel %vm65, %v42, 0
  %v82 = vsel %vm65, %v44, 0
  %v85 = vsel %vm65, %v46, 0
  %v88 = vsel %vm65, %v48, 0
  %v91 = vsel %vm65, %v50, 0
  %v94 = vsel %vm65, %v52, 0
  %v97 = vsel %vm65, %v54, 0
  %v100 = vsel %vm65, %v56, 0
  %v103 = vsel %vm65, %v58, 0
  %v106 = vsel %vm65, %v60, 0
  %v109 = vsel %vm65, %v62, 0
  %v112 = vsel %vm65, %v64, 0
  %vm114 = vcmask 1045504
  %v116 = vsel %vm114, %v32, 0
  %118 = vmatprep.subr.mxu0 0.0
  %119 = vmatpush1.msra.mxu0 %v14
  %120 = vmatprep.subr.mxu0 0.0
  %121 = vmatpush1.msra.mxu0 %v15
  %122 = vmatprep.subr.mxu0 0.0
  %123 = vmatpush1.msra.mxu0 %v16
  %124 = vmatprep.subr.mxu0 0.0
  %125 = vmatpush1.msra.mxu0 %v17
  %126 = vmatprep.subr.mxu0 0.0
  %127 = vmatpush1.msra.mxu0 %v18
  %128 = vmatprep.subr.mxu0 0.0
  %129 = vmatpush1.msra.mxu0 %v19
  %130 = vmatprep.subr.mxu0 0.0
  %131 = vmatpush1.msra.mxu0 %v20
  %132 = vmatprep.subr.mxu0 0.0
  %133 = vmatpush1.msra.mxu0 %v21
  %134 = vmatprep.subr.mxu0 0.0
  %135 = vmatpush1.msra.mxu0 %v22
  %136 = vmatprep.subr.mxu0 0.0
  %137 = vmatpush1.msra.mxu0 %v23
  %138 = vmatprep.subr.mxu0 0.0
  %139 = vmatpush1.msra.mxu0 %v24
  %140 = vmatprep.subr.mxu0 0.0
  %141 = vmatpush1.msra.mxu0 %v25
  %142 = vmatprep.subr.mxu0 0.0
  %143 = vmatpush1.msra.mxu0 %v26
  %144 = vmatprep.subr.mxu0 0.0
  %145 = vmatpush1.msra.mxu0 %v27
  %146 = vmatprep.subr.mxu0 0.0
  %147 = vmatpush1.msra.mxu0 %v28
  %148 = vmatprep.subr.mxu0 0.0
  %149 = vmatpush1.msra.mxu0 %v29
  %150 = vmatprep.subr.mxu0 0.0
  %151 = vmatpush1.msra.mxu0 %v30
  %152 = vmatprep.subr.mxu0 0.0
  %153 = vmatpush1.msra.mxu0 %v31
  %154 = vmatprep.subr.mxu0 0.0
  %155 = vmatpush1.msra.mxu0 %v116
  %156 = vmatprep.subr.mxu0 0.0
  %157 = vmatpush1.msra.mxu0 0.0
  %158 = vmatprep.subr.mxu0 0.0
  %159 = vmatpush1.msra.mxu0 0.0
  %160 = vmatprep.subr.mxu0 0.0
  %161 = vmatpush1.msra.mxu0 0.0
  %162 = vmatprep.subr.mxu0 0.0
  %163 = vmatpush1.msra.mxu0 0.0
  %164 = vmatprep.subr.mxu0 0.0
  %165 = vmatpush1.msra.mxu0 0.0
  %166 = vmatprep.subr.mxu0 0.0
  %167 = vmatpush1.msra.mxu0 0.0
  %168 = vmatprep.subr.mxu0 0.0
  %169 = vmatpush1.msra.mxu0 0.0
  %170 = vmatprep.subr.mxu0 0.0
  %171 = vmatpush1.msra.mxu0 0.0
  %172 = vmatprep.subr.mxu0 0.0
  %173 = vmatpush1.msra.mxu0 0.0
  %174 = vmatprep.subr.mxu0 0.0
  %175 = vmatpush1.msra.mxu0 0.0
  %176 = vmatprep.subr.mxu0 0.0
  %177 = vmatpush1.msra.mxu0 0.0
  %178 = vmatprep.subr.mxu0 0.0
  %179 = vmatpush1.msra.mxu0 0.0
  %180 = vmatprep.subr.mxu0 0.0
  %181 = vmatpush1.msra.mxu0 0.0
  %182 = vmatprep.mubr.f32.mxu0 %v67
  %183 = vmatmul.mubr.f32.gmra.mrb[0].mxu0 %v33
  %v184 = vpop.f32.mrb[0].mxu0
  %v185 = vadd.f32 0.0, %v184
  %v186 = vpop.f32.mrb[0].mxu0
  %187 = vmatprep.mubr.f32.mxu0 %v70
  %188 = vmatmul.mubr.f32.gmra.mrb[0].mxu0 %v35
  %v189 = vpop.f32.mrb[0].mxu0
  %v190 = vadd.f32 0.0, %v189
  %v191 = vpop.f32.mrb[0].mxu0
  %192 = vmatprep.mubr.f32.mxu0 %v73
  %193 = vmatmul.mubr.f32.gmra.mrb[0].mxu0 %v37
  %v194 = vpop.f32.mrb[0].mxu0
  %v195 = vadd.f32 0.0, %v194
  %v196 = vpop.f32.mrb[0].mxu0
  %197 = vmatprep.mubr.f32.mxu0 %v76
  %198 = vmatmul.mubr.f32.gmra.mrb[0].mxu0 %v39
  %v199 = vpop.f32.mrb[0].mxu0
  %v200 = vadd.f32 0.0, %v199
  %v201 = vpop.f32.mrb[0].mxu0
  %202 = vmatprep.mubr.f32.mxu0 %v79
  %203 = vmatmul.mubr.f32.gmra.mrb[0].mxu0 %v41
  %v204 = vpop.f32.mrb[0].mxu0
  %v205 = vadd.f32 0.0, %v204
  %v206 = vpop.f32.mrb[0].mxu0
  %207 = vmatprep.mubr.f32.mxu0 %v82
  %208 = vmatmul.mubr.f32.gmra.mrb[0].mxu0 %v43
  %v209 = vpop.f32.mrb[0].mxu0
  %v210 = vadd.f32 0.0, %v209
  %v211 = vpop.f32.mrb[0].mxu0
  %212 = vmatprep.mubr.f32.mxu0 %v85
  %213 = vmatmul.mubr.f32.gmra.mrb[0].mxu0 %v45
  %v214 = vpop.f32.mrb[0].mxu0
  %v215 = vadd.f32 0.0, %v214
  %v216 = vpop.f32.mrb[0].mxu0
  %217 = vmatprep.mubr.f32.mxu0 %v88
  %218 = vmatmul.mubr.f32.gmra.mrb[0].mxu0 %v47
  %v219 = vpop.f32.mrb[0].mxu0
  %v220 = vadd.f32 0.0, %v219
  %v221 = vpop.f32.mrb[0].mxu0
  %222 = vmatprep.mubr.f32.mxu0 %v91
  %223 = vmatmul.mubr.f32.gmra.mrb[0].mxu0 %v49
  %v224 = vpop.f32.mrb[0].mxu0
  %v225 = vadd.f32 0.0, %v224
  %v226 = vpop.f32.mrb[0].mxu0
  %227 = vmatprep.mubr.f32.mxu0 %v94
  %228 = vmatmul.mubr.f32.gmra.mrb[0].mxu0 %v51
  %v229 = vpop.f32.mrb[0].mxu0
  %v230 = vadd.f32 0.0, %v229
  %v231 = vpop.f32.mrb[0].mxu0
  %232 = vmatprep.mubr.f32.mxu0 %v97
  %233 = vmatmul.mubr.f32.gmra.mrb[0].mxu0 %v53
  %v234 = vpop.f32.mrb[0].mxu0
  %v235 = vadd.f32 0.0, %v234
  %v236 = vpop.f32.mrb[0].mxu0
  %237 = vmatprep.mubr.f32.mxu0 %v100
  %238 = vmatmul.mubr.f32.gmra.mrb[0].mxu0 %v55
  %v239 = vpop.f32.mrb[0].mxu0
  %v240 = vadd.f32 0.0, %v239
  %v241 = vpop.f32.mrb[0].mxu0
  %242 = vmatprep.mubr.f32.mxu0 %v103
  %243 = vmatmul.mubr.f32.gmra.mrb[0].mxu0 %v57
  %v244 = vpop.f32.mrb[0].mxu0
  %v245 = vadd.f32 0.0, %v244
  %v246 = vpop.f32.mrb[0].mxu0
  %247 = vmatprep.mubr.f32.mxu0 %v106
  %248 = vmatmul.mubr.f32.gmra.mrb[0].mxu0 %v59
  %v249 = vpop.f32.mrb[0].mxu0
  %v250 = vadd.f32 0.0, %v249
  %v251 = vpop.f32.mrb[0].mxu0
  %252 = vmatprep.mubr.f32.mxu0 %v109
  %253 = vmatmul.mubr.f32.gmra.mrb[0].mxu0 %v61
  %v254 = vpop.f32.mrb[0].mxu0
  %v255 = vadd.f32 0.0, %v254
  %v256 = vpop.f32.mrb[0].mxu0
  %257 = vmatprep.mubr.f32.mxu0 %v112
  %258 = vmatmul.mubr.f32.gmra.mrb[0].mxu0 %v63
  %v259 = vpop.f32.mrb[0].mxu0
  %v260 = vadd.f32 0.0, %v259
  %v261 = vpop.f32.mrb[0].mxu0
  %262 = vdwg.mxu0
  %s263 = scalar_lea.vmem %s0, 256
  %v264 = vld [vmem:[%s263] sm:$0xff]
  %v265 = vld [vmem:[%s263 + $0x8] sm:$0xff]
  %v266 = vld [vmem:[%s263 + $0x10] sm:$0xff]
  %v267 = vld [vmem:[%s263 + $0x18] sm:$0xff]
  %v268 = vld [vmem:[%s263 + $0x20] sm:$0xff]
  %v269 = vld [vmem:[%s263 + $0x28] sm:$0xff]
  %v270 = vld [vmem:[%s263 + $0x30] sm:$0xff]
  %v271 = vld [vmem:[%s263 + $0x38] sm:$0xff]
  %v272 = vld [vmem:[%s263 + $0x40] sm:$0xff]
  %v273 = vld [vmem:[%s263 + $0x48] sm:$0xff]
  %v274 = vld [vmem:[%s263 + $0x50] sm:$0xff]
  %v275 = vld [vmem:[%s263 + $0x58] sm:$0xff]
  %v276 = vld [vmem:[%s263 + $0x60] sm:$0xff]
  %v277 = vld [vmem:[%s263 + $0x68] sm:$0xff]
  %v278 = vld [vmem:[%s263 + $0x70] sm:$0xff]
  %v279 = vld [vmem:[%s263 + $0x78] sm:$0xff]
  %v280 = vld [vmem:[%s263 + $0x80] sm:$0xff]
  %v281 = vld [vmem:[%s263 + $0x88] sm:$0xff]
  %v282 = vld [vmem:[%s263 + $0x90] sm:$0xff]
  %v283 = vld [vmem:[%s263 + $0x98] sm:$0xff]
  %v284 = vld [vmem:[%s263 + $0xa0] sm:$0xff]
  %v285 = vld [vmem:[%s263 + $0xa8] sm:$0xff]
  %v286 = vld [vmem:[%s263 + $0xb0] sm:$0xff]
  %v287 = vld [vmem:[%s263 + $0xb8] sm:$0xff]
  %v288 = vld [vmem:[%s263 + $0xc0] sm:$0xff]
  %v289 = vld [vmem:[%s263 + $0xc8] sm:$0xff]
  %v290 = vld [vmem:[%s263 + $0xd0] sm:$0xff]
  %v291 = vld [vmem:[%s263 + $0xd8] sm:$0xff]
  %v292 = vld [vmem:[%s263 + $0xe0] sm:$0xff]
  %v293 = vld [vmem:[%s263 + $0xe8] sm:$0xff]
  %v294 = vld [vmem:[%s263 + $0xf0] sm:$0xff]
  %v295 = vld [vmem:[%s263 + $0xf8] sm:$0xff]
  %v297 = vsel %vm65, %v265, 0
  %v300 = vsel %vm65, %v267, 0
  %v303 = vsel %vm65, %v269, 0
  %v306 = vsel %vm65, %v271, 0
  %v309 = vsel %vm65, %v273, 0
  %v312 = vsel %vm65, %v275, 0
  %v315 = vsel %vm65, %v277, 0
  %v318 = vsel %vm65, %v279, 0
  %v321 = vsel %vm65, %v281, 0
  %v324 = vsel %vm65, %v283, 0
  %v327 = vsel %vm65, %v285, 0
  %v330 = vsel %vm65, %v287, 0
  %v333 = vsel %vm65, %v289, 0
  %v336 = vsel %vm65, %v291, 0
  %v339 = vsel %vm65, %v293, 0
  %v342 = vsel %vm65, %v295, 0
  %344 = vmatprep.subr.mxu0 0.0
  %345 = vmatpush1.msra.mxu0 %v14
  %346 = vmatprep.subr.mxu0 0.0
  %347 = vmatpush1.msra.mxu0 %v15
  %348 = vmatprep.subr.mxu0 0.0
  %349 = vmatpush1.msra.mxu0 %v16
  %350 = vmatprep.subr.mxu0 0.0
  %351 = vmatpush1.msra.mxu0 %v17
  %352 = vmatprep.subr.mxu0 0.0
  %353 = vmatpush1.msra.mxu0 %v18
  %354 = vmatprep.subr.mxu0 0.0
  %355 = vmatpush1.msra.mxu0 %v19
  %356 = vmatprep.subr.mxu0 0.0
  %357 = vmatpush1.msra.mxu0 %v20
  %358 = vmatprep.subr.mxu0 0.0
  %359 = vmatpush1.msra.mxu0 %v21
  %360 = vmatprep.subr.mxu0 0.0
  %361 = vmatpush1.msra.mxu0 %v22
  %362 = vmatprep.subr.mxu0 0.0
  %363 = vmatpush1.msra.mxu0 %v23
  %364 = vmatprep.subr.mxu0 0.0
  %365 = vmatpush1.msra.mxu0 %v24
  %366 = vmatprep.subr.mxu0 0.0
  %367 = vmatpush1.msra.mxu0 %v25
  %368 = vmatprep.subr.mxu0 0.0
  %369 = vmatpush1.msra.mxu0 %v26
  %370 = vmatprep.subr.mxu0 0.0
  %371 = vmatpush1.msra.mxu0 %v27
  %372 = vmatprep.subr.mxu0 0.0
  %373 = vmatpush1.msra.mxu0 %v28
  %374 = vmatprep.subr.mxu0 0.0
  %375 = vmatpush1.msra.mxu0 %v29
  %376 = vmatprep.subr.mxu0 0.0
  %377 = vmatpush1.msra.mxu0 %v30
  %378 = vmatprep.subr.mxu0 0.0
  %379 = vmatpush1.msra.mxu0 %v31
  %380 = vmatprep.subr.mxu0 0.0
  %381 = vmatpush1.msra.mxu0 %v116
  %382 = vmatprep.subr.mxu0 0.0
  %383 = vmatpush1.msra.mxu0 0.0
  %384 = vmatprep.subr.mxu0 0.0
  %385 = vmatpush1.msra.mxu0 0.0
  %386 = vmatprep.subr.mxu0 0.0
  %387 = vmatpush1.msra.mxu0 0.0
  %388 = vmatprep.subr.mxu0 0.0
  %389 = vmatpush1.msra.mxu0 0.0
  %390 = vmatprep.subr.mxu0 0.0
  %391 = vmatpush1.msra.mxu0 0.0
  %392 = vmatprep.subr.mxu0 0.0
  %393 = vmatpush1.msra.mxu0 0.0
  %394 = vmatprep.subr.mxu0 0.0
  %395 = vmatpush1.msra.mxu0 0.0
  %396 = vmatprep.subr.mxu0 0.0
  %397 = vmatpush1.msra.mxu0 0.0
  %398 = vmatprep.subr.mxu0 0.0
  %399 = vmatpush1.msra.mxu0 0.0
  %400 = vmatprep.subr.mxu0 0.0
  %401 = vmatpush1.msra.mxu0 0.0
  %402 = vmatprep.subr.mxu0 0.0
  %403 = vmatpush1.msra.mxu0 0.0
  %404 = vmatprep.subr.mxu0 0.0
  %405 = vmatpush1.msra.mxu0 0.0
  %406 = vmatprep.subr.mxu0 0.0
  %407 = vmatpush1.msra.mxu0 0.0
  %408 = vmatprep.mubr.f32.mxu0 %v297
  %409 = vmatmul.mubr.f32.gmra.mrb[0].mxu0 %v264
  %v410 = vpop.f32.mrb[0].mxu0
  %v411 = vadd.f32 0.0, %v410
  %v412 = vpop.f32.mrb[0].mxu0
  %413 = vmatprep.mubr.f32.mxu0 %v300
  %414 = vmatmul.mubr.f32.gmra.mrb[0].mxu0 %v266
  %v415 = vpop.f32.mrb[0].mxu0
  %v416 = vadd.f32 0.0, %v415
  %v417 = vpop.f32.mrb[0].mxu0
  %418 = vmatprep.mubr.f32.mxu0 %v303
  %419 = vmatmul.mubr.f32.gmra.mrb[0].mxu0 %v268
  %v420 = vpop.f32.mrb[0].mxu0
  %v421 = vadd.f32 0.0, %v420
  %v422 = vpop.f32.mrb[0].mxu0
  %423 = vmatprep.mubr.f32.mxu0 %v306
  %424 = vmatmul.mubr.f32.gmra.mrb[0].mxu0 %v270
  %v425 = vpop.f32.mrb[0].mxu0
  %v426 = vadd.f32 0.0, %v425
  %v427 = vpop.f32.mrb[0].mxu0
  %428 = vmatprep.mubr.f32.mxu0 %v309
  %429 = vmatmul.mubr.f32.gmra.mrb[0].mxu0 %v272
  %v430 = vpop.f32.mrb[0].mxu0
  %v431 = vadd.f32 0.0, %v430
  %v432 = vpop.f32.mrb[0].mxu0
  %433 = vmatprep.mubr.f32.mxu0 %v312
  %434 = vmatmul.mubr.f32.gmra.mrb[0].mxu0 %v274
  %v435 = vpop.f32.mrb[0].mxu0
  %v436 = vadd.f32 0.0, %v435
  %v437 = vpop.f32.mrb[0].mxu0
  %438 = vmatprep.mubr.f32.mxu0 %v315
  %439 = vmatmul.mubr.f32.gmra.mrb[0].mxu0 %v276
  %v440 = vpop.f32.mrb[0].mxu0
  %v441 = vadd.f32 0.0, %v440
  %v442 = vpop.f32.mrb[0].mxu0
  %443 = vmatprep.mubr.f32.mxu0 %v318
  %444 = vmatmul.mubr.f32.gmra.mrb[0].mxu0 %v278
  %v445 = vpop.f32.mrb[0].mxu0
  %v446 = vadd.f32 0.0, %v445
  %v447 = vpop.f32.mrb[0].mxu0
  %448 = vmatprep.mubr.f32.mxu0 %v321
  %449 = vmatmul.mubr.f32.gmra.mrb[0].mxu0 %v280
  %v450 = vpop.f32.mrb[0].mxu0
  %v451 = vadd.f32 0.0, %v450
  %v452 = vpop.f32.mrb[0].mxu0
  %453 = vmatprep.mubr.f32.mxu0 %v324
  %454 = vmatmul.mubr.f32.gmra.mrb[0].mxu0 %v282
  %v455 = vpop.f32.mrb[0].mxu0
  %v456 = vadd.f32 0.0, %v455
  %v457 = vpop.f32.mrb[0].mxu0
  %458 = vmatprep.mubr.f32.mxu0 %v327
  %459 = vmatmul.mubr.f32.gmra.mrb[0].mxu0 %v284
  %v460 = vpop.f32.mrb[0].mxu0
  %v461 = vadd.f32 0.0, %v460
  %v462 = vpop.f32.mrb[0].mxu0
  %463 = vmatprep.mubr.f32.mxu0 %v330
  %464 = vmatmul.mubr.f32.gmra.mrb[0].mxu0 %v286
  %v465 = vpop.f32.mrb[0].mxu0
  %v466 = vadd.f32 0.0, %v465
  %v467 = vpop.f32.mrb[0].mxu0
  %468 = vmatprep.mubr.f32.mxu0 %v333
  %469 = vmatmul.mubr.f32.gmra.mrb[0].mxu0 %v288
  %v470 = vpop.f32.mrb[0].mxu0
  %v471 = vadd.f32 0.0, %v470
  %v472 = vpop.f32.mrb[0].mxu0
  %473 = vmatprep.mubr.f32.mxu0 %v336
  %474 = vmatmul.mubr.f32.gmra.mrb[0].mxu0 %v290
  %v475 = vpop.f32.mrb[0].mxu0
  %v476 = vadd.f32 0.0, %v475
  %v477 = vpop.f32.mrb[0].mxu0
  %478 = vmatprep.mubr.f32.mxu0 %v339
  %479 = vmatmul.mubr.f32.gmra.mrb[0].mxu0 %v292
  %v480 = vpop.f32.mrb[0].mxu0
  %v481 = vadd.f32 0.0, %v480
  %v482 = vpop.f32.mrb[0].mxu0
  %483 = vmatprep.mubr.f32.mxu0 %v342
  %484 = vmatmul.mubr.f32.gmra.mrb[0].mxu0 %v294
  %v485 = vpop.f32.mrb[0].mxu0
  %v486 = vadd.f32 0.0, %v485
  %v487 = vpop.f32.mrb[0].mxu0
  %488 = vdwg.mxu0
  %v489 = vmax.f32 %v185, %v411
  %v490 = vmax.f32 %v190, %v416
  %v491 = vmax.f32 %v195, %v421
  %v492 = vmax.f32 %v200, %v426
  %v493 = vmax.f32 %v205, %v431
  %v494 = vmax.f32 %v210, %v436
  %v495 = vmax.f32 %v215, %v441
  %v496 = vmax.f32 %v220, %v446
  %v497 = vmax.f32 %v225, %v451
  %v498 = vmax.f32 %v230, %v456
  %v499 = vmax.f32 %v235, %v461
  %v500 = vmax.f32 %v240, %v466
  %v501 = vmax.f32 %v245, %v471
  %v502 = vmax.f32 %v250, %v476
  %v503 = vmax.f32 %v255, %v481
  %v504 = vmax.f32 %v260, %v486
  %s505 = scalar_lea.vmem %s0, 512
  %v506 = vld [vmem:[%s505] sm:$0xff]
  %v507 = vld [vmem:[%s505 + $0x8] sm:$0xff]
  %v508 = vld [vmem:[%s505 + $0x10] sm:$0xff]
  %v509 = vld [vmem:[%s505 + $0x18] sm:$0xff]
  %v510 = vld [vmem:[%s505 + $0x20] sm:$0xff]
  %v511 = vld [vmem:[%s505 + $0x28] sm:$0xff]
  %v512 = vld [vmem:[%s505 + $0x30] sm:$0xff]
  %v513 = vld [vmem:[%s505 + $0x38] sm:$0xff]
  %v514 = vld [vmem:[%s505 + $0x40] sm:$0xff]
  %v515 = vld [vmem:[%s505 + $0x48] sm:$0xff]
  %v516 = vld [vmem:[%s505 + $0x50] sm:$0xff]
  %v517 = vld [vmem:[%s505 + $0x58] sm:$0xff]
  %v518 = vld [vmem:[%s505 + $0x60] sm:$0xff]
  %v519 = vld [vmem:[%s505 + $0x68] sm:$0xff]
  %v520 = vld [vmem:[%s505 + $0x70] sm:$0xff]
  %v521 = vld [vmem:[%s505 + $0x78] sm:$0xff]
  %v522 = vld [vmem:[%s505 + $0x80] sm:$0xff]
  %v523 = vld [vmem:[%s505 + $0x88] sm:$0xff]
  %v524 = vld [vmem:[%s505 + $0x90] sm:$0xff]
  %v525 = vld [vmem:[%s505 + $0x98] sm:$0xff]
  %v526 = vld [vmem:[%s505 + $0xa0] sm:$0xff]
  %v527 = vld [vmem:[%s505 + $0xa8] sm:$0xff]
  %v528 = vld [vmem:[%s505 + $0xb0] sm:$0xff]
  %v529 = vld [vmem:[%s505 + $0xb8] sm:$0xff]
  %v530 = vld [vmem:[%s505 + $0xc0] sm:$0xff]
  %v531 = vld [vmem:[%s505 + $0xc8] sm:$0xff]
  %v532 = vld [vmem:[%s505 + $0xd0] sm:$0xff]
  %v533 = vld [vmem:[%s505 + $0xd8] sm:$0xff]
  %v534 = vld [vmem:[%s505 + $0xe0] sm:$0xff]
  %v535 = vld [vmem:[%s505 + $0xe8] sm:$0xff]
  %v536 = vld [vmem:[%s505 + $0xf0] sm:$0xff]
  %v537 = vld [vmem:[%s505 + $0xf8] sm:$0xff]
  %v539 = vsel %vm65, %v507, 0
  %v542 = vsel %vm65, %v509, 0
  %v545 = vsel %vm65, %v511, 0
  %v548 = vsel %vm65, %v513, 0
  %v551 = vsel %vm65, %v515, 0
  %v554 = vsel %vm65, %v517, 0
  %v557 = vsel %vm65, %v519, 0
  %v560 = vsel %vm65, %v521, 0
  %v563 = vsel %vm65, %v523, 0
  %v566 = vsel %vm65, %v525, 0
  %v569 = vsel %vm65, %v527, 0
  %v572 = vsel %vm65, %v529, 0
  %v575 = vsel %vm65, %v531, 0
  %v578 = vsel %vm65, %v533, 0
  %v581 = vsel %vm65, %v535, 0
  %v584 = vsel %vm65, %v537, 0
  %586 = vmatprep.subr.mxu0 0.0
  %587 = vmatpush1.msra.mxu0 %v14
  %588 = vmatprep.subr.mxu0 0.0
  %589 = vmatpush1.msra.mxu0 %v15
  %590 = vmatprep.subr.mxu0 0.0
  %591 = vmatpush1.msra.mxu0 %v16
  %592 = vmatprep.subr.mxu0 0.0
  %593 = vmatpush1.msra.mxu0 %v17
  %594 = vmatprep.subr.mxu0 0.0
  %595 = vmatpush1.msra.mxu0 %v18
  %596 = vmatprep.subr.mxu0 0.0
  %597 = vmatpush1.msra.mxu0 %v19
  %598 = vmatprep.subr.mxu0 0.0
  %599 = vmatpush1.msra.mxu0 %v20
  %600 = vmatprep.subr.mxu0 0.0
  %601 = vmatpush1.msra.mxu0 %v21
  %602 = vmatprep.subr.mxu0 0.0
  %603 = vmatpush1.msra.mxu0 %v22
  %604 = vmatprep.subr.mxu0 0.0
  %605 = vmatpush1.msra.mxu0 %v23
  %606 = vmatprep.subr.mxu0 0.0
  %607 = vmatpush1.msra.mxu0 %v24
  %608 = vmatprep.subr.mxu0 0.0
  %609 = vmatpush1.msra.mxu0 %v25
  %610 = vmatprep.subr.mxu0 0.0
  %611 = vmatpush1.msra.mxu0 %v26
  %612 = vmatprep.subr.mxu0 0.0
  %613 = vmatpush1.msra.mxu0 %v27
  %614 = vmatprep.subr.mxu0 0.0
  %615 = vmatpush1.msra.mxu0 %v28
  %616 = vmatprep.subr.mxu0 0.0
  %617 = vmatpush1.msra.mxu0 %v29
  %618 = vmatprep.subr.mxu0 0.0
  %619 = vmatpush1.msra.mxu0 %v30
  %620 = vmatprep.subr.mxu0 0.0
  %621 = vmatpush1.msra.mxu0 %v31
  %622 = vmatprep.subr.mxu0 0.0
  %623 = vmatpush1.msra.mxu0 %v116
  %624 = vmatprep.subr.mxu0 0.0
  %625 = vmatpush1.msra.mxu0 0.0
  %626 = vmatprep.subr.mxu0 0.0
  %627 = vmatpush1.msra.mxu0 0.0
  %628 = vmatprep.subr.mxu0 0.0
  %629 = vmatpush1.msra.mxu0 0.0
  %630 = vmatprep.subr.mxu0 0.0
  %631 = vmatpush1.msra.mxu0 0.0
  %632 = vmatprep.subr.mxu0 0.0
  %633 = vmatpush1.msra.mxu0 0.0
  %634 = vmatprep.subr.mxu0 0.0
  %635 = vmatpush1.msra.mxu0 0.0
  %636 = vmatprep.subr.mxu0 0.0
  %637 = vmatpush1.msra.mxu0 0.0
  %638 = vmatprep.subr.mxu0 0.0
  %639 = vmatpush1.msra.mxu0 0.0
  %640 = vmatprep.subr.mxu0 0.0
  %641 = vmatpush1.msra.mxu0 0.0
  %642 = vmatprep.subr.mxu0 0.0
  %643 = vmatpush1.msra.mxu0 0.0
  %644 = vmatprep.subr.mxu0 0.0
  %645 = vmatpush1.msra.mxu0 0.0
  %646 = vmatprep.subr.mxu0 0.0
  %647 = vmatpush1.msra.mxu0 0.0
  %648 = vmatprep.subr.mxu0 0.0
  %649 = vmatpush1.msra.mxu0 0.0
  %650 = vmatprep.mubr.f32.mxu0 %v539
  %651 = vmatmul.mubr.f32.gmra.mrb[0].mxu0 %v506
  %v652 = vpop.f32.mrb[0].mxu0
  %v653 = vadd.f32 0.0, %v652
  %v654 = vpop.f32.mrb[0].mxu0
  %655 = vmatprep.mubr.f32.mxu0 %v542
  %656 = vmatmul.mubr.f32.gmra.mrb[0].mxu0 %v508
  %v657 = vpop.f32.mrb[0].mxu0
  %v658 = vadd.f32 0.0, %v657
  %v659 = vpop.f32.mrb[0].mxu0
  %660 = vmatprep.mubr.f32.mxu0 %v545
  %661 = vmatmul.mubr.f32.gmra.mrb[0].mxu0 %v510
  %v662 = vpop.f32.mrb[0].mxu0
  %v663 = vadd.f32 0.0, %v662
  %v664 = vpop.f32.mrb[0].mxu0
  %665 = vmatprep.mubr.f32.mxu0 %v548
  %666 = vmatmul.mubr.f32.gmra.mrb[0].mxu0 %v512
  %v667 = vpop.f32.mrb[0].mxu0
  %v668 = vadd.f32 0.0, %v667
  %v669 = vpop.f32.mrb[0].mxu0
  %670 = vmatprep.mubr.f32.mxu0 %v551
  %671 = vmatmul.mubr.f32.gmra.mrb[0].mxu0 %v514
  %v672 = vpop.f32.mrb[0].mxu0
  %v673 = vadd.f32 0.0, %v672
  %v674 = vpop.f32.mrb[0].mxu0
  %675 = vmatprep.mubr.f32.mxu0 %v554
  %676 = vmatmul.mubr.f32.gmra.mrb[0].mxu0 %v516
  %v677 = vpop.f32.mrb[0].mxu0
  %v678 = vadd.f32 0.0, %v677
  %v679 = vpop.f32.mrb[0].mxu0
  %680 = vmatprep.mubr.f32.mxu0 %v557
  %681 = vmatmul.mubr.f32.gmra.mrb[0].mxu0 %v518
  %v682 = vpop.f32.mrb[0].mxu0
  %v683 = vadd.f32 0.0, %v682
  %v684 = vpop.f32.mrb[0].mxu0
  %685 = vmatprep.mubr.f32.mxu0 %v560
  %686 = vmatmul.mubr.f32.gmra.mrb[0].mxu0 %v520
  %v687 = vpop.f32.mrb[0].mxu0
  %v688 = vadd.f32 0.0, %v687
  %v689 = vpop.f32.mrb[0].mxu0
  %690 = vmatprep.mubr.f32.mxu0 %v563
  %691 = vmatmul.mubr.f32.gmra.mrb[0].mxu0 %v522
  %v692 = vpop.f32.mrb[0].mxu0
  %v693 = vadd.f32 0.0, %v692
  %v694 = vpop.f32.mrb[0].mxu0
  %695 = vmatprep.mubr.f32.mxu0 %v566
  %696 = vmatmul.mubr.f32.gmra.mrb[0].mxu0 %v524
  %v697 = vpop.f32.mrb[0].mxu0
  %v698 = vadd.f32 0.0, %v697
  %v699 = vpop.f32.mrb[0].mxu0
  %700 = vmatprep.mubr.f32.mxu0 %v569
  %701 = vmatmul.mubr.f32.gmra.mrb[0].mxu0 %v526
  %v702 = vpop.f32.mrb[0].mxu0
  %v703 = vadd.f32 0.0, %v702
  %v704 = vpop.f32.mrb[0].mxu0
  %705 = vmatprep.mubr.f32.mxu0 %v572
  %706 = vmatmul.mubr.f32.gmra.mrb[0].mxu0 %v528
  %v707 = vpop.f32.mrb[0].mxu0
  %v708 = vadd.f32 0.0, %v707
  %v709 = vpop.f32.mrb[0].mxu0
  %710 = vmatprep.mubr.f32.mxu0 %v575
  %711 = vmatmul.mubr.f32.gmra.mrb[0].mxu0 %v530
  %v712 = vpop.f32.mrb[0].mxu0
  %v713 = vadd.f32 0.0, %v712
  %v714 = vpop.f32.mrb[0].mxu0
  %715 = vmatprep.mubr.f32.mxu0 %v578
  %716 = vmatmul.mubr.f32.gmra.mrb[0].mxu0 %v532
  %v717 = vpop.f32.mrb[0].mxu0
  %v718 = vadd.f32 0.0, %v717
  %v719 = vpop.f32.mrb[0].mxu0
  %720 = vmatprep.mubr.f32.mxu0 %v581
  %721 = vmatmul.mubr.f32.gmra.mrb[0].mxu0 %v534
  %v722 = vpop.f32.mrb[0].mxu0
  %v723 = vadd.f32 0.0, %v722
  %v724 = vpop.f32.mrb[0].mxu0
  %725 = vmatprep.mubr.f32.mxu0 %v584
  %726 = vmatmul.mubr.f32.gmra.mrb[0].mxu0 %v536
  %v727 = vpop.f32.mrb[0].mxu0
  %v728 = vadd.f32 0.0, %v727
  %v729 = vpop.f32.mrb[0].mxu0
  %730 = vdwg.mxu0
  %s731 = scalar_lea.vmem %s0, 768
  %v732 = vld [vmem:[%s731] sm:$0xff]
  %v733 = vld [vmem:[%s731 + $0x8] sm:$0xff]
  %v734 = vld [vmem:[%s731 + $0x10] sm:$0xff]
  %v735 = vld [vmem:[%s731 + $0x18] sm:$0xff]
  %v736 = vld [vmem:[%s731 + $0x20] sm:$0xff]
  %v737 = vld [vmem:[%s731 + $0x28] sm:$0xff]
  %v738 = vld [vmem:[%s731 + $0x30] sm:$0xff]
  %v739 = vld [vmem:[%s731 + $0x38] sm:$0xff]
  %v740 = vld [vmem:[%s731 + $0x40] sm:$0xff]
  %v741 = vld [vmem:[%s731 + $0x48] sm:$0xff]
  %v742 = vld [vmem:[%s731 + $0x50] sm:$0xff]
  %v743 = vld [vmem:[%s731 + $0x58] sm:$0xff]
  %v744 = vld [vmem:[%s731 + $0x60] sm:$0xff]
  %v745 = vld [vmem:[%s731 + $0x68] sm:$0xff]
  %v746 = vld [vmem:[%s731 + $0x70] sm:$0xff]
  %v747 = vld [vmem:[%s731 + $0x78] sm:$0xff]
  %v748 = vld [vmem:[%s731 + $0x80] sm:$0xff]
  %v749 = vld [vmem:[%s731 + $0x88] sm:$0xff]
  %v750 = vld [vmem:[%s731 + $0x90] sm:$0xff]
  %v751 = vld [vmem:[%s731 + $0x98] sm:$0xff]
  %v752 = vld [vmem:[%s731 + $0xa0] sm:$0xff]
  %v753 = vld [vmem:[%s731 + $0xa8] sm:$0xff]
  %v754 = vld [vmem:[%s731 + $0xb0] sm:$0xff]
  %v755 = vld [vmem:[%s731 + $0xb8] sm:$0xff]
  %v756 = vld [vmem:[%s731 + $0xc0] sm:$0xff]
  %v757 = vld [vmem:[%s731 + $0xc8] sm:$0xff]
  %v758 = vld [vmem:[%s731 + $0xd0] sm:$0xff]
  %v759 = vld [vmem:[%s731 + $0xd8] sm:$0xff]
  %v760 = vld [vmem:[%s731 + $0xe0] sm:$0xff]
  %v761 = vld [vmem:[%s731 + $0xe8] sm:$0xff]
  %v762 = vld [vmem:[%s731 + $0xf0] sm:$0xff]
  %v763 = vld [vmem:[%s731 + $0xf8] sm:$0xff]
  %v765 = vsel %vm65, %v733, 0
  %v768 = vsel %vm65, %v735, 0
  %v771 = vsel %vm65, %v737, 0
  %v774 = vsel %vm65, %v739, 0
  %v777 = vsel %vm65, %v741, 0
  %v780 = vsel %vm65, %v743, 0
  %v783 = vsel %vm65, %v745, 0
  %v786 = vsel %vm65, %v747, 0
  %v789 = vsel %vm65, %v749, 0
  %v792 = vsel %vm65, %v751, 0
  %v795 = vsel %vm65, %v753, 0
  %v798 = vsel %vm65, %v755, 0
  %v801 = vsel %vm65, %v757, 0
  %v804 = vsel %vm65, %v759, 0
  %v807 = vsel %vm65, %v761, 0
  %v810 = vsel %vm65, %v763, 0
  %812 = vmatprep.subr.mxu0 0.0
  %813 = vmatpush1.msra.mxu0 %v14
  %814 = vmatprep.subr.mxu0 0.0
  %815 = vmatpush1.msra.mxu0 %v15
  %816 = vmatprep.subr.mxu0 0.0
  %817 = vmatpush1.msra.mxu0 %v16
  %818 = vmatprep.subr.mxu0 0.0
  %819 = vmatpush1.msra.mxu0 %v17
  %820 = vmatprep.subr.mxu0 0.0
  %821 = vmatpush1.msra.mxu0 %v18
  %822 = vmatprep.subr.mxu0 0.0
  %823 = vmatpush1.msra.mxu0 %v19
  %824 = vmatprep.subr.mxu0 0.0
  %825 = vmatpush1.msra.mxu0 %v20
  %826 = vmatprep.subr.mxu0 0.0
  %827 = vmatpush1.msra.mxu0 %v21
  %828 = vmatprep.subr.mxu0 0.0
  %829 = vmatpush1.msra.mxu0 %v22
  %830 = vmatprep.subr.mxu0 0.0
  %831 = vmatpush1.msra.mxu0 %v23
  %832 = vmatprep.subr.mxu0 0.0
  %833 = vmatpush1.msra.mxu0 %v24
  %834 = vmatprep.subr.mxu0 0.0
  %835 = vmatpush1.msra.mxu0 %v25
  %836 = vmatprep.subr.mxu0 0.0
  %837 = vmatpush1.msra.mxu0 %v26
  %838 = vmatprep.subr.mxu0 0.0
  %839 = vmatpush1.msra.mxu0 %v27
  %840 = vmatprep.subr.mxu0 0.0
  %841 = vmatpush1.msra.mxu0 %v28
  %842 = vmatprep.subr.mxu0 0.0
  %843 = vmatpush1.msra.mxu0 %v29
  %844 = vmatprep.subr.mxu0 0.0
  %845 = vmatpush1.msra.mxu0 %v30
  %846 = vmatprep.subr.mxu0 0.0
  %847 = vmatpush1.msra.mxu0 %v31
  %848 = vmatprep.subr.mxu0 0.0
  %849 = vmatpush1.msra.mxu0 %v116
  %850 = vmatprep.subr.mxu0 0.0
  %851 = vmatpush1.msra.mxu0 0.0
  %852 = vmatprep.subr.mxu0 0.0
  %853 = vmatpush1.msra.mxu0 0.0
  %854 = vmatprep.subr.mxu0 0.0
  %855 = vmatpush1.msra.mxu0 0.0
  %856 = vmatprep.subr.mxu0 0.0
  %857 = vmatpush1.msra.mxu0 0.0
  %858 = vmatprep.subr.mxu0 0.0
  %859 = vmatpush1.msra.mxu0 0.0
  %860 = vmatprep.subr.mxu0 0.0
  %861 = vmatpush1.msra.mxu0 0.0
  %862 = vmatprep.subr.mxu0 0.0
  %863 = vmatpush1.msra.mxu0 0.0
  %864 = vmatprep.subr.mxu0 0.0
  %865 = vmatpush1.msra.mxu0 0.0
  %866 = vmatprep.subr.mxu0 0.0
  %867 = vmatpush1.msra.mxu0 0.0
  %868 = vmatprep.subr.mxu0 0.0
  %869 = vmatpush1.msra.mxu0 0.0
  %870 = vmatprep.subr.mxu0 0.0
  %871 = vmatpush1.msra.mxu0 0.0
  %872 = vmatprep.subr.mxu0 0.0
  %873 = vmatpush1.msra.mxu0 0.0
  %874 = vmatprep.subr.mxu0 0.0
  %875 = vmatpush1.msra.mxu0 0.0
  %876 = vmatprep.mubr.f32.mxu0 %v765
  %877 = vmatmul.mubr.f32.gmra.mrb[0].mxu0 %v732
  %v878 = vpop.f32.mrb[0].mxu0
  %v879 = vadd.f32 0.0, %v878
  %v880 = vpop.f32.mrb[0].mxu0
  %881 = vmatprep.mubr.f32.mxu0 %v768
  %882 = vmatmul.mubr.f32.gmra.mrb[0].mxu0 %v734
  %v883 = vpop.f32.mrb[0].mxu0
  %v884 = vadd.f32 0.0, %v883
  %v885 = vpop.f32.mrb[0].mxu0
  %886 = vmatprep.mubr.f32.mxu0 %v771
  %887 = vmatmul.mubr.f32.gmra.mrb[0].mxu0 %v736
  %v888 = vpop.f32.mrb[0].mxu0
  %v889 = vadd.f32 0.0, %v888
  %v890 = vpop.f32.mrb[0].mxu0
  %891 = vmatprep.mubr.f32.mxu0 %v774
  %892 = vmatmul.mubr.f32.gmra.mrb[0].mxu0 %v738
  %v893 = vpop.f32.mrb[0].mxu0
  %v894 = vadd.f32 0.0, %v893
  %v895 = vpop.f32.mrb[0].mxu0
  %896 = vmatprep.mubr.f32.mxu0 %v777
  %897 = vmatmul.mubr.f32.gmra.mrb[0].mxu0 %v740
  %v898 = vpop.f32.mrb[0].mxu0
  %v899 = vadd.f32 0.0, %v898
  %v900 = vpop.f32.mrb[0].mxu0
  %901 = vmatprep.mubr.f32.mxu0 %v780
  %902 = vmatmul.mubr.f32.gmra.mrb[0].mxu0 %v742
  %v903 = vpop.f32.mrb[0].mxu0
  %v904 = vadd.f32 0.0, %v903
  %v905 = vpop.f32.mrb[0].mxu0
  %906 = vmatprep.mubr.f32.mxu0 %v783
  %907 = vmatmul.mubr.f32.gmra.mrb[0].mxu0 %v744
  %v908 = vpop.f32.mrb[0].mxu0
  %v909 = vadd.f32 0.0, %v908
  %v910 = vpop.f32.mrb[0].mxu0
  %911 = vmatprep.mubr.f32.mxu0 %v786
  %912 = vmatmul.mubr.f32.gmra.mrb[0].mxu0 %v746
  %v913 = vpop.f32.mrb[0].mxu0
  %v914 = vadd.f32 0.0, %v913
  %v915 = vpop.f32.mrb[0].mxu0
  %916 = vmatprep.mubr.f32.mxu0 %v789
  %917 = vmatmul.mubr.f32.gmra.mrb[0].mxu0 %v748
  %v918 = vpop.f32.mrb[0].mxu0
  %v919 = vadd.f32 0.0, %v918
  %v920 = vpop.f32.mrb[0].mxu0
  %921 = vmatprep.mubr.f32.mxu0 %v792
  %922 = vmatmul.mubr.f32.gmra.mrb[0].mxu0 %v750
  %v923 = vpop.f32.mrb[0].mxu0
  %v924 = vadd.f32 0.0, %v923
  %v925 = vpop.f32.mrb[0].mxu0
  %926 = vmatprep.mubr.f32.mxu0 %v795
  %927 = vmatmul.mubr.f32.gmra.mrb[0].mxu0 %v752
  %v928 = vpop.f32.mrb[0].mxu0
  %v929 = vadd.f32 0.0, %v928
  %v930 = vpop.f32.mrb[0].mxu0
  %931 = vmatprep.mubr.f32.mxu0 %v798
  %932 = vmatmul.mubr.f32.gmra.mrb[0].mxu0 %v754
  %v933 = vpop.f32.mrb[0].mxu0
  %v934 = vadd.f32 0.0, %v933
  %v935 = vpop.f32.mrb[0].mxu0
  %936 = vmatprep.mubr.f32.mxu0 %v801
  %937 = vmatmul.mubr.f32.gmra.mrb[0].mxu0 %v756
  %v938 = vpop.f32.mrb[0].mxu0
  %v939 = vadd.f32 0.0, %v938
  %v940 = vpop.f32.mrb[0].mxu0
  %941 = vmatprep.mubr.f32.mxu0 %v804
  %942 = vmatmul.mubr.f32.gmra.mrb[0].mxu0 %v758
  %v943 = vpop.f32.mrb[0].mxu0
  %v944 = vadd.f32 0.0, %v943
  %v945 = vpop.f32.mrb[0].mxu0
  %946 = vmatprep.mubr.f32.mxu0 %v807
  %947 = vmatmul.mubr.f32.gmra.mrb[0].mxu0 %v760
  %v948 = vpop.f32.mrb[0].mxu0
  %v949 = vadd.f32 0.0, %v948
  %v950 = vpop.f32.mrb[0].mxu0
  %951 = vmatprep.mubr.f32.mxu0 %v810
  %952 = vmatmul.mubr.f32.gmra.mrb[0].mxu0 %v762
  %v953 = vpop.f32.mrb[0].mxu0
  %v954 = vadd.f32 0.0, %v953
  %v955 = vpop.f32.mrb[0].mxu0
  %956 = vdwg.mxu0
  %v957 = vmax.f32 %v653, %v879
  %v958 = vmax.f32 %v658, %v884
  %v959 = vmax.f32 %v663, %v889
  %v960 = vmax.f32 %v668, %v894
  %v961 = vmax.f32 %v673, %v899
  %v962 = vmax.f32 %v678, %v904
  %v963 = vmax.f32 %v683, %v909
  %v964 = vmax.f32 %v688, %v914
  %v965 = vmax.f32 %v693, %v919
  %v966 = vmax.f32 %v698, %v924
  %v967 = vmax.f32 %v703, %v929
  %v968 = vmax.f32 %v708, %v934
  %v969 = vmax.f32 %v713, %v939
  %v970 = vmax.f32 %v718, %v944
  %v971 = vmax.f32 %v723, %v949
  %v972 = vmax.f32 %v728, %v954
  %v973 = vmax.f32 %v489, %v957
  %v974 = vmax.f32 %v490, %v958
  %v975 = vmax.f32 %v491, %v959
  %v976 = vmax.f32 %v492, %v960
  %v977 = vmax.f32 %v493, %v961
  %v978 = vmax.f32 %v494, %v962
  %v979 = vmax.f32 %v495, %v963
  %v980 = vmax.f32 %v496, %v964
  %v981 = vmax.f32 %v497, %v965
  %v982 = vmax.f32 %v498, %v966
  %v983 = vmax.f32 %v499, %v967
  %v984 = vmax.f32 %v500, %v968
  %v985 = vmax.f32 %v501, %v969
  %v986 = vmax.f32 %v502, %v970
  %v987 = vmax.f32 %v503, %v971
  %v988 = vmax.f32 %v504, %v972
  %v989 = vld [vmem:[%s2] sm:$0x1]
  %v991 = vlaneseq
  %v992 = vshrl.u32 %v991, 7
  %v993 = vsub.s32 0, %v992
  %v994 = vrot.slane %v989, %v993
  %v996 = vadd.f32 %v973, %v994
  %v997 = vadd.f32 %v974, %v994
  %v998 = vadd.f32 %v975, %v994
  %v999 = vadd.f32 %v976, %v994
  %v1000 = vadd.f32 %v977, %v994
  %v1001 = vadd.f32 %v978, %v994
  %v1002 = vadd.f32 %v979, %v994
  %v1003 = vadd.f32 %v980, %v994
  %v1004 = vadd.f32 %v981, %v994
  %v1005 = vadd.f32 %v982, %v994
  %v1006 = vadd.f32 %v983, %v994
  %v1007 = vadd.f32 %v984, %v994
  %v1008 = vadd.f32 %v985, %v994
  %v1009 = vadd.f32 %v986, %v994
  %v1010 = vadd.f32 %v987, %v994
  %v1011 = vadd.f32 %v988, %v994
  %v1012 = vmax.f32 %v996, 0.0
  %v1013 = vmax.f32 %v997, 0.0
  %v1014 = vmax.f32 %v998, 0.0
  %v1015 = vmax.f32 %v999, 0.0
  %v1016 = vmax.f32 %v1000, 0.0
  %v1017 = vmax.f32 %v1001, 0.0
  %v1018 = vmax.f32 %v1002, 0.0
  %v1019 = vmax.f32 %v1003, 0.0
  %v1020 = vmax.f32 %v1004, 0.0
  %v1021 = vmax.f32 %v1005, 0.0
  %v1022 = vmax.f32 %v1006, 0.0
  %v1023 = vmax.f32 %v1007, 0.0
  %v1024 = vmax.f32 %v1008, 0.0
  %v1025 = vmax.f32 %v1009, 0.0
  %v1026 = vmax.f32 %v1010, 0.0
  %v1027 = vmax.f32 %v1011, 0.0
  %1028 = vst [vmem:[%s3] sm:$0xff] %v1012
  %1029 = vst [vmem:[%s3 + $0x8] sm:$0xff] %v1013
  %1030 = vst [vmem:[%s3 + $0x10] sm:$0xff] %v1014
  %1031 = vst [vmem:[%s3 + $0x18] sm:$0xff] %v1015
  %1032 = vst [vmem:[%s3 + $0x20] sm:$0xff] %v1016
  %1033 = vst [vmem:[%s3 + $0x28] sm:$0xff] %v1017
  %1034 = vst [vmem:[%s3 + $0x30] sm:$0xff] %v1018
  %1035 = vst [vmem:[%s3 + $0x38] sm:$0xff] %v1019
  %1036 = vst [vmem:[%s3 + $0x40] sm:$0xff] %v1020
  %1037 = vst [vmem:[%s3 + $0x48] sm:$0xff] %v1021
  %1038 = vst [vmem:[%s3 + $0x50] sm:$0xff] %v1022
  %1039 = vst [vmem:[%s3 + $0x58] sm:$0xff] %v1023
  %1040 = vst [vmem:[%s3 + $0x60] sm:$0xff] %v1024
  %1041 = vst [vmem:[%s3 + $0x68] sm:$0xff] %v1025
  %1042 = vst [vmem:[%s3 + $0x70] sm:$0xff] %v1026
  %1043 = vst [vmem:[%s3 + $0x78] sm:$0xff] %v1027
  // Predicated region
  $region14: #{net_forward.4} parent=0 // pred_check
    _
  $region15: #{net_forward.4} parent=0 // pred_check_branch
    %1045 = sbr.rel (0) target = $region17
  $region16: #{net_forward.4} parent=0 // pred_region
    _
  $region17: #{net_forward.4} parent=0 // pred_fallthru
    _
  // Predicated region
  $region18: #{net_forward.4} parent=0 // pred_check
    _
  $region19: #{net_forward.4} parent=0 // pred_check_branch
    %1047 = sbr.rel (0) target = $region21
  $region20: #{net_forward.4} parent=0 // pred_region
    _
  $region21: #{net_forward.4} parent=0 // pred_fallthru
    _

// kernel: net_forward.5
$region0: #{net_forward.5}
  #allocation0 [shape = 'u32[]', space=smem, size = 0x4, offset = 0x4, fixed_abs, tag = 'smem constant byte address 0x4 - core index']
  #allocation1 [shape = 'u32[144,128]{1,0:T(1,128)}', space=vmem, size = 0x12000, scoped, tag = 'internal scratch']
  %s0 = inlined_call_operand.vmem [shape: f32[8,256], index: 0, kind: input, shape index: {}]
  %s1 = inlined_call_operand.vmem [shape: f32[256,128], index: 1, kind: input, shape index: {}]
  %s2 = inlined_call_operand.vmem [shape: f32[1,128], index: 2, kind: input, shape index: {}]
  %s3 = inlined_call_operand.vmem [shape: f32[8,128], index: 3, kind: output, shape index: {}]
  %s4 = sld [smem:[#allocation0]]
  $region22: #{net_forward.5} parent=0
    _
  %s6 = ssub.s32 1, %s4
  %s7 = scalar_select 0, %s6, %s4
  // Predicated region
  $region2: #{net_forward.5} parent=0 // pred_check
    _
  $region3: #{net_forward.5} parent=0 // pred_check_branch
    %9 = sbr.rel (0) target = $region5
  $region4: #{net_forward.5} parent=0 // pred_region
    _
  $region5: #{net_forward.5} parent=0 // pred_fallthru
    _
  // Predicated region
  $region6: #{net_forward.5} parent=0 // pred_check
    _
  $region7: #{net_forward.5} parent=0 // pred_check_branch
    %11 = sbr.rel (0) target = $region9
  $region8: #{net_forward.5} parent=0 // pred_region
    _
  $region9: #{net_forward.5} parent=0 // pred_fallthru
    _
  // Predicated region
  $region10: #{net_forward.5} parent=0 // pred_check
    _
  $region11: #{net_forward.5} parent=0 // pred_check_branch
    %13 = sbr.rel (0) target = $region13
  $region12: #{net_forward.5} parent=0 // pred_region
    _
  $region13: #{net_forward.5} parent=0 // pred_fallthru
    _
  %v14 = vld [vmem:[%s0] sm:$0xff]
  %v15 = vld [vmem:[%s0 + $0x8] sm:$0xff]
  %v16 = vld [vmem:[%s1] sm:$0xff]
  %v17 = vld [vmem:[%s1 + $0x8] sm:$0xff]
  %v18 = vld [vmem:[%s1 + $0x10] sm:$0xff]
  %v19 = vld [vmem:[%s1 + $0x18] sm:$0xff]
  %v20 = vld [vmem:[%s1 + $0x20] sm:$0xff]
  %v21 = vld [vmem:[%s1 + $0x28] sm:$0xff]
  %v22 = vld [vmem:[%s1 + $0x30] sm:$0xff]
  %v23 = vld [vmem:[%s1 + $0x38] sm:$0xff]
  %v24 = vld [vmem:[%s1 + $0x40] sm:$0xff]
  %v25 = vld [vmem:[%s1 + $0x48] sm:$0xff]
  %v26 = vld [vmem:[%s1 + $0x50] sm:$0xff]
  %v27 = vld [vmem:[%s1 + $0x58] sm:$0xff]
  %v28 = vld [vmem:[%s1 + $0x60] sm:$0xff]
  %v29 = vld [vmem:[%s1 + $0x68] sm:$0xff]
  %v30 = vld [vmem:[%s1 + $0x70] sm:$0xff]
  %v31 = vld [vmem:[%s1 + $0x78] sm:$0xff]
  %v32 = vld [vmem:[%s1 + $0x80] sm:$0xff]
  %v33 = vld [vmem:[%s1 + $0x88] sm:$0xff]
  %v34 = vld [vmem:[%s1 + $0x90] sm:$0xff]
  %v35 = vld [vmem:[%s1 + $0x98] sm:$0xff]
  %v36 = vld [vmem:[%s1 + $0xa0] sm:$0xff]
  %v37 = vld [vmem:[%s1 + $0xa8] sm:$0xff]
  %v38 = vld [vmem:[%s1 + $0xb0] sm:$0xff]
  %v39 = vld [vmem:[%s1 + $0xb8] sm:$0xff]
  %v40 = vld [vmem:[%s1 + $0xc0] sm:$0xff]
  %v41 = vld [vmem:[%s1 + $0xc8] sm:$0xff]
  %v42 = vld [vmem:[%s1 + $0xd0] sm:$0xff]
  %v43 = vld [vmem:[%s1 + $0xd8] sm:$0xff]
  %v44 = vld [vmem:[%s1 + $0xe0] sm:$0xff]
  %v45 = vld [vmem:[%s1 + $0xe8] sm:$0xff]
  %v46 = vld [vmem:[%s1 + $0xf0] sm:$0xff]
  %v47 = vld [vmem:[%s1 + $0xf8] sm:$0xff]
  %v48 = vld [vmem:[%s2] sm:$0x1]
  %v50 = vlaneseq
  %v51 = vshrl.u32 %v50, 7
  %v52 = vsub.s32 0, %v51
  %v53 = vrot.slane %v48, %v52
  %55 = vmatprep.subr.mxu0 0.0
  %56 = vmatpush1.msra.mxu0 %v16
  %57 = vmatprep.subr.mxu0 0.0
  %58 = vmatpush1.msra.mxu0 %v17
  %59 = vmatprep.subr.mxu0 0.0
  %60 = vmatpush1.msra.mxu0 %v18
  %61 = vmatprep.subr.mxu0 0.0
  %62 = vmatpush1.msra.mxu0 %v19
  %63 = vmatprep.subr.mxu0 0.0
  %64 = vmatpush1.msra.mxu0 %v20
  %65 = vmatprep.subr.mxu0 0.0
  %66 = vmatpush1.msra.mxu0 %v21
  %67 = vmatprep.subr.mxu0 0.0
  %68 = vmatpush1.msra.mxu0 %v22
  %69 = vmatprep.subr.mxu0 0.0
  %70 = vmatpush1.msra.mxu0 %v23
  %71 = vmatprep.subr.mxu0 0.0
  %72 = vmatpush1.msra.mxu0 %v24
  %73 = vmatprep.subr.mxu0 0.0
  %74 = vmatpush1.msra.mxu0 %v25
  %75 = vmatprep.subr.mxu0 0.0
  %76 = vmatpush1.msra.mxu0 %v26
  %77 = vmatprep.subr.mxu0 0.0
  %78 = vmatpush1.msra.mxu0 %v27
  %79 = vmatprep.subr.mxu0 0.0
  %80 = vmatpush1.msra.mxu0 %v28
  %81 = vmatprep.subr.mxu0 0.0
  %82 = vmatpush1.msra.mxu0 %v29
  %83 = vmatprep.subr.mxu0 0.0
  %84 = vmatpush1.msra.mxu0 %v30
  %85 = vmatprep.subr.mxu0 0.0
  %86 = vmatpush1.msra.mxu0 %v31
  %87 = vmatprep.subr.mxu0 0.0
  %88 = vmatpush1.msra.mxu0 %v32
  %89 = vmatprep.subr.mxu0 0.0
  %90 = vmatpush1.msra.mxu0 %v33
  %91 = vmatprep.subr.mxu0 0.0
  %92 = vmatpush1.msra.mxu0 %v34
  %93 = vmatprep.subr.mxu0 0.0
  %94 = vmatpush1.msra.mxu0 %v35
  %95 = vmatprep.subr.mxu0 0.0
  %96 = vmatpush1.msra.mxu0 %v36
  %97 = vmatprep.subr.mxu0 0.0
  %98 = vmatpush1.msra.mxu0 %v37
  %99 = vmatprep.subr.mxu0 0.0
  %100 = vmatpush1.msra.mxu0 %v38
  %101 = vmatprep.subr.mxu0 0.0
  %102 = vmatpush1.msra.mxu0 %v39
  %103 = vmatprep.subr.mxu0 0.0
  %104 = vmatpush1.msra.mxu0 %v40
  %105 = vmatprep.subr.mxu0 0.0
  %106 = vmatpush1.msra.mxu0 %v41
  %107 = vmatprep.subr.mxu0 0.0
  %108 = vmatpush1.msra.mxu0 %v42
  %109 = vmatprep.subr.mxu0 0.0
  %110 = vmatpush1.msra.mxu0 %v43
  %111 = vmatprep.subr.mxu0 0.0
  %112 = vmatpush1.msra.mxu0 %v44
  %113 = vmatprep.subr.mxu0 0.0
  %114 = vmatpush1.msra.mxu0 %v45
  %115 = vmatprep.subr.mxu0 0.0
  %116 = vmatpush1.msra.mxu0 %v46
  %117 = vmatprep.subr.mxu0 0.0
  %118 = vmatpush1.msra.mxu0 %v47
  %119 = vmatprep.mubr.f32.mxu0 %v15
  %120 = vmatmul.mubr.f32.gmra.mrb[0].mxu0 %v14
  %v121 = vpop.f32.mrb[0].mxu0
  %v122 = vadd.f32 %v53, %v121
  %v123 = vpop.f32.mrb[0].mxu0
  %124 = vdwg.mxu0
  %125 = vst [vmem:[%s3] sm:$0xff] %v122
  // Predicated region
  $region14: #{net_forward.5} parent=0 // pred_check
    _
  $region15: #{net_forward.5} parent=0 // pred_check_branch
    %127 = sbr.rel (0) target = $region17
  $region16: #{net_forward.5} parent=0 // pred_region
    _
  $region17: #{net_forward.5} parent=0 // pred_fallthru
    _
  // Predicated region
  $region18: #{net_forward.5} parent=0 // pred_check
    _
  $region19: #{net_forward.5} parent=0 // pred_check_branch
    %129 = sbr.rel (0) target = $region21
  $region20: #{net_forward.5} parent=0 // pred_region
    _
  $region21: #{net_forward.5} parent=0 // pred_fallthru
    _

</llo_original>
